<compile_context>
chip_gen: v6e
topology: v6e:2x2x1
jax: 0.10.0
libtpu: 0.0.40
codegen_flags: <defaults>
</compile_context>

<pallas_src>
import jax
import jax.numpy as jnp
from jax.experimental import pallas as pl
from jax.experimental.pallas import tpu as pltpu


_LANES = 512  # lane-dense reduction width (multiple of 128)


def _cparams(n_axes=1):
    return pltpu.CompilerParams(
        dimension_semantics=("parallel",) * n_axes,
        vmem_limit_bytes=48 * 1024 * 1024,
    )


# ------------------------------ fused gradient penalty -----------------------------
def _make_grad_penalty_kernel(H, W):
    """Per plane: Sobel-X / Sobel-Y of zero-padded pred & target (separable taps),
    reduced to 4 scalars: sum|dpx-dgx|, sum|dpy-dgy|, sum|dpx|, sum|dpy|."""

    def kernel(xp_ref, tp_ref, dx_ref, dy_ref, ax_ref, ay_ref):
        xp = xp_ref[0].astype(jnp.float32)   # (H+2, W+2), zero padded
        tp = tp_ref[0].astype(jnp.float32)

        def vsmooth(a):   # [1, 2, 1] along rows
            return a[0:H, :] + 2.0 * a[1:H + 1, :] + a[2:H + 2, :]

        def vdiff(a):     # [-1, 0, 1] along rows
            return a[2:H + 2, :] - a[0:H, :]

        def hsmooth(a):   # [1, 2, 1] along cols
            return a[:, 0:W] + 2.0 * a[:, 1:W + 1] + a[:, 2:W + 2]

        def hdiff(a):     # [-1, 0, 1] along cols
            return a[:, 2:W + 2] - a[:, 0:W]

        dpx = hdiff(vsmooth(xp))   # Sobel-X on pred
        dgx = hdiff(vsmooth(tp))   # Sobel-X on target
        dpy = hsmooth(vdiff(xp))   # Sobel-Y on pred
        dgy = hsmooth(vdiff(tp))   # Sobel-Y on target

        dx_ref[0] = jnp.sum(jnp.abs(dpx - dgx), keepdims=True)
        dy_ref[0] = jnp.sum(jnp.abs(dpy - dgy), keepdims=True)
        ax_ref[0] = jnp.sum(jnp.abs(dpx), keepdims=True)
        ay_ref[0] = jnp.sum(jnp.abs(dpy), keepdims=True)

    return kernel


def _grad_penalty_sums(pred_planes, tgt_planes):
    """pred/tgt planes: (P, H, W).  Returns four scalar sums."""
    P, H, W = pred_planes.shape
    pp = jnp.pad(pred_planes, ((0, 0), (1, 1), (1, 1)))   # zero pad (conv2d padding=1)
    tp = jnp.pad(tgt_planes, ((0, 0), (1, 1), (1, 1)))
    in_spec = pl.BlockSpec((1, H + 2, W + 2), lambda p: (p, 0, 0))
    out_spec = pl.BlockSpec((1, 1, 1), lambda p: (p, 0, 0))
    outs = pl.pallas_call(
        _make_grad_penalty_kernel(H, W),
        out_shape=tuple(jax.ShapeDtypeStruct((P, 1, 1), jnp.float32) for _ in range(4)),
        grid=(P,),
        in_specs=[in_spec, in_spec],
        out_specs=(out_spec,) * 4,
        compiler_params=_cparams(),
    )(pp, tp)
    return tuple(jnp.sum(o) for o in outs)


# ---------------------------- polyphase gauss downsample ---------------------------
def _make_gauss_down_kernel(h, w):
    k1, k4, k6 = 1.0 / 16.0, 4.0 / 16.0, 6.0 / 16.0

    def kernel(a_ref, b_ref, c_ref, d_ref, o_ref):
        A = a_ref[0].astype(jnp.float32)  # (even rows, even cols) of reflect-padded plane
        B = b_ref[0].astype(jnp.float32)  # (even rows, odd cols)
        C = c_ref[0].astype(jnp.float32)  # (odd rows,  even cols)
        D = d_ref[0].astype(jnp.float32)  # (odd rows,  odd cols)
        # vertical (already decimated): ge=[1,6,1]/16 on even-row phases, go=[4,4]/16 on odd
        ve = (A[0:h] + A[2:h + 2]) * k1 + A[1:h + 1] * k6 + (C[0:h] + C[1:h + 1]) * k4
        vo = (B[0:h] + B[2:h + 2]) * k1 + B[1:h + 1] * k6 + (D[0:h] + D[1:h + 1]) * k4
        # horizontal (already decimated)
        out = ((ve[:, 0:w] + ve[:, 2:w + 2]) * k1 + ve[:, 1:w + 1] * k6
               + (vo[:, 0:w] + vo[:, 1:w + 1]) * k4)
        o_ref[0] = out.astype(o_ref.dtype)

    return kernel


def gauss_downsample_planes(x):
    """x: (P, H, W) with H, W even.  Returns gauss5x5(reflect_pad2(x))[:, ::2, ::2]."""
    P, H, W = x.shape
    h, w = H // 2, W // 2
    xp = jnp.pad(x, ((0, 0), (2, 2), (2, 2)), mode="reflect")
    phases = [xp[:, a::2, b::2] for a in (0, 1) for b in (0, 1)]  # each (P, h+2, w+2)
    in_spec = pl.BlockSpec((1, h + 2, w + 2), lambda p: (p, 0, 0))
    return pl.pallas_call(
        _make_gauss_down_kernel(h, w),
        out_shape=jax.ShapeDtypeStruct((P, h, w), jnp.float32),
        grid=(P,),
        in_specs=[in_spec] * 4,
        out_specs=pl.BlockSpec((1, h, w), lambda p: (p, 0, 0)),
        compiler_params=_cparams(),
    )(*phases)


# --------------------------- fused laplacian level loss ----------------------------
def _make_lap_level_kernel(h, w):
    """Per plane: sum | (cur_pred - cur_true) - upsample(down_pred - down_true) |,
    with upsample (zero-insert*4 + reflect-pad-2 + 5x5 gauss) evaluated in polyphase
    form: 1-D phase filters [1,6,1]/8 (even phase) and [4,4]/8 (odd phase) applied to
    the custom-padded low-res difference."""

    def kernel(c00_ref, c01_ref, c10_ref, c11_ref, dd_ref, o_ref):
        dd = dd_ref[0].astype(jnp.float32)                       # (h+2, w+2)
        v0 = dd[0:h] * 0.125 + dd[1:h + 1] * 0.75 + dd[2:h + 2] * 0.125   # even row phase
        v1 = (dd[1:h + 1] + dd[2:h + 2]) * 0.5                            # odd row phase

        def hz0(v):
            return v[:, 0:w] * 0.125 + v[:, 1:w + 1] * 0.75 + v[:, 2:w + 2] * 0.125

        def hz1(v):
            return (v[:, 1:w + 1] + v[:, 2:w + 2]) * 0.5

        s = jnp.sum(jnp.abs(c00_ref[0].astype(jnp.float32) - hz0(v0)), keepdims=True)
        s = s + jnp.sum(jnp.abs(c01_ref[0].astype(jnp.float32) - hz1(v0)), keepdims=True)
        s = s + jnp.sum(jnp.abs(c10_ref[0].astype(jnp.float32) - hz0(v1)), keepdims=True)
        s = s + jnp.sum(jnp.abs(c11_ref[0].astype(jnp.float32) - hz1(v1)), keepdims=True)
        o_ref[0] = s

    return kernel


def _upsample_pad(x):
    """Pad (P, h, w) by 1 with the samples the reflect-padded zero-interleaved upsample
    actually reads: leading pad = row/col index 1, trailing pad = last row/col."""
    x = jnp.concatenate([x[:, 1:2, :], x, x[:, -1:, :]], axis=1)
    x = jnp.concatenate([x[:, :, 1:2], x, x[:, :, -1:]], axis=2)
    return x


def _laplacian_level_sum(cur_diff, down_diff):
    """cur_diff: (P, H, W) with H, W even; down_diff: (P, H//2, W//2)."""
    P, H, W = cur_diff.shape
    h, w = H // 2, W // 2
    phases = [cur_diff[:, a::2, b::2] for a in (0, 1) for b in (0, 1)]   # (P, h, w)
    dd = _upsample_pad(down_diff)                                        # (P, h+2, w+2)
    cd_spec = pl.BlockSpec((1, h, w), lambda p: (p, 0, 0))
    dd_spec = pl.BlockSpec((1, h + 2, w + 2), lambda p: (p, 0, 0))
    partial = pl.pallas_call(
        _make_lap_level_kernel(h, w),
        out_shape=jax.ShapeDtypeStruct((P, 1, 1), jnp.float32),
        grid=(P,),
        in_specs=[cd_spec] * 4 + [dd_spec],
        out_specs=pl.BlockSpec((1, 1, 1), lambda p: (p, 0, 0)),
        compiler_params=_cparams(),
    )(*phases, dd)
    return jnp.sum(partial)


def laplacian_loss(pred, true, max_levels=5):
    N, C, H, W = pred.shape
    cp = pred.reshape(N * C, H, W).astype(jnp.float32)
    ct = true.reshape(N * C, H, W).astype(jnp.float32)
    loss = jnp.float32(0.0)
    for level in range(max_levels):
        P, Hc, Wc = cp.shape
        He, We = Hc - Hc % 2, Wc - Wc % 2
        cp = cp[:, :He, :We]                       # crop_to_even_size
        ct = ct[:, :He, :We]
        dp = gauss_downsample_planes(cp)           # next level "current" (pred)
        dt = gauss_downsample_planes(ct)           # next level "current" (true)
        level_sum = _laplacian_level_sum(cp - ct, dp - dt)
        loss = loss + (2.0 ** level) * level_sum / float(P * He * We)
        cp, ct = dp, dt
    return loss / max_levels


# ---------------------------- tiled masked-L1 reduction ----------------------------
def _masked_l1_kernel(p_ref, t_ref, m_ref, d_ref, s_ref):
    p = p_ref[...].astype(jnp.float32)
    t = t_ref[...].astype(jnp.float32)
    m = m_ref[...].astype(jnp.float32)
    d_ref[0] = jnp.sum(jnp.abs(p * m - t * m), keepdims=True)
    s_ref[0] = jnp.sum(m, keepdims=True)


def _to_lane_dense_tiles(flat, tile_rows):
    n = flat.shape[0]
    tile_elems = tile_rows * _LANES
    pad = (-n) % tile_elems
    if pad:
        flat = jnp.pad(flat, (0, pad))
    return flat.reshape(-1, _LANES)


def masked_l1_sums(pred, tgt, mask):
    """Returns (sum |pred*mask - tgt*mask|, sum mask) as f32 scalars."""
    p = pred.reshape(-1).astype(jnp.float32)
    t = tgt.reshape(-1).astype(jnp.float32)
    m = mask.reshape(-1).astype(jnp.float32)
    n = p.shape[0]
    rows = -(-n // _LANES)
    tile_rows = 256 if rows >= 256 else -(-rows // 8) * 8   # multiple of 8 sublanes
    p2 = _to_lane_dense_tiles(p, tile_rows)
    t2 = _to_lane_dense_tiles(t, tile_rows)
    m2 = _to_lane_dense_tiles(m, tile_rows)
    ntiles = p2.shape[0] // tile_rows
    in_spec = pl.BlockSpec((tile_rows, _LANES), lambda i: (i, 0))
    out_spec = pl.BlockSpec((1, 1, 1), lambda i: (i, 0, 0))
    d, s = pl.pallas_call(
        _masked_l1_kernel,
        out_shape=(jax.ShapeDtypeStruct((ntiles, 1, 1), jnp.float32),
                   jax.ShapeDtypeStruct((ntiles, 1, 1), jnp.float32)),
        grid=(ntiles,),
        in_specs=[in_spec] * 3,
        out_specs=(out_spec, out_spec),
        compiler_params=_cparams(),
    )(p2, t2, m2)
    return jnp.sum(d), jnp.sum(s)


# ------------------------------------ criterion ------------------------------------
class MattingCriterion:
    def __init__(self, *, losses):
        self.losses = losses

    def loss_gradient_penalty(self, sample_map, preds, targets):
        pred = preds["phas"]
        tgt = targets["phas"]
        N, C, H, W = pred.shape
        P = N * C
        sdx, sdy, sax, say = _grad_penalty_sums(
            pred.reshape(P, H, W).astype(jnp.float32),
            tgt.reshape(P, H, W).astype(jnp.float32))
        numel = float(P * H * W)
        loss = (sdx + sdy + 0.01 * sax + 0.01 * say) / numel
        return dict(loss_gradient_penalty=loss)

    def loss_pha_laplacian(self, preds, targets):
        assert "phas" in preds and "phas" in targets
        return dict(loss_pha_laplacian=laplacian_loss(preds["phas"], targets["phas"]))

    def unknown_l1_loss(self, sample_map, preds, targets):
        pred = preds["phas"]
        tgt = targets["phas"]
        sdiff, msum = masked_l1_sums(pred, tgt, sample_map)
        scale = sample_map.shape[0] * 262144.0 / msum
        loss = (sdiff / pred.size) * scale
        return dict(unknown_l1_loss=loss)

    def known_l1_loss(self, sample_map, preds, targets):
        new_sample_map = (sample_map == 0).astype(jnp.float32)
        pred = preds["phas"]
        tgt = targets["phas"]
        sdiff, msum = masked_l1_sums(pred, tgt, new_sample_map)
        scale = jnp.where(msum == 0, 0.0,
                          new_sample_map.shape[0] * 262144.0 / msum)
        loss = (sdiff / pred.size) * scale
        return dict(known_l1_loss=loss)

    def l1_loss(self, sample_map, preds, targets):
        # TODO(synk): get_unknown_tensor_from_pred needs cv2.dilate with a np.random-chosen
        # elliptical structuring element; no clean Pallas equivalent, so not translated.
        raise NotImplementedError("l1_loss (cv2/random based) is not translated")

    def forward(self, sample_map, preds, targets):
        losses = dict()
        for k in self.losses:
            if k == "l1_loss" or k == "loss_gradient_penalty":
                losses.update(getattr(self, k)(sample_map, preds, targets))
            else:
                losses.update(getattr(self, k)(preds, targets))
        return losses

    __call__ = forward


# --------------------------------------- main --------------------------------------
if __name__ == "__main__":
    key = jax.random.PRNGKey(0)
    k1, k2, k3 = jax.random.split(key, 3)
    N, C, H, W = 2, 1, 64, 64
    pred = jax.random.uniform(k1, (N, C, H, W), dtype=jnp.float32)
    target = jax.random.uniform(k2, (N, C, H, W), dtype=jnp.float32)
    sample_map = (jax.random.uniform(k3, (N, 1, H, W)) > 0.5).astype(jnp.float32)

    criterion = MattingCriterion(losses=("loss_pha_laplacian", "loss_gradient_penalty"))

    @jax.jit
    def compute_all(sample_map, pred, target):
        preds = {"phas": pred}
        targets = {"phas": target}
        out = criterion(sample_map, preds, targets)
        out.update(criterion.unknown_l1_loss(sample_map, preds, targets))
        out.update(criterion.known_l1_loss(sample_map, preds, targets))
        return out

    losses = compute_all(sample_map, pred, target)
    jax.block_until_ready(losses)
    print("KERNEL_OK")
</pallas_src>

<mosaic_0001>
module attributes {stable_mosaic.version = 11 : i64} {
  func.func @kernel(%arg0: i32, %arg1: memref<1x34x34xf32, #tpu.memory_space<vmem>>, %arg2: memref<1x34x34xf32, #tpu.memory_space<vmem>>, %arg3: memref<1x34x34xf32, #tpu.memory_space<vmem>>, %arg4: memref<1x34x34xf32, #tpu.memory_space<vmem>>, %arg5: memref<1x32x32xf32, #tpu.memory_space<vmem>>) attributes {dimension_semantics = [#tpu.dimension_semantics<parallel>], iteration_bounds = array<i64: 2>, scalar_prefetch = 0 : i64, scratch_operands = 0 : i64, tpu.core_type = #tpu.core_type<tc>, window_params = [{transform_indices = @transform_0, window_bounds = array<i64: 1, 34, 34>}, {transform_indices = @transform_1, window_bounds = array<i64: 1, 34, 34>}, {transform_indices = @transform_2, window_bounds = array<i64: 1, 34, 34>}, {transform_indices = @transform_3, window_bounds = array<i64: 1, 34, 34>}, {transform_indices = @transform_4, window_bounds = array<i64: 1, 32, 32>}]} {
    %c0 = arith.constant 0 : index
    %c0_0 = arith.constant 0 : index
    %c0_1 = arith.constant 0 : index
    %0 = vector.load %arg1[%c0, %c0_0, %c0_1] : memref<1x34x34xf32, #tpu.memory_space<vmem>>, vector<1x34x34xf32>
    %1 = vector.shape_cast %0 : vector<1x34x34xf32> to vector<34x34xf32>
    %c0_2 = arith.constant 0 : index
    %c0_3 = arith.constant 0 : index
    %c0_4 = arith.constant 0 : index
    %2 = vector.load %arg2[%c0_2, %c0_3, %c0_4] : memref<1x34x34xf32, #tpu.memory_space<vmem>>, vector<1x34x34xf32>
    %3 = vector.shape_cast %2 : vector<1x34x34xf32> to vector<34x34xf32>
    %c0_5 = arith.constant 0 : index
    %c0_6 = arith.constant 0 : index
    %c0_7 = arith.constant 0 : index
    %4 = vector.load %arg3[%c0_5, %c0_6, %c0_7] : memref<1x34x34xf32, #tpu.memory_space<vmem>>, vector<1x34x34xf32>
    %5 = vector.shape_cast %4 : vector<1x34x34xf32> to vector<34x34xf32>
    %c0_8 = arith.constant 0 : index
    %c0_9 = arith.constant 0 : index
    %c0_10 = arith.constant 0 : index
    %6 = vector.load %arg4[%c0_8, %c0_9, %c0_10] : memref<1x34x34xf32, #tpu.memory_space<vmem>>, vector<1x34x34xf32>
    %7 = vector.shape_cast %6 : vector<1x34x34xf32> to vector<34x34xf32>
    %8 = vector.extract_strided_slice %1 {offsets = [0, 0], sizes = [32, 34], strides = [1, 1]} : vector<34x34xf32> to vector<32x34xf32>
    %9 = vector.extract_strided_slice %1 {offsets = [2, 0], sizes = [32, 34], strides = [1, 1]} : vector<34x34xf32> to vector<32x34xf32>
    %10 = arith.addf %8, %9 : vector<32x34xf32>
    %cst = arith.constant 6.250000e-02 : f32
    %11 = vector.broadcast %cst : f32 to vector<32x34xf32>
    %12 = arith.mulf %10, %11 : vector<32x34xf32>
    %13 = vector.extract_strided_slice %1 {offsets = [1, 0], sizes = [32, 34], strides = [1, 1]} : vector<34x34xf32> to vector<32x34xf32>
    %cst_11 = arith.constant 3.750000e-01 : f32
    %14 = vector.broadcast %cst_11 : f32 to vector<32x34xf32>
    %15 = arith.mulf %13, %14 : vector<32x34xf32>
    %16 = arith.addf %12, %15 : vector<32x34xf32>
    %17 = vector.extract_strided_slice %5 {offsets = [0, 0], sizes = [32, 34], strides = [1, 1]} : vector<34x34xf32> to vector<32x34xf32>
    %18 = vector.extract_strided_slice %5 {offsets = [1, 0], sizes = [32, 34], strides = [1, 1]} : vector<34x34xf32> to vector<32x34xf32>
    %19 = arith.addf %17, %18 : vector<32x34xf32>
    %cst_12 = arith.constant 2.500000e-01 : f32
    %20 = vector.broadcast %cst_12 : f32 to vector<32x34xf32>
    %21 = arith.mulf %19, %20 : vector<32x34xf32>
    %22 = arith.addf %16, %21 : vector<32x34xf32>
    %23 = vector.extract_strided_slice %3 {offsets = [0, 0], sizes = [32, 34], strides = [1, 1]} : vector<34x34xf32> to vector<32x34xf32>
    %24 = vector.extract_strided_slice %3 {offsets = [2, 0], sizes = [32, 34], strides = [1, 1]} : vector<34x34xf32> to vector<32x34xf32>
    %25 = arith.addf %23, %24 : vector<32x34xf32>
    %cst_13 = arith.constant 6.250000e-02 : f32
    %26 = vector.broadcast %cst_13 : f32 to vector<32x34xf32>
    %27 = arith.mulf %25, %26 : vector<32x34xf32>
    %28 = vector.extract_strided_slice %3 {offsets = [1, 0], sizes = [32, 34], strides = [1, 1]} : vector<34x34xf32> to vector<32x34xf32>
    %cst_14 = arith.constant 3.750000e-01 : f32
    %29 = vector.broadcast %cst_14 : f32 to vector<32x34xf32>
    %30 = arith.mulf %28, %29 : vector<32x34xf32>
    %31 = arith.addf %27, %30 : vector<32x34xf32>
    %32 = vector.extract_strided_slice %7 {offsets = [0, 0], sizes = [32, 34], strides = [1, 1]} : vector<34x34xf32> to vector<32x34xf32>
    %33 = vector.extract_strided_slice %7 {offsets = [1, 0], sizes = [32, 34], strides = [1, 1]} : vector<34x34xf32> to vector<32x34xf32>
    %34 = arith.addf %32, %33 : vector<32x34xf32>
    %cst_15 = arith.constant 2.500000e-01 : f32
    %35 = vector.broadcast %cst_15 : f32 to vector<32x34xf32>
    %36 = arith.mulf %34, %35 : vector<32x34xf32>
    %37 = arith.addf %31, %36 : vector<32x34xf32>
    %38 = vector.extract_strided_slice %22 {offsets = [0, 0], sizes = [32, 32], strides = [1, 1]} : vector<32x34xf32> to vector<32x32xf32>
    %39 = vector.extract_strided_slice %22 {offsets = [0, 2], sizes = [32, 32], strides = [1, 1]} : vector<32x34xf32> to vector<32x32xf32>
    %40 = arith.addf %38, %39 : vector<32x32xf32>
    %cst_16 = arith.constant 6.250000e-02 : f32
    %41 = vector.broadcast %cst_16 : f32 to vector<32x32xf32>
    %42 = arith.mulf %40, %41 : vector<32x32xf32>
    %43 = vector.extract_strided_slice %22 {offsets = [0, 1], sizes = [32, 32], strides = [1, 1]} : vector<32x34xf32> to vector<32x32xf32>
    %cst_17 = arith.constant 3.750000e-01 : f32
    %44 = vector.broadcast %cst_17 : f32 to vector<32x32xf32>
    %45 = arith.mulf %43, %44 : vector<32x32xf32>
    %46 = arith.addf %42, %45 : vector<32x32xf32>
    %47 = vector.extract_strided_slice %37 {offsets = [0, 0], sizes = [32, 32], strides = [1, 1]} : vector<32x34xf32> to vector<32x32xf32>
    %48 = vector.extract_strided_slice %37 {offsets = [0, 1], sizes = [32, 32], strides = [1, 1]} : vector<32x34xf32> to vector<32x32xf32>
    %49 = arith.addf %47, %48 : vector<32x32xf32>
    %cst_18 = arith.constant 2.500000e-01 : f32
    %50 = vector.broadcast %cst_18 : f32 to vector<32x32xf32>
    %51 = arith.mulf %49, %50 : vector<32x32xf32>
    %52 = arith.addf %46, %51 : vector<32x32xf32>
    %c0_19 = arith.constant 0 : index
    %c0_20 = arith.constant 0 : index
    %c0_21 = arith.constant 0 : index
    %53 = vector.load %arg5[%c0_19, %c0_20, %c0_21] : memref<1x32x32xf32, #tpu.memory_space<vmem>>, vector<1x32x32xf32>
    %54 = vector.shape_cast %53 : vector<1x32x32xf32> to vector<32x32xf32>
    %55 = vector.shape_cast %52 : vector<32x32xf32> to vector<1x32x32xf32>
    tpu.vector_store %arg5[%c0_19, %c0_20, %c0_21], %55 {strides = array<i32>} : memref<1x32x32xf32, #tpu.memory_space<vmem>>, vector<1x32x32xf32>,
    return
  }
  func.func @transform_0(%arg0: i32) -> (i32, i32, i32) {
    %c0_i32 = arith.constant 0 : i32
    %c0_i32_0 = arith.constant 0 : i32
    %c0_i32_1 = arith.constant 0 : i32
    return %arg0, %c0_i32, %c0_i32_0 : i32, i32, i32
  }
  func.func @transform_1(%arg0: i32) -> (i32, i32, i32) {
    %c0_i32 = arith.constant 0 : i32
    %c0_i32_0 = arith.constant 0 : i32
    %c0_i32_1 = arith.constant 0 : i32
    return %arg0, %c0_i32, %c0_i32_0 : i32, i32, i32
  }
  func.func @transform_2(%arg0: i32) -> (i32, i32, i32) {
    %c0_i32 = arith.constant 0 : i32
    %c0_i32_0 = arith.constant 0 : i32
    %c0_i32_1 = arith.constant 0 : i32
    return %arg0, %c0_i32, %c0_i32_0 : i32, i32, i32
  }
  func.func @transform_3(%arg0: i32) -> (i32, i32, i32) {
    %c0_i32 = arith.constant 0 : i32
    %c0_i32_0 = arith.constant 0 : i32
    %c0_i32_1 = arith.constant 0 : i32
    return %arg0, %c0_i32, %c0_i32_0 : i32, i32, i32
  }
  func.func @transform_4(%arg0: i32) -> (i32, i32, i32) {
    %c0_i32 = arith.constant 0 : i32
    %c0_i32_0 = arith.constant 0 : i32
    %c0_i32_1 = arith.constant 0 : i32
    return %arg0, %c0_i32, %c0_i32_0 : i32, i32, i32
  }
}

module attributes {stable_mosaic.version = 11 : i64} {
  func.func @kernel(%arg0: i32, %arg1: memref<1x18x18xf32, #tpu.memory_space<vmem>>, %arg2: memref<1x18x18xf32, #tpu.memory_space<vmem>>, %arg3: memref<1x18x18xf32, #tpu.memory_space<vmem>>, %arg4: memref<1x18x18xf32, #tpu.memory_space<vmem>>, %arg5: memref<1x16x16xf32, #tpu.memory_space<vmem>>) attributes {dimension_semantics = [#tpu.dimension_semantics<parallel>], iteration_bounds = array<i64: 2>, scalar_prefetch = 0 : i64, scratch_operands = 0 : i64, tpu.core_type = #tpu.core_type<tc>, window_params = [{transform_indices = @transform_0, window_bounds = array<i64: 1, 18, 18>}, {transform_indices = @transform_1, window_bounds = array<i64: 1, 18, 18>}, {transform_indices = @transform_2, window_bounds = array<i64: 1, 18, 18>}, {transform_indices = @transform_3, window_bounds = array<i64: 1, 18, 18>}, {transform_indices = @transform_4, window_bounds = array<i64: 1, 16, 16>}]} {
    %c0 = arith.constant 0 : index
    %c0_0 = arith.constant 0 : index
    %c0_1 = arith.constant 0 : index
    %0 = vector.load %arg1[%c0, %c0_0, %c0_1] : memref<1x18x18xf32, #tpu.memory_space<vmem>>, vector<1x18x18xf32>
    %1 = vector.shape_cast %0 : vector<1x18x18xf32> to vector<18x18xf32>
    %c0_2 = arith.constant 0 : index
    %c0_3 = arith.constant 0 : index
    %c0_4 = arith.constant 0 : index
    %2 = vector.load %arg2[%c0_2, %c0_3, %c0_4] : memref<1x18x18xf32, #tpu.memory_space<vmem>>, vector<1x18x18xf32>
    %3 = vector.shape_cast %2 : vector<1x18x18xf32> to vector<18x18xf32>
    %c0_5 = arith.constant 0 : index
    %c0_6 = arith.constant 0 : index
    %c0_7 = arith.constant 0 : index
    %4 = vector.load %arg3[%c0_5, %c0_6, %c0_7] : memref<1x18x18xf32, #tpu.memory_space<vmem>>, vector<1x18x18xf32>
    %5 = vector.shape_cast %4 : vector<1x18x18xf32> to vector<18x18xf32>
    %c0_8 = arith.constant 0 : index
    %c0_9 = arith.constant 0 : index
    %c0_10 = arith.constant 0 : index
    %6 = vector.load %arg4[%c0_8, %c0_9, %c0_10] : memref<1x18x18xf32, #tpu.memory_space<vmem>>, vector<1x18x18xf32>
    %7 = vector.shape_cast %6 : vector<1x18x18xf32> to vector<18x18xf32>
    %8 = vector.extract_strided_slice %1 {offsets = [0, 0], sizes = [16, 18], strides = [1, 1]} : vector<18x18xf32> to vector<16x18xf32>
    %9 = vector.extract_strided_slice %1 {offsets = [2, 0], sizes = [16, 18], strides = [1, 1]} : vector<18x18xf32> to vector<16x18xf32>
    %10 = arith.addf %8, %9 : vector<16x18xf32>
    %cst = arith.constant 6.250000e-02 : f32
    %11 = vector.broadcast %cst : f32 to vector<16x18xf32>
    %12 = arith.mulf %10, %11 : vector<16x18xf32>
    %13 = vector.extract_strided_slice %1 {offsets = [1, 0], sizes = [16, 18], strides = [1, 1]} : vector<18x18xf32> to vector<16x18xf32>
    %cst_11 = arith.constant 3.750000e-01 : f32
    %14 = vector.broadcast %cst_11 : f32 to vector<16x18xf32>
    %15 = arith.mulf %13, %14 : vector<16x18xf32>
    %16 = arith.addf %12, %15 : vector<16x18xf32>
    %17 = vector.extract_strided_slice %5 {offsets = [0, 0], sizes = [16, 18], strides = [1, 1]} : vector<18x18xf32> to vector<16x18xf32>
    %18 = vector.extract_strided_slice %5 {offsets = [1, 0], sizes = [16, 18], strides = [1, 1]} : vector<18x18xf32> to vector<16x18xf32>
    %19 = arith.addf %17, %18 : vector<16x18xf32>
    %cst_12 = arith.constant 2.500000e-01 : f32
    %20 = vector.broadcast %cst_12 : f32 to vector<16x18xf32>
    %21 = arith.mulf %19, %20 : vector<16x18xf32>
    %22 = arith.addf %16, %21 : vector<16x18xf32>
    %23 = vector.extract_strided_slice %3 {offsets = [0, 0], sizes = [16, 18], strides = [1, 1]} : vector<18x18xf32> to vector<16x18xf32>
    %24 = vector.extract_strided_slice %3 {offsets = [2, 0], sizes = [16, 18], strides = [1, 1]} : vector<18x18xf32> to vector<16x18xf32>
    %25 = arith.addf %23, %24 : vector<16x18xf32>
    %cst_13 = arith.constant 6.250000e-02 : f32
    %26 = vector.broadcast %cst_13 : f32 to vector<16x18xf32>
    %27 = arith.mulf %25, %26 : vector<16x18xf32>
    %28 = vector.extract_strided_slice %3 {offsets = [1, 0], sizes = [16, 18], strides = [1, 1]} : vector<18x18xf32> to vector<16x18xf32>
    %cst_14 = arith.constant 3.750000e-01 : f32
    %29 = vector.broadcast %cst_14 : f32 to vector<16x18xf32>
    %30 = arith.mulf %28, %29 : vector<16x18xf32>
    %31 = arith.addf %27, %30 : vector<16x18xf32>
    %32 = vector.extract_strided_slice %7 {offsets = [0, 0], sizes = [16, 18], strides = [1, 1]} : vector<18x18xf32> to vector<16x18xf32>
    %33 = vector.extract_strided_slice %7 {offsets = [1, 0], sizes = [16, 18], strides = [1, 1]} : vector<18x18xf32> to vector<16x18xf32>
    %34 = arith.addf %32, %33 : vector<16x18xf32>
    %cst_15 = arith.constant 2.500000e-01 : f32
    %35 = vector.broadcast %cst_15 : f32 to vector<16x18xf32>
    %36 = arith.mulf %34, %35 : vector<16x18xf32>
    %37 = arith.addf %31, %36 : vector<16x18xf32>
    %38 = vector.extract_strided_slice %22 {offsets = [0, 0], sizes = [16, 16], strides = [1, 1]} : vector<16x18xf32> to vector<16x16xf32>
    %39 = vector.extract_strided_slice %22 {offsets = [0, 2], sizes = [16, 16], strides = [1, 1]} : vector<16x18xf32> to vector<16x16xf32>
    %40 = arith.addf %38, %39 : vector<16x16xf32>
    %cst_16 = arith.constant 6.250000e-02 : f32
    %41 = vector.broadcast %cst_16 : f32 to vector<16x16xf32>
    %42 = arith.mulf %40, %41 : vector<16x16xf32>
    %43 = vector.extract_strided_slice %22 {offsets = [0, 1], sizes = [16, 16], strides = [1, 1]} : vector<16x18xf32> to vector<16x16xf32>
    %cst_17 = arith.constant 3.750000e-01 : f32
    %44 = vector.broadcast %cst_17 : f32 to vector<16x16xf32>
    %45 = arith.mulf %43, %44 : vector<16x16xf32>
    %46 = arith.addf %42, %45 : vector<16x16xf32>
    %47 = vector.extract_strided_slice %37 {offsets = [0, 0], sizes = [16, 16], strides = [1, 1]} : vector<16x18xf32> to vector<16x16xf32>
    %48 = vector.extract_strided_slice %37 {offsets = [0, 1], sizes = [16, 16], strides = [1, 1]} : vector<16x18xf32> to vector<16x16xf32>
    %49 = arith.addf %47, %48 : vector<16x16xf32>
    %cst_18 = arith.constant 2.500000e-01 : f32
    %50 = vector.broadcast %cst_18 : f32 to vector<16x16xf32>
    %51 = arith.mulf %49, %50 : vector<16x16xf32>
    %52 = arith.addf %46, %51 : vector<16x16xf32>
    %c0_19 = arith.constant 0 : index
    %c0_20 = arith.constant 0 : index
    %c0_21 = arith.constant 0 : index
    %53 = vector.load %arg5[%c0_19, %c0_20, %c0_21] : memref<1x16x16xf32, #tpu.memory_space<vmem>>, vector<1x16x16xf32>
    %54 = vector.shape_cast %53 : vector<1x16x16xf32> to vector<16x16xf32>
    %55 = vector.shape_cast %52 : vector<16x16xf32> to vector<1x16x16xf32>
    tpu.vector_store %arg5[%c0_19, %c0_20, %c0_21], %55 {strides = array<i32>} : memref<1x16x16xf32, #tpu.memory_space<vmem>>, vector<1x16x16xf32>,
    return
  }
  func.func @transform_0(%arg0: i32) -> (i32, i32, i32) {
    %c0_i32 = arith.constant 0 : i32
    %c0_i32_0 = arith.constant 0 : i32
    %c0_i32_1 = arith.constant 0 : i32
    return %arg0, %c0_i32, %c0_i32_0 : i32, i32, i32
  }
  func.func @transform_1(%arg0: i32) -> (i32, i32, i32) {
    %c0_i32 = arith.constant 0 : i32
    %c0_i32_0 = arith.constant 0 : i32
    %c0_i32_1 = arith.constant 0 : i32
    return %arg0, %c0_i32, %c0_i32_0 : i32, i32, i32
  }
  func.func @transform_2(%arg0: i32) -> (i32, i32, i32) {
    %c0_i32 = arith.constant 0 : i32
    %c0_i32_0 = arith.constant 0 : i32
    %c0_i32_1 = arith.constant 0 : i32
    return %arg0, %c0_i32, %c0_i32_0 : i32, i32, i32
  }
  func.func @transform_3(%arg0: i32) -> (i32, i32, i32) {
    %c0_i32 = arith.constant 0 : i32
    %c0_i32_0 = arith.constant 0 : i32
    %c0_i32_1 = arith.constant 0 : i32
    return %arg0, %c0_i32, %c0_i32_0 : i32, i32, i32
  }
  func.func @transform_4(%arg0: i32) -> (i32, i32, i32) {
    %c0_i32 = arith.constant 0 : i32
    %c0_i32_0 = arith.constant 0 : i32
    %c0_i32_1 = arith.constant 0 : i32
    return %arg0, %c0_i32, %c0_i32_0 : i32, i32, i32
  }
}

module attributes {stable_mosaic.version = 11 : i64} {
  func.func @kernel(%arg0: i32, %arg1: memref<1x10x10xf32, #tpu.memory_space<vmem>>, %arg2: memref<1x10x10xf32, #tpu.memory_space<vmem>>, %arg3: memref<1x10x10xf32, #tpu.memory_space<vmem>>, %arg4: memref<1x10x10xf32, #tpu.memory_space<vmem>>, %arg5: memref<1x8x8xf32, #tpu.memory_space<vmem>>) attributes {dimension_semantics = [#tpu.dimension_semantics<parallel>], iteration_bounds = array<i64: 2>, scalar_prefetch = 0 : i64, scratch_operands = 0 : i64, tpu.core_type = #tpu.core_type<tc>, window_params = [{transform_indices = @transform_0, window_bounds = array<i64: 1, 10, 10>}, {transform_indices = @transform_1, window_bounds = array<i64: 1, 10, 10>}, {transform_indices = @transform_2, window_bounds = array<i64: 1, 10, 10>}, {transform_indices = @transform_3, window_bounds = array<i64: 1, 10, 10>}, {transform_indices = @transform_4, window_bounds = array<i64: 1, 8, 8>}]} {
    %c0 = arith.constant 0 : index
    %c0_0 = arith.constant 0 : index
    %c0_1 = arith.constant 0 : index
    %0 = vector.load %arg1[%c0, %c0_0, %c0_1] : memref<1x10x10xf32, #tpu.memory_space<vmem>>, vector<1x10x10xf32>
    %1 = vector.shape_cast %0 : vector<1x10x10xf32> to vector<10x10xf32>
    %c0_2 = arith.constant 0 : index
    %c0_3 = arith.constant 0 : index
    %c0_4 = arith.constant 0 : index
    %2 = vector.load %arg2[%c0_2, %c0_3, %c0_4] : memref<1x10x10xf32, #tpu.memory_space<vmem>>, vector<1x10x10xf32>
    %3 = vector.shape_cast %2 : vector<1x10x10xf32> to vector<10x10xf32>
    %c0_5 = arith.constant 0 : index
    %c0_6 = arith.constant 0 : index
    %c0_7 = arith.constant 0 : index
    %4 = vector.load %arg3[%c0_5, %c0_6, %c0_7] : memref<1x10x10xf32, #tpu.memory_space<vmem>>, vector<1x10x10xf32>
    %5 = vector.shape_cast %4 : vector<1x10x10xf32> to vector<10x10xf32>
    %c0_8 = arith.constant 0 : index
    %c0_9 = arith.constant 0 : index
    %c0_10 = arith.constant 0 : index
    %6 = vector.load %arg4[%c0_8, %c0_9, %c0_10] : memref<1x10x10xf32, #tpu.memory_space<vmem>>, vector<1x10x10xf32>
    %7 = vector.shape_cast %6 : vector<1x10x10xf32> to vector<10x10xf32>
    %8 = vector.extract_strided_slice %1 {offsets = [0, 0], sizes = [8, 10], strides = [1, 1]} : vector<10x10xf32> to vector<8x10xf32>
    %9 = vector.extract_strided_slice %1 {offsets = [2, 0], sizes = [8, 10], strides = [1, 1]} : vector<10x10xf32> to vector<8x10xf32>
    %10 = arith.addf %8, %9 : vector<8x10xf32>
    %cst = arith.constant 6.250000e-02 : f32
    %11 = vector.broadcast %cst : f32 to vector<8x10xf32>
    %12 = arith.mulf %10, %11 : vector<8x10xf32>
    %13 = vector.extract_strided_slice %1 {offsets = [1, 0], sizes = [8, 10], strides = [1, 1]} : vector<10x10xf32> to vector<8x10xf32>
    %cst_11 = arith.constant 3.750000e-01 : f32
    %14 = vector.broadcast %cst_11 : f32 to vector<8x10xf32>
    %15 = arith.mulf %13, %14 : vector<8x10xf32>
    %16 = arith.addf %12, %15 : vector<8x10xf32>
    %17 = vector.extract_strided_slice %5 {offsets = [0, 0], sizes = [8, 10], strides = [1, 1]} : vector<10x10xf32> to vector<8x10xf32>
    %18 = vector.extract_strided_slice %5 {offsets = [1, 0], sizes = [8, 10], strides = [1, 1]} : vector<10x10xf32> to vector<8x10xf32>
    %19 = arith.addf %17, %18 : vector<8x10xf32>
    %cst_12 = arith.constant 2.500000e-01 : f32
    %20 = vector.broadcast %cst_12 : f32 to vector<8x10xf32>
    %21 = arith.mulf %19, %20 : vector<8x10xf32>
    %22 = arith.addf %16, %21 : vector<8x10xf32>
    %23 = vector.extract_strided_slice %3 {offsets = [0, 0], sizes = [8, 10], strides = [1, 1]} : vector<10x10xf32> to vector<8x10xf32>
    %24 = vector.extract_strided_slice %3 {offsets = [2, 0], sizes = [8, 10], strides = [1, 1]} : vector<10x10xf32> to vector<8x10xf32>
    %25 = arith.addf %23, %24 : vector<8x10xf32>
    %cst_13 = arith.constant 6.250000e-02 : f32
    %26 = vector.broadcast %cst_13 : f32 to vector<8x10xf32>
    %27 = arith.mulf %25, %26 : vector<8x10xf32>
    %28 = vector.extract_strided_slice %3 {offsets = [1, 0], sizes = [8, 10], strides = [1, 1]} : vector<10x10xf32> to vector<8x10xf32>
    %cst_14 = arith.constant 3.750000e-01 : f32
    %29 = vector.broadcast %cst_14 : f32 to vector<8x10xf32>
    %30 = arith.mulf %28, %29 : vector<8x10xf32>
    %31 = arith.addf %27, %30 : vector<8x10xf32>
    %32 = vector.extract_strided_slice %7 {offsets = [0, 0], sizes = [8, 10], strides = [1, 1]} : vector<10x10xf32> to vector<8x10xf32>
    %33 = vector.extract_strided_slice %7 {offsets = [1, 0], sizes = [8, 10], strides = [1, 1]} : vector<10x10xf32> to vector<8x10xf32>
    %34 = arith.addf %32, %33 : vector<8x10xf32>
    %cst_15 = arith.constant 2.500000e-01 : f32
    %35 = vector.broadcast %cst_15 : f32 to vector<8x10xf32>
    %36 = arith.mulf %34, %35 : vector<8x10xf32>
    %37 = arith.addf %31, %36 : vector<8x10xf32>
    %38 = vector.extract_strided_slice %22 {offsets = [0, 0], sizes = [8, 8], strides = [1, 1]} : vector<8x10xf32> to vector<8x8xf32>
    %39 = vector.extract_strided_slice %22 {offsets = [0, 2], sizes = [8, 8], strides = [1, 1]} : vector<8x10xf32> to vector<8x8xf32>
    %40 = arith.addf %38, %39 : vector<8x8xf32>
    %cst_16 = arith.constant 6.250000e-02 : f32
    %41 = vector.broadcast %cst_16 : f32 to vector<8x8xf32>
    %42 = arith.mulf %40, %41 : vector<8x8xf32>
    %43 = vector.extract_strided_slice %22 {offsets = [0, 1], sizes = [8, 8], strides = [1, 1]} : vector<8x10xf32> to vector<8x8xf32>
    %cst_17 = arith.constant 3.750000e-01 : f32
    %44 = vector.broadcast %cst_17 : f32 to vector<8x8xf32>
    %45 = arith.mulf %43, %44 : vector<8x8xf32>
    %46 = arith.addf %42, %45 : vector<8x8xf32>
    %47 = vector.extract_strided_slice %37 {offsets = [0, 0], sizes = [8, 8], strides = [1, 1]} : vector<8x10xf32> to vector<8x8xf32>
    %48 = vector.extract_strided_slice %37 {offsets = [0, 1], sizes = [8, 8], strides = [1, 1]} : vector<8x10xf32> to vector<8x8xf32>
    %49 = arith.addf %47, %48 : vector<8x8xf32>
    %cst_18 = arith.constant 2.500000e-01 : f32
    %50 = vector.broadcast %cst_18 : f32 to vector<8x8xf32>
    %51 = arith.mulf %49, %50 : vector<8x8xf32>
    %52 = arith.addf %46, %51 : vector<8x8xf32>
    %c0_19 = arith.constant 0 : index
    %c0_20 = arith.constant 0 : index
    %c0_21 = arith.constant 0 : index
    %53 = vector.load %arg5[%c0_19, %c0_20, %c0_21] : memref<1x8x8xf32, #tpu.memory_space<vmem>>, vector<1x8x8xf32>
    %54 = vector.shape_cast %53 : vector<1x8x8xf32> to vector<8x8xf32>
    %55 = vector.shape_cast %52 : vector<8x8xf32> to vector<1x8x8xf32>
    tpu.vector_store %arg5[%c0_19, %c0_20, %c0_21], %55 {strides = array<i32>} : memref<1x8x8xf32, #tpu.memory_space<vmem>>, vector<1x8x8xf32>,
    return
  }
  func.func @transform_0(%arg0: i32) -> (i32, i32, i32) {
    %c0_i32 = arith.constant 0 : i32
    %c0_i32_0 = arith.constant 0 : i32
    %c0_i32_1 = arith.constant 0 : i32
    return %arg0, %c0_i32, %c0_i32_0 : i32, i32, i32
  }
  func.func @transform_1(%arg0: i32) -> (i32, i32, i32) {
    %c0_i32 = arith.constant 0 : i32
    %c0_i32_0 = arith.constant 0 : i32
    %c0_i32_1 = arith.constant 0 : i32
    return %arg0, %c0_i32, %c0_i32_0 : i32, i32, i32
  }
  func.func @transform_2(%arg0: i32) -> (i32, i32, i32) {
    %c0_i32 = arith.constant 0 : i32
    %c0_i32_0 = arith.constant 0 : i32
    %c0_i32_1 = arith.constant 0 : i32
    return %arg0, %c0_i32, %c0_i32_0 : i32, i32, i32
  }
  func.func @transform_3(%arg0: i32) -> (i32, i32, i32) {
    %c0_i32 = arith.constant 0 : i32
    %c0_i32_0 = arith.constant 0 : i32
    %c0_i32_1 = arith.constant 0 : i32
    return %arg0, %c0_i32, %c0_i32_0 : i32, i32, i32
  }
  func.func @transform_4(%arg0: i32) -> (i32, i32, i32) {
    %c0_i32 = arith.constant 0 : i32
    %c0_i32_0 = arith.constant 0 : i32
    %c0_i32_1 = arith.constant 0 : i32
    return %arg0, %c0_i32, %c0_i32_0 : i32, i32, i32
  }
}

module attributes {stable_mosaic.version = 11 : i64} {
  func.func @kernel(%arg0: i32, %arg1: memref<1x6x6xf32, #tpu.memory_space<vmem>>, %arg2: memref<1x6x6xf32, #tpu.memory_space<vmem>>, %arg3: memref<1x6x6xf32, #tpu.memory_space<vmem>>, %arg4: memref<1x6x6xf32, #tpu.memory_space<vmem>>, %arg5: memref<1x4x4xf32, #tpu.memory_space<vmem>>) attributes {dimension_semantics = [#tpu.dimension_semantics<parallel>], iteration_bounds = array<i64: 2>, scalar_prefetch = 0 : i64, scratch_operands = 0 : i64, tpu.core_type = #tpu.core_type<tc>, window_params = [{transform_indices = @transform_0, window_bounds = array<i64: 1, 6, 6>}, {transform_indices = @transform_1, window_bounds = array<i64: 1, 6, 6>}, {transform_indices = @transform_2, window_bounds = array<i64: 1, 6, 6>}, {transform_indices = @transform_3, window_bounds = array<i64: 1, 6, 6>}, {transform_indices = @transform_4, window_bounds = array<i64: 1, 4, 4>}]} {
    %c0 = arith.constant 0 : index
    %c0_0 = arith.constant 0 : index
    %c0_1 = arith.constant 0 : index
    %0 = vector.load %arg1[%c0, %c0_0, %c0_1] : memref<1x6x6xf32, #tpu.memory_space<vmem>>, vector<1x6x6xf32>
    %1 = vector.shape_cast %0 : vector<1x6x6xf32> to vector<6x6xf32>
    %c0_2 = arith.constant 0 : index
    %c0_3 = arith.constant 0 : index
    %c0_4 = arith.constant 0 : index
    %2 = vector.load %arg2[%c0_2, %c0_3, %c0_4] : memref<1x6x6xf32, #tpu.memory_space<vmem>>, vector<1x6x6xf32>
    %3 = vector.shape_cast %2 : vector<1x6x6xf32> to vector<6x6xf32>
    %c0_5 = arith.constant 0 : index
    %c0_6 = arith.constant 0 : index
    %c0_7 = arith.constant 0 : index
    %4 = vector.load %arg3[%c0_5, %c0_6, %c0_7] : memref<1x6x6xf32, #tpu.memory_space<vmem>>, vector<1x6x6xf32>
    %5 = vector.shape_cast %4 : vector<1x6x6xf32> to vector<6x6xf32>
    %c0_8 = arith.constant 0 : index
    %c0_9 = arith.constant 0 : index
    %c0_10 = arith.constant 0 : index
    %6 = vector.load %arg4[%c0_8, %c0_9, %c0_10] : memref<1x6x6xf32, #tpu.memory_space<vmem>>, vector<1x6x6xf32>
    %7 = vector.shape_cast %6 : vector<1x6x6xf32> to vector<6x6xf32>
    %8 = vector.extract_strided_slice %1 {offsets = [0, 0], sizes = [4, 6], strides = [1, 1]} : vector<6x6xf32> to vector<4x6xf32>
    %9 = vector.extract_strided_slice %1 {offsets = [2, 0], sizes = [4, 6], strides = [1, 1]} : vector<6x6xf32> to vector<4x6xf32>
    %10 = arith.addf %8, %9 : vector<4x6xf32>
    %cst = arith.constant 6.250000e-02 : f32
    %11 = vector.broadcast %cst : f32 to vector<4x6xf32>
    %12 = arith.mulf %10, %11 : vector<4x6xf32>
    %13 = vector.extract_strided_slice %1 {offsets = [1, 0], sizes = [4, 6], strides = [1, 1]} : vector<6x6xf32> to vector<4x6xf32>
    %cst_11 = arith.constant 3.750000e-01 : f32
    %14 = vector.broadcast %cst_11 : f32 to vector<4x6xf32>
    %15 = arith.mulf %13, %14 : vector<4x6xf32>
    %16 = arith.addf %12, %15 : vector<4x6xf32>
    %17 = vector.extract_strided_slice %5 {offsets = [0, 0], sizes = [4, 6], strides = [1, 1]} : vector<6x6xf32> to vector<4x6xf32>
    %18 = vector.extract_strided_slice %5 {offsets = [1, 0], sizes = [4, 6], strides = [1, 1]} : vector<6x6xf32> to vector<4x6xf32>
    %19 = arith.addf %17, %18 : vector<4x6xf32>
    %cst_12 = arith.constant 2.500000e-01 : f32
    %20 = vector.broadcast %cst_12 : f32 to vector<4x6xf32>
    %21 = arith.mulf %19, %20 : vector<4x6xf32>
    %22 = arith.addf %16, %21 : vector<4x6xf32>
    %23 = vector.extract_strided_slice %3 {offsets = [0, 0], sizes = [4, 6], strides = [1, 1]} : vector<6x6xf32> to vector<4x6xf32>
    %24 = vector.extract_strided_slice %3 {offsets = [2, 0], sizes = [4, 6], strides = [1, 1]} : vector<6x6xf32> to vector<4x6xf32>
    %25 = arith.addf %23, %24 : vector<4x6xf32>
    %cst_13 = arith.constant 6.250000e-02 : f32
    %26 = vector.broadcast %cst_13 : f32 to vector<4x6xf32>
    %27 = arith.mulf %25, %26 : vector<4x6xf32>
    %28 = vector.extract_strided_slice %3 {offsets = [1, 0], sizes = [4, 6], strides = [1, 1]} : vector<6x6xf32> to vector<4x6xf32>
    %cst_14 = arith.constant 3.750000e-01 : f32
    %29 = vector.broadcast %cst_14 : f32 to vector<4x6xf32>
    %30 = arith.mulf %28, %29 : vector<4x6xf32>
    %31 = arith.addf %27, %30 : vector<4x6xf32>
    %32 = vector.extract_strided_slice %7 {offsets = [0, 0], sizes = [4, 6], strides = [1, 1]} : vector<6x6xf32> to vector<4x6xf32>
    %33 = vector.extract_strided_slice %7 {offsets = [1, 0], sizes = [4, 6], strides = [1, 1]} : vector<6x6xf32> to vector<4x6xf32>
    %34 = arith.addf %32, %33 : vector<4x6xf32>
    %cst_15 = arith.constant 2.500000e-01 : f32
    %35 = vector.broadcast %cst_15 : f32 to vector<4x6xf32>
    %36 = arith.mulf %34, %35 : vector<4x6xf32>
    %37 = arith.addf %31, %36 : vector<4x6xf32>
    %38 = vector.extract_strided_slice %22 {offsets = [0, 0], sizes = [4, 4], strides = [1, 1]} : vector<4x6xf32> to vector<4x4xf32>
    %39 = vector.extract_strided_slice %22 {offsets = [0, 2], sizes = [4, 4], strides = [1, 1]} : vector<4x6xf32> to vector<4x4xf32>
    %40 = arith.addf %38, %39 : vector<4x4xf32>
    %cst_16 = arith.constant 6.250000e-02 : f32
    %41 = vector.broadcast %cst_16 : f32 to vector<4x4xf32>
    %42 = arith.mulf %40, %41 : vector<4x4xf32>
    %43 = vector.extract_strided_slice %22 {offsets = [0, 1], sizes = [4, 4], strides = [1, 1]} : vector<4x6xf32> to vector<4x4xf32>
    %cst_17 = arith.constant 3.750000e-01 : f32
    %44 = vector.broadcast %cst_17 : f32 to vector<4x4xf32>
    %45 = arith.mulf %43, %44 : vector<4x4xf32>
    %46 = arith.addf %42, %45 : vector<4x4xf32>
    %47 = vector.extract_strided_slice %37 {offsets = [0, 0], sizes = [4, 4], strides = [1, 1]} : vector<4x6xf32> to vector<4x4xf32>
    %48 = vector.extract_strided_slice %37 {offsets = [0, 1], sizes = [4, 4], strides = [1, 1]} : vector<4x6xf32> to vector<4x4xf32>
    %49 = arith.addf %47, %48 : vector<4x4xf32>
    %cst_18 = arith.constant 2.500000e-01 : f32
    %50 = vector.broadcast %cst_18 : f32 to vector<4x4xf32>
    %51 = arith.mulf %49, %50 : vector<4x4xf32>
    %52 = arith.addf %46, %51 : vector<4x4xf32>
    %c0_19 = arith.constant 0 : index
    %c0_20 = arith.constant 0 : index
    %c0_21 = arith.constant 0 : index
    %53 = vector.load %arg5[%c0_19, %c0_20, %c0_21] : memref<1x4x4xf32, #tpu.memory_space<vmem>>, vector<1x4x4xf32>
    %54 = vector.shape_cast %53 : vector<1x4x4xf32> to vector<4x4xf32>
    %55 = vector.shape_cast %52 : vector<4x4xf32> to vector<1x4x4xf32>
    tpu.vector_store %arg5[%c0_19, %c0_20, %c0_21], %55 {strides = array<i32>} : memref<1x4x4xf32, #tpu.memory_space<vmem>>, vector<1x4x4xf32>,
    return
  }
  func.func @transform_0(%arg0: i32) -> (i32, i32, i32) {
    %c0_i32 = arith.constant 0 : i32
    %c0_i32_0 = arith.constant 0 : i32
    %c0_i32_1 = arith.constant 0 : i32
    return %arg0, %c0_i32, %c0_i32_0 : i32, i32, i32
  }
  func.func @transform_1(%arg0: i32) -> (i32, i32, i32) {
    %c0_i32 = arith.constant 0 : i32
    %c0_i32_0 = arith.constant 0 : i32
    %c0_i32_1 = arith.constant 0 : i32
    return %arg0, %c0_i32, %c0_i32_0 : i32, i32, i32
  }
  func.func @transform_2(%arg0: i32) -> (i32, i32, i32) {
    %c0_i32 = arith.constant 0 : i32
    %c0_i32_0 = arith.constant 0 : i32
    %c0_i32_1 = arith.constant 0 : i32
    return %arg0, %c0_i32, %c0_i32_0 : i32, i32, i32
  }
  func.func @transform_3(%arg0: i32) -> (i32, i32, i32) {
    %c0_i32 = arith.constant 0 : i32
    %c0_i32_0 = arith.constant 0 : i32
    %c0_i32_1 = arith.constant 0 : i32
    return %arg0, %c0_i32, %c0_i32_0 : i32, i32, i32
  }
  func.func @transform_4(%arg0: i32) -> (i32, i32, i32) {
    %c0_i32 = arith.constant 0 : i32
    %c0_i32_0 = arith.constant 0 : i32
    %c0_i32_1 = arith.constant 0 : i32
    return %arg0, %c0_i32, %c0_i32_0 : i32, i32, i32
  }
}

module attributes {stable_mosaic.version = 11 : i64} {
  func.func @kernel(%arg0: i32, %arg1: memref<1x4x4xf32, #tpu.memory_space<vmem>>, %arg2: memref<1x4x4xf32, #tpu.memory_space<vmem>>, %arg3: memref<1x4x4xf32, #tpu.memory_space<vmem>>, %arg4: memref<1x4x4xf32, #tpu.memory_space<vmem>>, %arg5: memref<1x2x2xf32, #tpu.memory_space<vmem>>) attributes {dimension_semantics = [#tpu.dimension_semantics<parallel>], iteration_bounds = array<i64: 2>, scalar_prefetch = 0 : i64, scratch_operands = 0 : i64, tpu.core_type = #tpu.core_type<tc>, window_params = [{transform_indices = @transform_0, window_bounds = array<i64: 1, 4, 4>}, {transform_indices = @transform_1, window_bounds = array<i64: 1, 4, 4>}, {transform_indices = @transform_2, window_bounds = array<i64: 1, 4, 4>}, {transform_indices = @transform_3, window_bounds = array<i64: 1, 4, 4>}, {transform_indices = @transform_4, window_bounds = array<i64: 1, 2, 2>}]} {
    %c0 = arith.constant 0 : index
    %c0_0 = arith.constant 0 : index
    %c0_1 = arith.constant 0 : index
    %0 = vector.load %arg1[%c0, %c0_0, %c0_1] : memref<1x4x4xf32, #tpu.memory_space<vmem>>, vector<1x4x4xf32>
    %1 = vector.shape_cast %0 : vector<1x4x4xf32> to vector<4x4xf32>
    %c0_2 = arith.constant 0 : index
    %c0_3 = arith.constant 0 : index
    %c0_4 = arith.constant 0 : index
    %2 = vector.load %arg2[%c0_2, %c0_3, %c0_4] : memref<1x4x4xf32, #tpu.memory_space<vmem>>, vector<1x4x4xf32>
    %3 = vector.shape_cast %2 : vector<1x4x4xf32> to vector<4x4xf32>
    %c0_5 = arith.constant 0 : index
    %c0_6 = arith.constant 0 : index
    %c0_7 = arith.constant 0 : index
    %4 = vector.load %arg3[%c0_5, %c0_6, %c0_7] : memref<1x4x4xf32, #tpu.memory_space<vmem>>, vector<1x4x4xf32>
    %5 = vector.shape_cast %4 : vector<1x4x4xf32> to vector<4x4xf32>
    %c0_8 = arith.constant 0 : index
    %c0_9 = arith.constant 0 : index
    %c0_10 = arith.constant 0 : index
    %6 = vector.load %arg4[%c0_8, %c0_9, %c0_10] : memref<1x4x4xf32, #tpu.memory_space<vmem>>, vector<1x4x4xf32>
    %7 = vector.shape_cast %6 : vector<1x4x4xf32> to vector<4x4xf32>
    %8 = vector.extract_strided_slice %1 {offsets = [0, 0], sizes = [2, 4], strides = [1, 1]} : vector<4x4xf32> to vector<2x4xf32>
    %9 = vector.extract_strided_slice %1 {offsets = [2, 0], sizes = [2, 4], strides = [1, 1]} : vector<4x4xf32> to vector<2x4xf32>
    %10 = arith.addf %8, %9 : vector<2x4xf32>
    %cst = arith.constant 6.250000e-02 : f32
    %11 = vector.broadcast %cst : f32 to vector<2x4xf32>
    %12 = arith.mulf %10, %11 : vector<2x4xf32>
    %13 = vector.extract_strided_slice %1 {offsets = [1, 0], sizes = [2, 4], strides = [1, 1]} : vector<4x4xf32> to vector<2x4xf32>
    %cst_11 = arith.constant 3.750000e-01 : f32
    %14 = vector.broadcast %cst_11 : f32 to vector<2x4xf32>
    %15 = arith.mulf %13, %14 : vector<2x4xf32>
    %16 = arith.addf %12, %15 : vector<2x4xf32>
    %17 = vector.extract_strided_slice %5 {offsets = [0, 0], sizes = [2, 4], strides = [1, 1]} : vector<4x4xf32> to vector<2x4xf32>
    %18 = vector.extract_strided_slice %5 {offsets = [1, 0], sizes = [2, 4], strides = [1, 1]} : vector<4x4xf32> to vector<2x4xf32>
    %19 = arith.addf %17, %18 : vector<2x4xf32>
    %cst_12 = arith.constant 2.500000e-01 : f32
    %20 = vector.broadcast %cst_12 : f32 to vector<2x4xf32>
    %21 = arith.mulf %19, %20 : vector<2x4xf32>
    %22 = arith.addf %16, %21 : vector<2x4xf32>
    %23 = vector.extract_strided_slice %3 {offsets = [0, 0], sizes = [2, 4], strides = [1, 1]} : vector<4x4xf32> to vector<2x4xf32>
    %24 = vector.extract_strided_slice %3 {offsets = [2, 0], sizes = [2, 4], strides = [1, 1]} : vector<4x4xf32> to vector<2x4xf32>
    %25 = arith.addf %23, %24 : vector<2x4xf32>
    %cst_13 = arith.constant 6.250000e-02 : f32
    %26 = vector.broadcast %cst_13 : f32 to vector<2x4xf32>
    %27 = arith.mulf %25, %26 : vector<2x4xf32>
    %28 = vector.extract_strided_slice %3 {offsets = [1, 0], sizes = [2, 4], strides = [1, 1]} : vector<4x4xf32> to vector<2x4xf32>
    %cst_14 = arith.constant 3.750000e-01 : f32
    %29 = vector.broadcast %cst_14 : f32 to vector<2x4xf32>
    %30 = arith.mulf %28, %29 : vector<2x4xf32>
    %31 = arith.addf %27, %30 : vector<2x4xf32>
    %32 = vector.extract_strided_slice %7 {offsets = [0, 0], sizes = [2, 4], strides = [1, 1]} : vector<4x4xf32> to vector<2x4xf32>
    %33 = vector.extract_strided_slice %7 {offsets = [1, 0], sizes = [2, 4], strides = [1, 1]} : vector<4x4xf32> to vector<2x4xf32>
    %34 = arith.addf %32, %33 : vector<2x4xf32>
    %cst_15 = arith.constant 2.500000e-01 : f32
    %35 = vector.broadcast %cst_15 : f32 to vector<2x4xf32>
    %36 = arith.mulf %34, %35 : vector<2x4xf32>
    %37 = arith.addf %31, %36 : vector<2x4xf32>
    %38 = vector.extract_strided_slice %22 {offsets = [0, 0], sizes = [2, 2], strides = [1, 1]} : vector<2x4xf32> to vector<2x2xf32>
    %39 = vector.extract_strided_slice %22 {offsets = [0, 2], sizes = [2, 2], strides = [1, 1]} : vector<2x4xf32> to vector<2x2xf32>
    %40 = arith.addf %38, %39 : vector<2x2xf32>
    %cst_16 = arith.constant 6.250000e-02 : f32
    %41 = vector.broadcast %cst_16 : f32 to vector<2x2xf32>
    %42 = arith.mulf %40, %41 : vector<2x2xf32>
    %43 = vector.extract_strided_slice %22 {offsets = [0, 1], sizes = [2, 2], strides = [1, 1]} : vector<2x4xf32> to vector<2x2xf32>
    %cst_17 = arith.constant 3.750000e-01 : f32
    %44 = vector.broadcast %cst_17 : f32 to vector<2x2xf32>
    %45 = arith.mulf %43, %44 : vector<2x2xf32>
    %46 = arith.addf %42, %45 : vector<2x2xf32>
    %47 = vector.extract_strided_slice %37 {offsets = [0, 0], sizes = [2, 2], strides = [1, 1]} : vector<2x4xf32> to vector<2x2xf32>
    %48 = vector.extract_strided_slice %37 {offsets = [0, 1], sizes = [2, 2], strides = [1, 1]} : vector<2x4xf32> to vector<2x2xf32>
    %49 = arith.addf %47, %48 : vector<2x2xf32>
    %cst_18 = arith.constant 2.500000e-01 : f32
    %50 = vector.broadcast %cst_18 : f32 to vector<2x2xf32>
    %51 = arith.mulf %49, %50 : vector<2x2xf32>
    %52 = arith.addf %46, %51 : vector<2x2xf32>
    %c0_19 = arith.constant 0 : index
    %c0_20 = arith.constant 0 : index
    %c0_21 = arith.constant 0 : index
    %53 = vector.load %arg5[%c0_19, %c0_20, %c0_21] : memref<1x2x2xf32, #tpu.memory_space<vmem>>, vector<1x2x2xf32>
    %54 = vector.shape_cast %53 : vector<1x2x2xf32> to vector<2x2xf32>
    %55 = vector.shape_cast %52 : vector<2x2xf32> to vector<1x2x2xf32>
    tpu.vector_store %arg5[%c0_19, %c0_20, %c0_21], %55 {strides = array<i32>} : memref<1x2x2xf32, #tpu.memory_space<vmem>>, vector<1x2x2xf32>,
    return
  }
  func.func @transform_0(%arg0: i32) -> (i32, i32, i32) {
    %c0_i32 = arith.constant 0 : i32
    %c0_i32_0 = arith.constant 0 : i32
    %c0_i32_1 = arith.constant 0 : i32
    return %arg0, %c0_i32, %c0_i32_0 : i32, i32, i32
  }
  func.func @transform_1(%arg0: i32) -> (i32, i32, i32) {
    %c0_i32 = arith.constant 0 : i32
    %c0_i32_0 = arith.constant 0 : i32
    %c0_i32_1 = arith.constant 0 : i32
    return %arg0, %c0_i32, %c0_i32_0 : i32, i32, i32
  }
  func.func @transform_2(%arg0: i32) -> (i32, i32, i32) {
    %c0_i32 = arith.constant 0 : i32
    %c0_i32_0 = arith.constant 0 : i32
    %c0_i32_1 = arith.constant 0 : i32
    return %arg0, %c0_i32, %c0_i32_0 : i32, i32, i32
  }
  func.func @transform_3(%arg0: i32) -> (i32, i32, i32) {
    %c0_i32 = arith.constant 0 : i32
    %c0_i32_0 = arith.constant 0 : i32
    %c0_i32_1 = arith.constant 0 : i32
    return %arg0, %c0_i32, %c0_i32_0 : i32, i32, i32
  }
  func.func @transform_4(%arg0: i32) -> (i32, i32, i32) {
    %c0_i32 = arith.constant 0 : i32
    %c0_i32_0 = arith.constant 0 : i32
    %c0_i32_1 = arith.constant 0 : i32
    return %arg0, %c0_i32, %c0_i32_0 : i32, i32, i32
  }
}

module attributes {stable_mosaic.version = 11 : i64} {
  func.func @kernel(%arg0: i32, %arg1: memref<1x2x2xf32, #tpu.memory_space<vmem>>, %arg2: memref<1x2x2xf32, #tpu.memory_space<vmem>>, %arg3: memref<1x2x2xf32, #tpu.memory_space<vmem>>, %arg4: memref<1x2x2xf32, #tpu.memory_space<vmem>>, %arg5: memref<1x4x4xf32, #tpu.memory_space<vmem>>, %arg6: memref<1x1x1xf32, #tpu.memory_space<vmem>>) attributes {dimension_semantics = [#tpu.dimension_semantics<parallel>], iteration_bounds = array<i64: 2>, scalar_prefetch = 0 : i64, scratch_operands = 0 : i64, tpu.core_type = #tpu.core_type<tc>, window_params = [{transform_indices = @transform_0, window_bounds = array<i64: 1, 2, 2>}, {transform_indices = @transform_1, window_bounds = array<i64: 1, 2, 2>}, {transform_indices = @transform_2, window_bounds = array<i64: 1, 2, 2>}, {transform_indices = @transform_3, window_bounds = array<i64: 1, 2, 2>}, {transform_indices = @transform_4, window_bounds = array<i64: 1, 4, 4>}, {transform_indices = @transform_5, window_bounds = array<i64: 1, 1, 1>}]} {
    %c0 = arith.constant 0 : index
    %c0_0 = arith.constant 0 : index
    %c0_1 = arith.constant 0 : index
    %0 = vector.load %arg5[%c0, %c0_0, %c0_1] : memref<1x4x4xf32, #tpu.memory_space<vmem>>, vector<1x4x4xf32>
    %1 = vector.shape_cast %0 : vector<1x4x4xf32> to vector<4x4xf32>
    %2 = vector.extract_strided_slice %1 {offsets = [0, 0], sizes = [2, 4], strides = [1, 1]} : vector<4x4xf32> to vector<2x4xf32>
    %cst = arith.constant 1.250000e-01 : f32
    %3 = vector.broadcast %cst : f32 to vector<2x4xf32>
    %4 = arith.mulf %2, %3 : vector<2x4xf32>
    %5 = vector.extract_strided_slice %1 {offsets = [1, 0], sizes = [2, 4], strides = [1, 1]} : vector<4x4xf32> to vector<2x4xf32>
    %cst_2 = arith.constant 7.500000e-01 : f32
    %6 = vector.broadcast %cst_2 : f32 to vector<2x4xf32>
    %7 = arith.mulf %5, %6 : vector<2x4xf32>
    %8 = arith.addf %4, %7 : vector<2x4xf32>
    %9 = vector.extract_strided_slice %1 {offsets = [2, 0], sizes = [2, 4], strides = [1, 1]} : vector<4x4xf32> to vector<2x4xf32>
    %cst_3 = arith.constant 1.250000e-01 : f32
    %10 = vector.broadcast %cst_3 : f32 to vector<2x4xf32>
    %11 = arith.mulf %9, %10 : vector<2x4xf32>
    %12 = arith.addf %8, %11 : vector<2x4xf32>
    %13 = vector.extract_strided_slice %1 {offsets = [1, 0], sizes = [2, 4], strides = [1, 1]} : vector<4x4xf32> to vector<2x4xf32>
    %14 = vector.extract_strided_slice %1 {offsets = [2, 0], sizes = [2, 4], strides = [1, 1]} : vector<4x4xf32> to vector<2x4xf32>
    %15 = arith.addf %13, %14 : vector<2x4xf32>
    %cst_4 = arith.constant 5.000000e-01 : f32
    %16 = vector.broadcast %cst_4 : f32 to vector<2x4xf32>
    %17 = arith.mulf %15, %16 : vector<2x4xf32>
    %c0_5 = arith.constant 0 : index
    %c0_6 = arith.constant 0 : index
    %c0_7 = arith.constant 0 : index
    %18 = vector.load %arg1[%c0_5, %c0_6, %c0_7] : memref<1x2x2xf32, #tpu.memory_space<vmem>>, vector<1x2x2xf32>
    %19 = vector.shape_cast %18 : vector<1x2x2xf32> to vector<2x2xf32>
    %20 = vector.extract_strided_slice %12 {offsets = [0, 0], sizes = [2, 2], strides = [1, 1]} : vector<2x4xf32> to vector<2x2xf32>
    %cst_8 = arith.constant 1.250000e-01 : f32
    %21 = vector.broadcast %cst_8 : f32 to vector<2x2xf32>
    %22 = arith.mulf %20, %21 : vector<2x2xf32>
    %23 = vector.extract_strided_slice %12 {offsets = [0, 1], sizes = [2, 2], strides = [1, 1]} : vector<2x4xf32> to vector<2x2xf32>
    %cst_9 = arith.constant 7.500000e-01 : f32
    %24 = vector.broadcast %cst_9 : f32 to vector<2x2xf32>
    %25 = arith.mulf %23, %24 : vector<2x2xf32>
    %26 = arith.addf %22, %25 : vector<2x2xf32>
    %27 = vector.extract_strided_slice %12 {offsets = [0, 2], sizes = [2, 2], strides = [1, 1]} : vector<2x4xf32> to vector<2x2xf32>
    %cst_10 = arith.constant 1.250000e-01 : f32
    %28 = vector.broadcast %cst_10 : f32 to vector<2x2xf32>
    %29 = arith.mulf %27, %28 : vector<2x2xf32>
    %30 = arith.addf %26, %29 : vector<2x2xf32>
    %31 = arith.subf %19, %30 : vector<2x2xf32>
    %32 = math.absf %31 : vector<2x2xf32>
    %33 = vector.shape_cast %32 : vector<2x2xf32> to vector<1x2x2xf32>
    %cst_11 = arith.constant dense<0.000000e+00> : vector<1xf32>
    %34 = vector.multi_reduction <add>, %33, %cst_11 [1, 2] : vector<1x2x2xf32> to vector<1xf32>
    %35 = vector.shape_cast %34 : vector<1xf32> to vector<1x1x1xf32>
    %36 = vector.extract %35[0, 0, 0] : f32 from vector<1x1x1xf32>
    %37 = vector.broadcast %36 : f32 to vector<1x1xf32>
    %c0_12 = arith.constant 0 : index
    %c0_13 = arith.constant 0 : index
    %c0_14 = arith.constant 0 : index
    %38 = vector.load %arg2[%c0_12, %c0_13, %c0_14] : memref<1x2x2xf32, #tpu.memory_space<vmem>>, vector<1x2x2xf32>
    %39 = vector.shape_cast %38 : vector<1x2x2xf32> to vector<2x2xf32>
    %40 = vector.extract_strided_slice %12 {offsets = [0, 1], sizes = [2, 2], strides = [1, 1]} : vector<2x4xf32> to vector<2x2xf32>
    %41 = vector.extract_strided_slice %12 {offsets = [0, 2], sizes = [2, 2], strides = [1, 1]} : vector<2x4xf32> to vector<2x2xf32>
    %42 = arith.addf %40, %41 : vector<2x2xf32>
    %cst_15 = arith.constant 5.000000e-01 : f32
    %43 = vector.broadcast %cst_15 : f32 to vector<2x2xf32>
    %44 = arith.mulf %42, %43 : vector<2x2xf32>
    %45 = arith.subf %39, %44 : vector<2x2xf32>
    %46 = math.absf %45 : vector<2x2xf32>
    %47 = vector.shape_cast %46 : vector<2x2xf32> to vector<1x2x2xf32>
    %cst_16 = arith.constant dense<0.000000e+00> : vector<1xf32>
    %48 = vector.multi_reduction <add>, %47, %cst_16 [1, 2] : vector<1x2x2xf32> to vector<1xf32>
    %49 = vector.shape_cast %48 : vector<1xf32> to vector<1x1x1xf32>
    %50 = vector.extract %49[0, 0, 0] : f32 from vector<1x1x1xf32>
    %51 = vector.broadcast %50 : f32 to vector<1x1xf32>
    %52 = arith.addf %37, %51 : vector<1x1xf32>
    %c0_17 = arith.constant 0 : index
    %c0_18 = arith.constant 0 : index
    %c0_19 = arith.constant 0 : index
    %53 = vector.load %arg3[%c0_17, %c0_18, %c0_19] : memref<1x2x2xf32, #tpu.memory_space<vmem>>, vector<1x2x2xf32>
    %54 = vector.shape_cast %53 : vector<1x2x2xf32> to vector<2x2xf32>
    %55 = vector.extract_strided_slice %17 {offsets = [0, 0], sizes = [2, 2], strides = [1, 1]} : vector<2x4xf32> to vector<2x2xf32>
    %cst_20 = arith.constant 1.250000e-01 : f32
    %56 = vector.broadcast %cst_20 : f32 to vector<2x2xf32>
    %57 = arith.mulf %55, %56 : vector<2x2xf32>
    %58 = vector.extract_strided_slice %17 {offsets = [0, 1], sizes = [2, 2], strides = [1, 1]} : vector<2x4xf32> to vector<2x2xf32>
    %cst_21 = arith.constant 7.500000e-01 : f32
    %59 = vector.broadcast %cst_21 : f32 to vector<2x2xf32>
    %60 = arith.mulf %58, %59 : vector<2x2xf32>
    %61 = arith.addf %57, %60 : vector<2x2xf32>
    %62 = vector.extract_strided_slice %17 {offsets = [0, 2], sizes = [2, 2], strides = [1, 1]} : vector<2x4xf32> to vector<2x2xf32>
    %cst_22 = arith.constant 1.250000e-01 : f32
    %63 = vector.broadcast %cst_22 : f32 to vector<2x2xf32>
    %64 = arith.mulf %62, %63 : vector<2x2xf32>
    %65 = arith.addf %61, %64 : vector<2x2xf32>
    %66 = arith.subf %54, %65 : vector<2x2xf32>
    %67 = math.absf %66 : vector<2x2xf32>
    %68 = vector.shape_cast %67 : vector<2x2xf32> to vector<1x2x2xf32>
    %cst_23 = arith.constant dense<0.000000e+00> : vector<1xf32>
    %69 = vector.multi_reduction <add>, %68, %cst_23 [1, 2] : vector<1x2x2xf32> to vector<1xf32>
    %70 = vector.shape_cast %69 : vector<1xf32> to vector<1x1x1xf32>
    %71 = vector.extract %70[0, 0, 0] : f32 from vector<1x1x1xf32>
    %72 = vector.broadcast %71 : f32 to vector<1x1xf32>
    %73 = arith.addf %52, %72 : vector<1x1xf32>
    %c0_24 = arith.constant 0 : index
    %c0_25 = arith.constant 0 : index
    %c0_26 = arith.constant 0 : index
    %74 = vector.load %arg4[%c0_24, %c0_25, %c0_26] : memref<1x2x2xf32, #tpu.memory_space<vmem>>, vector<1x2x2xf32>
    %75 = vector.shape_cast %74 : vector<1x2x2xf32> to vector<2x2xf32>
    %76 = vector.extract_strided_slice %17 {offsets = [0, 1], sizes = [2, 2], strides = [1, 1]} : vector<2x4xf32> to vector<2x2xf32>
    %77 = vector.extract_strided_slice %17 {offsets = [0, 2], sizes = [2, 2], strides = [1, 1]} : vector<2x4xf32> to vector<2x2xf32>
    %78 = arith.addf %76, %77 : vector<2x2xf32>
    %cst_27 = arith.constant 5.000000e-01 : f32
    %79 = vector.broadcast %cst_27 : f32 to vector<2x2xf32>
    %80 = arith.mulf %78, %79 : vector<2x2xf32>
    %81 = arith.subf %75, %80 : vector<2x2xf32>
    %82 = math.absf %81 : vector<2x2xf32>
    %83 = vector.shape_cast %82 : vector<2x2xf32> to vector<1x2x2xf32>
    %cst_28 = arith.constant dense<0.000000e+00> : vector<1xf32>
    %84 = vector.multi_reduction <add>, %83, %cst_28 [1, 2] : vector<1x2x2xf32> to vector<1xf32>
    %85 = vector.shape_cast %84 : vector<1xf32> to vector<1x1x1xf32>
    %86 = vector.extract %85[0, 0, 0] : f32 from vector<1x1x1xf32>
    %87 = vector.broadcast %86 : f32 to vector<1x1xf32>
    %88 = arith.addf %73, %87 : vector<1x1xf32>
    %c0_29 = arith.constant 0 : index
    %c0_30 = arith.constant 0 : index
    %c0_31 = arith.constant 0 : index
    %89 = vector.load %arg6[%c0_29, %c0_30, %c0_31] : memref<1x1x1xf32, #tpu.memory_space<vmem>>, vector<1x1x1xf32>
    %90 = vector.shape_cast %89 : vector<1x1x1xf32> to vector<1x1xf32>
    %91 = vector.shape_cast %88 : vector<1x1xf32> to vector<1x1x1xf32>
    tpu.vector_store %arg6[%c0_29, %c0_30, %c0_31], %91 {strides = array<i32>} : memref<1x1x1xf32, #tpu.memory_space<vmem>>, vector<1x1x1xf32>,
    return
  }
  func.func @transform_0(%arg0: i32) -> (i32, i32, i32) {
    %c0_i32 = arith.constant 0 : i32
    %c0_i32_0 = arith.constant 0 : i32
    %c0_i32_1 = arith.constant 0 : i32
    return %arg0, %c0_i32, %c0_i32_0 : i32, i32, i32
  }
  func.func @transform_1(%arg0: i32) -> (i32, i32, i32) {
    %c0_i32 = arith.constant 0 : i32
    %c0_i32_0 = arith.constant 0 : i32
    %c0_i32_1 = arith.constant 0 : i32
    return %arg0, %c0_i32, %c0_i32_0 : i32, i32, i32
  }
  func.func @transform_2(%arg0: i32) -> (i32, i32, i32) {
    %c0_i32 = arith.constant 0 : i32
    %c0_i32_0 = arith.constant 0 : i32
    %c0_i32_1 = arith.constant 0 : i32
    return %arg0, %c0_i32, %c0_i32_0 : i32, i32, i32
  }
  func.func @transform_3(%arg0: i32) -> (i32, i32, i32) {
    %c0_i32 = arith.constant 0 : i32
    %c0_i32_0 = arith.constant 0 : i32
    %c0_i32_1 = arith.constant 0 : i32
    return %arg0, %c0_i32, %c0_i32_0 : i32, i32, i32
  }
  func.func @transform_4(%arg0: i32) -> (i32, i32, i32) {
    %c0_i32 = arith.constant 0 : i32
    %c0_i32_0 = arith.constant 0 : i32
    %c0_i32_1 = arith.constant 0 : i32
    return %arg0, %c0_i32, %c0_i32_0 : i32, i32, i32
  }
  func.func @transform_5(%arg0: i32) -> (i32, i32, i32) {
    %c0_i32 = arith.constant 0 : i32
    %c0_i32_0 = arith.constant 0 : i32
    %c0_i32_1 = arith.constant 0 : i32
    return %arg0, %c0_i32, %c0_i32_0 : i32, i32, i32
  }
}

module attributes {stable_mosaic.version = 11 : i64} {
  func.func @kernel(%arg0: i32, %arg1: memref<1x4x4xf32, #tpu.memory_space<vmem>>, %arg2: memref<1x4x4xf32, #tpu.memory_space<vmem>>, %arg3: memref<1x4x4xf32, #tpu.memory_space<vmem>>, %arg4: memref<1x4x4xf32, #tpu.memory_space<vmem>>, %arg5: memref<1x6x6xf32, #tpu.memory_space<vmem>>, %arg6: memref<1x1x1xf32, #tpu.memory_space<vmem>>) attributes {dimension_semantics = [#tpu.dimension_semantics<parallel>], iteration_bounds = array<i64: 2>, scalar_prefetch = 0 : i64, scratch_operands = 0 : i64, tpu.core_type = #tpu.core_type<tc>, window_params = [{transform_indices = @transform_0, window_bounds = array<i64: 1, 4, 4>}, {transform_indices = @transform_1, window_bounds = array<i64: 1, 4, 4>}, {transform_indices = @transform_2, window_bounds = array<i64: 1, 4, 4>}, {transform_indices = @transform_3, window_bounds = array<i64: 1, 4, 4>}, {transform_indices = @transform_4, window_bounds = array<i64: 1, 6, 6>}, {transform_indices = @transform_5, window_bounds = array<i64: 1, 1, 1>}]} {
    %c0 = arith.constant 0 : index
    %c0_0 = arith.constant 0 : index
    %c0_1 = arith.constant 0 : index
    %0 = vector.load %arg5[%c0, %c0_0, %c0_1] : memref<1x6x6xf32, #tpu.memory_space<vmem>>, vector<1x6x6xf32>
    %1 = vector.shape_cast %0 : vector<1x6x6xf32> to vector<6x6xf32>
    %2 = vector.extract_strided_slice %1 {offsets = [0, 0], sizes = [4, 6], strides = [1, 1]} : vector<6x6xf32> to vector<4x6xf32>
    %cst = arith.constant 1.250000e-01 : f32
    %3 = vector.broadcast %cst : f32 to vector<4x6xf32>
    %4 = arith.mulf %2, %3 : vector<4x6xf32>
    %5 = vector.extract_strided_slice %1 {offsets = [1, 0], sizes = [4, 6], strides = [1, 1]} : vector<6x6xf32> to vector<4x6xf32>
    %cst_2 = arith.constant 7.500000e-01 : f32
    %6 = vector.broadcast %cst_2 : f32 to vector<4x6xf32>
    %7 = arith.mulf %5, %6 : vector<4x6xf32>
    %8 = arith.addf %4, %7 : vector<4x6xf32>
    %9 = vector.extract_strided_slice %1 {offsets = [2, 0], sizes = [4, 6], strides = [1, 1]} : vector<6x6xf32> to vector<4x6xf32>
    %cst_3 = arith.constant 1.250000e-01 : f32
    %10 = vector.broadcast %cst_3 : f32 to vector<4x6xf32>
    %11 = arith.mulf %9, %10 : vector<4x6xf32>
    %12 = arith.addf %8, %11 : vector<4x6xf32>
    %13 = vector.extract_strided_slice %1 {offsets = [1, 0], sizes = [4, 6], strides = [1, 1]} : vector<6x6xf32> to vector<4x6xf32>
    %14 = vector.extract_strided_slice %1 {offsets = [2, 0], sizes = [4, 6], strides = [1, 1]} : vector<6x6xf32> to vector<4x6xf32>
    %15 = arith.addf %13, %14 : vector<4x6xf32>
    %cst_4 = arith.constant 5.000000e-01 : f32
    %16 = vector.broadcast %cst_4 : f32 to vector<4x6xf32>
    %17 = arith.mulf %15, %16 : vector<4x6xf32>
    %c0_5 = arith.constant 0 : index
    %c0_6 = arith.constant 0 : index
    %c0_7 = arith.constant 0 : index
    %18 = vector.load %arg1[%c0_5, %c0_6, %c0_7] : memref<1x4x4xf32, #tpu.memory_space<vmem>>, vector<1x4x4xf32>
    %19 = vector.shape_cast %18 : vector<1x4x4xf32> to vector<4x4xf32>
    %20 = vector.extract_strided_slice %12 {offsets = [0, 0], sizes = [4, 4], strides = [1, 1]} : vector<4x6xf32> to vector<4x4xf32>
    %cst_8 = arith.constant 1.250000e-01 : f32
    %21 = vector.broadcast %cst_8 : f32 to vector<4x4xf32>
    %22 = arith.mulf %20, %21 : vector<4x4xf32>
    %23 = vector.extract_strided_slice %12 {offsets = [0, 1], sizes = [4, 4], strides = [1, 1]} : vector<4x6xf32> to vector<4x4xf32>
    %cst_9 = arith.constant 7.500000e-01 : f32
    %24 = vector.broadcast %cst_9 : f32 to vector<4x4xf32>
    %25 = arith.mulf %23, %24 : vector<4x4xf32>
    %26 = arith.addf %22, %25 : vector<4x4xf32>
    %27 = vector.extract_strided_slice %12 {offsets = [0, 2], sizes = [4, 4], strides = [1, 1]} : vector<4x6xf32> to vector<4x4xf32>
    %cst_10 = arith.constant 1.250000e-01 : f32
    %28 = vector.broadcast %cst_10 : f32 to vector<4x4xf32>
    %29 = arith.mulf %27, %28 : vector<4x4xf32>
    %30 = arith.addf %26, %29 : vector<4x4xf32>
    %31 = arith.subf %19, %30 : vector<4x4xf32>
    %32 = math.absf %31 : vector<4x4xf32>
    %33 = vector.shape_cast %32 : vector<4x4xf32> to vector<1x4x4xf32>
    %cst_11 = arith.constant dense<0.000000e+00> : vector<1xf32>
    %34 = vector.multi_reduction <add>, %33, %cst_11 [1, 2] : vector<1x4x4xf32> to vector<1xf32>
    %35 = vector.shape_cast %34 : vector<1xf32> to vector<1x1x1xf32>
    %36 = vector.extract %35[0, 0, 0] : f32 from vector<1x1x1xf32>
    %37 = vector.broadcast %36 : f32 to vector<1x1xf32>
    %c0_12 = arith.constant 0 : index
    %c0_13 = arith.constant 0 : index
    %c0_14 = arith.constant 0 : index
    %38 = vector.load %arg2[%c0_12, %c0_13, %c0_14] : memref<1x4x4xf32, #tpu.memory_space<vmem>>, vector<1x4x4xf32>
    %39 = vector.shape_cast %38 : vector<1x4x4xf32> to vector<4x4xf32>
    %40 = vector.extract_strided_slice %12 {offsets = [0, 1], sizes = [4, 4], strides = [1, 1]} : vector<4x6xf32> to vector<4x4xf32>
    %41 = vector.extract_strided_slice %12 {offsets = [0, 2], sizes = [4, 4], strides = [1, 1]} : vector<4x6xf32> to vector<4x4xf32>
    %42 = arith.addf %40, %41 : vector<4x4xf32>
    %cst_15 = arith.constant 5.000000e-01 : f32
    %43 = vector.broadcast %cst_15 : f32 to vector<4x4xf32>
    %44 = arith.mulf %42, %43 : vector<4x4xf32>
    %45 = arith.subf %39, %44 : vector<4x4xf32>
    %46 = math.absf %45 : vector<4x4xf32>
    %47 = vector.shape_cast %46 : vector<4x4xf32> to vector<1x4x4xf32>
    %cst_16 = arith.constant dense<0.000000e+00> : vector<1xf32>
    %48 = vector.multi_reduction <add>, %47, %cst_16 [1, 2] : vector<1x4x4xf32> to vector<1xf32>
    %49 = vector.shape_cast %48 : vector<1xf32> to vector<1x1x1xf32>
    %50 = vector.extract %49[0, 0, 0] : f32 from vector<1x1x1xf32>
    %51 = vector.broadcast %50 : f32 to vector<1x1xf32>
    %52 = arith.addf %37, %51 : vector<1x1xf32>
    %c0_17 = arith.constant 0 : index
    %c0_18 = arith.constant 0 : index
    %c0_19 = arith.constant 0 : index
    %53 = vector.load %arg3[%c0_17, %c0_18, %c0_19] : memref<1x4x4xf32, #tpu.memory_space<vmem>>, vector<1x4x4xf32>
    %54 = vector.shape_cast %53 : vector<1x4x4xf32> to vector<4x4xf32>
    %55 = vector.extract_strided_slice %17 {offsets = [0, 0], sizes = [4, 4], strides = [1, 1]} : vector<4x6xf32> to vector<4x4xf32>
    %cst_20 = arith.constant 1.250000e-01 : f32
    %56 = vector.broadcast %cst_20 : f32 to vector<4x4xf32>
    %57 = arith.mulf %55, %56 : vector<4x4xf32>
    %58 = vector.extract_strided_slice %17 {offsets = [0, 1], sizes = [4, 4], strides = [1, 1]} : vector<4x6xf32> to vector<4x4xf32>
    %cst_21 = arith.constant 7.500000e-01 : f32
    %59 = vector.broadcast %cst_21 : f32 to vector<4x4xf32>
    %60 = arith.mulf %58, %59 : vector<4x4xf32>
    %61 = arith.addf %57, %60 : vector<4x4xf32>
    %62 = vector.extract_strided_slice %17 {offsets = [0, 2], sizes = [4, 4], strides = [1, 1]} : vector<4x6xf32> to vector<4x4xf32>
    %cst_22 = arith.constant 1.250000e-01 : f32
    %63 = vector.broadcast %cst_22 : f32 to vector<4x4xf32>
    %64 = arith.mulf %62, %63 : vector<4x4xf32>
    %65 = arith.addf %61, %64 : vector<4x4xf32>
    %66 = arith.subf %54, %65 : vector<4x4xf32>
    %67 = math.absf %66 : vector<4x4xf32>
    %68 = vector.shape_cast %67 : vector<4x4xf32> to vector<1x4x4xf32>
    %cst_23 = arith.constant dense<0.000000e+00> : vector<1xf32>
    %69 = vector.multi_reduction <add>, %68, %cst_23 [1, 2] : vector<1x4x4xf32> to vector<1xf32>
    %70 = vector.shape_cast %69 : vector<1xf32> to vector<1x1x1xf32>
    %71 = vector.extract %70[0, 0, 0] : f32 from vector<1x1x1xf32>
    %72 = vector.broadcast %71 : f32 to vector<1x1xf32>
    %73 = arith.addf %52, %72 : vector<1x1xf32>
    %c0_24 = arith.constant 0 : index
    %c0_25 = arith.constant 0 : index
    %c0_26 = arith.constant 0 : index
    %74 = vector.load %arg4[%c0_24, %c0_25, %c0_26] : memref<1x4x4xf32, #tpu.memory_space<vmem>>, vector<1x4x4xf32>
    %75 = vector.shape_cast %74 : vector<1x4x4xf32> to vector<4x4xf32>
    %76 = vector.extract_strided_slice %17 {offsets = [0, 1], sizes = [4, 4], strides = [1, 1]} : vector<4x6xf32> to vector<4x4xf32>
    %77 = vector.extract_strided_slice %17 {offsets = [0, 2], sizes = [4, 4], strides = [1, 1]} : vector<4x6xf32> to vector<4x4xf32>
    %78 = arith.addf %76, %77 : vector<4x4xf32>
    %cst_27 = arith.constant 5.000000e-01 : f32
    %79 = vector.broadcast %cst_27 : f32 to vector<4x4xf32>
    %80 = arith.mulf %78, %79 : vector<4x4xf32>
    %81 = arith.subf %75, %80 : vector<4x4xf32>
    %82 = math.absf %81 : vector<4x4xf32>
    %83 = vector.shape_cast %82 : vector<4x4xf32> to vector<1x4x4xf32>
    %cst_28 = arith.constant dense<0.000000e+00> : vector<1xf32>
    %84 = vector.multi_reduction <add>, %83, %cst_28 [1, 2] : vector<1x4x4xf32> to vector<1xf32>
    %85 = vector.shape_cast %84 : vector<1xf32> to vector<1x1x1xf32>
    %86 = vector.extract %85[0, 0, 0] : f32 from vector<1x1x1xf32>
    %87 = vector.broadcast %86 : f32 to vector<1x1xf32>
    %88 = arith.addf %73, %87 : vector<1x1xf32>
    %c0_29 = arith.constant 0 : index
    %c0_30 = arith.constant 0 : index
    %c0_31 = arith.constant 0 : index
    %89 = vector.load %arg6[%c0_29, %c0_30, %c0_31] : memref<1x1x1xf32, #tpu.memory_space<vmem>>, vector<1x1x1xf32>
    %90 = vector.shape_cast %89 : vector<1x1x1xf32> to vector<1x1xf32>
    %91 = vector.shape_cast %88 : vector<1x1xf32> to vector<1x1x1xf32>
    tpu.vector_store %arg6[%c0_29, %c0_30, %c0_31], %91 {strides = array<i32>} : memref<1x1x1xf32, #tpu.memory_space<vmem>>, vector<1x1x1xf32>,
    return
  }
  func.func @transform_0(%arg0: i32) -> (i32, i32, i32) {
    %c0_i32 = arith.constant 0 : i32
    %c0_i32_0 = arith.constant 0 : i32
    %c0_i32_1 = arith.constant 0 : i32
    return %arg0, %c0_i32, %c0_i32_0 : i32, i32, i32
  }
  func.func @transform_1(%arg0: i32) -> (i32, i32, i32) {
    %c0_i32 = arith.constant 0 : i32
    %c0_i32_0 = arith.constant 0 : i32
    %c0_i32_1 = arith.constant 0 : i32
    return %arg0, %c0_i32, %c0_i32_0 : i32, i32, i32
  }
  func.func @transform_2(%arg0: i32) -> (i32, i32, i32) {
    %c0_i32 = arith.constant 0 : i32
    %c0_i32_0 = arith.constant 0 : i32
    %c0_i32_1 = arith.constant 0 : i32
    return %arg0, %c0_i32, %c0_i32_0 : i32, i32, i32
  }
  func.func @transform_3(%arg0: i32) -> (i32, i32, i32) {
    %c0_i32 = arith.constant 0 : i32
    %c0_i32_0 = arith.constant 0 : i32
    %c0_i32_1 = arith.constant 0 : i32
    return %arg0, %c0_i32, %c0_i32_0 : i32, i32, i32
  }
  func.func @transform_4(%arg0: i32) -> (i32, i32, i32) {
    %c0_i32 = arith.constant 0 : i32
    %c0_i32_0 = arith.constant 0 : i32
    %c0_i32_1 = arith.constant 0 : i32
    return %arg0, %c0_i32, %c0_i32_0 : i32, i32, i32
  }
  func.func @transform_5(%arg0: i32) -> (i32, i32, i32) {
    %c0_i32 = arith.constant 0 : i32
    %c0_i32_0 = arith.constant 0 : i32
    %c0_i32_1 = arith.constant 0 : i32
    return %arg0, %c0_i32, %c0_i32_0 : i32, i32, i32
  }
}

module attributes {stable_mosaic.version = 11 : i64} {
  func.func @kernel(%arg0: i32, %arg1: memref<1x8x8xf32, #tpu.memory_space<vmem>>, %arg2: memref<1x8x8xf32, #tpu.memory_space<vmem>>, %arg3: memref<1x8x8xf32, #tpu.memory_space<vmem>>, %arg4: memref<1x8x8xf32, #tpu.memory_space<vmem>>, %arg5: memref<1x10x10xf32, #tpu.memory_space<vmem>>, %arg6: memref<1x1x1xf32, #tpu.memory_space<vmem>>) attributes {dimension_semantics = [#tpu.dimension_semantics<parallel>], iteration_bounds = array<i64: 2>, scalar_prefetch = 0 : i64, scratch_operands = 0 : i64, tpu.core_type = #tpu.core_type<tc>, window_params = [{transform_indices = @transform_0, window_bounds = array<i64: 1, 8, 8>}, {transform_indices = @transform_1, window_bounds = array<i64: 1, 8, 8>}, {transform_indices = @transform_2, window_bounds = array<i64: 1, 8, 8>}, {transform_indices = @transform_3, window_bounds = array<i64: 1, 8, 8>}, {transform_indices = @transform_4, window_bounds = array<i64: 1, 10, 10>}, {transform_indices = @transform_5, window_bounds = array<i64: 1, 1, 1>}]} {
    %c0 = arith.constant 0 : index
    %c0_0 = arith.constant 0 : index
    %c0_1 = arith.constant 0 : index
    %0 = vector.load %arg5[%c0, %c0_0, %c0_1] : memref<1x10x10xf32, #tpu.memory_space<vmem>>, vector<1x10x10xf32>
    %1 = vector.shape_cast %0 : vector<1x10x10xf32> to vector<10x10xf32>
    %2 = vector.extract_strided_slice %1 {offsets = [0, 0], sizes = [8, 10], strides = [1, 1]} : vector<10x10xf32> to vector<8x10xf32>
    %cst = arith.constant 1.250000e-01 : f32
    %3 = vector.broadcast %cst : f32 to vector<8x10xf32>
    %4 = arith.mulf %2, %3 : vector<8x10xf32>
    %5 = vector.extract_strided_slice %1 {offsets = [1, 0], sizes = [8, 10], strides = [1, 1]} : vector<10x10xf32> to vector<8x10xf32>
    %cst_2 = arith.constant 7.500000e-01 : f32
    %6 = vector.broadcast %cst_2 : f32 to vector<8x10xf32>
    %7 = arith.mulf %5, %6 : vector<8x10xf32>
    %8 = arith.addf %4, %7 : vector<8x10xf32>
    %9 = vector.extract_strided_slice %1 {offsets = [2, 0], sizes = [8, 10], strides = [1, 1]} : vector<10x10xf32> to vector<8x10xf32>
    %cst_3 = arith.constant 1.250000e-01 : f32
    %10 = vector.broadcast %cst_3 : f32 to vector<8x10xf32>
    %11 = arith.mulf %9, %10 : vector<8x10xf32>
    %12 = arith.addf %8, %11 : vector<8x10xf32>
    %13 = vector.extract_strided_slice %1 {offsets = [1, 0], sizes = [8, 10], strides = [1, 1]} : vector<10x10xf32> to vector<8x10xf32>
    %14 = vector.extract_strided_slice %1 {offsets = [2, 0], sizes = [8, 10], strides = [1, 1]} : vector<10x10xf32> to vector<8x10xf32>
    %15 = arith.addf %13, %14 : vector<8x10xf32>
    %cst_4 = arith.constant 5.000000e-01 : f32
    %16 = vector.broadcast %cst_4 : f32 to vector<8x10xf32>
    %17 = arith.mulf %15, %16 : vector<8x10xf32>
    %c0_5 = arith.constant 0 : index
    %c0_6 = arith.constant 0 : index
    %c0_7 = arith.constant 0 : index
    %18 = vector.load %arg1[%c0_5, %c0_6, %c0_7] : memref<1x8x8xf32, #tpu.memory_space<vmem>>, vector<1x8x8xf32>
    %19 = vector.shape_cast %18 : vector<1x8x8xf32> to vector<8x8xf32>
    %20 = vector.extract_strided_slice %12 {offsets = [0, 0], sizes = [8, 8], strides = [1, 1]} : vector<8x10xf32> to vector<8x8xf32>
    %cst_8 = arith.constant 1.250000e-01 : f32
    %21 = vector.broadcast %cst_8 : f32 to vector<8x8xf32>
    %22 = arith.mulf %20, %21 : vector<8x8xf32>
    %23 = vector.extract_strided_slice %12 {offsets = [0, 1], sizes = [8, 8], strides = [1, 1]} : vector<8x10xf32> to vector<8x8xf32>
    %cst_9 = arith.constant 7.500000e-01 : f32
    %24 = vector.broadcast %cst_9 : f32 to vector<8x8xf32>
    %25 = arith.mulf %23, %24 : vector<8x8xf32>
    %26 = arith.addf %22, %25 : vector<8x8xf32>
    %27 = vector.extract_strided_slice %12 {offsets = [0, 2], sizes = [8, 8], strides = [1, 1]} : vector<8x10xf32> to vector<8x8xf32>
    %cst_10 = arith.constant 1.250000e-01 : f32
    %28 = vector.broadcast %cst_10 : f32 to vector<8x8xf32>
    %29 = arith.mulf %27, %28 : vector<8x8xf32>
    %30 = arith.addf %26, %29 : vector<8x8xf32>
    %31 = arith.subf %19, %30 : vector<8x8xf32>
    %32 = math.absf %31 : vector<8x8xf32>
    %33 = vector.shape_cast %32 : vector<8x8xf32> to vector<1x8x8xf32>
    %cst_11 = arith.constant dense<0.000000e+00> : vector<1xf32>
    %34 = vector.multi_reduction <add>, %33, %cst_11 [1, 2] : vector<1x8x8xf32> to vector<1xf32>
    %35 = vector.shape_cast %34 : vector<1xf32> to vector<1x1x1xf32>
    %36 = vector.extract %35[0, 0, 0] : f32 from vector<1x1x1xf32>
    %37 = vector.broadcast %36 : f32 to vector<1x1xf32>
    %c0_12 = arith.constant 0 : index
    %c0_13 = arith.constant 0 : index
    %c0_14 = arith.constant 0 : index
    %38 = vector.load %arg2[%c0_12, %c0_13, %c0_14] : memref<1x8x8xf32, #tpu.memory_space<vmem>>, vector<1x8x8xf32>
    %39 = vector.shape_cast %38 : vector<1x8x8xf32> to vector<8x8xf32>
    %40 = vector.extract_strided_slice %12 {offsets = [0, 1], sizes = [8, 8], strides = [1, 1]} : vector<8x10xf32> to vector<8x8xf32>
    %41 = vector.extract_strided_slice %12 {offsets = [0, 2], sizes = [8, 8], strides = [1, 1]} : vector<8x10xf32> to vector<8x8xf32>
    %42 = arith.addf %40, %41 : vector<8x8xf32>
    %cst_15 = arith.constant 5.000000e-01 : f32
    %43 = vector.broadcast %cst_15 : f32 to vector<8x8xf32>
    %44 = arith.mulf %42, %43 : vector<8x8xf32>
    %45 = arith.subf %39, %44 : vector<8x8xf32>
    %46 = math.absf %45 : vector<8x8xf32>
    %47 = vector.shape_cast %46 : vector<8x8xf32> to vector<1x8x8xf32>
    %cst_16 = arith.constant dense<0.000000e+00> : vector<1xf32>
    %48 = vector.multi_reduction <add>, %47, %cst_16 [1, 2] : vector<1x8x8xf32> to vector<1xf32>
    %49 = vector.shape_cast %48 : vector<1xf32> to vector<1x1x1xf32>
    %50 = vector.extract %49[0, 0, 0] : f32 from vector<1x1x1xf32>
    %51 = vector.broadcast %50 : f32 to vector<1x1xf32>
    %52 = arith.addf %37, %51 : vector<1x1xf32>
    %c0_17 = arith.constant 0 : index
    %c0_18 = arith.constant 0 : index
    %c0_19 = arith.constant 0 : index
    %53 = vector.load %arg3[%c0_17, %c0_18, %c0_19] : memref<1x8x8xf32, #tpu.memory_space<vmem>>, vector<1x8x8xf32>
    %54 = vector.shape_cast %53 : vector<1x8x8xf32> to vector<8x8xf32>
    %55 = vector.extract_strided_slice %17 {offsets = [0, 0], sizes = [8, 8], strides = [1, 1]} : vector<8x10xf32> to vector<8x8xf32>
    %cst_20 = arith.constant 1.250000e-01 : f32
    %56 = vector.broadcast %cst_20 : f32 to vector<8x8xf32>
    %57 = arith.mulf %55, %56 : vector<8x8xf32>
    %58 = vector.extract_strided_slice %17 {offsets = [0, 1], sizes = [8, 8], strides = [1, 1]} : vector<8x10xf32> to vector<8x8xf32>
    %cst_21 = arith.constant 7.500000e-01 : f32
    %59 = vector.broadcast %cst_21 : f32 to vector<8x8xf32>
    %60 = arith.mulf %58, %59 : vector<8x8xf32>
    %61 = arith.addf %57, %60 : vector<8x8xf32>
    %62 = vector.extract_strided_slice %17 {offsets = [0, 2], sizes = [8, 8], strides = [1, 1]} : vector<8x10xf32> to vector<8x8xf32>
    %cst_22 = arith.constant 1.250000e-01 : f32
    %63 = vector.broadcast %cst_22 : f32 to vector<8x8xf32>
    %64 = arith.mulf %62, %63 : vector<8x8xf32>
    %65 = arith.addf %61, %64 : vector<8x8xf32>
    %66 = arith.subf %54, %65 : vector<8x8xf32>
    %67 = math.absf %66 : vector<8x8xf32>
    %68 = vector.shape_cast %67 : vector<8x8xf32> to vector<1x8x8xf32>
    %cst_23 = arith.constant dense<0.000000e+00> : vector<1xf32>
    %69 = vector.multi_reduction <add>, %68, %cst_23 [1, 2] : vector<1x8x8xf32> to vector<1xf32>
    %70 = vector.shape_cast %69 : vector<1xf32> to vector<1x1x1xf32>
    %71 = vector.extract %70[0, 0, 0] : f32 from vector<1x1x1xf32>
    %72 = vector.broadcast %71 : f32 to vector<1x1xf32>
    %73 = arith.addf %52, %72 : vector<1x1xf32>
    %c0_24 = arith.constant 0 : index
    %c0_25 = arith.constant 0 : index
    %c0_26 = arith.constant 0 : index
    %74 = vector.load %arg4[%c0_24, %c0_25, %c0_26] : memref<1x8x8xf32, #tpu.memory_space<vmem>>, vector<1x8x8xf32>
    %75 = vector.shape_cast %74 : vector<1x8x8xf32> to vector<8x8xf32>
    %76 = vector.extract_strided_slice %17 {offsets = [0, 1], sizes = [8, 8], strides = [1, 1]} : vector<8x10xf32> to vector<8x8xf32>
    %77 = vector.extract_strided_slice %17 {offsets = [0, 2], sizes = [8, 8], strides = [1, 1]} : vector<8x10xf32> to vector<8x8xf32>
    %78 = arith.addf %76, %77 : vector<8x8xf32>
    %cst_27 = arith.constant 5.000000e-01 : f32
    %79 = vector.broadcast %cst_27 : f32 to vector<8x8xf32>
    %80 = arith.mulf %78, %79 : vector<8x8xf32>
    %81 = arith.subf %75, %80 : vector<8x8xf32>
    %82 = math.absf %81 : vector<8x8xf32>
    %83 = vector.shape_cast %82 : vector<8x8xf32> to vector<1x8x8xf32>
    %cst_28 = arith.constant dense<0.000000e+00> : vector<1xf32>
    %84 = vector.multi_reduction <add>, %83, %cst_28 [1, 2] : vector<1x8x8xf32> to vector<1xf32>
    %85 = vector.shape_cast %84 : vector<1xf32> to vector<1x1x1xf32>
    %86 = vector.extract %85[0, 0, 0] : f32 from vector<1x1x1xf32>
    %87 = vector.broadcast %86 : f32 to vector<1x1xf32>
    %88 = arith.addf %73, %87 : vector<1x1xf32>
    %c0_29 = arith.constant 0 : index
    %c0_30 = arith.constant 0 : index
    %c0_31 = arith.constant 0 : index
    %89 = vector.load %arg6[%c0_29, %c0_30, %c0_31] : memref<1x1x1xf32, #tpu.memory_space<vmem>>, vector<1x1x1xf32>
    %90 = vector.shape_cast %89 : vector<1x1x1xf32> to vector<1x1xf32>
    %91 = vector.shape_cast %88 : vector<1x1xf32> to vector<1x1x1xf32>
    tpu.vector_store %arg6[%c0_29, %c0_30, %c0_31], %91 {strides = array<i32>} : memref<1x1x1xf32, #tpu.memory_space<vmem>>, vector<1x1x1xf32>,
    return
  }
  func.func @transform_0(%arg0: i32) -> (i32, i32, i32) {
    %c0_i32 = arith.constant 0 : i32
    %c0_i32_0 = arith.constant 0 : i32
    %c0_i32_1 = arith.constant 0 : i32
    return %arg0, %c0_i32, %c0_i32_0 : i32, i32, i32
  }
  func.func @transform_1(%arg0: i32) -> (i32, i32, i32) {
    %c0_i32 = arith.constant 0 : i32
    %c0_i32_0 = arith.constant 0 : i32
    %c0_i32_1 = arith.constant 0 : i32
    return %arg0, %c0_i32, %c0_i32_0 : i32, i32, i32
  }
  func.func @transform_2(%arg0: i32) -> (i32, i32, i32) {
    %c0_i32 = arith.constant 0 : i32
    %c0_i32_0 = arith.constant 0 : i32
    %c0_i32_1 = arith.constant 0 : i32
    return %arg0, %c0_i32, %c0_i32_0 : i32, i32, i32
  }
  func.func @transform_3(%arg0: i32) -> (i32, i32, i32) {
    %c0_i32 = arith.constant 0 : i32
    %c0_i32_0 = arith.constant 0 : i32
    %c0_i32_1 = arith.constant 0 : i32
    return %arg0, %c0_i32, %c0_i32_0 : i32, i32, i32
  }
  func.func @transform_4(%arg0: i32) -> (i32, i32, i32) {
    %c0_i32 = arith.constant 0 : i32
    %c0_i32_0 = arith.constant 0 : i32
    %c0_i32_1 = arith.constant 0 : i32
    return %arg0, %c0_i32, %c0_i32_0 : i32, i32, i32
  }
  func.func @transform_5(%arg0: i32) -> (i32, i32, i32) {
    %c0_i32 = arith.constant 0 : i32
    %c0_i32_0 = arith.constant 0 : i32
    %c0_i32_1 = arith.constant 0 : i32
    return %arg0, %c0_i32, %c0_i32_0 : i32, i32, i32
  }
}

module attributes {stable_mosaic.version = 11 : i64} {
  func.func @kernel(%arg0: i32, %arg1: memref<1x16x16xf32, #tpu.memory_space<vmem>>, %arg2: memref<1x16x16xf32, #tpu.memory_space<vmem>>, %arg3: memref<1x16x16xf32, #tpu.memory_space<vmem>>, %arg4: memref<1x16x16xf32, #tpu.memory_space<vmem>>, %arg5: memref<1x18x18xf32, #tpu.memory_space<vmem>>, %arg6: memref<1x1x1xf32, #tpu.memory_space<vmem>>) attributes {dimension_semantics = [#tpu.dimension_semantics<parallel>], iteration_bounds = array<i64: 2>, scalar_prefetch = 0 : i64, scratch_operands = 0 : i64, tpu.core_type = #tpu.core_type<tc>, window_params = [{transform_indices = @transform_0, window_bounds = array<i64: 1, 16, 16>}, {transform_indices = @transform_1, window_bounds = array<i64: 1, 16, 16>}, {transform_indices = @transform_2, window_bounds = array<i64: 1, 16, 16>}, {transform_indices = @transform_3, window_bounds = array<i64: 1, 16, 16>}, {transform_indices = @transform_4, window_bounds = array<i64: 1, 18, 18>}, {transform_indices = @transform_5, window_bounds = array<i64: 1, 1, 1>}]} {
    %c0 = arith.constant 0 : index
    %c0_0 = arith.constant 0 : index
    %c0_1 = arith.constant 0 : index
    %0 = vector.load %arg5[%c0, %c0_0, %c0_1] : memref<1x18x18xf32, #tpu.memory_space<vmem>>, vector<1x18x18xf32>
    %1 = vector.shape_cast %0 : vector<1x18x18xf32> to vector<18x18xf32>
    %2 = vector.extract_strided_slice %1 {offsets = [0, 0], sizes = [16, 18], strides = [1, 1]} : vector<18x18xf32> to vector<16x18xf32>
    %cst = arith.constant 1.250000e-01 : f32
    %3 = vector.broadcast %cst : f32 to vector<16x18xf32>
    %4 = arith.mulf %2, %3 : vector<16x18xf32>
    %5 = vector.extract_strided_slice %1 {offsets = [1, 0], sizes = [16, 18], strides = [1, 1]} : vector<18x18xf32> to vector<16x18xf32>
    %cst_2 = arith.constant 7.500000e-01 : f32
    %6 = vector.broadcast %cst_2 : f32 to vector<16x18xf32>
    %7 = arith.mulf %5, %6 : vector<16x18xf32>
    %8 = arith.addf %4, %7 : vector<16x18xf32>
    %9 = vector.extract_strided_slice %1 {offsets = [2, 0], sizes = [16, 18], strides = [1, 1]} : vector<18x18xf32> to vector<16x18xf32>
    %cst_3 = arith.constant 1.250000e-01 : f32
    %10 = vector.broadcast %cst_3 : f32 to vector<16x18xf32>
    %11 = arith.mulf %9, %10 : vector<16x18xf32>
    %12 = arith.addf %8, %11 : vector<16x18xf32>
    %13 = vector.extract_strided_slice %1 {offsets = [1, 0], sizes = [16, 18], strides = [1, 1]} : vector<18x18xf32> to vector<16x18xf32>
    %14 = vector.extract_strided_slice %1 {offsets = [2, 0], sizes = [16, 18], strides = [1, 1]} : vector<18x18xf32> to vector<16x18xf32>
    %15 = arith.addf %13, %14 : vector<16x18xf32>
    %cst_4 = arith.constant 5.000000e-01 : f32
    %16 = vector.broadcast %cst_4 : f32 to vector<16x18xf32>
    %17 = arith.mulf %15, %16 : vector<16x18xf32>
    %c0_5 = arith.constant 0 : index
    %c0_6 = arith.constant 0 : index
    %c0_7 = arith.constant 0 : index
    %18 = vector.load %arg1[%c0_5, %c0_6, %c0_7] : memref<1x16x16xf32, #tpu.memory_space<vmem>>, vector<1x16x16xf32>
    %19 = vector.shape_cast %18 : vector<1x16x16xf32> to vector<16x16xf32>
    %20 = vector.extract_strided_slice %12 {offsets = [0, 0], sizes = [16, 16], strides = [1, 1]} : vector<16x18xf32> to vector<16x16xf32>
    %cst_8 = arith.constant 1.250000e-01 : f32
    %21 = vector.broadcast %cst_8 : f32 to vector<16x16xf32>
    %22 = arith.mulf %20, %21 : vector<16x16xf32>
    %23 = vector.extract_strided_slice %12 {offsets = [0, 1], sizes = [16, 16], strides = [1, 1]} : vector<16x18xf32> to vector<16x16xf32>
    %cst_9 = arith.constant 7.500000e-01 : f32
    %24 = vector.broadcast %cst_9 : f32 to vector<16x16xf32>
    %25 = arith.mulf %23, %24 : vector<16x16xf32>
    %26 = arith.addf %22, %25 : vector<16x16xf32>
    %27 = vector.extract_strided_slice %12 {offsets = [0, 2], sizes = [16, 16], strides = [1, 1]} : vector<16x18xf32> to vector<16x16xf32>
    %cst_10 = arith.constant 1.250000e-01 : f32
    %28 = vector.broadcast %cst_10 : f32 to vector<16x16xf32>
    %29 = arith.mulf %27, %28 : vector<16x16xf32>
    %30 = arith.addf %26, %29 : vector<16x16xf32>
    %31 = arith.subf %19, %30 : vector<16x16xf32>
    %32 = math.absf %31 : vector<16x16xf32>
    %33 = vector.shape_cast %32 : vector<16x16xf32> to vector<1x16x16xf32>
    %cst_11 = arith.constant dense<0.000000e+00> : vector<1xf32>
    %34 = vector.multi_reduction <add>, %33, %cst_11 [1, 2] : vector<1x16x16xf32> to vector<1xf32>
    %35 = vector.shape_cast %34 : vector<1xf32> to vector<1x1x1xf32>
    %36 = vector.extract %35[0, 0, 0] : f32 from vector<1x1x1xf32>
    %37 = vector.broadcast %36 : f32 to vector<1x1xf32>
    %c0_12 = arith.constant 0 : index
    %c0_13 = arith.constant 0 : index
    %c0_14 = arith.constant 0 : index
    %38 = vector.load %arg2[%c0_12, %c0_13, %c0_14] : memref<1x16x16xf32, #tpu.memory_space<vmem>>, vector<1x16x16xf32>
    %39 = vector.shape_cast %38 : vector<1x16x16xf32> to vector<16x16xf32>
    %40 = vector.extract_strided_slice %12 {offsets = [0, 1], sizes = [16, 16], strides = [1, 1]} : vector<16x18xf32> to vector<16x16xf32>
    %41 = vector.extract_strided_slice %12 {offsets = [0, 2], sizes = [16, 16], strides = [1, 1]} : vector<16x18xf32> to vector<16x16xf32>
    %42 = arith.addf %40, %41 : vector<16x16xf32>
    %cst_15 = arith.constant 5.000000e-01 : f32
    %43 = vector.broadcast %cst_15 : f32 to vector<16x16xf32>
    %44 = arith.mulf %42, %43 : vector<16x16xf32>
    %45 = arith.subf %39, %44 : vector<16x16xf32>
    %46 = math.absf %45 : vector<16x16xf32>
    %47 = vector.shape_cast %46 : vector<16x16xf32> to vector<1x16x16xf32>
    %cst_16 = arith.constant dense<0.000000e+00> : vector<1xf32>
    %48 = vector.multi_reduction <add>, %47, %cst_16 [1, 2] : vector<1x16x16xf32> to vector<1xf32>
    %49 = vector.shape_cast %48 : vector<1xf32> to vector<1x1x1xf32>
    %50 = vector.extract %49[0, 0, 0] : f32 from vector<1x1x1xf32>
    %51 = vector.broadcast %50 : f32 to vector<1x1xf32>
    %52 = arith.addf %37, %51 : vector<1x1xf32>
    %c0_17 = arith.constant 0 : index
    %c0_18 = arith.constant 0 : index
    %c0_19 = arith.constant 0 : index
    %53 = vector.load %arg3[%c0_17, %c0_18, %c0_19] : memref<1x16x16xf32, #tpu.memory_space<vmem>>, vector<1x16x16xf32>
    %54 = vector.shape_cast %53 : vector<1x16x16xf32> to vector<16x16xf32>
    %55 = vector.extract_strided_slice %17 {offsets = [0, 0], sizes = [16, 16], strides = [1, 1]} : vector<16x18xf32> to vector<16x16xf32>
    %cst_20 = arith.constant 1.250000e-01 : f32
    %56 = vector.broadcast %cst_20 : f32 to vector<16x16xf32>
    %57 = arith.mulf %55, %56 : vector<16x16xf32>
    %58 = vector.extract_strided_slice %17 {offsets = [0, 1], sizes = [16, 16], strides = [1, 1]} : vector<16x18xf32> to vector<16x16xf32>
    %cst_21 = arith.constant 7.500000e-01 : f32
    %59 = vector.broadcast %cst_21 : f32 to vector<16x16xf32>
    %60 = arith.mulf %58, %59 : vector<16x16xf32>
    %61 = arith.addf %57, %60 : vector<16x16xf32>
    %62 = vector.extract_strided_slice %17 {offsets = [0, 2], sizes = [16, 16], strides = [1, 1]} : vector<16x18xf32> to vector<16x16xf32>
    %cst_22 = arith.constant 1.250000e-01 : f32
    %63 = vector.broadcast %cst_22 : f32 to vector<16x16xf32>
    %64 = arith.mulf %62, %63 : vector<16x16xf32>
    %65 = arith.addf %61, %64 : vector<16x16xf32>
    %66 = arith.subf %54, %65 : vector<16x16xf32>
    %67 = math.absf %66 : vector<16x16xf32>
    %68 = vector.shape_cast %67 : vector<16x16xf32> to vector<1x16x16xf32>
    %cst_23 = arith.constant dense<0.000000e+00> : vector<1xf32>
    %69 = vector.multi_reduction <add>, %68, %cst_23 [1, 2] : vector<1x16x16xf32> to vector<1xf32>
    %70 = vector.shape_cast %69 : vector<1xf32> to vector<1x1x1xf32>
    %71 = vector.extract %70[0, 0, 0] : f32 from vector<1x1x1xf32>
    %72 = vector.broadcast %71 : f32 to vector<1x1xf32>
    %73 = arith.addf %52, %72 : vector<1x1xf32>
    %c0_24 = arith.constant 0 : index
    %c0_25 = arith.constant 0 : index
    %c0_26 = arith.constant 0 : index
    %74 = vector.load %arg4[%c0_24, %c0_25, %c0_26] : memref<1x16x16xf32, #tpu.memory_space<vmem>>, vector<1x16x16xf32>
    %75 = vector.shape_cast %74 : vector<1x16x16xf32> to vector<16x16xf32>
    %76 = vector.extract_strided_slice %17 {offsets = [0, 1], sizes = [16, 16], strides = [1, 1]} : vector<16x18xf32> to vector<16x16xf32>
    %77 = vector.extract_strided_slice %17 {offsets = [0, 2], sizes = [16, 16], strides = [1, 1]} : vector<16x18xf32> to vector<16x16xf32>
    %78 = arith.addf %76, %77 : vector<16x16xf32>
    %cst_27 = arith.constant 5.000000e-01 : f32
    %79 = vector.broadcast %cst_27 : f32 to vector<16x16xf32>
    %80 = arith.mulf %78, %79 : vector<16x16xf32>
    %81 = arith.subf %75, %80 : vector<16x16xf32>
    %82 = math.absf %81 : vector<16x16xf32>
    %83 = vector.shape_cast %82 : vector<16x16xf32> to vector<1x16x16xf32>
    %cst_28 = arith.constant dense<0.000000e+00> : vector<1xf32>
    %84 = vector.multi_reduction <add>, %83, %cst_28 [1, 2] : vector<1x16x16xf32> to vector<1xf32>
    %85 = vector.shape_cast %84 : vector<1xf32> to vector<1x1x1xf32>
    %86 = vector.extract %85[0, 0, 0] : f32 from vector<1x1x1xf32>
    %87 = vector.broadcast %86 : f32 to vector<1x1xf32>
    %88 = arith.addf %73, %87 : vector<1x1xf32>
    %c0_29 = arith.constant 0 : index
    %c0_30 = arith.constant 0 : index
    %c0_31 = arith.constant 0 : index
    %89 = vector.load %arg6[%c0_29, %c0_30, %c0_31] : memref<1x1x1xf32, #tpu.memory_space<vmem>>, vector<1x1x1xf32>
    %90 = vector.shape_cast %89 : vector<1x1x1xf32> to vector<1x1xf32>
    %91 = vector.shape_cast %88 : vector<1x1xf32> to vector<1x1x1xf32>
    tpu.vector_store %arg6[%c0_29, %c0_30, %c0_31], %91 {strides = array<i32>} : memref<1x1x1xf32, #tpu.memory_space<vmem>>, vector<1x1x1xf32>,
    return
  }
  func.func @transform_0(%arg0: i32) -> (i32, i32, i32) {
    %c0_i32 = arith.constant 0 : i32
    %c0_i32_0 = arith.constant 0 : i32
    %c0_i32_1 = arith.constant 0 : i32
    return %arg0, %c0_i32, %c0_i32_0 : i32, i32, i32
  }
  func.func @transform_1(%arg0: i32) -> (i32, i32, i32) {
    %c0_i32 = arith.constant 0 : i32
    %c0_i32_0 = arith.constant 0 : i32
    %c0_i32_1 = arith.constant 0 : i32
    return %arg0, %c0_i32, %c0_i32_0 : i32, i32, i32
  }
  func.func @transform_2(%arg0: i32) -> (i32, i32, i32) {
    %c0_i32 = arith.constant 0 : i32
    %c0_i32_0 = arith.constant 0 : i32
    %c0_i32_1 = arith.constant 0 : i32
    return %arg0, %c0_i32, %c0_i32_0 : i32, i32, i32
  }
  func.func @transform_3(%arg0: i32) -> (i32, i32, i32) {
    %c0_i32 = arith.constant 0 : i32
    %c0_i32_0 = arith.constant 0 : i32
    %c0_i32_1 = arith.constant 0 : i32
    return %arg0, %c0_i32, %c0_i32_0 : i32, i32, i32
  }
  func.func @transform_4(%arg0: i32) -> (i32, i32, i32) {
    %c0_i32 = arith.constant 0 : i32
    %c0_i32_0 = arith.constant 0 : i32
    %c0_i32_1 = arith.constant 0 : i32
    return %arg0, %c0_i32, %c0_i32_0 : i32, i32, i32
  }
  func.func @transform_5(%arg0: i32) -> (i32, i32, i32) {
    %c0_i32 = arith.constant 0 : i32
    %c0_i32_0 = arith.constant 0 : i32
    %c0_i32_1 = arith.constant 0 : i32
    return %arg0, %c0_i32, %c0_i32_0 : i32, i32, i32
  }
}

module attributes {stable_mosaic.version = 11 : i64} {
  func.func @kernel(%arg0: i32, %arg1: memref<1x32x32xf32, #tpu.memory_space<vmem>>, %arg2: memref<1x32x32xf32, #tpu.memory_space<vmem>>, %arg3: memref<1x32x32xf32, #tpu.memory_space<vmem>>, %arg4: memref<1x32x32xf32, #tpu.memory_space<vmem>>, %arg5: memref<1x34x34xf32, #tpu.memory_space<vmem>>, %arg6: memref<1x1x1xf32, #tpu.memory_space<vmem>>) attributes {dimension_semantics = [#tpu.dimension_semantics<parallel>], iteration_bounds = array<i64: 2>, scalar_prefetch = 0 : i64, scratch_operands = 0 : i64, tpu.core_type = #tpu.core_type<tc>, window_params = [{transform_indices = @transform_0, window_bounds = array<i64: 1, 32, 32>}, {transform_indices = @transform_1, window_bounds = array<i64: 1, 32, 32>}, {transform_indices = @transform_2, window_bounds = array<i64: 1, 32, 32>}, {transform_indices = @transform_3, window_bounds = array<i64: 1, 32, 32>}, {transform_indices = @transform_4, window_bounds = array<i64: 1, 34, 34>}, {transform_indices = @transform_5, window_bounds = array<i64: 1, 1, 1>}]} {
    %c0 = arith.constant 0 : index
    %c0_0 = arith.constant 0 : index
    %c0_1 = arith.constant 0 : index
    %0 = vector.load %arg5[%c0, %c0_0, %c0_1] : memref<1x34x34xf32, #tpu.memory_space<vmem>>, vector<1x34x34xf32>
    %1 = vector.shape_cast %0 : vector<1x34x34xf32> to vector<34x34xf32>
    %2 = vector.extract_strided_slice %1 {offsets = [0, 0], sizes = [32, 34], strides = [1, 1]} : vector<34x34xf32> to vector<32x34xf32>
    %cst = arith.constant 1.250000e-01 : f32
    %3 = vector.broadcast %cst : f32 to vector<32x34xf32>
    %4 = arith.mulf %2, %3 : vector<32x34xf32>
    %5 = vector.extract_strided_slice %1 {offsets = [1, 0], sizes = [32, 34], strides = [1, 1]} : vector<34x34xf32> to vector<32x34xf32>
    %cst_2 = arith.constant 7.500000e-01 : f32
    %6 = vector.broadcast %cst_2 : f32 to vector<32x34xf32>
    %7 = arith.mulf %5, %6 : vector<32x34xf32>
    %8 = arith.addf %4, %7 : vector<32x34xf32>
    %9 = vector.extract_strided_slice %1 {offsets = [2, 0], sizes = [32, 34], strides = [1, 1]} : vector<34x34xf32> to vector<32x34xf32>
    %cst_3 = arith.constant 1.250000e-01 : f32
    %10 = vector.broadcast %cst_3 : f32 to vector<32x34xf32>
    %11 = arith.mulf %9, %10 : vector<32x34xf32>
    %12 = arith.addf %8, %11 : vector<32x34xf32>
    %13 = vector.extract_strided_slice %1 {offsets = [1, 0], sizes = [32, 34], strides = [1, 1]} : vector<34x34xf32> to vector<32x34xf32>
    %14 = vector.extract_strided_slice %1 {offsets = [2, 0], sizes = [32, 34], strides = [1, 1]} : vector<34x34xf32> to vector<32x34xf32>
    %15 = arith.addf %13, %14 : vector<32x34xf32>
    %cst_4 = arith.constant 5.000000e-01 : f32
    %16 = vector.broadcast %cst_4 : f32 to vector<32x34xf32>
    %17 = arith.mulf %15, %16 : vector<32x34xf32>
    %c0_5 = arith.constant 0 : index
    %c0_6 = arith.constant 0 : index
    %c0_7 = arith.constant 0 : index
    %18 = vector.load %arg1[%c0_5, %c0_6, %c0_7] : memref<1x32x32xf32, #tpu.memory_space<vmem>>, vector<1x32x32xf32>
    %19 = vector.shape_cast %18 : vector<1x32x32xf32> to vector<32x32xf32>
    %20 = vector.extract_strided_slice %12 {offsets = [0, 0], sizes = [32, 32], strides = [1, 1]} : vector<32x34xf32> to vector<32x32xf32>
    %cst_8 = arith.constant 1.250000e-01 : f32
    %21 = vector.broadcast %cst_8 : f32 to vector<32x32xf32>
    %22 = arith.mulf %20, %21 : vector<32x32xf32>
    %23 = vector.extract_strided_slice %12 {offsets = [0, 1], sizes = [32, 32], strides = [1, 1]} : vector<32x34xf32> to vector<32x32xf32>
    %cst_9 = arith.constant 7.500000e-01 : f32
    %24 = vector.broadcast %cst_9 : f32 to vector<32x32xf32>
    %25 = arith.mulf %23, %24 : vector<32x32xf32>
    %26 = arith.addf %22, %25 : vector<32x32xf32>
    %27 = vector.extract_strided_slice %12 {offsets = [0, 2], sizes = [32, 32], strides = [1, 1]} : vector<32x34xf32> to vector<32x32xf32>
    %cst_10 = arith.constant 1.250000e-01 : f32
    %28 = vector.broadcast %cst_10 : f32 to vector<32x32xf32>
    %29 = arith.mulf %27, %28 : vector<32x32xf32>
    %30 = arith.addf %26, %29 : vector<32x32xf32>
    %31 = arith.subf %19, %30 : vector<32x32xf32>
    %32 = math.absf %31 : vector<32x32xf32>
    %33 = vector.shape_cast %32 : vector<32x32xf32> to vector<1x32x32xf32>
    %cst_11 = arith.constant dense<0.000000e+00> : vector<1xf32>
    %34 = vector.multi_reduction <add>, %33, %cst_11 [1, 2] : vector<1x32x32xf32> to vector<1xf32>
    %35 = vector.shape_cast %34 : vector<1xf32> to vector<1x1x1xf32>
    %36 = vector.extract %35[0, 0, 0] : f32 from vector<1x1x1xf32>
    %37 = vector.broadcast %36 : f32 to vector<1x1xf32>
    %c0_12 = arith.constant 0 : index
    %c0_13 = arith.constant 0 : index
    %c0_14 = arith.constant 0 : index
    %38 = vector.load %arg2[%c0_12, %c0_13, %c0_14] : memref<1x32x32xf32, #tpu.memory_space<vmem>>, vector<1x32x32xf32>
    %39 = vector.shape_cast %38 : vector<1x32x32xf32> to vector<32x32xf32>
    %40 = vector.extract_strided_slice %12 {offsets = [0, 1], sizes = [32, 32], strides = [1, 1]} : vector<32x34xf32> to vector<32x32xf32>
    %41 = vector.extract_strided_slice %12 {offsets = [0, 2], sizes = [32, 32], strides = [1, 1]} : vector<32x34xf32> to vector<32x32xf32>
    %42 = arith.addf %40, %41 : vector<32x32xf32>
    %cst_15 = arith.constant 5.000000e-01 : f32
    %43 = vector.broadcast %cst_15 : f32 to vector<32x32xf32>
    %44 = arith.mulf %42, %43 : vector<32x32xf32>
    %45 = arith.subf %39, %44 : vector<32x32xf32>
    %46 = math.absf %45 : vector<32x32xf32>
    %47 = vector.shape_cast %46 : vector<32x32xf32> to vector<1x32x32xf32>
    %cst_16 = arith.constant dense<0.000000e+00> : vector<1xf32>
    %48 = vector.multi_reduction <add>, %47, %cst_16 [1, 2] : vector<1x32x32xf32> to vector<1xf32>
    %49 = vector.shape_cast %48 : vector<1xf32> to vector<1x1x1xf32>
    %50 = vector.extract %49[0, 0, 0] : f32 from vector<1x1x1xf32>
    %51 = vector.broadcast %50 : f32 to vector<1x1xf32>
    %52 = arith.addf %37, %51 : vector<1x1xf32>
    %c0_17 = arith.constant 0 : index
    %c0_18 = arith.constant 0 : index
    %c0_19 = arith.constant 0 : index
    %53 = vector.load %arg3[%c0_17, %c0_18, %c0_19] : memref<1x32x32xf32, #tpu.memory_space<vmem>>, vector<1x32x32xf32>
    %54 = vector.shape_cast %53 : vector<1x32x32xf32> to vector<32x32xf32>
    %55 = vector.extract_strided_slice %17 {offsets = [0, 0], sizes = [32, 32], strides = [1, 1]} : vector<32x34xf32> to vector<32x32xf32>
    %cst_20 = arith.constant 1.250000e-01 : f32
    %56 = vector.broadcast %cst_20 : f32 to vector<32x32xf32>
    %57 = arith.mulf %55, %56 : vector<32x32xf32>
    %58 = vector.extract_strided_slice %17 {offsets = [0, 1], sizes = [32, 32], strides = [1, 1]} : vector<32x34xf32> to vector<32x32xf32>
    %cst_21 = arith.constant 7.500000e-01 : f32
    %59 = vector.broadcast %cst_21 : f32 to vector<32x32xf32>
    %60 = arith.mulf %58, %59 : vector<32x32xf32>
    %61 = arith.addf %57, %60 : vector<32x32xf32>
    %62 = vector.extract_strided_slice %17 {offsets = [0, 2], sizes = [32, 32], strides = [1, 1]} : vector<32x34xf32> to vector<32x32xf32>
    %cst_22 = arith.constant 1.250000e-01 : f32
    %63 = vector.broadcast %cst_22 : f32 to vector<32x32xf32>
    %64 = arith.mulf %62, %63 : vector<32x32xf32>
    %65 = arith.addf %61, %64 : vector<32x32xf32>
    %66 = arith.subf %54, %65 : vector<32x32xf32>
    %67 = math.absf %66 : vector<32x32xf32>
    %68 = vector.shape_cast %67 : vector<32x32xf32> to vector<1x32x32xf32>
    %cst_23 = arith.constant dense<0.000000e+00> : vector<1xf32>
    %69 = vector.multi_reduction <add>, %68, %cst_23 [1, 2] : vector<1x32x32xf32> to vector<1xf32>
    %70 = vector.shape_cast %69 : vector<1xf32> to vector<1x1x1xf32>
    %71 = vector.extract %70[0, 0, 0] : f32 from vector<1x1x1xf32>
    %72 = vector.broadcast %71 : f32 to vector<1x1xf32>
    %73 = arith.addf %52, %72 : vector<1x1xf32>
    %c0_24 = arith.constant 0 : index
    %c0_25 = arith.constant 0 : index
    %c0_26 = arith.constant 0 : index
    %74 = vector.load %arg4[%c0_24, %c0_25, %c0_26] : memref<1x32x32xf32, #tpu.memory_space<vmem>>, vector<1x32x32xf32>
    %75 = vector.shape_cast %74 : vector<1x32x32xf32> to vector<32x32xf32>
    %76 = vector.extract_strided_slice %17 {offsets = [0, 1], sizes = [32, 32], strides = [1, 1]} : vector<32x34xf32> to vector<32x32xf32>
    %77 = vector.extract_strided_slice %17 {offsets = [0, 2], sizes = [32, 32], strides = [1, 1]} : vector<32x34xf32> to vector<32x32xf32>
    %78 = arith.addf %76, %77 : vector<32x32xf32>
    %cst_27 = arith.constant 5.000000e-01 : f32
    %79 = vector.broadcast %cst_27 : f32 to vector<32x32xf32>
    %80 = arith.mulf %78, %79 : vector<32x32xf32>
    %81 = arith.subf %75, %80 : vector<32x32xf32>
    %82 = math.absf %81 : vector<32x32xf32>
    %83 = vector.shape_cast %82 : vector<32x32xf32> to vector<1x32x32xf32>
    %cst_28 = arith.constant dense<0.000000e+00> : vector<1xf32>
    %84 = vector.multi_reduction <add>, %83, %cst_28 [1, 2] : vector<1x32x32xf32> to vector<1xf32>
    %85 = vector.shape_cast %84 : vector<1xf32> to vector<1x1x1xf32>
    %86 = vector.extract %85[0, 0, 0] : f32 from vector<1x1x1xf32>
    %87 = vector.broadcast %86 : f32 to vector<1x1xf32>
    %88 = arith.addf %73, %87 : vector<1x1xf32>
    %c0_29 = arith.constant 0 : index
    %c0_30 = arith.constant 0 : index
    %c0_31 = arith.constant 0 : index
    %89 = vector.load %arg6[%c0_29, %c0_30, %c0_31] : memref<1x1x1xf32, #tpu.memory_space<vmem>>, vector<1x1x1xf32>
    %90 = vector.shape_cast %89 : vector<1x1x1xf32> to vector<1x1xf32>
    %91 = vector.shape_cast %88 : vector<1x1xf32> to vector<1x1x1xf32>
    tpu.vector_store %arg6[%c0_29, %c0_30, %c0_31], %91 {strides = array<i32>} : memref<1x1x1xf32, #tpu.memory_space<vmem>>, vector<1x1x1xf32>,
    return
  }
  func.func @transform_0(%arg0: i32) -> (i32, i32, i32) {
    %c0_i32 = arith.constant 0 : i32
    %c0_i32_0 = arith.constant 0 : i32
    %c0_i32_1 = arith.constant 0 : i32
    return %arg0, %c0_i32, %c0_i32_0 : i32, i32, i32
  }
  func.func @transform_1(%arg0: i32) -> (i32, i32, i32) {
    %c0_i32 = arith.constant 0 : i32
    %c0_i32_0 = arith.constant 0 : i32
    %c0_i32_1 = arith.constant 0 : i32
    return %arg0, %c0_i32, %c0_i32_0 : i32, i32, i32
  }
  func.func @transform_2(%arg0: i32) -> (i32, i32, i32) {
    %c0_i32 = arith.constant 0 : i32
    %c0_i32_0 = arith.constant 0 : i32
    %c0_i32_1 = arith.constant 0 : i32
    return %arg0, %c0_i32, %c0_i32_0 : i32, i32, i32
  }
  func.func @transform_3(%arg0: i32) -> (i32, i32, i32) {
    %c0_i32 = arith.constant 0 : i32
    %c0_i32_0 = arith.constant 0 : i32
    %c0_i32_1 = arith.constant 0 : i32
    return %arg0, %c0_i32, %c0_i32_0 : i32, i32, i32
  }
  func.func @transform_4(%arg0: i32) -> (i32, i32, i32) {
    %c0_i32 = arith.constant 0 : i32
    %c0_i32_0 = arith.constant 0 : i32
    %c0_i32_1 = arith.constant 0 : i32
    return %arg0, %c0_i32, %c0_i32_0 : i32, i32, i32
  }
  func.func @transform_5(%arg0: i32) -> (i32, i32, i32) {
    %c0_i32 = arith.constant 0 : i32
    %c0_i32_0 = arith.constant 0 : i32
    %c0_i32_1 = arith.constant 0 : i32
    return %arg0, %c0_i32, %c0_i32_0 : i32, i32, i32
  }
}

module attributes {stable_mosaic.version = 11 : i64} {
  func.func @kernel(%arg0: i32, %arg1: memref<1x66x66xf32, #tpu.memory_space<vmem>>, %arg2: memref<1x66x66xf32, #tpu.memory_space<vmem>>, %arg3: memref<1x1x1xf32, #tpu.memory_space<vmem>>, %arg4: memref<1x1x1xf32, #tpu.memory_space<vmem>>, %arg5: memref<1x1x1xf32, #tpu.memory_space<vmem>>, %arg6: memref<1x1x1xf32, #tpu.memory_space<vmem>>) attributes {dimension_semantics = [#tpu.dimension_semantics<parallel>], iteration_bounds = array<i64: 2>, scalar_prefetch = 0 : i64, scratch_operands = 0 : i64, tpu.core_type = #tpu.core_type<tc>, window_params = [{transform_indices = @transform_0, window_bounds = array<i64: 1, 66, 66>}, {transform_indices = @transform_1, window_bounds = array<i64: 1, 66, 66>}, {transform_indices = @transform_2, window_bounds = array<i64: 1, 1, 1>}, {transform_indices = @transform_3, window_bounds = array<i64: 1, 1, 1>}, {transform_indices = @transform_4, window_bounds = array<i64: 1, 1, 1>}, {transform_indices = @transform_5, window_bounds = array<i64: 1, 1, 1>}]} {
    %c0 = arith.constant 0 : index
    %c0_0 = arith.constant 0 : index
    %c0_1 = arith.constant 0 : index
    %0 = vector.load %arg1[%c0, %c0_0, %c0_1] : memref<1x66x66xf32, #tpu.memory_space<vmem>>, vector<1x66x66xf32>
    %1 = vector.shape_cast %0 : vector<1x66x66xf32> to vector<66x66xf32>
    %c0_2 = arith.constant 0 : index
    %c0_3 = arith.constant 0 : index
    %c0_4 = arith.constant 0 : index
    %2 = vector.load %arg2[%c0_2, %c0_3, %c0_4] : memref<1x66x66xf32, #tpu.memory_space<vmem>>, vector<1x66x66xf32>
    %3 = vector.shape_cast %2 : vector<1x66x66xf32> to vector<66x66xf32>
    %4 = vector.extract_strided_slice %1 {offsets = [0, 0], sizes = [64, 66], strides = [1, 1]} : vector<66x66xf32> to vector<64x66xf32>
    %5 = vector.extract_strided_slice %1 {offsets = [1, 0], sizes = [64, 66], strides = [1, 1]} : vector<66x66xf32> to vector<64x66xf32>
    %cst = arith.constant 2.000000e+00 : f32
    %6 = vector.broadcast %cst : f32 to vector<64x66xf32>
    %7 = arith.mulf %6, %5 : vector<64x66xf32>
    %8 = arith.addf %4, %7 : vector<64x66xf32>
    %9 = vector.extract_strided_slice %1 {offsets = [2, 0], sizes = [64, 66], strides = [1, 1]} : vector<66x66xf32> to vector<64x66xf32>
    %10 = arith.addf %8, %9 : vector<64x66xf32>
    %11 = vector.extract_strided_slice %10 {offsets = [0, 2], sizes = [64, 64], strides = [1, 1]} : vector<64x66xf32> to vector<64x64xf32>
    %12 = vector.extract_strided_slice %10 {offsets = [0, 0], sizes = [64, 64], strides = [1, 1]} : vector<64x66xf32> to vector<64x64xf32>
    %13 = arith.subf %11, %12 : vector<64x64xf32>
    %14 = vector.extract_strided_slice %3 {offsets = [0, 0], sizes = [64, 66], strides = [1, 1]} : vector<66x66xf32> to vector<64x66xf32>
    %15 = vector.extract_strided_slice %3 {offsets = [1, 0], sizes = [64, 66], strides = [1, 1]} : vector<66x66xf32> to vector<64x66xf32>
    %cst_5 = arith.constant 2.000000e+00 : f32
    %16 = vector.broadcast %cst_5 : f32 to vector<64x66xf32>
    %17 = arith.mulf %16, %15 : vector<64x66xf32>
    %18 = arith.addf %14, %17 : vector<64x66xf32>
    %19 = vector.extract_strided_slice %3 {offsets = [2, 0], sizes = [64, 66], strides = [1, 1]} : vector<66x66xf32> to vector<64x66xf32>
    %20 = arith.addf %18, %19 : vector<64x66xf32>
    %21 = vector.extract_strided_slice %20 {offsets = [0, 2], sizes = [64, 64], strides = [1, 1]} : vector<64x66xf32> to vector<64x64xf32>
    %22 = vector.extract_strided_slice %20 {offsets = [0, 0], sizes = [64, 64], strides = [1, 1]} : vector<64x66xf32> to vector<64x64xf32>
    %23 = arith.subf %21, %22 : vector<64x64xf32>
    %24 = vector.extract_strided_slice %1 {offsets = [2, 0], sizes = [64, 66], strides = [1, 1]} : vector<66x66xf32> to vector<64x66xf32>
    %25 = vector.extract_strided_slice %1 {offsets = [0, 0], sizes = [64, 66], strides = [1, 1]} : vector<66x66xf32> to vector<64x66xf32>
    %26 = arith.subf %24, %25 : vector<64x66xf32>
    %27 = vector.extract_strided_slice %26 {offsets = [0, 0], sizes = [64, 64], strides = [1, 1]} : vector<64x66xf32> to vector<64x64xf32>
    %28 = vector.extract_strided_slice %26 {offsets = [0, 1], sizes = [64, 64], strides = [1, 1]} : vector<64x66xf32> to vector<64x64xf32>
    %cst_6 = arith.constant 2.000000e+00 : f32
    %29 = vector.broadcast %cst_6 : f32 to vector<64x64xf32>
    %30 = arith.mulf %29, %28 : vector<64x64xf32>
    %31 = arith.addf %27, %30 : vector<64x64xf32>
    %32 = vector.extract_strided_slice %26 {offsets = [0, 2], sizes = [64, 64], strides = [1, 1]} : vector<64x66xf32> to vector<64x64xf32>
    %33 = arith.addf %31, %32 : vector<64x64xf32>
    %34 = vector.extract_strided_slice %3 {offsets = [2, 0], sizes = [64, 66], strides = [1, 1]} : vector<66x66xf32> to vector<64x66xf32>
    %35 = vector.extract_strided_slice %3 {offsets = [0, 0], sizes = [64, 66], strides = [1, 1]} : vector<66x66xf32> to vector<64x66xf32>
    %36 = arith.subf %34, %35 : vector<64x66xf32>
    %37 = vector.extract_strided_slice %36 {offsets = [0, 0], sizes = [64, 64], strides = [1, 1]} : vector<64x66xf32> to vector<64x64xf32>
    %38 = vector.extract_strided_slice %36 {offsets = [0, 1], sizes = [64, 64], strides = [1, 1]} : vector<64x66xf32> to vector<64x64xf32>
    %cst_7 = arith.constant 2.000000e+00 : f32
    %39 = vector.broadcast %cst_7 : f32 to vector<64x64xf32>
    %40 = arith.mulf %39, %38 : vector<64x64xf32>
    %41 = arith.addf %37, %40 : vector<64x64xf32>
    %42 = vector.extract_strided_slice %36 {offsets = [0, 2], sizes = [64, 64], strides = [1, 1]} : vector<64x66xf32> to vector<64x64xf32>
    %43 = arith.addf %41, %42 : vector<64x64xf32>
    %44 = arith.subf %13, %23 : vector<64x64xf32>
    %45 = math.absf %44 : vector<64x64xf32>
    %46 = vector.shape_cast %45 : vector<64x64xf32> to vector<1x64x64xf32>
    %cst_8 = arith.constant dense<0.000000e+00> : vector<1xf32>
    %47 = vector.multi_reduction <add>, %46, %cst_8 [1, 2] : vector<1x64x64xf32> to vector<1xf32>
    %48 = vector.shape_cast %47 : vector<1xf32> to vector<1x1x1xf32>
    %49 = vector.extract %48[0, 0, 0] : f32 from vector<1x1x1xf32>
    %50 = vector.broadcast %49 : f32 to vector<1x1xf32>
    %c0_9 = arith.constant 0 : index
    %c0_10 = arith.constant 0 : index
    %c0_11 = arith.constant 0 : index
    %51 = vector.load %arg3[%c0_9, %c0_10, %c0_11] : memref<1x1x1xf32, #tpu.memory_space<vmem>>, vector<1x1x1xf32>
    %52 = vector.shape_cast %51 : vector<1x1x1xf32> to vector<1x1xf32>
    %53 = vector.shape_cast %50 : vector<1x1xf32> to vector<1x1x1xf32>
    tpu.vector_store %arg3[%c0_9, %c0_10, %c0_11], %53 {strides = array<i32>} : memref<1x1x1xf32, #tpu.memory_space<vmem>>, vector<1x1x1xf32>,
    %54 = arith.subf %33, %43 : vector<64x64xf32>
    %55 = math.absf %54 : vector<64x64xf32>
    %56 = vector.shape_cast %55 : vector<64x64xf32> to vector<1x64x64xf32>
    %cst_12 = arith.constant dense<0.000000e+00> : vector<1xf32>
    %57 = vector.multi_reduction <add>, %56, %cst_12 [1, 2] : vector<1x64x64xf32> to vector<1xf32>
    %58 = vector.shape_cast %57 : vector<1xf32> to vector<1x1x1xf32>
    %59 = vector.extract %58[0, 0, 0] : f32 from vector<1x1x1xf32>
    %60 = vector.broadcast %59 : f32 to vector<1x1xf32>
    %c0_13 = arith.constant 0 : index
    %c0_14 = arith.constant 0 : index
    %c0_15 = arith.constant 0 : index
    %61 = vector.load %arg4[%c0_13, %c0_14, %c0_15] : memref<1x1x1xf32, #tpu.memory_space<vmem>>, vector<1x1x1xf32>
    %62 = vector.shape_cast %61 : vector<1x1x1xf32> to vector<1x1xf32>
    %63 = vector.shape_cast %60 : vector<1x1xf32> to vector<1x1x1xf32>
    tpu.vector_store %arg4[%c0_13, %c0_14, %c0_15], %63 {strides = array<i32>} : memref<1x1x1xf32, #tpu.memory_space<vmem>>, vector<1x1x1xf32>,
    %64 = math.absf %13 : vector<64x64xf32>
    %65 = vector.shape_cast %64 : vector<64x64xf32> to vector<1x64x64xf32>
    %cst_16 = arith.constant dense<0.000000e+00> : vector<1xf32>
    %66 = vector.multi_reduction <add>, %65, %cst_16 [1, 2] : vector<1x64x64xf32> to vector<1xf32>
    %67 = vector.shape_cast %66 : vector<1xf32> to vector<1x1x1xf32>
    %68 = vector.extract %67[0, 0, 0] : f32 from vector<1x1x1xf32>
    %69 = vector.broadcast %68 : f32 to vector<1x1xf32>
    %c0_17 = arith.constant 0 : index
    %c0_18 = arith.constant 0 : index
    %c0_19 = arith.constant 0 : index
    %70 = vector.load %arg5[%c0_17, %c0_18, %c0_19] : memref<1x1x1xf32, #tpu.memory_space<vmem>>, vector<1x1x1xf32>
    %71 = vector.shape_cast %70 : vector<1x1x1xf32> to vector<1x1xf32>
    %72 = vector.shape_cast %69 : vector<1x1xf32> to vector<1x1x1xf32>
    tpu.vector_store %arg5[%c0_17, %c0_18, %c0_19], %72 {strides = array<i32>} : memref<1x1x1xf32, #tpu.memory_space<vmem>>, vector<1x1x1xf32>,
    %73 = math.absf %33 : vector<64x64xf32>
    %74 = vector.shape_cast %73 : vector<64x64xf32> to vector<1x64x64xf32>
    %cst_20 = arith.constant dense<0.000000e+00> : vector<1xf32>
    %75 = vector.multi_reduction <add>, %74, %cst_20 [1, 2] : vector<1x64x64xf32> to vector<1xf32>
    %76 = vector.shape_cast %75 : vector<1xf32> to vector<1x1x1xf32>
    %77 = vector.extract %76[0, 0, 0] : f32 from vector<1x1x1xf32>
    %78 = vector.broadcast %77 : f32 to vector<1x1xf32>
    %c0_21 = arith.constant 0 : index
    %c0_22 = arith.constant 0 : index
    %c0_23 = arith.constant 0 : index
    %79 = vector.load %arg6[%c0_21, %c0_22, %c0_23] : memref<1x1x1xf32, #tpu.memory_space<vmem>>, vector<1x1x1xf32>
    %80 = vector.shape_cast %79 : vector<1x1x1xf32> to vector<1x1xf32>
    %81 = vector.shape_cast %78 : vector<1x1xf32> to vector<1x1x1xf32>
    tpu.vector_store %arg6[%c0_21, %c0_22, %c0_23], %81 {strides = array<i32>} : memref<1x1x1xf32, #tpu.memory_space<vmem>>, vector<1x1x1xf32>,
    return
  }
  func.func @transform_0(%arg0: i32) -> (i32, i32, i32) {
    %c0_i32 = arith.constant 0 : i32
    %c0_i32_0 = arith.constant 0 : i32
    %c0_i32_1 = arith.constant 0 : i32
    return %arg0, %c0_i32, %c0_i32_0 : i32, i32, i32
  }
  func.func @transform_1(%arg0: i32) -> (i32, i32, i32) {
    %c0_i32 = arith.constant 0 : i32
    %c0_i32_0 = arith.constant 0 : i32
    %c0_i32_1 = arith.constant 0 : i32
    return %arg0, %c0_i32, %c0_i32_0 : i32, i32, i32
  }
  func.func @transform_2(%arg0: i32) -> (i32, i32, i32) {
    %c0_i32 = arith.constant 0 : i32
    %c0_i32_0 = arith.constant 0 : i32
    %c0_i32_1 = arith.constant 0 : i32
    return %arg0, %c0_i32, %c0_i32_0 : i32, i32, i32
  }
  func.func @transform_3(%arg0: i32) -> (i32, i32, i32) {
    %c0_i32 = arith.constant 0 : i32
    %c0_i32_0 = arith.constant 0 : i32
    %c0_i32_1 = arith.constant 0 : i32
    return %arg0, %c0_i32, %c0_i32_0 : i32, i32, i32
  }
  func.func @transform_4(%arg0: i32) -> (i32, i32, i32) {
    %c0_i32 = arith.constant 0 : i32
    %c0_i32_0 = arith.constant 0 : i32
    %c0_i32_1 = arith.constant 0 : i32
    return %arg0, %c0_i32, %c0_i32_0 : i32, i32, i32
  }
  func.func @transform_5(%arg0: i32) -> (i32, i32, i32) {
    %c0_i32 = arith.constant 0 : i32
    %c0_i32_0 = arith.constant 0 : i32
    %c0_i32_1 = arith.constant 0 : i32
    return %arg0, %c0_i32, %c0_i32_0 : i32, i32, i32
  }
}

module attributes {stable_mosaic.version = 11 : i64} {
  func.func @_masked_l1_kernel(%arg0: i32, %arg1: memref<16x512xf32, #tpu.memory_space<vmem>>, %arg2: memref<16x512xf32, #tpu.memory_space<vmem>>, %arg3: memref<16x512xf32, #tpu.memory_space<vmem>>, %arg4: memref<1x1x1xf32, #tpu.memory_space<vmem>>, %arg5: memref<1x1x1xf32, #tpu.memory_space<vmem>>) attributes {dimension_semantics = [#tpu.dimension_semantics<parallel>], iteration_bounds = array<i64: 1>, scalar_prefetch = 0 : i64, scratch_operands = 0 : i64, tpu.core_type = #tpu.core_type<tc>, window_params = [{transform_indices = @transform_0, window_bounds = array<i64: 16, 512>}, {transform_indices = @transform_1, window_bounds = array<i64: 16, 512>}, {transform_indices = @transform_2, window_bounds = array<i64: 16, 512>}, {transform_indices = @transform_3, window_bounds = array<i64: 1, 1, 1>}, {transform_indices = @transform_4, window_bounds = array<i64: 1, 1, 1>}]} {
    %c0 = arith.constant 0 : index
    %c0_0 = arith.constant 0 : index
    %0 = vector.load %arg1[%c0, %c0_0] : memref<16x512xf32, #tpu.memory_space<vmem>>, vector<16x512xf32>
    %c0_1 = arith.constant 0 : index
    %c0_2 = arith.constant 0 : index
    %1 = vector.load %arg2[%c0_1, %c0_2] : memref<16x512xf32, #tpu.memory_space<vmem>>, vector<16x512xf32>
    %c0_3 = arith.constant 0 : index
    %c0_4 = arith.constant 0 : index
    %2 = vector.load %arg3[%c0_3, %c0_4] : memref<16x512xf32, #tpu.memory_space<vmem>>, vector<16x512xf32>
    %3 = arith.mulf %0, %2 : vector<16x512xf32>
    %4 = arith.mulf %1, %2 : vector<16x512xf32>
    %5 = arith.subf %3, %4 : vector<16x512xf32>
    %6 = math.absf %5 : vector<16x512xf32>
    %7 = vector.shape_cast %6 : vector<16x512xf32> to vector<1x16x512xf32>
    %cst = arith.constant dense<0.000000e+00> : vector<1xf32>
    %8 = vector.multi_reduction <add>, %7, %cst [1, 2] : vector<1x16x512xf32> to vector<1xf32>
    %9 = vector.shape_cast %8 : vector<1xf32> to vector<1x1x1xf32>
    %10 = vector.extract %9[0, 0, 0] : f32 from vector<1x1x1xf32>
    %11 = vector.broadcast %10 : f32 to vector<1x1xf32>
    %c0_5 = arith.constant 0 : index
    %c0_6 = arith.constant 0 : index
    %c0_7 = arith.constant 0 : index
    %12 = vector.load %arg4[%c0_5, %c0_6, %c0_7] : memref<1x1x1xf32, #tpu.memory_space<vmem>>, vector<1x1x1xf32>
    %13 = vector.shape_cast %12 : vector<1x1x1xf32> to vector<1x1xf32>
    %14 = vector.shape_cast %11 : vector<1x1xf32> to vector<1x1x1xf32>
    tpu.vector_store %arg4[%c0_5, %c0_6, %c0_7], %14 {strides = array<i32>} : memref<1x1x1xf32, #tpu.memory_space<vmem>>, vector<1x1x1xf32>,
    %15 = vector.shape_cast %2 : vector<16x512xf32> to vector<1x16x512xf32>
    %cst_8 = arith.constant dense<0.000000e+00> : vector<1xf32>
    %16 = vector.multi_reduction <add>, %15, %cst_8 [1, 2] : vector<1x16x512xf32> to vector<1xf32>
    %17 = vector.shape_cast %16 : vector<1xf32> to vector<1x1x1xf32>
    %18 = vector.extract %17[0, 0, 0] : f32 from vector<1x1x1xf32>
    %19 = vector.broadcast %18 : f32 to vector<1x1xf32>
    %c0_9 = arith.constant 0 : index
    %c0_10 = arith.constant 0 : index
    %c0_11 = arith.constant 0 : index
    %20 = vector.load %arg5[%c0_9, %c0_10, %c0_11] : memref<1x1x1xf32, #tpu.memory_space<vmem>>, vector<1x1x1xf32>
    %21 = vector.shape_cast %20 : vector<1x1x1xf32> to vector<1x1xf32>
    %22 = vector.shape_cast %19 : vector<1x1xf32> to vector<1x1x1xf32>
    tpu.vector_store %arg5[%c0_9, %c0_10, %c0_11], %22 {strides = array<i32>} : memref<1x1x1xf32, #tpu.memory_space<vmem>>, vector<1x1x1xf32>,
    return
  }
  func.func @transform_0(%arg0: i32) -> (i32, i32) {
    %c0_i32 = arith.constant 0 : i32
    %c0_i32_0 = arith.constant 0 : i32
    return %arg0, %c0_i32 : i32, i32
  }
  func.func @transform_1(%arg0: i32) -> (i32, i32) {
    %c0_i32 = arith.constant 0 : i32
    %c0_i32_0 = arith.constant 0 : i32
    return %arg0, %c0_i32 : i32, i32
  }
  func.func @transform_2(%arg0: i32) -> (i32, i32) {
    %c0_i32 = arith.constant 0 : i32
    %c0_i32_0 = arith.constant 0 : i32
    return %arg0, %c0_i32 : i32, i32
  }
  func.func @transform_3(%arg0: i32) -> (i32, i32, i32) {
    %c0_i32 = arith.constant 0 : i32
    %c0_i32_0 = arith.constant 0 : i32
    %c0_i32_1 = arith.constant 0 : i32
    return %arg0, %c0_i32, %c0_i32_0 : i32, i32, i32
  }
  func.func @transform_4(%arg0: i32) -> (i32, i32, i32) {
    %c0_i32 = arith.constant 0 : i32
    %c0_i32_0 = arith.constant 0 : i32
    %c0_i32_1 = arith.constant 0 : i32
    return %arg0, %c0_i32, %c0_i32_0 : i32, i32, i32
  }
}

</mosaic_0001>

<llo_original>
// kernel: compute_all.19
$region0: #{compute_all.19}
  #allocation0 [shape = 'u32[]', space=smem, size = 0x4, offset = 0x4, fixed_abs, tag = 'smem constant byte address 0x4 - core index']
  #allocation1 [shape = 'u32[144,128]{1,0:T(1,128)}', space=vmem, size = 0x12000, scoped, tag = 'internal scratch']
  %s0 = inlined_call_operand.vmem [shape: f32[2,34,34], index: 0, kind: input, shape index: {}]
  %s1 = inlined_call_operand.vmem [shape: f32[2,34,34], index: 1, kind: input, shape index: {}]
  %s2 = inlined_call_operand.vmem [shape: f32[2,34,34], index: 2, kind: input, shape index: {}]
  %s3 = inlined_call_operand.vmem [shape: f32[2,34,34], index: 3, kind: input, shape index: {}]
  %s4 = inlined_call_operand.vmem [shape: f32[2,32,32], index: 4, kind: output, shape index: {}]
  %s5 = sld [smem:[#allocation0]]
  $region49: #{compute_all.19} parent=0
    _
  %s7 = ssub.s32 1, %s5
  %s8 = scalar_select 0, %s7, %s5
  loop: start=0, step=1, limit=4
  $region2: #{compute_all.19} parent=0 // loop_pre_header
    _
  $region3: #{compute_all.19} parent=0 // loop_header
    %s10 = sphi 0, %s14
    %p11 = scmp.ge.s32.totalorder %s10, 4
    %s20 = sphi 0, %s22
    %s23 = sphi 0, %s20
    %s24 = sphi 0, %s23
    %s40 = sphi 0, %s24
    %s46 = sphi 0, %s48
    %s49 = sphi 0, %s46
    %s50 = sphi 0, %s49
    %s66 = sphi 0, %s50
    %s72 = sphi 0, %s74
    %s75 = sphi 0, %s72
    %s76 = sphi 0, %s75
    %s92 = sphi 0, %s76
    %s98 = sphi 0, %s100
    %s101 = sphi 0, %s98
    %s102 = sphi 0, %s101
    %s118 = sphi 0, %s102
    %s124 = sphi 0, %s126
    %s127 = sphi 0, %s124
    %s128 = sphi 0, %s127
    %s144 = sphi 0, %s128
  $region4: #{compute_all.19} parent=0 // loop_header_branch
    %13 = sbr.rel (%p11) target = $region8
  $region5: #{compute_all.19} parent=0 // loop_body
    %s15 = ssub.s32 %s10, 1
    %s16 = ssub.s32 %s10, 2
    %s17 = sadd.s32 %s10, 1
    %s18 = ssub.s32 %s10, %s17
    %p19 = scmp.eq.s32.totalorder %s18, 0
    %s21 = sadd.s32 %s20, 1
    %s22 = scalar_select %p19, %s20, %s21
    %p25 = pneg %p19
    %p26 = scmp.eq.s32.totalorder %s10, 1
    %p27 = por %p25, %p26
    %p28 = scmp.ne.s32.totalorder %s20, %s23
    %p29 = scmp.eq.s32.totalorder %s10, 0
    %p30 = por %p28, %p29
    %p31 = scmp.ne.s32.totalorder %s20, %s23
    %p32 = scmp.eq.s32.totalorder %s15, 1
    %p33 = por %p31, %p32
    %p34 = scmp.ne.s32.totalorder %s23, %s24
    %p35 = scmp.eq.s32.totalorder %s15, 0
    %p36 = por %p34, %p35
    %p37 = scmp.ne.s32.totalorder %s23, %s24
    %p38 = scmp.eq.s32.totalorder %s16, 1
    %p39 = por %p37, %p38
    %p41 = scmp.ne.s32.totalorder %s24, %s40
    %p42 = scmp.eq.s32.totalorder %s16, 0
    %p43 = por %p41, %p42
    %s44 = ssub.s32 %s10, %s17
    %p45 = scmp.eq.s32.totalorder %s44, 0
    %s47 = sadd.s32 %s46, 1
    %s48 = scalar_select %p45, %s46, %s47
    %p51 = pneg %p45
    %p52 = scmp.eq.s32.totalorder %s10, 1
    %p53 = por %p51, %p52
    %p54 = scmp.ne.s32.totalorder %s46, %s49
    %p55 = scmp.eq.s32.totalorder %s10, 0
    %p56 = por %p54, %p55
    %p57 = scmp.ne.s32.totalorder %s46, %s49
    %p58 = scmp.eq.s32.totalorder %s15, 1
    %p59 = por %p57, %p58
    %p60 = scmp.ne.s32.totalorder %s49, %s50
    %p61 = scmp.eq.s32.totalorder %s15, 0
    %p62 = por %p60, %p61
    %p63 = scmp.ne.s32.totalorder %s49, %s50
    %p64 = scmp.eq.s32.totalorder %s16, 1
    %p65 = por %p63, %p64
    %p67 = scmp.ne.s32.totalorder %s50, %s66
    %p68 = scmp.eq.s32.totalorder %s16, 0
    %p69 = por %p67, %p68
    %s70 = ssub.s32 %s10, %s17
    %p71 = scmp.eq.s32.totalorder %s70, 0
    %s73 = sadd.s32 %s72, 1
    %s74 = scalar_select %p71, %s72, %s73
    %p77 = pneg %p71
    %p78 = scmp.eq.s32.totalorder %s10, 1
    %p79 = por %p77, %p78
    %p80 = scmp.ne.s32.totalorder %s72, %s75
    %p81 = scmp.eq.s32.totalorder %s10, 0
    %p82 = por %p80, %p81
    %p83 = scmp.ne.s32.totalorder %s72, %s75
    %p84 = scmp.eq.s32.totalorder %s15, 1
    %p85 = por %p83, %p84
    %p86 = scmp.ne.s32.totalorder %s75, %s76
    %p87 = scmp.eq.s32.totalorder %s15, 0
    %p88 = por %p86, %p87
    %p89 = scmp.ne.s32.totalorder %s75, %s76
    %p90 = scmp.eq.s32.totalorder %s16, 1
    %p91 = por %p89, %p90
    %p93 = scmp.ne.s32.totalorder %s76, %s92
    %p94 = scmp.eq.s32.totalorder %s16, 0
    %p95 = por %p93, %p94
    %s96 = ssub.s32 %s10, %s17
    %p97 = scmp.eq.s32.totalorder %s96, 0
    %s99 = sadd.s32 %s98, 1
    %s100 = scalar_select %p97, %s98, %s99
    %p103 = pneg %p97
    %p104 = scmp.eq.s32.totalorder %s10, 1
    %p105 = por %p103, %p104
    %p106 = scmp.ne.s32.totalorder %s98, %s101
    %p107 = scmp.eq.s32.totalorder %s10, 0
    %p108 = por %p106, %p107
    %p109 = scmp.ne.s32.totalorder %s98, %s101
    %p110 = scmp.eq.s32.totalorder %s15, 1
    %p111 = por %p109, %p110
    %p112 = scmp.ne.s32.totalorder %s101, %s102
    %p113 = scmp.eq.s32.totalorder %s15, 0
    %p114 = por %p112, %p113
    %p115 = scmp.ne.s32.totalorder %s101, %s102
    %p116 = scmp.eq.s32.totalorder %s16, 1
    %p117 = por %p115, %p116
    %p119 = scmp.ne.s32.totalorder %s102, %s118
    %p120 = scmp.eq.s32.totalorder %s16, 0
    %p121 = por %p119, %p120
    %s122 = ssub.s32 %s10, %s17
    %p123 = scmp.eq.s32.totalorder %s122, 0
    %s125 = sadd.s32 %s124, 1
    %s126 = scalar_select %p123, %s124, %s125
    %p129 = pneg %p123
    %p130 = scmp.eq.s32.totalorder %s10, 1
    %p131 = por %p129, %p130
    %p132 = scmp.ne.s32.totalorder %s124, %s127
    %p133 = scmp.eq.s32.totalorder %s10, 0
    %p134 = por %p132, %p133
    %p135 = scmp.ne.s32.totalorder %s124, %s127
    %p136 = scmp.eq.s32.totalorder %s15, 1
    %p137 = por %p135, %p136
    %p138 = scmp.ne.s32.totalorder %s127, %s128
    %p139 = scmp.eq.s32.totalorder %s15, 0
    %p140 = por %p138, %p139
    %p141 = scmp.ne.s32.totalorder %s127, %s128
    %p142 = scmp.eq.s32.totalorder %s16, 1
    %p143 = por %p141, %p142
    %p145 = scmp.ne.s32.totalorder %s128, %s144
    %p146 = scmp.eq.s32.totalorder %s16, 0
    %p147 = por %p145, %p146
    %p148 = scmp.le.s32.totalorder 1, %s10
    %p149 = scmp.lt.s32.totalorder %s10, 3
    %p150 = pnand %p148, %p149
    %p151 = pneg %p150
    // Predicated region
    $region9: #{compute_all.19} parent=5 // pred_check
      _
    $region10: #{compute_all.19} parent=5 // pred_check_branch
      %153 = sbr.rel (%p150) target = $region12
    $region11: #{compute_all.19} parent=5 // pred_region
      %s154 = ssub.s32 %s10, 1
    $region12: #{compute_all.19} parent=5 // pred_fallthru
      _
    %p155 = scmp.lt.s32.totalorder %s10, 2
    // Predicated region
    $region13: #{compute_all.19} parent=5 // pred_check
      %p156 = pneg %p155
    $region14: #{compute_all.19} parent=5 // pred_check_branch
      %158 = sbr.rel (%p156) target = $region16
    $region15: #{compute_all.19} parent=5 // pred_region
      // Predicated region
      $region17: #{compute_all.19} parent=15 // pred_check
        %p159 = pneg %p30
      $region18: #{compute_all.19} parent=15 // pred_check_branch
        %161 = sbr.rel (%p159) target = $region20
      $region19: #{compute_all.19} parent=15 // pred_region
        %p162 = scmp.lt.s32.totalorder %s10, 1
        %s163 = scalar_select %p162, %s10, 1
        %s164 = smul.addr %s163, 5
        %s165 = smul.addr %s164, 8
        %s166 = scalar_lea.vmem %s0, %s165
      $region20: #{compute_all.19} parent=15 // pred_fallthru
        _
      // Predicated region
      $region21: #{compute_all.19} parent=15 // pred_check
        %p167 = pneg %p56
      $region22: #{compute_all.19} parent=15 // pred_check_branch
        %169 = sbr.rel (%p167) target = $region24
      $region23: #{compute_all.19} parent=15 // pred_region
        %p170 = scmp.lt.s32.totalorder %s10, 1
        %s171 = scalar_select %p170, %s10, 1
        %s172 = smul.addr %s171, 5
        %s173 = smul.addr %s172, 8
        %s174 = scalar_lea.vmem %s1, %s173
      $region24: #{compute_all.19} parent=15 // pred_fallthru
        _
      // Predicated region
      $region25: #{compute_all.19} parent=15 // pred_check
        %p175 = pneg %p82
      $region26: #{compute_all.19} parent=15 // pred_check_branch
        %177 = sbr.rel (%p175) target = $region28
      $region27: #{compute_all.19} parent=15 // pred_region
        %p178 = scmp.lt.s32.totalorder %s10, 1
        %s179 = scalar_select %p178, %s10, 1
        %s180 = smul.addr %s179, 5
        %s181 = smul.addr %s180, 8
        %s182 = scalar_lea.vmem %s2, %s181
      $region28: #{compute_all.19} parent=15 // pred_fallthru
        _
      // Predicated region
      $region29: #{compute_all.19} parent=15 // pred_check
        %p183 = pneg %p108
      $region30: #{compute_all.19} parent=15 // pred_check_branch
        %185 = sbr.rel (%p183) target = $region32
      $region31: #{compute_all.19} parent=15 // pred_region
        %p186 = scmp.lt.s32.totalorder %s10, 1
        %s187 = scalar_select %p186, %s10, 1
        %s188 = smul.addr %s187, 5
        %s189 = smul.addr %s188, 8
        %s190 = scalar_lea.vmem %s3, %s189
      $region32: #{compute_all.19} parent=15 // pred_fallthru
        _
    $region16: #{compute_all.19} parent=5 // pred_fallthru
      _
    %p191 = scmp.le.s32.totalorder 1, %s10
    %p192 = scmp.lt.s32.totalorder %s10, 3
    %p193 = pnand %p191, %p192
    %p194 = pneg %p193
    // Predicated region
    $region33: #{compute_all.19} parent=5 // pred_check
      _
    $region34: #{compute_all.19} parent=5 // pred_check_branch
      %196 = sbr.rel (%p193) target = $region36
    $region35: #{compute_all.19} parent=5 // pred_region
      %s197 = ssub.s32 %s10, 1
      %p198 = scmp.lt.s32.totalorder %s15, 1
      %s199 = scalar_select %p198, %s15, 1
      %s200 = smul.addr %s199, 5
      %s201 = smul.addr %s200, 8
      %s202 = scalar_lea.vmem %s0, %s201
      %p203 = pneg %p36
      %p204 = pneg %p33
      %p205 = scmp.lt.s32.totalorder %s15, 1
      %s206 = scalar_select %p205, %s15, 1
      %s207 = smul.addr %s206, 5
      %s208 = smul.addr %s207, 8
      %s209 = scalar_lea.vmem %s1, %s208
      %p210 = pneg %p62
      %p211 = pneg %p59
      %p212 = scmp.lt.s32.totalorder %s15, 1
      %s213 = scalar_select %p212, %s15, 1
      %s214 = smul.addr %s213, 5
      %s215 = smul.addr %s214, 8
      %s216 = scalar_lea.vmem %s2, %s215
      %p217 = pneg %p88
      %p218 = pneg %p85
      %p219 = scmp.lt.s32.totalorder %s15, 1
      %s220 = scalar_select %p219, %s15, 1
      %s221 = smul.addr %s220, 5
      %s222 = smul.addr %s221, 8
      %s223 = scalar_lea.vmem %s3, %s222
      %p224 = pneg %p114
      %p225 = pneg %p111
      %p226 = pneg %p140
      %p227 = pneg %p137
      %p228 = scmp.lt.s32.totalorder %s15, 1
      %s229 = scalar_select %p228, %s15, 1
      %s230 = smul.addr %s229, 4
      %s231 = smul.addr %s230, 8
      %s232 = scalar_lea.vmem %s4, %s231
      %p233 = scmp.lt.s32.totalorder %s15, 1
      %s234 = scalar_select %p233, %s15, 1
      %s235 = smul.addr %s234, 5
      %s236 = smul.addr %s235, 8
      %s237 = scalar_lea.vmem %s0, %s236
      %p238 = scmp.lt.s32.totalorder %s15, 1
      %s239 = scalar_select %p238, %s15, 1
      %s240 = smul.addr %s239, 5
      %s241 = smul.addr %s240, 8
      %s242 = scalar_lea.vmem %s1, %s241
      %p243 = scmp.lt.s32.totalorder %s15, 1
      %s244 = scalar_select %p243, %s15, 1
      %s245 = smul.addr %s244, 5
      %s246 = smul.addr %s245, 8
      %s247 = scalar_lea.vmem %s2, %s246
      %p248 = scmp.lt.s32.totalorder %s15, 1
      %s249 = scalar_select %p248, %s15, 1
      %s250 = smul.addr %s249, 5
      %s251 = smul.addr %s250, 8
      %s252 = scalar_lea.vmem %s3, %s251
      %p253 = scmp.lt.s32.totalorder %s15, 1
      %s254 = scalar_select %p253, %s15, 1
      %s255 = smul.addr %s254, 4
      %s256 = smul.addr %s255, 8
      %s257 = scalar_lea.vmem %s4, %s256
      %v258 = vld [vmem:[%s237] sm:$0xff]
      %v259 = vld [vmem:[%s237 + $0x8] sm:$0xff]
      %v260 = vld [vmem:[%s237 + $0x10] sm:$0xff]
      %v261 = vld [vmem:[%s237 + $0x18] sm:$0xff]
      %v262 = vld [vmem:[%s237 + $0x20] sm:$0x3]
      %v263 = vld [vmem:[%s242] sm:$0xff]
      %v264 = vld [vmem:[%s242 + $0x8] sm:$0xff]
      %v265 = vld [vmem:[%s242 + $0x10] sm:$0xff]
      %v266 = vld [vmem:[%s242 + $0x18] sm:$0xff]
      %v267 = vld [vmem:[%s242 + $0x20] sm:$0x3]
      %v268 = vld [vmem:[%s247] sm:$0xff]
      %v269 = vld [vmem:[%s247 + $0x8] sm:$0xff]
      %v270 = vld [vmem:[%s247 + $0x10] sm:$0xff]
      %v271 = vld [vmem:[%s247 + $0x18] sm:$0xff]
      %v272 = vld [vmem:[%s247 + $0x20] sm:$0x3]
      %v273 = vld [vmem:[%s252] sm:$0xff]
      %v274 = vld [vmem:[%s252 + $0x8] sm:$0xff]
      %v275 = vld [vmem:[%s252 + $0x10] sm:$0xff]
      %v276 = vld [vmem:[%s252 + $0x18] sm:$0xff]
      %v277 = vld [vmem:[%s252 + $0x20] sm:$0x3]
      %vm283 = vcmask 1045504
      %v284 = vrot.slane %v258, 2
      %v285 = vrot.slane %v259, 2
      %v286 = vsel %vm283, %v284, %v285
      %v287 = vrot.slane %v260, 2
      %v288 = vsel %vm283, %v285, %v287
      %v289 = vrot.slane %v261, 2
      %v290 = vsel %vm283, %v287, %v289
      %v291 = vrot.slane %v262, 2
      %v292 = vsel %vm283, %v289, %v291
      %v297 = vadd.f32 %v258, %v286
      %v298 = vadd.f32 %v259, %v288
      %v299 = vadd.f32 %v260, %v290
      %v300 = vadd.f32 %v261, %v292
      %v301 = vmul.f32 %v297, 0.0625
      %v302 = vmul.f32 %v298, 0.0625
      %v303 = vmul.f32 %v299, 0.0625
      %v304 = vmul.f32 %v300, 0.0625
      %v305 = vmul.f32 %v258, 0.375
      %v306 = vmul.f32 %v259, 0.375
      %v307 = vmul.f32 %v260, 0.375
      %v308 = vmul.f32 %v261, 0.375
      %v309 = vmul.f32 %v262, 0.375
      %vm315 = vcmask 1046528
      %v316 = vrot.slane %v305, 1
      %v317 = vrot.slane %v306, 1
      %v318 = vsel %vm315, %v316, %v317
      %v319 = vrot.slane %v307, 1
      %v320 = vsel %vm315, %v317, %v319
      %v321 = vrot.slane %v308, 1
      %v322 = vsel %vm315, %v319, %v321
      %v323 = vrot.slane %v309, 1
      %v324 = vsel %vm315, %v321, %v323
      %v329 = vadd.f32 %v301, %v318
      %v330 = vadd.f32 %v302, %v320
      %v331 = vadd.f32 %v303, %v322
      %v332 = vadd.f32 %v304, %v324
      %v338 = vrot.slane %v268, 1
      %v339 = vrot.slane %v269, 1
      %v340 = vsel %vm315, %v338, %v339
      %v341 = vrot.slane %v270, 1
      %v342 = vsel %vm315, %v339, %v341
      %v343 = vrot.slane %v271, 1
      %v344 = vsel %vm315, %v341, %v343
      %v345 = vrot.slane %v272, 1
      %v346 = vsel %vm315, %v343, %v345
      %v351 = vadd.f32 %v268, %v340
      %v352 = vadd.f32 %v269, %v342
      %v353 = vadd.f32 %v270, %v344
      %v354 = vadd.f32 %v271, %v346
      %v355 = vmul.f32 %v351, 0.25
      %v356 = vmul.f32 %v352, 0.25
      %v357 = vmul.f32 %v353, 0.25
      %v358 = vmul.f32 %v354, 0.25
      %v359 = vadd.f32 %v329, %v355
      %v360 = vadd.f32 %v330, %v356
      %v361 = vadd.f32 %v331, %v357
      %v362 = vadd.f32 %v332, %v358
      %v368 = vrot.slane %v263, 2
      %v369 = vrot.slane %v264, 2
      %v370 = vsel %vm283, %v368, %v369
      %v371 = vrot.slane %v265, 2
      %v372 = vsel %vm283, %v369, %v371
      %v373 = vrot.slane %v266, 2
      %v374 = vsel %vm283, %v371, %v373
      %v375 = vrot.slane %v267, 2
      %v376 = vsel %vm283, %v373, %v375
      %v381 = vadd.f32 %v263, %v370
      %v382 = vadd.f32 %v264, %v372
      %v383 = vadd.f32 %v265, %v374
      %v384 = vadd.f32 %v266, %v376
      %v385 = vmul.f32 %v381, 0.0625
      %v386 = vmul.f32 %v382, 0.0625
      %v387 = vmul.f32 %v383, 0.0625
      %v388 = vmul.f32 %v384, 0.0625
      %v389 = vmul.f32 %v263, 0.375
      %v390 = vmul.f32 %v264, 0.375
      %v391 = vmul.f32 %v265, 0.375
      %v392 = vmul.f32 %v266, 0.375
      %v393 = vmul.f32 %v267, 0.375
      %v399 = vrot.slane %v389, 1
      %v400 = vrot.slane %v390, 1
      %v401 = vsel %vm315, %v399, %v400
      %v402 = vrot.slane %v391, 1
      %v403 = vsel %vm315, %v400, %v402
      %v404 = vrot.slane %v392, 1
      %v405 = vsel %vm315, %v402, %v404
      %v406 = vrot.slane %v393, 1
      %v407 = vsel %vm315, %v404, %v406
      %v412 = vadd.f32 %v385, %v401
      %v413 = vadd.f32 %v386, %v403
      %v414 = vadd.f32 %v387, %v405
      %v415 = vadd.f32 %v388, %v407
      %v421 = vrot.slane %v273, 1
      %v422 = vrot.slane %v274, 1
      %v423 = vsel %vm315, %v421, %v422
      %v424 = vrot.slane %v275, 1
      %v425 = vsel %vm315, %v422, %v424
      %v426 = vrot.slane %v276, 1
      %v427 = vsel %vm315, %v424, %v426
      %v428 = vrot.slane %v277, 1
      %v429 = vsel %vm315, %v426, %v428
      %v434 = vadd.f32 %v273, %v423
      %v435 = vadd.f32 %v274, %v425
      %v436 = vadd.f32 %v275, %v427
      %v437 = vadd.f32 %v276, %v429
      %v438 = vmul.f32 %v434, 0.25
      %v439 = vmul.f32 %v435, 0.25
      %v440 = vmul.f32 %v436, 0.25
      %v441 = vmul.f32 %v437, 0.25
      %v442 = vadd.f32 %v412, %v438
      %v443 = vadd.f32 %v413, %v439
      %v444 = vadd.f32 %v414, %v440
      %v445 = vadd.f32 %v415, %v441
      %450 = vrot.lane.b32.xlu0 %v359, 126
      %v451 = vpop.permute.xlu0 %450
      %452 = vrot.lane.b32.xlu0 %v360, 126
      %v453 = vpop.permute.xlu0 %452
      %454 = vrot.lane.b32.xlu0 %v361, 126
      %v455 = vpop.permute.xlu0 %454
      %456 = vrot.lane.b32.xlu0 %v362, 126
      %v457 = vpop.permute.xlu0 %456
      %v462 = vadd.f32 %v359, %v451
      %v463 = vadd.f32 %v360, %v453
      %v464 = vadd.f32 %v361, %v455
      %v465 = vadd.f32 %v362, %v457
      %v466 = vmul.f32 %v462, 0.0625
      %v467 = vmul.f32 %v463, 0.0625
      %v468 = vmul.f32 %v464, 0.0625
      %v469 = vmul.f32 %v465, 0.0625
      %v470 = vmul.f32 %v359, 0.375
      %v471 = vmul.f32 %v360, 0.375
      %v472 = vmul.f32 %v361, 0.375
      %v473 = vmul.f32 %v362, 0.375
      %478 = vrot.lane.b32.xlu0 %v470, 127
      %v479 = vpop.permute.xlu0 %478
      %480 = vrot.lane.b32.xlu0 %v471, 127
      %v481 = vpop.permute.xlu0 %480
      %482 = vrot.lane.b32.xlu0 %v472, 127
      %v483 = vpop.permute.xlu0 %482
      %484 = vrot.lane.b32.xlu0 %v473, 127
      %v485 = vpop.permute.xlu0 %484
      %v490 = vadd.f32 %v466, %v479
      %v491 = vadd.f32 %v467, %v481
      %v492 = vadd.f32 %v468, %v483
      %v493 = vadd.f32 %v469, %v485
      %498 = vrot.lane.b32.xlu0 %v442, 127
      %v499 = vpop.permute.xlu0 %498
      %500 = vrot.lane.b32.xlu0 %v443, 127
      %v501 = vpop.permute.xlu0 %500
      %502 = vrot.lane.b32.xlu0 %v444, 127
      %v503 = vpop.permute.xlu0 %502
      %504 = vrot.lane.b32.xlu0 %v445, 127
      %v505 = vpop.permute.xlu0 %504
      %v510 = vadd.f32 %v442, %v499
      %v511 = vadd.f32 %v443, %v501
      %v512 = vadd.f32 %v444, %v503
      %v513 = vadd.f32 %v445, %v505
      %v514 = vmul.f32 %v510, 0.25
      %v515 = vmul.f32 %v511, 0.25
      %v516 = vmul.f32 %v512, 0.25
      %v517 = vmul.f32 %v513, 0.25
      %v518 = vadd.f32 %v490, %v514
      %v519 = vadd.f32 %v491, %v515
      %v520 = vadd.f32 %v492, %v516
      %v521 = vadd.f32 %v493, %v517
      %vm522 = vcmask 261120
      %523 = vst.msk [vmem:[%s257] sm:$0xff] %vm522, %v518
      %524 = vst.msk [vmem:[%s257 + $0x8] sm:$0xff] %vm522, %v519
      %525 = vst.msk [vmem:[%s257 + $0x10] sm:$0xff] %vm522, %v520
      %526 = vst.msk [vmem:[%s257 + $0x18] sm:$0xff] %vm522, %v521
      %p527 = scmp.lt.s32.totalorder %s15, 1
      %s528 = scalar_select %p527, %s15, 1
      %s529 = smul.addr %s528, 4
      %s530 = smul.addr %s529, 8
      %s531 = scalar_lea.vmem %s4, %s530
      // Predicated region
      $region37: #{compute_all.19} parent=35 // pred_check
        %p532 = pneg %p137
      $region38: #{compute_all.19} parent=35 // pred_check_branch
        %534 = sbr.rel (%p532) target = $region40
      $region39: #{compute_all.19} parent=35 // pred_region
        _
      $region40: #{compute_all.19} parent=35 // pred_fallthru
        _
    $region36: #{compute_all.19} parent=5 // pred_fallthru
      _
    %p535 = scmp.le.s32.totalorder 2, %s10
    // Predicated region
    $region41: #{compute_all.19} parent=5 // pred_check
      %p536 = pneg %p535
    $region42: #{compute_all.19} parent=5 // pred_check_branch
      %538 = sbr.rel (%p536) target = $region44
    $region43: #{compute_all.19} parent=5 // pred_region
      %s539 = ssub.s32 %s10, 2
      // Predicated region
      $region45: #{compute_all.19} parent=43 // pred_check
        %p540 = pneg %p143
      $region46: #{compute_all.19} parent=43 // pred_check_branch
        %542 = sbr.rel (%p540) target = $region48
      $region47: #{compute_all.19} parent=43 // pred_region
        %p543 = scmp.lt.s32.totalorder %s16, 1
        %s544 = scalar_select %p543, %s16, 1
        %s545 = smul.addr %s544, 4
        %s546 = smul.addr %s545, 8
        %s547 = scalar_lea.vmem %s4, %s546
      $region48: #{compute_all.19} parent=43 // pred_fallthru
        _
    $region44: #{compute_all.19} parent=5 // pred_fallthru
      _
  $region6: #{compute_all.19} parent=0 // loop_footer
    %s14 = sadd.s32 1, %s10
  $region7: #{compute_all.19} parent=0 // loop_footer_branch
    %9 = sbr.rel target = $region3
  $region8: #{compute_all.19} parent=0 // loop_exit
    _

// kernel: compute_all.22
$region0: #{compute_all.22}
  #allocation0 [shape = 'u32[]', space=smem, size = 0x4, offset = 0x4, fixed_abs, tag = 'smem constant byte address 0x4 - core index']
  #allocation1 [shape = 'u32[144,128]{1,0:T(1,128)}', space=vmem, size = 0x12000, scoped, tag = 'internal scratch']
  %s0 = inlined_call_operand.vmem [shape: f32[2,18,18], index: 0, kind: input, shape index: {}]
  %s1 = inlined_call_operand.vmem [shape: f32[2,18,18], index: 1, kind: input, shape index: {}]
  %s2 = inlined_call_operand.vmem [shape: f32[2,18,18], index: 2, kind: input, shape index: {}]
  %s3 = inlined_call_operand.vmem [shape: f32[2,18,18], index: 3, kind: input, shape index: {}]
  %s4 = inlined_call_operand.vmem [shape: f32[2,16,16], index: 4, kind: output, shape index: {}]
  %s5 = sld [smem:[#allocation0]]
  $region49: #{compute_all.22} parent=0
    _
  %s7 = ssub.s32 1, %s5
  %s8 = scalar_select 0, %s7, %s5
  loop: start=0, step=1, limit=4
  $region2: #{compute_all.22} parent=0 // loop_pre_header
    _
  $region3: #{compute_all.22} parent=0 // loop_header
    %s10 = sphi 0, %s14
    %p11 = scmp.ge.s32.totalorder %s10, 4
    %s20 = sphi 0, %s22
    %s23 = sphi 0, %s20
    %s24 = sphi 0, %s23
    %s40 = sphi 0, %s24
    %s46 = sphi 0, %s48
    %s49 = sphi 0, %s46
    %s50 = sphi 0, %s49
    %s66 = sphi 0, %s50
    %s72 = sphi 0, %s74
    %s75 = sphi 0, %s72
    %s76 = sphi 0, %s75
    %s92 = sphi 0, %s76
    %s98 = sphi 0, %s100
    %s101 = sphi 0, %s98
    %s102 = sphi 0, %s101
    %s118 = sphi 0, %s102
    %s124 = sphi 0, %s126
    %s127 = sphi 0, %s124
    %s128 = sphi 0, %s127
    %s144 = sphi 0, %s128
  $region4: #{compute_all.22} parent=0 // loop_header_branch
    %13 = sbr.rel (%p11) target = $region8
  $region5: #{compute_all.22} parent=0 // loop_body
    %s15 = ssub.s32 %s10, 1
    %s16 = ssub.s32 %s10, 2
    %s17 = sadd.s32 %s10, 1
    %s18 = ssub.s32 %s10, %s17
    %p19 = scmp.eq.s32.totalorder %s18, 0
    %s21 = sadd.s32 %s20, 1
    %s22 = scalar_select %p19, %s20, %s21
    %p25 = pneg %p19
    %p26 = scmp.eq.s32.totalorder %s10, 1
    %p27 = por %p25, %p26
    %p28 = scmp.ne.s32.totalorder %s20, %s23
    %p29 = scmp.eq.s32.totalorder %s10, 0
    %p30 = por %p28, %p29
    %p31 = scmp.ne.s32.totalorder %s20, %s23
    %p32 = scmp.eq.s32.totalorder %s15, 1
    %p33 = por %p31, %p32
    %p34 = scmp.ne.s32.totalorder %s23, %s24
    %p35 = scmp.eq.s32.totalorder %s15, 0
    %p36 = por %p34, %p35
    %p37 = scmp.ne.s32.totalorder %s23, %s24
    %p38 = scmp.eq.s32.totalorder %s16, 1
    %p39 = por %p37, %p38
    %p41 = scmp.ne.s32.totalorder %s24, %s40
    %p42 = scmp.eq.s32.totalorder %s16, 0
    %p43 = por %p41, %p42
    %s44 = ssub.s32 %s10, %s17
    %p45 = scmp.eq.s32.totalorder %s44, 0
    %s47 = sadd.s32 %s46, 1
    %s48 = scalar_select %p45, %s46, %s47
    %p51 = pneg %p45
    %p52 = scmp.eq.s32.totalorder %s10, 1
    %p53 = por %p51, %p52
    %p54 = scmp.ne.s32.totalorder %s46, %s49
    %p55 = scmp.eq.s32.totalorder %s10, 0
    %p56 = por %p54, %p55
    %p57 = scmp.ne.s32.totalorder %s46, %s49
    %p58 = scmp.eq.s32.totalorder %s15, 1
    %p59 = por %p57, %p58
    %p60 = scmp.ne.s32.totalorder %s49, %s50
    %p61 = scmp.eq.s32.totalorder %s15, 0
    %p62 = por %p60, %p61
    %p63 = scmp.ne.s32.totalorder %s49, %s50
    %p64 = scmp.eq.s32.totalorder %s16, 1
    %p65 = por %p63, %p64
    %p67 = scmp.ne.s32.totalorder %s50, %s66
    %p68 = scmp.eq.s32.totalorder %s16, 0
    %p69 = por %p67, %p68
    %s70 = ssub.s32 %s10, %s17
    %p71 = scmp.eq.s32.totalorder %s70, 0
    %s73 = sadd.s32 %s72, 1
    %s74 = scalar_select %p71, %s72, %s73
    %p77 = pneg %p71
    %p78 = scmp.eq.s32.totalorder %s10, 1
    %p79 = por %p77, %p78
    %p80 = scmp.ne.s32.totalorder %s72, %s75
    %p81 = scmp.eq.s32.totalorder %s10, 0
    %p82 = por %p80, %p81
    %p83 = scmp.ne.s32.totalorder %s72, %s75
    %p84 = scmp.eq.s32.totalorder %s15, 1
    %p85 = por %p83, %p84
    %p86 = scmp.ne.s32.totalorder %s75, %s76
    %p87 = scmp.eq.s32.totalorder %s15, 0
    %p88 = por %p86, %p87
    %p89 = scmp.ne.s32.totalorder %s75, %s76
    %p90 = scmp.eq.s32.totalorder %s16, 1
    %p91 = por %p89, %p90
    %p93 = scmp.ne.s32.totalorder %s76, %s92
    %p94 = scmp.eq.s32.totalorder %s16, 0
    %p95 = por %p93, %p94
    %s96 = ssub.s32 %s10, %s17
    %p97 = scmp.eq.s32.totalorder %s96, 0
    %s99 = sadd.s32 %s98, 1
    %s100 = scalar_select %p97, %s98, %s99
    %p103 = pneg %p97
    %p104 = scmp.eq.s32.totalorder %s10, 1
    %p105 = por %p103, %p104
    %p106 = scmp.ne.s32.totalorder %s98, %s101
    %p107 = scmp.eq.s32.totalorder %s10, 0
    %p108 = por %p106, %p107
    %p109 = scmp.ne.s32.totalorder %s98, %s101
    %p110 = scmp.eq.s32.totalorder %s15, 1
    %p111 = por %p109, %p110
    %p112 = scmp.ne.s32.totalorder %s101, %s102
    %p113 = scmp.eq.s32.totalorder %s15, 0
    %p114 = por %p112, %p113
    %p115 = scmp.ne.s32.totalorder %s101, %s102
    %p116 = scmp.eq.s32.totalorder %s16, 1
    %p117 = por %p115, %p116
    %p119 = scmp.ne.s32.totalorder %s102, %s118
    %p120 = scmp.eq.s32.totalorder %s16, 0
    %p121 = por %p119, %p120
    %s122 = ssub.s32 %s10, %s17
    %p123 = scmp.eq.s32.totalorder %s122, 0
    %s125 = sadd.s32 %s124, 1
    %s126 = scalar_select %p123, %s124, %s125
    %p129 = pneg %p123
    %p130 = scmp.eq.s32.totalorder %s10, 1
    %p131 = por %p129, %p130
    %p132 = scmp.ne.s32.totalorder %s124, %s127
    %p133 = scmp.eq.s32.totalorder %s10, 0
    %p134 = por %p132, %p133
    %p135 = scmp.ne.s32.totalorder %s124, %s127
    %p136 = scmp.eq.s32.totalorder %s15, 1
    %p137 = por %p135, %p136
    %p138 = scmp.ne.s32.totalorder %s127, %s128
    %p139 = scmp.eq.s32.totalorder %s15, 0
    %p140 = por %p138, %p139
    %p141 = scmp.ne.s32.totalorder %s127, %s128
    %p142 = scmp.eq.s32.totalorder %s16, 1
    %p143 = por %p141, %p142
    %p145 = scmp.ne.s32.totalorder %s128, %s144
    %p146 = scmp.eq.s32.totalorder %s16, 0
    %p147 = por %p145, %p146
    %p148 = scmp.le.s32.totalorder 1, %s10
    %p149 = scmp.lt.s32.totalorder %s10, 3
    %p150 = pnand %p148, %p149
    %p151 = pneg %p150
    // Predicated region
    $region9: #{compute_all.22} parent=5 // pred_check
      _
    $region10: #{compute_all.22} parent=5 // pred_check_branch
      %153 = sbr.rel (%p150) target = $region12
    $region11: #{compute_all.22} parent=5 // pred_region
      %s154 = ssub.s32 %s10, 1
    $region12: #{compute_all.22} parent=5 // pred_fallthru
      _
    %p155 = scmp.lt.s32.totalorder %s10, 2
    // Predicated region
    $region13: #{compute_all.22} parent=5 // pred_check
      %p156 = pneg %p155
    $region14: #{compute_all.22} parent=5 // pred_check_branch
      %158 = sbr.rel (%p156) target = $region16
    $region15: #{compute_all.22} parent=5 // pred_region
      // Predicated region
      $region17: #{compute_all.22} parent=15 // pred_check
        %p159 = pneg %p30
      $region18: #{compute_all.22} parent=15 // pred_check_branch
        %161 = sbr.rel (%p159) target = $region20
      $region19: #{compute_all.22} parent=15 // pred_region
        %p162 = scmp.lt.s32.totalorder %s10, 1
        %s163 = scalar_select %p162, %s10, 1
        %s164 = smul.addr %s163, 3
        %s165 = smul.addr %s164, 8
        %s166 = scalar_lea.vmem %s0, %s165
      $region20: #{compute_all.22} parent=15 // pred_fallthru
        _
      // Predicated region
      $region21: #{compute_all.22} parent=15 // pred_check
        %p167 = pneg %p56
      $region22: #{compute_all.22} parent=15 // pred_check_branch
        %169 = sbr.rel (%p167) target = $region24
      $region23: #{compute_all.22} parent=15 // pred_region
        %p170 = scmp.lt.s32.totalorder %s10, 1
        %s171 = scalar_select %p170, %s10, 1
        %s172 = smul.addr %s171, 3
        %s173 = smul.addr %s172, 8
        %s174 = scalar_lea.vmem %s1, %s173
      $region24: #{compute_all.22} parent=15 // pred_fallthru
        _
      // Predicated region
      $region25: #{compute_all.22} parent=15 // pred_check
        %p175 = pneg %p82
      $region26: #{compute_all.22} parent=15 // pred_check_branch
        %177 = sbr.rel (%p175) target = $region28
      $region27: #{compute_all.22} parent=15 // pred_region
        %p178 = scmp.lt.s32.totalorder %s10, 1
        %s179 = scalar_select %p178, %s10, 1
        %s180 = smul.addr %s179, 3
        %s181 = smul.addr %s180, 8
        %s182 = scalar_lea.vmem %s2, %s181
      $region28: #{compute_all.22} parent=15 // pred_fallthru
        _
      // Predicated region
      $region29: #{compute_all.22} parent=15 // pred_check
        %p183 = pneg %p108
      $region30: #{compute_all.22} parent=15 // pred_check_branch
        %185 = sbr.rel (%p183) target = $region32
      $region31: #{compute_all.22} parent=15 // pred_region
        %p186 = scmp.lt.s32.totalorder %s10, 1
        %s187 = scalar_select %p186, %s10, 1
        %s188 = smul.addr %s187, 3
        %s189 = smul.addr %s188, 8
        %s190 = scalar_lea.vmem %s3, %s189
      $region32: #{compute_all.22} parent=15 // pred_fallthru
        _
    $region16: #{compute_all.22} parent=5 // pred_fallthru
      _
    %p191 = scmp.le.s32.totalorder 1, %s10
    %p192 = scmp.lt.s32.totalorder %s10, 3
    %p193 = pnand %p191, %p192
    %p194 = pneg %p193
    // Predicated region
    $region33: #{compute_all.22} parent=5 // pred_check
      _
    $region34: #{compute_all.22} parent=5 // pred_check_branch
      %196 = sbr.rel (%p193) target = $region36
    $region35: #{compute_all.22} parent=5 // pred_region
      %s197 = ssub.s32 %s10, 1
      %p198 = scmp.lt.s32.totalorder %s15, 1
      %s199 = scalar_select %p198, %s15, 1
      %s200 = smul.addr %s199, 3
      %s201 = smul.addr %s200, 8
      %s202 = scalar_lea.vmem %s0, %s201
      %p203 = pneg %p36
      %p204 = pneg %p33
      %p205 = scmp.lt.s32.totalorder %s15, 1
      %s206 = scalar_select %p205, %s15, 1
      %s207 = smul.addr %s206, 3
      %s208 = smul.addr %s207, 8
      %s209 = scalar_lea.vmem %s1, %s208
      %p210 = pneg %p62
      %p211 = pneg %p59
      %p212 = scmp.lt.s32.totalorder %s15, 1
      %s213 = scalar_select %p212, %s15, 1
      %s214 = smul.addr %s213, 3
      %s215 = smul.addr %s214, 8
      %s216 = scalar_lea.vmem %s2, %s215
      %p217 = pneg %p88
      %p218 = pneg %p85
      %p219 = scmp.lt.s32.totalorder %s15, 1
      %s220 = scalar_select %p219, %s15, 1
      %s221 = smul.addr %s220, 3
      %s222 = smul.addr %s221, 8
      %s223 = scalar_lea.vmem %s3, %s222
      %p224 = pneg %p114
      %p225 = pneg %p111
      %p226 = pneg %p140
      %p227 = pneg %p137
      %p228 = scmp.lt.s32.totalorder %s15, 1
      %s229 = scalar_select %p228, %s15, 1
      %s230 = smul.addr %s229, 2
      %s231 = smul.addr %s230, 8
      %s232 = scalar_lea.vmem %s4, %s231
      %p233 = scmp.lt.s32.totalorder %s15, 1
      %s234 = scalar_select %p233, %s15, 1
      %s235 = smul.addr %s234, 3
      %s236 = smul.addr %s235, 8
      %s237 = scalar_lea.vmem %s0, %s236
      %p238 = scmp.lt.s32.totalorder %s15, 1
      %s239 = scalar_select %p238, %s15, 1
      %s240 = smul.addr %s239, 3
      %s241 = smul.addr %s240, 8
      %s242 = scalar_lea.vmem %s1, %s241
      %p243 = scmp.lt.s32.totalorder %s15, 1
      %s244 = scalar_select %p243, %s15, 1
      %s245 = smul.addr %s244, 3
      %s246 = smul.addr %s245, 8
      %s247 = scalar_lea.vmem %s2, %s246
      %p248 = scmp.lt.s32.totalorder %s15, 1
      %s249 = scalar_select %p248, %s15, 1
      %s250 = smul.addr %s249, 3
      %s251 = smul.addr %s250, 8
      %s252 = scalar_lea.vmem %s3, %s251
      %p253 = scmp.lt.s32.totalorder %s15, 1
      %s254 = scalar_select %p253, %s15, 1
      %s255 = smul.addr %s254, 2
      %s256 = smul.addr %s255, 8
      %s257 = scalar_lea.vmem %s4, %s256
      %v258 = vld [vmem:[%s237] sm:$0xff]
      %v259 = vld [vmem:[%s237 + $0x8] sm:$0xff]
      %v260 = vld [vmem:[%s237 + $0x10] sm:$0x3]
      %v261 = vld [vmem:[%s242] sm:$0xff]
      %v262 = vld [vmem:[%s242 + $0x8] sm:$0xff]
      %v263 = vld [vmem:[%s242 + $0x10] sm:$0x3]
      %v264 = vld [vmem:[%s247] sm:$0xff]
      %v265 = vld [vmem:[%s247 + $0x8] sm:$0xff]
      %v266 = vld [vmem:[%s247 + $0x10] sm:$0x3]
      %v267 = vld [vmem:[%s252] sm:$0xff]
      %v268 = vld [vmem:[%s252 + $0x8] sm:$0xff]
      %v269 = vld [vmem:[%s252 + $0x10] sm:$0x3]
      %vm273 = vcmask 1045504
      %v274 = vrot.slane %v258, 2
      %v275 = vrot.slane %v259, 2
      %v276 = vsel %vm273, %v274, %v275
      %v277 = vrot.slane %v260, 2
      %v278 = vsel %vm273, %v275, %v277
      %v281 = vadd.f32 %v258, %v276
      %v282 = vadd.f32 %v259, %v278
      %v283 = vmul.f32 %v281, 0.0625
      %v284 = vmul.f32 %v282, 0.0625
      %v285 = vmul.f32 %v258, 0.375
      %v286 = vmul.f32 %v259, 0.375
      %v287 = vmul.f32 %v260, 0.375
      %vm291 = vcmask 1046528
      %v292 = vrot.slane %v285, 1
      %v293 = vrot.slane %v286, 1
      %v294 = vsel %vm291, %v292, %v293
      %v295 = vrot.slane %v287, 1
      %v296 = vsel %vm291, %v293, %v295
      %v299 = vadd.f32 %v283, %v294
      %v300 = vadd.f32 %v284, %v296
      %v304 = vrot.slane %v264, 1
      %v305 = vrot.slane %v265, 1
      %v306 = vsel %vm291, %v304, %v305
      %v307 = vrot.slane %v266, 1
      %v308 = vsel %vm291, %v305, %v307
      %v311 = vadd.f32 %v264, %v306
      %v312 = vadd.f32 %v265, %v308
      %v313 = vmul.f32 %v311, 0.25
      %v314 = vmul.f32 %v312, 0.25
      %v315 = vadd.f32 %v299, %v313
      %v316 = vadd.f32 %v300, %v314
      %v320 = vrot.slane %v261, 2
      %v321 = vrot.slane %v262, 2
      %v322 = vsel %vm273, %v320, %v321
      %v323 = vrot.slane %v263, 2
      %v324 = vsel %vm273, %v321, %v323
      %v327 = vadd.f32 %v261, %v322
      %v328 = vadd.f32 %v262, %v324
      %v329 = vmul.f32 %v327, 0.0625
      %v330 = vmul.f32 %v328, 0.0625
      %v331 = vmul.f32 %v261, 0.375
      %v332 = vmul.f32 %v262, 0.375
      %v333 = vmul.f32 %v263, 0.375
      %v337 = vrot.slane %v331, 1
      %v338 = vrot.slane %v332, 1
      %v339 = vsel %vm291, %v337, %v338
      %v340 = vrot.slane %v333, 1
      %v341 = vsel %vm291, %v338, %v340
      %v344 = vadd.f32 %v329, %v339
      %v345 = vadd.f32 %v330, %v341
      %v349 = vrot.slane %v267, 1
      %v350 = vrot.slane %v268, 1
      %v351 = vsel %vm291, %v349, %v350
      %v352 = vrot.slane %v269, 1
      %v353 = vsel %vm291, %v350, %v352
      %v356 = vadd.f32 %v267, %v351
      %v357 = vadd.f32 %v268, %v353
      %v358 = vmul.f32 %v356, 0.25
      %v359 = vmul.f32 %v357, 0.25
      %v360 = vadd.f32 %v344, %v358
      %v361 = vadd.f32 %v345, %v359
      %364 = vrot.lane.b32.xlu0 %v315, 126
      %v365 = vpop.permute.xlu0 %364
      %366 = vrot.lane.b32.xlu0 %v316, 126
      %v367 = vpop.permute.xlu0 %366
      %v370 = vadd.f32 %v315, %v365
      %v371 = vadd.f32 %v316, %v367
      %v372 = vmul.f32 %v370, 0.0625
      %v373 = vmul.f32 %v371, 0.0625
      %v374 = vmul.f32 %v315, 0.375
      %v375 = vmul.f32 %v316, 0.375
      %378 = vrot.lane.b32.xlu0 %v374, 127
      %v379 = vpop.permute.xlu0 %378
      %380 = vrot.lane.b32.xlu0 %v375, 127
      %v381 = vpop.permute.xlu0 %380
      %v384 = vadd.f32 %v372, %v379
      %v385 = vadd.f32 %v373, %v381
      %388 = vrot.lane.b32.xlu0 %v360, 127
      %v389 = vpop.permute.xlu0 %388
      %390 = vrot.lane.b32.xlu0 %v361, 127
      %v391 = vpop.permute.xlu0 %390
      %v394 = vadd.f32 %v360, %v389
      %v395 = vadd.f32 %v361, %v391
      %v396 = vmul.f32 %v394, 0.25
      %v397 = vmul.f32 %v395, 0.25
      %v398 = vadd.f32 %v384, %v396
      %v399 = vadd.f32 %v385, %v397
      %vm400 = vcmask 130048
      %401 = vst.msk [vmem:[%s257] sm:$0xff] %vm400, %v398
      %402 = vst.msk [vmem:[%s257 + $0x8] sm:$0xff] %vm400, %v399
      %p403 = scmp.lt.s32.totalorder %s15, 1
      %s404 = scalar_select %p403, %s15, 1
      %s405 = smul.addr %s404, 2
      %s406 = smul.addr %s405, 8
      %s407 = scalar_lea.vmem %s4, %s406
      // Predicated region
      $region37: #{compute_all.22} parent=35 // pred_check
        %p408 = pneg %p137
      $region38: #{compute_all.22} parent=35 // pred_check_branch
        %410 = sbr.rel (%p408) target = $region40
      $region39: #{compute_all.22} parent=35 // pred_region
        _
      $region40: #{compute_all.22} parent=35 // pred_fallthru
        _
    $region36: #{compute_all.22} parent=5 // pred_fallthru
      _
    %p411 = scmp.le.s32.totalorder 2, %s10
    // Predicated region
    $region41: #{compute_all.22} parent=5 // pred_check
      %p412 = pneg %p411
    $region42: #{compute_all.22} parent=5 // pred_check_branch
      %414 = sbr.rel (%p412) target = $region44
    $region43: #{compute_all.22} parent=5 // pred_region
      %s415 = ssub.s32 %s10, 2
      // Predicated region
      $region45: #{compute_all.22} parent=43 // pred_check
        %p416 = pneg %p143
      $region46: #{compute_all.22} parent=43 // pred_check_branch
        %418 = sbr.rel (%p416) target = $region48
      $region47: #{compute_all.22} parent=43 // pred_region
        %p419 = scmp.lt.s32.totalorder %s16, 1
        %s420 = scalar_select %p419, %s16, 1
        %s421 = smul.addr %s420, 2
        %s422 = smul.addr %s421, 8
        %s423 = scalar_lea.vmem %s4, %s422
      $region48: #{compute_all.22} parent=43 // pred_fallthru
        _
    $region44: #{compute_all.22} parent=5 // pred_fallthru
      _
  $region6: #{compute_all.22} parent=0 // loop_footer
    %s14 = sadd.s32 1, %s10
  $region7: #{compute_all.22} parent=0 // loop_footer_branch
    %9 = sbr.rel target = $region3
  $region8: #{compute_all.22} parent=0 // loop_exit
    _

// kernel: compute_all.25
$region0: #{compute_all.25}
  #allocation0 [shape = 'u32[]', space=smem, size = 0x4, offset = 0x4, fixed_abs, tag = 'smem constant byte address 0x4 - core index']
  #allocation1 [shape = 'u32[144,128]{1,0:T(1,128)}', space=vmem, size = 0x12000, scoped, tag = 'internal scratch']
  %s0 = inlined_call_operand.vmem [shape: f32[2,10,10], index: 0, kind: input, shape index: {}]
  %s1 = inlined_call_operand.vmem [shape: f32[2,10,10], index: 1, kind: input, shape index: {}]
  %s2 = inlined_call_operand.vmem [shape: f32[2,10,10], index: 2, kind: input, shape index: {}]
  %s3 = inlined_call_operand.vmem [shape: f32[2,10,10], index: 3, kind: input, shape index: {}]
  %s4 = inlined_call_operand.vmem [shape: f32[2,8,8], index: 4, kind: output, shape index: {}]
  %s5 = sld [smem:[#allocation0]]
  $region49: #{compute_all.25} parent=0
    _
  %s7 = ssub.s32 1, %s5
  %s8 = scalar_select 0, %s7, %s5
  loop: start=0, step=1, limit=4
  $region2: #{compute_all.25} parent=0 // loop_pre_header
    _
  $region3: #{compute_all.25} parent=0 // loop_header
    %s10 = sphi 0, %s14
    %p11 = scmp.ge.s32.totalorder %s10, 4
    %s20 = sphi 0, %s22
    %s23 = sphi 0, %s20
    %s24 = sphi 0, %s23
    %s40 = sphi 0, %s24
    %s46 = sphi 0, %s48
    %s49 = sphi 0, %s46
    %s50 = sphi 0, %s49
    %s66 = sphi 0, %s50
    %s72 = sphi 0, %s74
    %s75 = sphi 0, %s72
    %s76 = sphi 0, %s75
    %s92 = sphi 0, %s76
    %s98 = sphi 0, %s100
    %s101 = sphi 0, %s98
    %s102 = sphi 0, %s101
    %s118 = sphi 0, %s102
    %s124 = sphi 0, %s126
    %s127 = sphi 0, %s124
    %s128 = sphi 0, %s127
    %s144 = sphi 0, %s128
  $region4: #{compute_all.25} parent=0 // loop_header_branch
    %13 = sbr.rel (%p11) target = $region8
  $region5: #{compute_all.25} parent=0 // loop_body
    %s15 = ssub.s32 %s10, 1
    %s16 = ssub.s32 %s10, 2
    %s17 = sadd.s32 %s10, 1
    %s18 = ssub.s32 %s10, %s17
    %p19 = scmp.eq.s32.totalorder %s18, 0
    %s21 = sadd.s32 %s20, 1
    %s22 = scalar_select %p19, %s20, %s21
    %p25 = pneg %p19
    %p26 = scmp.eq.s32.totalorder %s10, 1
    %p27 = por %p25, %p26
    %p28 = scmp.ne.s32.totalorder %s20, %s23
    %p29 = scmp.eq.s32.totalorder %s10, 0
    %p30 = por %p28, %p29
    %p31 = scmp.ne.s32.totalorder %s20, %s23
    %p32 = scmp.eq.s32.totalorder %s15, 1
    %p33 = por %p31, %p32
    %p34 = scmp.ne.s32.totalorder %s23, %s24
    %p35 = scmp.eq.s32.totalorder %s15, 0
    %p36 = por %p34, %p35
    %p37 = scmp.ne.s32.totalorder %s23, %s24
    %p38 = scmp.eq.s32.totalorder %s16, 1
    %p39 = por %p37, %p38
    %p41 = scmp.ne.s32.totalorder %s24, %s40
    %p42 = scmp.eq.s32.totalorder %s16, 0
    %p43 = por %p41, %p42
    %s44 = ssub.s32 %s10, %s17
    %p45 = scmp.eq.s32.totalorder %s44, 0
    %s47 = sadd.s32 %s46, 1
    %s48 = scalar_select %p45, %s46, %s47
    %p51 = pneg %p45
    %p52 = scmp.eq.s32.totalorder %s10, 1
    %p53 = por %p51, %p52
    %p54 = scmp.ne.s32.totalorder %s46, %s49
    %p55 = scmp.eq.s32.totalorder %s10, 0
    %p56 = por %p54, %p55
    %p57 = scmp.ne.s32.totalorder %s46, %s49
    %p58 = scmp.eq.s32.totalorder %s15, 1
    %p59 = por %p57, %p58
    %p60 = scmp.ne.s32.totalorder %s49, %s50
    %p61 = scmp.eq.s32.totalorder %s15, 0
    %p62 = por %p60, %p61
    %p63 = scmp.ne.s32.totalorder %s49, %s50
    %p64 = scmp.eq.s32.totalorder %s16, 1
    %p65 = por %p63, %p64
    %p67 = scmp.ne.s32.totalorder %s50, %s66
    %p68 = scmp.eq.s32.totalorder %s16, 0
    %p69 = por %p67, %p68
    %s70 = ssub.s32 %s10, %s17
    %p71 = scmp.eq.s32.totalorder %s70, 0
    %s73 = sadd.s32 %s72, 1
    %s74 = scalar_select %p71, %s72, %s73
    %p77 = pneg %p71
    %p78 = scmp.eq.s32.totalorder %s10, 1
    %p79 = por %p77, %p78
    %p80 = scmp.ne.s32.totalorder %s72, %s75
    %p81 = scmp.eq.s32.totalorder %s10, 0
    %p82 = por %p80, %p81
    %p83 = scmp.ne.s32.totalorder %s72, %s75
    %p84 = scmp.eq.s32.totalorder %s15, 1
    %p85 = por %p83, %p84
    %p86 = scmp.ne.s32.totalorder %s75, %s76
    %p87 = scmp.eq.s32.totalorder %s15, 0
    %p88 = por %p86, %p87
    %p89 = scmp.ne.s32.totalorder %s75, %s76
    %p90 = scmp.eq.s32.totalorder %s16, 1
    %p91 = por %p89, %p90
    %p93 = scmp.ne.s32.totalorder %s76, %s92
    %p94 = scmp.eq.s32.totalorder %s16, 0
    %p95 = por %p93, %p94
    %s96 = ssub.s32 %s10, %s17
    %p97 = scmp.eq.s32.totalorder %s96, 0
    %s99 = sadd.s32 %s98, 1
    %s100 = scalar_select %p97, %s98, %s99
    %p103 = pneg %p97
    %p104 = scmp.eq.s32.totalorder %s10, 1
    %p105 = por %p103, %p104
    %p106 = scmp.ne.s32.totalorder %s98, %s101
    %p107 = scmp.eq.s32.totalorder %s10, 0
    %p108 = por %p106, %p107
    %p109 = scmp.ne.s32.totalorder %s98, %s101
    %p110 = scmp.eq.s32.totalorder %s15, 1
    %p111 = por %p109, %p110
    %p112 = scmp.ne.s32.totalorder %s101, %s102
    %p113 = scmp.eq.s32.totalorder %s15, 0
    %p114 = por %p112, %p113
    %p115 = scmp.ne.s32.totalorder %s101, %s102
    %p116 = scmp.eq.s32.totalorder %s16, 1
    %p117 = por %p115, %p116
    %p119 = scmp.ne.s32.totalorder %s102, %s118
    %p120 = scmp.eq.s32.totalorder %s16, 0
    %p121 = por %p119, %p120
    %s122 = ssub.s32 %s10, %s17
    %p123 = scmp.eq.s32.totalorder %s122, 0
    %s125 = sadd.s32 %s124, 1
    %s126 = scalar_select %p123, %s124, %s125
    %p129 = pneg %p123
    %p130 = scmp.eq.s32.totalorder %s10, 1
    %p131 = por %p129, %p130
    %p132 = scmp.ne.s32.totalorder %s124, %s127
    %p133 = scmp.eq.s32.totalorder %s10, 0
    %p134 = por %p132, %p133
    %p135 = scmp.ne.s32.totalorder %s124, %s127
    %p136 = scmp.eq.s32.totalorder %s15, 1
    %p137 = por %p135, %p136
    %p138 = scmp.ne.s32.totalorder %s127, %s128
    %p139 = scmp.eq.s32.totalorder %s15, 0
    %p140 = por %p138, %p139
    %p141 = scmp.ne.s32.totalorder %s127, %s128
    %p142 = scmp.eq.s32.totalorder %s16, 1
    %p143 = por %p141, %p142
    %p145 = scmp.ne.s32.totalorder %s128, %s144
    %p146 = scmp.eq.s32.totalorder %s16, 0
    %p147 = por %p145, %p146
    %p148 = scmp.le.s32.totalorder 1, %s10
    %p149 = scmp.lt.s32.totalorder %s10, 3
    %p150 = pnand %p148, %p149
    %p151 = pneg %p150
    // Predicated region
    $region9: #{compute_all.25} parent=5 // pred_check
      _
    $region10: #{compute_all.25} parent=5 // pred_check_branch
      %153 = sbr.rel (%p150) target = $region12
    $region11: #{compute_all.25} parent=5 // pred_region
      %s154 = ssub.s32 %s10, 1
    $region12: #{compute_all.25} parent=5 // pred_fallthru
      _
    %p155 = scmp.lt.s32.totalorder %s10, 2
    // Predicated region
    $region13: #{compute_all.25} parent=5 // pred_check
      %p156 = pneg %p155
    $region14: #{compute_all.25} parent=5 // pred_check_branch
      %158 = sbr.rel (%p156) target = $region16
    $region15: #{compute_all.25} parent=5 // pred_region
      // Predicated region
      $region17: #{compute_all.25} parent=15 // pred_check
        %p159 = pneg %p30
      $region18: #{compute_all.25} parent=15 // pred_check_branch
        %161 = sbr.rel (%p159) target = $region20
      $region19: #{compute_all.25} parent=15 // pred_region
        %p162 = scmp.lt.s32.totalorder %s10, 1
        %s163 = scalar_select %p162, %s10, 1
        %s164 = smul.addr %s163, 2
        %s165 = smul.addr %s164, 8
        %s166 = scalar_lea.vmem %s0, %s165
      $region20: #{compute_all.25} parent=15 // pred_fallthru
        _
      // Predicated region
      $region21: #{compute_all.25} parent=15 // pred_check
        %p167 = pneg %p56
      $region22: #{compute_all.25} parent=15 // pred_check_branch
        %169 = sbr.rel (%p167) target = $region24
      $region23: #{compute_all.25} parent=15 // pred_region
        %p170 = scmp.lt.s32.totalorder %s10, 1
        %s171 = scalar_select %p170, %s10, 1
        %s172 = smul.addr %s171, 2
        %s173 = smul.addr %s172, 8
        %s174 = scalar_lea.vmem %s1, %s173
      $region24: #{compute_all.25} parent=15 // pred_fallthru
        _
      // Predicated region
      $region25: #{compute_all.25} parent=15 // pred_check
        %p175 = pneg %p82
      $region26: #{compute_all.25} parent=15 // pred_check_branch
        %177 = sbr.rel (%p175) target = $region28
      $region27: #{compute_all.25} parent=15 // pred_region
        %p178 = scmp.lt.s32.totalorder %s10, 1
        %s179 = scalar_select %p178, %s10, 1
        %s180 = smul.addr %s179, 2
        %s181 = smul.addr %s180, 8
        %s182 = scalar_lea.vmem %s2, %s181
      $region28: #{compute_all.25} parent=15 // pred_fallthru
        _
      // Predicated region
      $region29: #{compute_all.25} parent=15 // pred_check
        %p183 = pneg %p108
      $region30: #{compute_all.25} parent=15 // pred_check_branch
        %185 = sbr.rel (%p183) target = $region32
      $region31: #{compute_all.25} parent=15 // pred_region
        %p186 = scmp.lt.s32.totalorder %s10, 1
        %s187 = scalar_select %p186, %s10, 1
        %s188 = smul.addr %s187, 2
        %s189 = smul.addr %s188, 8
        %s190 = scalar_lea.vmem %s3, %s189
      $region32: #{compute_all.25} parent=15 // pred_fallthru
        _
    $region16: #{compute_all.25} parent=5 // pred_fallthru
      _
    %p191 = scmp.le.s32.totalorder 1, %s10
    %p192 = scmp.lt.s32.totalorder %s10, 3
    %p193 = pnand %p191, %p192
    %p194 = pneg %p193
    // Predicated region
    $region33: #{compute_all.25} parent=5 // pred_check
      _
    $region34: #{compute_all.25} parent=5 // pred_check_branch
      %196 = sbr.rel (%p193) target = $region36
    $region35: #{compute_all.25} parent=5 // pred_region
      %s197 = ssub.s32 %s10, 1
      %p198 = scmp.lt.s32.totalorder %s15, 1
      %s199 = scalar_select %p198, %s15, 1
      %s200 = smul.addr %s199, 2
      %s201 = smul.addr %s200, 8
      %s202 = scalar_lea.vmem %s0, %s201
      %p203 = pneg %p36
      %p204 = pneg %p33
      %p205 = scmp.lt.s32.totalorder %s15, 1
      %s206 = scalar_select %p205, %s15, 1
      %s207 = smul.addr %s206, 2
      %s208 = smul.addr %s207, 8
      %s209 = scalar_lea.vmem %s1, %s208
      %p210 = pneg %p62
      %p211 = pneg %p59
      %p212 = scmp.lt.s32.totalorder %s15, 1
      %s213 = scalar_select %p212, %s15, 1
      %s214 = smul.addr %s213, 2
      %s215 = smul.addr %s214, 8
      %s216 = scalar_lea.vmem %s2, %s215
      %p217 = pneg %p88
      %p218 = pneg %p85
      %p219 = scmp.lt.s32.totalorder %s15, 1
      %s220 = scalar_select %p219, %s15, 1
      %s221 = smul.addr %s220, 2
      %s222 = smul.addr %s221, 8
      %s223 = scalar_lea.vmem %s3, %s222
      %p224 = pneg %p114
      %p225 = pneg %p111
      %p226 = pneg %p140
      %p227 = pneg %p137
      %p228 = scmp.lt.s32.totalorder %s15, 1
      %s229 = scalar_select %p228, %s15, 1
      %s230 = smul.addr %s229, 8
      %s231 = scalar_lea.vmem %s4, %s230
      %p232 = scmp.lt.s32.totalorder %s15, 1
      %s233 = scalar_select %p232, %s15, 1
      %s234 = smul.addr %s233, 2
      %s235 = smul.addr %s234, 8
      %s236 = scalar_lea.vmem %s0, %s235
      %p237 = scmp.lt.s32.totalorder %s15, 1
      %s238 = scalar_select %p237, %s15, 1
      %s239 = smul.addr %s238, 2
      %s240 = smul.addr %s239, 8
      %s241 = scalar_lea.vmem %s1, %s240
      %p242 = scmp.lt.s32.totalorder %s15, 1
      %s243 = scalar_select %p242, %s15, 1
      %s244 = smul.addr %s243, 2
      %s245 = smul.addr %s244, 8
      %s246 = scalar_lea.vmem %s2, %s245
      %p247 = scmp.lt.s32.totalorder %s15, 1
      %s248 = scalar_select %p247, %s15, 1
      %s249 = smul.addr %s248, 2
      %s250 = smul.addr %s249, 8
      %s251 = scalar_lea.vmem %s3, %s250
      %p252 = scmp.lt.s32.totalorder %s15, 1
      %s253 = scalar_select %p252, %s15, 1
      %s254 = smul.addr %s253, 8
      %s255 = scalar_lea.vmem %s4, %s254
      %v256 = vld [vmem:[%s236] sm:$0xff]
      %v257 = vld [vmem:[%s236 + $0x8] sm:$0x3]
      %v258 = vld [vmem:[%s241] sm:$0xff]
      %v259 = vld [vmem:[%s241 + $0x8] sm:$0x3]
      %v260 = vld [vmem:[%s246] sm:$0xff]
      %v261 = vld [vmem:[%s246 + $0x8] sm:$0x3]
      %v262 = vld [vmem:[%s251] sm:$0xff]
      %v263 = vld [vmem:[%s251 + $0x8] sm:$0x3]
      %vm266 = vcmask 1045504
      %v267 = vrot.slane %v256, 2
      %v268 = vrot.slane %v257, 2
      %v269 = vsel %vm266, %v267, %v268
      %v271 = vadd.f32 %v256, %v269
      %v272 = vmul.f32 %v271, 0.0625
      %v273 = vmul.f32 %v256, 0.375
      %v274 = vmul.f32 %v257, 0.375
      %vm277 = vcmask 1046528
      %v278 = vrot.slane %v273, 1
      %v279 = vrot.slane %v274, 1
      %v280 = vsel %vm277, %v278, %v279
      %v282 = vadd.f32 %v272, %v280
      %v285 = vrot.slane %v260, 1
      %v286 = vrot.slane %v261, 1
      %v287 = vsel %vm277, %v285, %v286
      %v289 = vadd.f32 %v260, %v287
      %v290 = vmul.f32 %v289, 0.25
      %v291 = vadd.f32 %v282, %v290
      %v294 = vrot.slane %v258, 2
      %v295 = vrot.slane %v259, 2
      %v296 = vsel %vm266, %v294, %v295
      %v298 = vadd.f32 %v258, %v296
      %v299 = vmul.f32 %v298, 0.0625
      %v300 = vmul.f32 %v258, 0.375
      %v301 = vmul.f32 %v259, 0.375
      %v304 = vrot.slane %v300, 1
      %v305 = vrot.slane %v301, 1
      %v306 = vsel %vm277, %v304, %v305
      %v308 = vadd.f32 %v299, %v306
      %v311 = vrot.slane %v262, 1
      %v312 = vrot.slane %v263, 1
      %v313 = vsel %vm277, %v311, %v312
      %v315 = vadd.f32 %v262, %v313
      %v316 = vmul.f32 %v315, 0.25
      %v317 = vadd.f32 %v308, %v316
      %319 = vrot.lane.b32.xlu0 %v291, 126
      %v320 = vpop.permute.xlu0 %319
      %v322 = vadd.f32 %v291, %v320
      %v323 = vmul.f32 %v322, 0.0625
      %v324 = vmul.f32 %v291, 0.375
      %326 = vrot.lane.b32.xlu0 %v324, 127
      %v327 = vpop.permute.xlu0 %326
      %v329 = vadd.f32 %v323, %v327
      %331 = vrot.lane.b32.xlu0 %v317, 127
      %v332 = vpop.permute.xlu0 %331
      %v334 = vadd.f32 %v317, %v332
      %v335 = vmul.f32 %v334, 0.25
      %v336 = vadd.f32 %v329, %v335
      %vm337 = vcmask 64512
      %338 = vst.msk [vmem:[%s255] sm:$0xff] %vm337, %v336
      %p339 = scmp.lt.s32.totalorder %s15, 1
      %s340 = scalar_select %p339, %s15, 1
      %s341 = smul.addr %s340, 8
      %s342 = scalar_lea.vmem %s4, %s341
      // Predicated region
      $region37: #{compute_all.25} parent=35 // pred_check
        %p343 = pneg %p137
      $region38: #{compute_all.25} parent=35 // pred_check_branch
        %345 = sbr.rel (%p343) target = $region40
      $region39: #{compute_all.25} parent=35 // pred_region
        _
      $region40: #{compute_all.25} parent=35 // pred_fallthru
        _
    $region36: #{compute_all.25} parent=5 // pred_fallthru
      _
    %p346 = scmp.le.s32.totalorder 2, %s10
    // Predicated region
    $region41: #{compute_all.25} parent=5 // pred_check
      %p347 = pneg %p346
    $region42: #{compute_all.25} parent=5 // pred_check_branch
      %349 = sbr.rel (%p347) target = $region44
    $region43: #{compute_all.25} parent=5 // pred_region
      %s350 = ssub.s32 %s10, 2
      // Predicated region
      $region45: #{compute_all.25} parent=43 // pred_check
        %p351 = pneg %p143
      $region46: #{compute_all.25} parent=43 // pred_check_branch
        %353 = sbr.rel (%p351) target = $region48
      $region47: #{compute_all.25} parent=43 // pred_region
        %p354 = scmp.lt.s32.totalorder %s16, 1
        %s355 = scalar_select %p354, %s16, 1
        %s356 = smul.addr %s355, 8
        %s357 = scalar_lea.vmem %s4, %s356
      $region48: #{compute_all.25} parent=43 // pred_fallthru
        _
    $region44: #{compute_all.25} parent=5 // pred_fallthru
      _
  $region6: #{compute_all.25} parent=0 // loop_footer
    %s14 = sadd.s32 1, %s10
  $region7: #{compute_all.25} parent=0 // loop_footer_branch
    %9 = sbr.rel target = $region3
  $region8: #{compute_all.25} parent=0 // loop_exit
    _

// kernel: sub.19
$region0: #{sub.19}
  #allocation0 [shape = 's32[1]{0}', space=sflag, size = 0x4, scoped, tag = 'scoped memory for sub.19']
  %s0 = inlined_call_operand.vmem [shape: f32[2,2,2], index: 0, kind: input, shape index: {}]
  %s1 = inlined_call_operand.vmem [shape: f32[2,2,2], index: 1, kind: input, shape index: {}]
  %s2 = inlined_call_operand.vmem [shape: f32[2,2,2], index: 2, kind: output, shape index: {}]
  %v3 = vld [vmem:[%s0] sm:$0x3]
  %v4 = vld [vmem:[%s1] sm:$0x3]
  %5 = xla_tuple %v3, %v4
  %6 = xla_tuple %5
  %v7 = vsub.f32 %v3, %v4
  %8 = xla_tuple %v7
  %9 = vst [vmem:[%s2] sm:$0x3] %v7
  %s10 = scalar_lea.vmem %s0, 2
  %v11 = vld [vmem:[%s10] sm:$0x3]
  %s12 = scalar_lea.vmem %s1, 2
  %v13 = vld [vmem:[%s12] sm:$0x3]
  %14 = xla_tuple %v11, %v13
  %15 = xla_tuple %14
  %v16 = vsub.f32 %v11, %v13
  %17 = xla_tuple %v16
  %s18 = scalar_lea.vmem %s2, 2
  %19 = vst [vmem:[%s18] sm:$0x3] %v16

// kernel: compute_all.28
$region0: #{compute_all.28}
  #allocation0 [shape = 'u32[]', space=smem, size = 0x4, offset = 0x4, fixed_abs, tag = 'smem constant byte address 0x4 - core index']
  #allocation1 [shape = 'u32[144,128]{1,0:T(1,128)}', space=vmem, size = 0x12000, scoped, tag = 'internal scratch']
  %s0 = inlined_call_operand.vmem [shape: f32[2,6,6], index: 0, kind: input, shape index: {}]
  %s1 = inlined_call_operand.vmem [shape: f32[2,6,6], index: 1, kind: input, shape index: {}]
  %s2 = inlined_call_operand.vmem [shape: f32[2,6,6], index: 2, kind: input, shape index: {}]
  %s3 = inlined_call_operand.vmem [shape: f32[2,6,6], index: 3, kind: input, shape index: {}]
  %s4 = inlined_call_operand.vmem [shape: f32[2,4,4], index: 4, kind: output, shape index: {}]
  %s5 = sld [smem:[#allocation0]]
  $region49: #{compute_all.28} parent=0
    _
  %s7 = ssub.s32 1, %s5
  %s8 = scalar_select 0, %s7, %s5
  loop: start=0, step=1, limit=4
  $region2: #{compute_all.28} parent=0 // loop_pre_header
    _
  $region3: #{compute_all.28} parent=0 // loop_header
    %s10 = sphi 0, %s14
    %p11 = scmp.ge.s32.totalorder %s10, 4
    %s20 = sphi 0, %s22
    %s23 = sphi 0, %s20
    %s24 = sphi 0, %s23
    %s40 = sphi 0, %s24
    %s46 = sphi 0, %s48
    %s49 = sphi 0, %s46
    %s50 = sphi 0, %s49
    %s66 = sphi 0, %s50
    %s72 = sphi 0, %s74
    %s75 = sphi 0, %s72
    %s76 = sphi 0, %s75
    %s92 = sphi 0, %s76
    %s98 = sphi 0, %s100
    %s101 = sphi 0, %s98
    %s102 = sphi 0, %s101
    %s118 = sphi 0, %s102
    %s124 = sphi 0, %s126
    %s127 = sphi 0, %s124
    %s128 = sphi 0, %s127
    %s144 = sphi 0, %s128
  $region4: #{compute_all.28} parent=0 // loop_header_branch
    %13 = sbr.rel (%p11) target = $region8
  $region5: #{compute_all.28} parent=0 // loop_body
    %s15 = ssub.s32 %s10, 1
    %s16 = ssub.s32 %s10, 2
    %s17 = sadd.s32 %s10, 1
    %s18 = ssub.s32 %s10, %s17
    %p19 = scmp.eq.s32.totalorder %s18, 0
    %s21 = sadd.s32 %s20, 1
    %s22 = scalar_select %p19, %s20, %s21
    %p25 = pneg %p19
    %p26 = scmp.eq.s32.totalorder %s10, 1
    %p27 = por %p25, %p26
    %p28 = scmp.ne.s32.totalorder %s20, %s23
    %p29 = scmp.eq.s32.totalorder %s10, 0
    %p30 = por %p28, %p29
    %p31 = scmp.ne.s32.totalorder %s20, %s23
    %p32 = scmp.eq.s32.totalorder %s15, 1
    %p33 = por %p31, %p32
    %p34 = scmp.ne.s32.totalorder %s23, %s24
    %p35 = scmp.eq.s32.totalorder %s15, 0
    %p36 = por %p34, %p35
    %p37 = scmp.ne.s32.totalorder %s23, %s24
    %p38 = scmp.eq.s32.totalorder %s16, 1
    %p39 = por %p37, %p38
    %p41 = scmp.ne.s32.totalorder %s24, %s40
    %p42 = scmp.eq.s32.totalorder %s16, 0
    %p43 = por %p41, %p42
    %s44 = ssub.s32 %s10, %s17
    %p45 = scmp.eq.s32.totalorder %s44, 0
    %s47 = sadd.s32 %s46, 1
    %s48 = scalar_select %p45, %s46, %s47
    %p51 = pneg %p45
    %p52 = scmp.eq.s32.totalorder %s10, 1
    %p53 = por %p51, %p52
    %p54 = scmp.ne.s32.totalorder %s46, %s49
    %p55 = scmp.eq.s32.totalorder %s10, 0
    %p56 = por %p54, %p55
    %p57 = scmp.ne.s32.totalorder %s46, %s49
    %p58 = scmp.eq.s32.totalorder %s15, 1
    %p59 = por %p57, %p58
    %p60 = scmp.ne.s32.totalorder %s49, %s50
    %p61 = scmp.eq.s32.totalorder %s15, 0
    %p62 = por %p60, %p61
    %p63 = scmp.ne.s32.totalorder %s49, %s50
    %p64 = scmp.eq.s32.totalorder %s16, 1
    %p65 = por %p63, %p64
    %p67 = scmp.ne.s32.totalorder %s50, %s66
    %p68 = scmp.eq.s32.totalorder %s16, 0
    %p69 = por %p67, %p68
    %s70 = ssub.s32 %s10, %s17
    %p71 = scmp.eq.s32.totalorder %s70, 0
    %s73 = sadd.s32 %s72, 1
    %s74 = scalar_select %p71, %s72, %s73
    %p77 = pneg %p71
    %p78 = scmp.eq.s32.totalorder %s10, 1
    %p79 = por %p77, %p78
    %p80 = scmp.ne.s32.totalorder %s72, %s75
    %p81 = scmp.eq.s32.totalorder %s10, 0
    %p82 = por %p80, %p81
    %p83 = scmp.ne.s32.totalorder %s72, %s75
    %p84 = scmp.eq.s32.totalorder %s15, 1
    %p85 = por %p83, %p84
    %p86 = scmp.ne.s32.totalorder %s75, %s76
    %p87 = scmp.eq.s32.totalorder %s15, 0
    %p88 = por %p86, %p87
    %p89 = scmp.ne.s32.totalorder %s75, %s76
    %p90 = scmp.eq.s32.totalorder %s16, 1
    %p91 = por %p89, %p90
    %p93 = scmp.ne.s32.totalorder %s76, %s92
    %p94 = scmp.eq.s32.totalorder %s16, 0
    %p95 = por %p93, %p94
    %s96 = ssub.s32 %s10, %s17
    %p97 = scmp.eq.s32.totalorder %s96, 0
    %s99 = sadd.s32 %s98, 1
    %s100 = scalar_select %p97, %s98, %s99
    %p103 = pneg %p97
    %p104 = scmp.eq.s32.totalorder %s10, 1
    %p105 = por %p103, %p104
    %p106 = scmp.ne.s32.totalorder %s98, %s101
    %p107 = scmp.eq.s32.totalorder %s10, 0
    %p108 = por %p106, %p107
    %p109 = scmp.ne.s32.totalorder %s98, %s101
    %p110 = scmp.eq.s32.totalorder %s15, 1
    %p111 = por %p109, %p110
    %p112 = scmp.ne.s32.totalorder %s101, %s102
    %p113 = scmp.eq.s32.totalorder %s15, 0
    %p114 = por %p112, %p113
    %p115 = scmp.ne.s32.totalorder %s101, %s102
    %p116 = scmp.eq.s32.totalorder %s16, 1
    %p117 = por %p115, %p116
    %p119 = scmp.ne.s32.totalorder %s102, %s118
    %p120 = scmp.eq.s32.totalorder %s16, 0
    %p121 = por %p119, %p120
    %s122 = ssub.s32 %s10, %s17
    %p123 = scmp.eq.s32.totalorder %s122, 0
    %s125 = sadd.s32 %s124, 1
    %s126 = scalar_select %p123, %s124, %s125
    %p129 = pneg %p123
    %p130 = scmp.eq.s32.totalorder %s10, 1
    %p131 = por %p129, %p130
    %p132 = scmp.ne.s32.totalorder %s124, %s127
    %p133 = scmp.eq.s32.totalorder %s10, 0
    %p134 = por %p132, %p133
    %p135 = scmp.ne.s32.totalorder %s124, %s127
    %p136 = scmp.eq.s32.totalorder %s15, 1
    %p137 = por %p135, %p136
    %p138 = scmp.ne.s32.totalorder %s127, %s128
    %p139 = scmp.eq.s32.totalorder %s15, 0
    %p140 = por %p138, %p139
    %p141 = scmp.ne.s32.totalorder %s127, %s128
    %p142 = scmp.eq.s32.totalorder %s16, 1
    %p143 = por %p141, %p142
    %p145 = scmp.ne.s32.totalorder %s128, %s144
    %p146 = scmp.eq.s32.totalorder %s16, 0
    %p147 = por %p145, %p146
    %p148 = scmp.le.s32.totalorder 1, %s10
    %p149 = scmp.lt.s32.totalorder %s10, 3
    %p150 = pnand %p148, %p149
    %p151 = pneg %p150
    // Predicated region
    $region9: #{compute_all.28} parent=5 // pred_check
      _
    $region10: #{compute_all.28} parent=5 // pred_check_branch
      %153 = sbr.rel (%p150) target = $region12
    $region11: #{compute_all.28} parent=5 // pred_region
      %s154 = ssub.s32 %s10, 1
    $region12: #{compute_all.28} parent=5 // pred_fallthru
      _
    %p155 = scmp.lt.s32.totalorder %s10, 2
    // Predicated region
    $region13: #{compute_all.28} parent=5 // pred_check
      %p156 = pneg %p155
    $region14: #{compute_all.28} parent=5 // pred_check_branch
      %158 = sbr.rel (%p156) target = $region16
    $region15: #{compute_all.28} parent=5 // pred_region
      // Predicated region
      $region17: #{compute_all.28} parent=15 // pred_check
        %p159 = pneg %p30
      $region18: #{compute_all.28} parent=15 // pred_check_branch
        %161 = sbr.rel (%p159) target = $region20
      $region19: #{compute_all.28} parent=15 // pred_region
        %p162 = scmp.lt.s32.totalorder %s10, 1
        %s163 = scalar_select %p162, %s10, 1
        %s164 = smul.addr %s163, 8
        %s165 = scalar_lea.vmem %s0, %s164
      $region20: #{compute_all.28} parent=15 // pred_fallthru
        _
      // Predicated region
      $region21: #{compute_all.28} parent=15 // pred_check
        %p166 = pneg %p56
      $region22: #{compute_all.28} parent=15 // pred_check_branch
        %168 = sbr.rel (%p166) target = $region24
      $region23: #{compute_all.28} parent=15 // pred_region
        %p169 = scmp.lt.s32.totalorder %s10, 1
        %s170 = scalar_select %p169, %s10, 1
        %s171 = smul.addr %s170, 8
        %s172 = scalar_lea.vmem %s1, %s171
      $region24: #{compute_all.28} parent=15 // pred_fallthru
        _
      // Predicated region
      $region25: #{compute_all.28} parent=15 // pred_check
        %p173 = pneg %p82
      $region26: #{compute_all.28} parent=15 // pred_check_branch
        %175 = sbr.rel (%p173) target = $region28
      $region27: #{compute_all.28} parent=15 // pred_region
        %p176 = scmp.lt.s32.totalorder %s10, 1
        %s177 = scalar_select %p176, %s10, 1
        %s178 = smul.addr %s177, 8
        %s179 = scalar_lea.vmem %s2, %s178
      $region28: #{compute_all.28} parent=15 // pred_fallthru
        _
      // Predicated region
      $region29: #{compute_all.28} parent=15 // pred_check
        %p180 = pneg %p108
      $region30: #{compute_all.28} parent=15 // pred_check_branch
        %182 = sbr.rel (%p180) target = $region32
      $region31: #{compute_all.28} parent=15 // pred_region
        %p183 = scmp.lt.s32.totalorder %s10, 1
        %s184 = scalar_select %p183, %s10, 1
        %s185 = smul.addr %s184, 8
        %s186 = scalar_lea.vmem %s3, %s185
      $region32: #{compute_all.28} parent=15 // pred_fallthru
        _
    $region16: #{compute_all.28} parent=5 // pred_fallthru
      _
    %p187 = scmp.le.s32.totalorder 1, %s10
    %p188 = scmp.lt.s32.totalorder %s10, 3
    %p189 = pnand %p187, %p188
    %p190 = pneg %p189
    // Predicated region
    $region33: #{compute_all.28} parent=5 // pred_check
      _
    $region34: #{compute_all.28} parent=5 // pred_check_branch
      %192 = sbr.rel (%p189) target = $region36
    $region35: #{compute_all.28} parent=5 // pred_region
      %s193 = ssub.s32 %s10, 1
      %p194 = scmp.lt.s32.totalorder %s15, 1
      %s195 = scalar_select %p194, %s15, 1
      %s196 = smul.addr %s195, 8
      %s197 = scalar_lea.vmem %s0, %s196
      %p198 = pneg %p36
      %p199 = pneg %p33
      %p200 = scmp.lt.s32.totalorder %s15, 1
      %s201 = scalar_select %p200, %s15, 1
      %s202 = smul.addr %s201, 8
      %s203 = scalar_lea.vmem %s1, %s202
      %p204 = pneg %p62
      %p205 = pneg %p59
      %p206 = scmp.lt.s32.totalorder %s15, 1
      %s207 = scalar_select %p206, %s15, 1
      %s208 = smul.addr %s207, 8
      %s209 = scalar_lea.vmem %s2, %s208
      %p210 = pneg %p88
      %p211 = pneg %p85
      %p212 = scmp.lt.s32.totalorder %s15, 1
      %s213 = scalar_select %p212, %s15, 1
      %s214 = smul.addr %s213, 8
      %s215 = scalar_lea.vmem %s3, %s214
      %p216 = pneg %p114
      %p217 = pneg %p111
      %p218 = pneg %p140
      %p219 = pneg %p137
      %p220 = scmp.lt.s32.totalorder %s15, 1
      %s221 = scalar_select %p220, %s15, 1
      %s222 = smul.addr %s221, 4
      %s223 = scalar_lea.vmem %s4, %s222
      %p224 = scmp.lt.s32.totalorder %s15, 1
      %s225 = scalar_select %p224, %s15, 1
      %s226 = smul.addr %s225, 8
      %s227 = scalar_lea.vmem %s0, %s226
      %p228 = scmp.lt.s32.totalorder %s15, 1
      %s229 = scalar_select %p228, %s15, 1
      %s230 = smul.addr %s229, 8
      %s231 = scalar_lea.vmem %s1, %s230
      %p232 = scmp.lt.s32.totalorder %s15, 1
      %s233 = scalar_select %p232, %s15, 1
      %s234 = smul.addr %s233, 8
      %s235 = scalar_lea.vmem %s2, %s234
      %p236 = scmp.lt.s32.totalorder %s15, 1
      %s237 = scalar_select %p236, %s15, 1
      %s238 = smul.addr %s237, 8
      %s239 = scalar_lea.vmem %s3, %s238
      %p240 = scmp.lt.s32.totalorder %s15, 1
      %s241 = scalar_select %p240, %s15, 1
      %s242 = smul.addr %s241, 4
      %s243 = scalar_lea.vmem %s4, %s242
      %v244 = vld [vmem:[%s227] sm:$0x3f]
      %v245 = vld [vmem:[%s231] sm:$0x3f]
      %v246 = vld [vmem:[%s235] sm:$0x3f]
      %v247 = vld [vmem:[%s239] sm:$0x3f]
      %v249 = vrot.slane %v244, 2
      %v251 = vadd.f32 %v244, %v249
      %v252 = vmul.f32 %v251, 0.0625
      %v253 = vmul.f32 %v244, 0.375
      %v255 = vrot.slane %v253, 1
      %v257 = vadd.f32 %v252, %v255
      %v259 = vrot.slane %v246, 1
      %v261 = vadd.f32 %v246, %v259
      %v262 = vmul.f32 %v261, 0.25
      %v263 = vadd.f32 %v257, %v262
      %v265 = vrot.slane %v245, 2
      %v267 = vadd.f32 %v245, %v265
      %v268 = vmul.f32 %v267, 0.0625
      %v269 = vmul.f32 %v245, 0.375
      %v271 = vrot.slane %v269, 1
      %v273 = vadd.f32 %v268, %v271
      %v275 = vrot.slane %v247, 1
      %v277 = vadd.f32 %v247, %v275
      %v278 = vmul.f32 %v277, 0.25
      %v279 = vadd.f32 %v273, %v278
      %281 = vrot.lane.b32.xlu0 %v263, 126
      %v282 = vpop.permute.xlu0 %281
      %v284 = vadd.f32 %v263, %v282
      %v285 = vmul.f32 %v284, 0.0625
      %v286 = vmul.f32 %v263, 0.375
      %288 = vrot.lane.b32.xlu0 %v286, 127
      %v289 = vpop.permute.xlu0 %288
      %v291 = vadd.f32 %v285, %v289
      %293 = vrot.lane.b32.xlu0 %v279, 127
      %v294 = vpop.permute.xlu0 %293
      %v296 = vadd.f32 %v279, %v294
      %v297 = vmul.f32 %v296, 0.25
      %v298 = vadd.f32 %v291, %v297
      %vm299 = vcmask 27648
      %300 = vst.msk [vmem:[%s243] sm:$0xf] %vm299, %v298
      %p301 = scmp.lt.s32.totalorder %s15, 1
      %s302 = scalar_select %p301, %s15, 1
      %s303 = smul.addr %s302, 4
      %s304 = scalar_lea.vmem %s4, %s303
      // Predicated region
      $region37: #{compute_all.28} parent=35 // pred_check
        %p305 = pneg %p137
      $region38: #{compute_all.28} parent=35 // pred_check_branch
        %307 = sbr.rel (%p305) target = $region40
      $region39: #{compute_all.28} parent=35 // pred_region
        _
      $region40: #{compute_all.28} parent=35 // pred_fallthru
        _
    $region36: #{compute_all.28} parent=5 // pred_fallthru
      _
    %p308 = scmp.le.s32.totalorder 2, %s10
    // Predicated region
    $region41: #{compute_all.28} parent=5 // pred_check
      %p309 = pneg %p308
    $region42: #{compute_all.28} parent=5 // pred_check_branch
      %311 = sbr.rel (%p309) target = $region44
    $region43: #{compute_all.28} parent=5 // pred_region
      %s312 = ssub.s32 %s10, 2
      // Predicated region
      $region45: #{compute_all.28} parent=43 // pred_check
        %p313 = pneg %p143
      $region46: #{compute_all.28} parent=43 // pred_check_branch
        %315 = sbr.rel (%p313) target = $region48
      $region47: #{compute_all.28} parent=43 // pred_region
        %p316 = scmp.lt.s32.totalorder %s16, 1
        %s317 = scalar_select %p316, %s16, 1
        %s318 = smul.addr %s317, 4
        %s319 = scalar_lea.vmem %s4, %s318
      $region48: #{compute_all.28} parent=43 // pred_fallthru
        _
    $region44: #{compute_all.28} parent=5 // pred_fallthru
      _
  $region6: #{compute_all.28} parent=0 // loop_footer
    %s14 = sadd.s32 1, %s10
  $region7: #{compute_all.28} parent=0 // loop_footer_branch
    %9 = sbr.rel target = $region3
  $region8: #{compute_all.28} parent=0 // loop_exit
    _

// kernel: sub.17
$region0: #{sub.17}
  #allocation0 [shape = 's32[1]{0}', space=sflag, size = 0x4, scoped, tag = 'scoped memory for sub.17']
  %s0 = inlined_call_operand.vmem [shape: f32[2,4,4], index: 0, kind: input, shape index: {}]
  %s1 = inlined_call_operand.vmem [shape: f32[2,4,4], index: 1, kind: input, shape index: {}]
  %s2 = inlined_call_operand.vmem [shape: f32[2,4,4], index: 2, kind: output, shape index: {}]
  %v3 = vld [vmem:[%s0] sm:$0xf]
  %v4 = vld [vmem:[%s1] sm:$0xf]
  %5 = xla_tuple %v3, %v4
  %6 = xla_tuple %5
  %v7 = vsub.f32 %v3, %v4
  %8 = xla_tuple %v7
  %9 = vst [vmem:[%s2] sm:$0xf] %v7
  %s10 = scalar_lea.vmem %s0, 4
  %v11 = vld [vmem:[%s10] sm:$0xf]
  %s12 = scalar_lea.vmem %s1, 4
  %v13 = vld [vmem:[%s12] sm:$0xf]
  %14 = xla_tuple %v11, %v13
  %15 = xla_tuple %14
  %v16 = vsub.f32 %v11, %v13
  %17 = xla_tuple %v16
  %s18 = scalar_lea.vmem %s2, 4
  %19 = vst [vmem:[%s18] sm:$0xf] %v16

// kernel: compute_all.31
$region0: #{compute_all.31}
  #allocation0 [shape = 'u32[]', space=smem, size = 0x4, offset = 0x4, fixed_abs, tag = 'smem constant byte address 0x4 - core index']
  #allocation1 [shape = 'u32[144,128]{1,0:T(1,128)}', space=vmem, size = 0x12000, scoped, tag = 'internal scratch']
  %s0 = inlined_call_operand.vmem [shape: f32[2,4,4], index: 0, kind: input, shape index: {}]
  %s1 = inlined_call_operand.vmem [shape: f32[2,4,4], index: 1, kind: input, shape index: {}]
  %s2 = inlined_call_operand.vmem [shape: f32[2,4,4], index: 2, kind: input, shape index: {}]
  %s3 = inlined_call_operand.vmem [shape: f32[2,4,4], index: 3, kind: input, shape index: {}]
  %s4 = inlined_call_operand.vmem [shape: f32[2,2,2], index: 4, kind: output, shape index: {}]
  %s5 = sld [smem:[#allocation0]]
  $region49: #{compute_all.31} parent=0
    _
  %s7 = ssub.s32 1, %s5
  %s8 = scalar_select 0, %s7, %s5
  loop: start=0, step=1, limit=4
  $region2: #{compute_all.31} parent=0 // loop_pre_header
    _
  $region3: #{compute_all.31} parent=0 // loop_header
    %s10 = sphi 0, %s14
    %p11 = scmp.ge.s32.totalorder %s10, 4
    %s20 = sphi 0, %s22
    %s23 = sphi 0, %s20
    %s24 = sphi 0, %s23
    %s40 = sphi 0, %s24
    %s46 = sphi 0, %s48
    %s49 = sphi 0, %s46
    %s50 = sphi 0, %s49
    %s66 = sphi 0, %s50
    %s72 = sphi 0, %s74
    %s75 = sphi 0, %s72
    %s76 = sphi 0, %s75
    %s92 = sphi 0, %s76
    %s98 = sphi 0, %s100
    %s101 = sphi 0, %s98
    %s102 = sphi 0, %s101
    %s118 = sphi 0, %s102
    %s124 = sphi 0, %s126
    %s127 = sphi 0, %s124
    %s128 = sphi 0, %s127
    %s144 = sphi 0, %s128
  $region4: #{compute_all.31} parent=0 // loop_header_branch
    %13 = sbr.rel (%p11) target = $region8
  $region5: #{compute_all.31} parent=0 // loop_body
    %s15 = ssub.s32 %s10, 1
    %s16 = ssub.s32 %s10, 2
    %s17 = sadd.s32 %s10, 1
    %s18 = ssub.s32 %s10, %s17
    %p19 = scmp.eq.s32.totalorder %s18, 0
    %s21 = sadd.s32 %s20, 1
    %s22 = scalar_select %p19, %s20, %s21
    %p25 = pneg %p19
    %p26 = scmp.eq.s32.totalorder %s10, 1
    %p27 = por %p25, %p26
    %p28 = scmp.ne.s32.totalorder %s20, %s23
    %p29 = scmp.eq.s32.totalorder %s10, 0
    %p30 = por %p28, %p29
    %p31 = scmp.ne.s32.totalorder %s20, %s23
    %p32 = scmp.eq.s32.totalorder %s15, 1
    %p33 = por %p31, %p32
    %p34 = scmp.ne.s32.totalorder %s23, %s24
    %p35 = scmp.eq.s32.totalorder %s15, 0
    %p36 = por %p34, %p35
    %p37 = scmp.ne.s32.totalorder %s23, %s24
    %p38 = scmp.eq.s32.totalorder %s16, 1
    %p39 = por %p37, %p38
    %p41 = scmp.ne.s32.totalorder %s24, %s40
    %p42 = scmp.eq.s32.totalorder %s16, 0
    %p43 = por %p41, %p42
    %s44 = ssub.s32 %s10, %s17
    %p45 = scmp.eq.s32.totalorder %s44, 0
    %s47 = sadd.s32 %s46, 1
    %s48 = scalar_select %p45, %s46, %s47
    %p51 = pneg %p45
    %p52 = scmp.eq.s32.totalorder %s10, 1
    %p53 = por %p51, %p52
    %p54 = scmp.ne.s32.totalorder %s46, %s49
    %p55 = scmp.eq.s32.totalorder %s10, 0
    %p56 = por %p54, %p55
    %p57 = scmp.ne.s32.totalorder %s46, %s49
    %p58 = scmp.eq.s32.totalorder %s15, 1
    %p59 = por %p57, %p58
    %p60 = scmp.ne.s32.totalorder %s49, %s50
    %p61 = scmp.eq.s32.totalorder %s15, 0
    %p62 = por %p60, %p61
    %p63 = scmp.ne.s32.totalorder %s49, %s50
    %p64 = scmp.eq.s32.totalorder %s16, 1
    %p65 = por %p63, %p64
    %p67 = scmp.ne.s32.totalorder %s50, %s66
    %p68 = scmp.eq.s32.totalorder %s16, 0
    %p69 = por %p67, %p68
    %s70 = ssub.s32 %s10, %s17
    %p71 = scmp.eq.s32.totalorder %s70, 0
    %s73 = sadd.s32 %s72, 1
    %s74 = scalar_select %p71, %s72, %s73
    %p77 = pneg %p71
    %p78 = scmp.eq.s32.totalorder %s10, 1
    %p79 = por %p77, %p78
    %p80 = scmp.ne.s32.totalorder %s72, %s75
    %p81 = scmp.eq.s32.totalorder %s10, 0
    %p82 = por %p80, %p81
    %p83 = scmp.ne.s32.totalorder %s72, %s75
    %p84 = scmp.eq.s32.totalorder %s15, 1
    %p85 = por %p83, %p84
    %p86 = scmp.ne.s32.totalorder %s75, %s76
    %p87 = scmp.eq.s32.totalorder %s15, 0
    %p88 = por %p86, %p87
    %p89 = scmp.ne.s32.totalorder %s75, %s76
    %p90 = scmp.eq.s32.totalorder %s16, 1
    %p91 = por %p89, %p90
    %p93 = scmp.ne.s32.totalorder %s76, %s92
    %p94 = scmp.eq.s32.totalorder %s16, 0
    %p95 = por %p93, %p94
    %s96 = ssub.s32 %s10, %s17
    %p97 = scmp.eq.s32.totalorder %s96, 0
    %s99 = sadd.s32 %s98, 1
    %s100 = scalar_select %p97, %s98, %s99
    %p103 = pneg %p97
    %p104 = scmp.eq.s32.totalorder %s10, 1
    %p105 = por %p103, %p104
    %p106 = scmp.ne.s32.totalorder %s98, %s101
    %p107 = scmp.eq.s32.totalorder %s10, 0
    %p108 = por %p106, %p107
    %p109 = scmp.ne.s32.totalorder %s98, %s101
    %p110 = scmp.eq.s32.totalorder %s15, 1
    %p111 = por %p109, %p110
    %p112 = scmp.ne.s32.totalorder %s101, %s102
    %p113 = scmp.eq.s32.totalorder %s15, 0
    %p114 = por %p112, %p113
    %p115 = scmp.ne.s32.totalorder %s101, %s102
    %p116 = scmp.eq.s32.totalorder %s16, 1
    %p117 = por %p115, %p116
    %p119 = scmp.ne.s32.totalorder %s102, %s118
    %p120 = scmp.eq.s32.totalorder %s16, 0
    %p121 = por %p119, %p120
    %s122 = ssub.s32 %s10, %s17
    %p123 = scmp.eq.s32.totalorder %s122, 0
    %s125 = sadd.s32 %s124, 1
    %s126 = scalar_select %p123, %s124, %s125
    %p129 = pneg %p123
    %p130 = scmp.eq.s32.totalorder %s10, 1
    %p131 = por %p129, %p130
    %p132 = scmp.ne.s32.totalorder %s124, %s127
    %p133 = scmp.eq.s32.totalorder %s10, 0
    %p134 = por %p132, %p133
    %p135 = scmp.ne.s32.totalorder %s124, %s127
    %p136 = scmp.eq.s32.totalorder %s15, 1
    %p137 = por %p135, %p136
    %p138 = scmp.ne.s32.totalorder %s127, %s128
    %p139 = scmp.eq.s32.totalorder %s15, 0
    %p140 = por %p138, %p139
    %p141 = scmp.ne.s32.totalorder %s127, %s128
    %p142 = scmp.eq.s32.totalorder %s16, 1
    %p143 = por %p141, %p142
    %p145 = scmp.ne.s32.totalorder %s128, %s144
    %p146 = scmp.eq.s32.totalorder %s16, 0
    %p147 = por %p145, %p146
    %p148 = scmp.le.s32.totalorder 1, %s10
    %p149 = scmp.lt.s32.totalorder %s10, 3
    %p150 = pnand %p148, %p149
    %p151 = pneg %p150
    // Predicated region
    $region9: #{compute_all.31} parent=5 // pred_check
      _
    $region10: #{compute_all.31} parent=5 // pred_check_branch
      %153 = sbr.rel (%p150) target = $region12
    $region11: #{compute_all.31} parent=5 // pred_region
      %s154 = ssub.s32 %s10, 1
    $region12: #{compute_all.31} parent=5 // pred_fallthru
      _
    %p155 = scmp.lt.s32.totalorder %s10, 2
    // Predicated region
    $region13: #{compute_all.31} parent=5 // pred_check
      %p156 = pneg %p155
    $region14: #{compute_all.31} parent=5 // pred_check_branch
      %158 = sbr.rel (%p156) target = $region16
    $region15: #{compute_all.31} parent=5 // pred_region
      // Predicated region
      $region17: #{compute_all.31} parent=15 // pred_check
        %p159 = pneg %p30
      $region18: #{compute_all.31} parent=15 // pred_check_branch
        %161 = sbr.rel (%p159) target = $region20
      $region19: #{compute_all.31} parent=15 // pred_region
        %p162 = scmp.lt.s32.totalorder %s10, 1
        %s163 = scalar_select %p162, %s10, 1
        %s164 = smul.addr %s163, 4
        %s165 = scalar_lea.vmem %s0, %s164
      $region20: #{compute_all.31} parent=15 // pred_fallthru
        _
      // Predicated region
      $region21: #{compute_all.31} parent=15 // pred_check
        %p166 = pneg %p56
      $region22: #{compute_all.31} parent=15 // pred_check_branch
        %168 = sbr.rel (%p166) target = $region24
      $region23: #{compute_all.31} parent=15 // pred_region
        %p169 = scmp.lt.s32.totalorder %s10, 1
        %s170 = scalar_select %p169, %s10, 1
        %s171 = smul.addr %s170, 4
        %s172 = scalar_lea.vmem %s1, %s171
      $region24: #{compute_all.31} parent=15 // pred_fallthru
        _
      // Predicated region
      $region25: #{compute_all.31} parent=15 // pred_check
        %p173 = pneg %p82
      $region26: #{compute_all.31} parent=15 // pred_check_branch
        %175 = sbr.rel (%p173) target = $region28
      $region27: #{compute_all.31} parent=15 // pred_region
        %p176 = scmp.lt.s32.totalorder %s10, 1
        %s177 = scalar_select %p176, %s10, 1
        %s178 = smul.addr %s177, 4
        %s179 = scalar_lea.vmem %s2, %s178
      $region28: #{compute_all.31} parent=15 // pred_fallthru
        _
      // Predicated region
      $region29: #{compute_all.31} parent=15 // pred_check
        %p180 = pneg %p108
      $region30: #{compute_all.31} parent=15 // pred_check_branch
        %182 = sbr.rel (%p180) target = $region32
      $region31: #{compute_all.31} parent=15 // pred_region
        %p183 = scmp.lt.s32.totalorder %s10, 1
        %s184 = scalar_select %p183, %s10, 1
        %s185 = smul.addr %s184, 4
        %s186 = scalar_lea.vmem %s3, %s185
      $region32: #{compute_all.31} parent=15 // pred_fallthru
        _
    $region16: #{compute_all.31} parent=5 // pred_fallthru
      _
    %p187 = scmp.le.s32.totalorder 1, %s10
    %p188 = scmp.lt.s32.totalorder %s10, 3
    %p189 = pnand %p187, %p188
    %p190 = pneg %p189
    // Predicated region
    $region33: #{compute_all.31} parent=5 // pred_check
      _
    $region34: #{compute_all.31} parent=5 // pred_check_branch
      %192 = sbr.rel (%p189) target = $region36
    $region35: #{compute_all.31} parent=5 // pred_region
      %s193 = ssub.s32 %s10, 1
      %p194 = scmp.lt.s32.totalorder %s15, 1
      %s195 = scalar_select %p194, %s15, 1
      %s196 = smul.addr %s195, 4
      %s197 = scalar_lea.vmem %s0, %s196
      %p198 = pneg %p36
      %p199 = pneg %p33
      %p200 = scmp.lt.s32.totalorder %s15, 1
      %s201 = scalar_select %p200, %s15, 1
      %s202 = smul.addr %s201, 4
      %s203 = scalar_lea.vmem %s1, %s202
      %p204 = pneg %p62
      %p205 = pneg %p59
      %p206 = scmp.lt.s32.totalorder %s15, 1
      %s207 = scalar_select %p206, %s15, 1
      %s208 = smul.addr %s207, 4
      %s209 = scalar_lea.vmem %s2, %s208
      %p210 = pneg %p88
      %p211 = pneg %p85
      %p212 = scmp.lt.s32.totalorder %s15, 1
      %s213 = scalar_select %p212, %s15, 1
      %s214 = smul.addr %s213, 4
      %s215 = scalar_lea.vmem %s3, %s214
      %p216 = pneg %p114
      %p217 = pneg %p111
      %p218 = pneg %p140
      %p219 = pneg %p137
      %p220 = scmp.lt.s32.totalorder %s15, 1
      %s221 = scalar_select %p220, %s15, 1
      %s222 = smul.addr %s221, 2
      %s223 = scalar_lea.vmem %s4, %s222
      %p224 = scmp.lt.s32.totalorder %s15, 1
      %s225 = scalar_select %p224, %s15, 1
      %s226 = smul.addr %s225, 4
      %s227 = scalar_lea.vmem %s0, %s226
      %p228 = scmp.lt.s32.totalorder %s15, 1
      %s229 = scalar_select %p228, %s15, 1
      %s230 = smul.addr %s229, 4
      %s231 = scalar_lea.vmem %s1, %s230
      %p232 = scmp.lt.s32.totalorder %s15, 1
      %s233 = scalar_select %p232, %s15, 1
      %s234 = smul.addr %s233, 4
      %s235 = scalar_lea.vmem %s2, %s234
      %p236 = scmp.lt.s32.totalorder %s15, 1
      %s237 = scalar_select %p236, %s15, 1
      %s238 = smul.addr %s237, 4
      %s239 = scalar_lea.vmem %s3, %s238
      %p240 = scmp.lt.s32.totalorder %s15, 1
      %s241 = scalar_select %p240, %s15, 1
      %s242 = smul.addr %s241, 2
      %s243 = scalar_lea.vmem %s4, %s242
      %v244 = vld [vmem:[%s227] sm:$0xf]
      %v245 = vld [vmem:[%s231] sm:$0xf]
      %v246 = vld [vmem:[%s235] sm:$0xf]
      %v247 = vld [vmem:[%s239] sm:$0xf]
      %v249 = vrot.slane %v244, 2
      %v251 = vadd.f32 %v244, %v249
      %v252 = vmul.f32 %v251, 0.0625
      %v253 = vmul.f32 %v244, 0.375
      %v255 = vrot.slane %v253, 1
      %v257 = vadd.f32 %v252, %v255
      %v259 = vrot.slane %v246, 1
      %v261 = vadd.f32 %v246, %v259
      %v262 = vmul.f32 %v261, 0.25
      %v263 = vadd.f32 %v257, %v262
      %v265 = vrot.slane %v245, 2
      %v267 = vadd.f32 %v245, %v265
      %v268 = vmul.f32 %v267, 0.0625
      %v269 = vmul.f32 %v245, 0.375
      %v271 = vrot.slane %v269, 1
      %v273 = vadd.f32 %v268, %v271
      %v275 = vrot.slane %v247, 1
      %v277 = vadd.f32 %v247, %v275
      %v278 = vmul.f32 %v277, 0.25
      %v279 = vadd.f32 %v273, %v278
      %281 = vrot.lane.b32.xlu0 %v263, 126
      %v282 = vpop.permute.xlu0 %281
      %v284 = vadd.f32 %v263, %v282
      %v285 = vmul.f32 %v284, 0.0625
      %v286 = vmul.f32 %v263, 0.375
      %288 = vrot.lane.b32.xlu0 %v286, 127
      %v289 = vpop.permute.xlu0 %288
      %v291 = vadd.f32 %v285, %v289
      %293 = vrot.lane.b32.xlu0 %v279, 127
      %v294 = vpop.permute.xlu0 %293
      %v296 = vadd.f32 %v279, %v294
      %v297 = vmul.f32 %v296, 0.25
      %v298 = vadd.f32 %v291, %v297
      %vm299 = vcmask 9216
      %300 = vst.msk [vmem:[%s243] sm:$0x3] %vm299, %v298
      %p301 = scmp.lt.s32.totalorder %s15, 1
      %s302 = scalar_select %p301, %s15, 1
      %s303 = smul.addr %s302, 2
      %s304 = scalar_lea.vmem %s4, %s303
      // Predicated region
      $region37: #{compute_all.31} parent=35 // pred_check
        %p305 = pneg %p137
      $region38: #{compute_all.31} parent=35 // pred_check_branch
        %307 = sbr.rel (%p305) target = $region40
      $region39: #{compute_all.31} parent=35 // pred_region
        _
      $region40: #{compute_all.31} parent=35 // pred_fallthru
        _
    $region36: #{compute_all.31} parent=5 // pred_fallthru
      _
    %p308 = scmp.le.s32.totalorder 2, %s10
    // Predicated region
    $region41: #{compute_all.31} parent=5 // pred_check
      %p309 = pneg %p308
    $region42: #{compute_all.31} parent=5 // pred_check_branch
      %311 = sbr.rel (%p309) target = $region44
    $region43: #{compute_all.31} parent=5 // pred_region
      %s312 = ssub.s32 %s10, 2
      // Predicated region
      $region45: #{compute_all.31} parent=43 // pred_check
        %p313 = pneg %p143
      $region46: #{compute_all.31} parent=43 // pred_check_branch
        %315 = sbr.rel (%p313) target = $region48
      $region47: #{compute_all.31} parent=43 // pred_region
        %p316 = scmp.lt.s32.totalorder %s16, 1
        %s317 = scalar_select %p316, %s16, 1
        %s318 = smul.addr %s317, 2
        %s319 = scalar_lea.vmem %s4, %s318
      $region48: #{compute_all.31} parent=43 // pred_fallthru
        _
    $region44: #{compute_all.31} parent=5 // pred_fallthru
      _
  $region6: #{compute_all.31} parent=0 // loop_footer
    %s14 = sadd.s32 1, %s10
  $region7: #{compute_all.31} parent=0 // loop_footer_branch
    %9 = sbr.rel target = $region3
  $region8: #{compute_all.31} parent=0 // loop_exit
    _

// kernel: sub.15
$region0: #{sub.15}
  #allocation0 [shape = 's32[1]{0}', space=sflag, size = 0x4, scoped, tag = 'scoped memory for sub.15']
  %s0 = inlined_call_operand.vmem [shape: f32[2,8,8], index: 0, kind: input, shape index: {}]
  %s1 = inlined_call_operand.vmem [shape: f32[2,8,8], index: 1, kind: input, shape index: {}]
  %s2 = inlined_call_operand.vmem [shape: f32[2,8,8], index: 2, kind: output, shape index: {}]
  %v3 = vld [vmem:[%s0] sm:$0xff]
  %v4 = vld [vmem:[%s1] sm:$0xff]
  %5 = xla_tuple %v3, %v4
  %6 = xla_tuple %5
  %v7 = vsub.f32 %v3, %v4
  %8 = xla_tuple %v7
  %9 = vst [vmem:[%s2] sm:$0xff] %v7
  %s10 = scalar_lea.vmem %s0, 8
  %v11 = vld [vmem:[%s10] sm:$0xff]
  %s12 = scalar_lea.vmem %s1, 8
  %v13 = vld [vmem:[%s12] sm:$0xff]
  %14 = xla_tuple %v11, %v13
  %15 = xla_tuple %14
  %v16 = vsub.f32 %v11, %v13
  %17 = xla_tuple %v16
  %s18 = scalar_lea.vmem %s2, 8
  %19 = vst [vmem:[%s18] sm:$0xff] %v16

// kernel: sub.13
$region0: #{sub.13}
  #allocation0 [shape = 's32[1]{0}', space=sflag, size = 0x4, scoped, tag = 'scoped memory for sub.13']
  %s0 = inlined_call_operand.vmem [shape: f32[2,16,16], index: 0, kind: input, shape index: {}]
  %s1 = inlined_call_operand.vmem [shape: f32[2,16,16], index: 1, kind: input, shape index: {}]
  %s2 = inlined_call_operand.vmem [shape: f32[2,16,16], index: 2, kind: output, shape index: {}]
  %v3 = vld [vmem:[%s0] sm:$0xff]
  %v4 = vld [vmem:[%s1] sm:$0xff]
  %5 = xla_tuple %v3, %v4
  %6 = xla_tuple %5
  %v7 = vsub.f32 %v3, %v4
  %8 = xla_tuple %v7
  %9 = vst [vmem:[%s2] sm:$0xff] %v7
  %s10 = scalar_lea.vmem %s0, 16
  %v11 = vld [vmem:[%s10] sm:$0xff]
  %s12 = scalar_lea.vmem %s1, 16
  %v13 = vld [vmem:[%s12] sm:$0xff]
  %14 = xla_tuple %v11, %v13
  %15 = xla_tuple %14
  %v16 = vsub.f32 %v11, %v13
  %17 = xla_tuple %v16
  %s18 = scalar_lea.vmem %s2, 16
  %19 = vst [vmem:[%s18] sm:$0xff] %v16
  %s20 = scalar_lea.vmem %s0, 8
  %v21 = vld [vmem:[%s20] sm:$0xff]
  %s22 = scalar_lea.vmem %s1, 8
  %v23 = vld [vmem:[%s22] sm:$0xff]
  %24 = xla_tuple %v21, %v23
  %25 = xla_tuple %24
  %v26 = vsub.f32 %v21, %v23
  %27 = xla_tuple %v26
  %s28 = scalar_lea.vmem %s2, 8
  %29 = vst [vmem:[%s28] sm:$0xff] %v26
  %s30 = scalar_lea.vmem %s0, 24
  %v31 = vld [vmem:[%s30] sm:$0xff]
  %s32 = scalar_lea.vmem %s1, 24
  %v33 = vld [vmem:[%s32] sm:$0xff]
  %34 = xla_tuple %v31, %v33
  %35 = xla_tuple %34
  %v36 = vsub.f32 %v31, %v33
  %37 = xla_tuple %v36
  %s38 = scalar_lea.vmem %s2, 24
  %39 = vst [vmem:[%s38] sm:$0xff] %v36

// kernel: compute_all.29
$region0: #{compute_all.29}
  #allocation0 [shape = 'u32[]', space=smem, size = 0x4, offset = 0x4, fixed_abs, tag = 'smem constant byte address 0x4 - core index']
  #allocation1 [shape = 'u32[144,128]{1,0:T(1,128)}', space=vmem, size = 0x12000, scoped, tag = 'internal scratch']
  %s0 = inlined_call_operand.vmem [shape: f32[2,4,4], index: 0, kind: input, shape index: {}]
  %s1 = inlined_call_operand.vmem [shape: f32[2,4,4], index: 1, kind: input, shape index: {}]
  %s2 = inlined_call_operand.vmem [shape: f32[2,4,4], index: 2, kind: input, shape index: {}]
  %s3 = inlined_call_operand.vmem [shape: f32[2,4,4], index: 3, kind: input, shape index: {}]
  %s4 = inlined_call_operand.vmem [shape: f32[2,6,6], index: 4, kind: input, shape index: {}]
  %s5 = inlined_call_operand.vmem [shape: f32[2,1,1], index: 5, kind: output, shape index: {}]
  %s6 = sld [smem:[#allocation0]]
  $region53: #{compute_all.29} parent=0
    _
  %s8 = ssub.s32 1, %s6
  %s9 = scalar_select 0, %s8, %s6
  loop: start=0, step=1, limit=4
  $region2: #{compute_all.29} parent=0 // loop_pre_header
    _
  $region3: #{compute_all.29} parent=0 // loop_header
    %s11 = sphi 0, %s15
    %p12 = scmp.ge.s32.totalorder %s11, 4
    %s21 = sphi 0, %s23
    %s24 = sphi 0, %s21
    %s25 = sphi 0, %s24
    %s41 = sphi 0, %s25
    %s47 = sphi 0, %s49
    %s50 = sphi 0, %s47
    %s51 = sphi 0, %s50
    %s67 = sphi 0, %s51
    %s73 = sphi 0, %s75
    %s76 = sphi 0, %s73
    %s77 = sphi 0, %s76
    %s93 = sphi 0, %s77
    %s99 = sphi 0, %s101
    %s102 = sphi 0, %s99
    %s103 = sphi 0, %s102
    %s119 = sphi 0, %s103
    %s125 = sphi 0, %s127
    %s128 = sphi 0, %s125
    %s129 = sphi 0, %s128
    %s145 = sphi 0, %s129
    %s151 = sphi 0, %s153
    %s154 = sphi 0, %s151
    %s155 = sphi 0, %s154
    %s171 = sphi 0, %s155
  $region4: #{compute_all.29} parent=0 // loop_header_branch
    %14 = sbr.rel (%p12) target = $region8
  $region5: #{compute_all.29} parent=0 // loop_body
    %s16 = ssub.s32 %s11, 1
    %s17 = ssub.s32 %s11, 2
    %s18 = sadd.s32 %s11, 1
    %s19 = ssub.s32 %s11, %s18
    %p20 = scmp.eq.s32.totalorder %s19, 0
    %s22 = sadd.s32 %s21, 1
    %s23 = scalar_select %p20, %s21, %s22
    %p26 = pneg %p20
    %p27 = scmp.eq.s32.totalorder %s11, 1
    %p28 = por %p26, %p27
    %p29 = scmp.ne.s32.totalorder %s21, %s24
    %p30 = scmp.eq.s32.totalorder %s11, 0
    %p31 = por %p29, %p30
    %p32 = scmp.ne.s32.totalorder %s21, %s24
    %p33 = scmp.eq.s32.totalorder %s16, 1
    %p34 = por %p32, %p33
    %p35 = scmp.ne.s32.totalorder %s24, %s25
    %p36 = scmp.eq.s32.totalorder %s16, 0
    %p37 = por %p35, %p36
    %p38 = scmp.ne.s32.totalorder %s24, %s25
    %p39 = scmp.eq.s32.totalorder %s17, 1
    %p40 = por %p38, %p39
    %p42 = scmp.ne.s32.totalorder %s25, %s41
    %p43 = scmp.eq.s32.totalorder %s17, 0
    %p44 = por %p42, %p43
    %s45 = ssub.s32 %s11, %s18
    %p46 = scmp.eq.s32.totalorder %s45, 0
    %s48 = sadd.s32 %s47, 1
    %s49 = scalar_select %p46, %s47, %s48
    %p52 = pneg %p46
    %p53 = scmp.eq.s32.totalorder %s11, 1
    %p54 = por %p52, %p53
    %p55 = scmp.ne.s32.totalorder %s47, %s50
    %p56 = scmp.eq.s32.totalorder %s11, 0
    %p57 = por %p55, %p56
    %p58 = scmp.ne.s32.totalorder %s47, %s50
    %p59 = scmp.eq.s32.totalorder %s16, 1
    %p60 = por %p58, %p59
    %p61 = scmp.ne.s32.totalorder %s50, %s51
    %p62 = scmp.eq.s32.totalorder %s16, 0
    %p63 = por %p61, %p62
    %p64 = scmp.ne.s32.totalorder %s50, %s51
    %p65 = scmp.eq.s32.totalorder %s17, 1
    %p66 = por %p64, %p65
    %p68 = scmp.ne.s32.totalorder %s51, %s67
    %p69 = scmp.eq.s32.totalorder %s17, 0
    %p70 = por %p68, %p69
    %s71 = ssub.s32 %s11, %s18
    %p72 = scmp.eq.s32.totalorder %s71, 0
    %s74 = sadd.s32 %s73, 1
    %s75 = scalar_select %p72, %s73, %s74
    %p78 = pneg %p72
    %p79 = scmp.eq.s32.totalorder %s11, 1
    %p80 = por %p78, %p79
    %p81 = scmp.ne.s32.totalorder %s73, %s76
    %p82 = scmp.eq.s32.totalorder %s11, 0
    %p83 = por %p81, %p82
    %p84 = scmp.ne.s32.totalorder %s73, %s76
    %p85 = scmp.eq.s32.totalorder %s16, 1
    %p86 = por %p84, %p85
    %p87 = scmp.ne.s32.totalorder %s76, %s77
    %p88 = scmp.eq.s32.totalorder %s16, 0
    %p89 = por %p87, %p88
    %p90 = scmp.ne.s32.totalorder %s76, %s77
    %p91 = scmp.eq.s32.totalorder %s17, 1
    %p92 = por %p90, %p91
    %p94 = scmp.ne.s32.totalorder %s77, %s93
    %p95 = scmp.eq.s32.totalorder %s17, 0
    %p96 = por %p94, %p95
    %s97 = ssub.s32 %s11, %s18
    %p98 = scmp.eq.s32.totalorder %s97, 0
    %s100 = sadd.s32 %s99, 1
    %s101 = scalar_select %p98, %s99, %s100
    %p104 = pneg %p98
    %p105 = scmp.eq.s32.totalorder %s11, 1
    %p106 = por %p104, %p105
    %p107 = scmp.ne.s32.totalorder %s99, %s102
    %p108 = scmp.eq.s32.totalorder %s11, 0
    %p109 = por %p107, %p108
    %p110 = scmp.ne.s32.totalorder %s99, %s102
    %p111 = scmp.eq.s32.totalorder %s16, 1
    %p112 = por %p110, %p111
    %p113 = scmp.ne.s32.totalorder %s102, %s103
    %p114 = scmp.eq.s32.totalorder %s16, 0
    %p115 = por %p113, %p114
    %p116 = scmp.ne.s32.totalorder %s102, %s103
    %p117 = scmp.eq.s32.totalorder %s17, 1
    %p118 = por %p116, %p117
    %p120 = scmp.ne.s32.totalorder %s103, %s119
    %p121 = scmp.eq.s32.totalorder %s17, 0
    %p122 = por %p120, %p121
    %s123 = ssub.s32 %s11, %s18
    %p124 = scmp.eq.s32.totalorder %s123, 0
    %s126 = sadd.s32 %s125, 1
    %s127 = scalar_select %p124, %s125, %s126
    %p130 = pneg %p124
    %p131 = scmp.eq.s32.totalorder %s11, 1
    %p132 = por %p130, %p131
    %p133 = scmp.ne.s32.totalorder %s125, %s128
    %p134 = scmp.eq.s32.totalorder %s11, 0
    %p135 = por %p133, %p134
    %p136 = scmp.ne.s32.totalorder %s125, %s128
    %p137 = scmp.eq.s32.totalorder %s16, 1
    %p138 = por %p136, %p137
    %p139 = scmp.ne.s32.totalorder %s128, %s129
    %p140 = scmp.eq.s32.totalorder %s16, 0
    %p141 = por %p139, %p140
    %p142 = scmp.ne.s32.totalorder %s128, %s129
    %p143 = scmp.eq.s32.totalorder %s17, 1
    %p144 = por %p142, %p143
    %p146 = scmp.ne.s32.totalorder %s129, %s145
    %p147 = scmp.eq.s32.totalorder %s17, 0
    %p148 = por %p146, %p147
    %s149 = ssub.s32 %s11, %s18
    %p150 = scmp.eq.s32.totalorder %s149, 0
    %s152 = sadd.s32 %s151, 1
    %s153 = scalar_select %p150, %s151, %s152
    %p156 = pneg %p150
    %p157 = scmp.eq.s32.totalorder %s11, 1
    %p158 = por %p156, %p157
    %p159 = scmp.ne.s32.totalorder %s151, %s154
    %p160 = scmp.eq.s32.totalorder %s11, 0
    %p161 = por %p159, %p160
    %p162 = scmp.ne.s32.totalorder %s151, %s154
    %p163 = scmp.eq.s32.totalorder %s16, 1
    %p164 = por %p162, %p163
    %p165 = scmp.ne.s32.totalorder %s154, %s155
    %p166 = scmp.eq.s32.totalorder %s16, 0
    %p167 = por %p165, %p166
    %p168 = scmp.ne.s32.totalorder %s154, %s155
    %p169 = scmp.eq.s32.totalorder %s17, 1
    %p170 = por %p168, %p169
    %p172 = scmp.ne.s32.totalorder %s155, %s171
    %p173 = scmp.eq.s32.totalorder %s17, 0
    %p174 = por %p172, %p173
    %p175 = scmp.le.s32.totalorder 1, %s11
    %p176 = scmp.lt.s32.totalorder %s11, 3
    %p177 = pnand %p175, %p176
    %p178 = pneg %p177
    // Predicated region
    $region9: #{compute_all.29} parent=5 // pred_check
      _
    $region10: #{compute_all.29} parent=5 // pred_check_branch
      %180 = sbr.rel (%p177) target = $region12
    $region11: #{compute_all.29} parent=5 // pred_region
      %s181 = ssub.s32 %s11, 1
    $region12: #{compute_all.29} parent=5 // pred_fallthru
      _
    %p182 = scmp.lt.s32.totalorder %s11, 2
    // Predicated region
    $region13: #{compute_all.29} parent=5 // pred_check
      %p183 = pneg %p182
    $region14: #{compute_all.29} parent=5 // pred_check_branch
      %185 = sbr.rel (%p183) target = $region16
    $region15: #{compute_all.29} parent=5 // pred_region
      // Predicated region
      $region17: #{compute_all.29} parent=15 // pred_check
        %p186 = pneg %p31
      $region18: #{compute_all.29} parent=15 // pred_check_branch
        %188 = sbr.rel (%p186) target = $region20
      $region19: #{compute_all.29} parent=15 // pred_region
        %p189 = scmp.lt.s32.totalorder %s11, 1
        %s190 = scalar_select %p189, %s11, 1
        %s191 = smul.addr %s190, 4
        %s192 = scalar_lea.vmem %s0, %s191
      $region20: #{compute_all.29} parent=15 // pred_fallthru
        _
      // Predicated region
      $region21: #{compute_all.29} parent=15 // pred_check
        %p193 = pneg %p57
      $region22: #{compute_all.29} parent=15 // pred_check_branch
        %195 = sbr.rel (%p193) target = $region24
      $region23: #{compute_all.29} parent=15 // pred_region
        %p196 = scmp.lt.s32.totalorder %s11, 1
        %s197 = scalar_select %p196, %s11, 1
        %s198 = smul.addr %s197, 4
        %s199 = scalar_lea.vmem %s1, %s198
      $region24: #{compute_all.29} parent=15 // pred_fallthru
        _
      // Predicated region
      $region25: #{compute_all.29} parent=15 // pred_check
        %p200 = pneg %p83
      $region26: #{compute_all.29} parent=15 // pred_check_branch
        %202 = sbr.rel (%p200) target = $region28
      $region27: #{compute_all.29} parent=15 // pred_region
        %p203 = scmp.lt.s32.totalorder %s11, 1
        %s204 = scalar_select %p203, %s11, 1
        %s205 = smul.addr %s204, 4
        %s206 = scalar_lea.vmem %s2, %s205
      $region28: #{compute_all.29} parent=15 // pred_fallthru
        _
      // Predicated region
      $region29: #{compute_all.29} parent=15 // pred_check
        %p207 = pneg %p109
      $region30: #{compute_all.29} parent=15 // pred_check_branch
        %209 = sbr.rel (%p207) target = $region32
      $region31: #{compute_all.29} parent=15 // pred_region
        %p210 = scmp.lt.s32.totalorder %s11, 1
        %s211 = scalar_select %p210, %s11, 1
        %s212 = smul.addr %s211, 4
        %s213 = scalar_lea.vmem %s3, %s212
      $region32: #{compute_all.29} parent=15 // pred_fallthru
        _
      // Predicated region
      $region33: #{compute_all.29} parent=15 // pred_check
        %p214 = pneg %p135
      $region34: #{compute_all.29} parent=15 // pred_check_branch
        %216 = sbr.rel (%p214) target = $region36
      $region35: #{compute_all.29} parent=15 // pred_region
        %p217 = scmp.lt.s32.totalorder %s11, 1
        %s218 = scalar_select %p217, %s11, 1
        %s219 = smul.addr %s218, 8
        %s220 = scalar_lea.vmem %s4, %s219
      $region36: #{compute_all.29} parent=15 // pred_fallthru
        _
    $region16: #{compute_all.29} parent=5 // pred_fallthru
      _
    %p221 = scmp.le.s32.totalorder 1, %s11
    %p222 = scmp.lt.s32.totalorder %s11, 3
    %p223 = pnand %p221, %p222
    %p224 = pneg %p223
    // Predicated region
    $region37: #{compute_all.29} parent=5 // pred_check
      _
    $region38: #{compute_all.29} parent=5 // pred_check_branch
      %226 = sbr.rel (%p223) target = $region40
    $region39: #{compute_all.29} parent=5 // pred_region
      %s227 = ssub.s32 %s11, 1
      %p228 = scmp.lt.s32.totalorder %s16, 1
      %s229 = scalar_select %p228, %s16, 1
      %s230 = smul.addr %s229, 4
      %s231 = scalar_lea.vmem %s0, %s230
      %p232 = pneg %p37
      %p233 = pneg %p34
      %p234 = scmp.lt.s32.totalorder %s16, 1
      %s235 = scalar_select %p234, %s16, 1
      %s236 = smul.addr %s235, 4
      %s237 = scalar_lea.vmem %s1, %s236
      %p238 = pneg %p63
      %p239 = pneg %p60
      %p240 = scmp.lt.s32.totalorder %s16, 1
      %s241 = scalar_select %p240, %s16, 1
      %s242 = smul.addr %s241, 4
      %s243 = scalar_lea.vmem %s2, %s242
      %p244 = pneg %p89
      %p245 = pneg %p86
      %p246 = scmp.lt.s32.totalorder %s16, 1
      %s247 = scalar_select %p246, %s16, 1
      %s248 = smul.addr %s247, 4
      %s249 = scalar_lea.vmem %s3, %s248
      %p250 = pneg %p115
      %p251 = pneg %p112
      %p252 = scmp.lt.s32.totalorder %s16, 1
      %s253 = scalar_select %p252, %s16, 1
      %s254 = smul.addr %s253, 8
      %s255 = scalar_lea.vmem %s4, %s254
      %p256 = pneg %p141
      %p257 = pneg %p138
      %p258 = pneg %p167
      %p259 = pneg %p164
      %p260 = scmp.lt.s32.totalorder %s16, 1
      %s261 = scalar_select %p260, %s16, 1
      %s262 = scalar_lea.vmem %s5, %s261
      %p263 = scmp.lt.s32.totalorder %s16, 1
      %s264 = scalar_select %p263, %s16, 1
      %s265 = smul.addr %s264, 4
      %s266 = scalar_lea.vmem %s0, %s265
      %p267 = scmp.lt.s32.totalorder %s16, 1
      %s268 = scalar_select %p267, %s16, 1
      %s269 = smul.addr %s268, 4
      %s270 = scalar_lea.vmem %s1, %s269
      %p271 = scmp.lt.s32.totalorder %s16, 1
      %s272 = scalar_select %p271, %s16, 1
      %s273 = smul.addr %s272, 4
      %s274 = scalar_lea.vmem %s2, %s273
      %p275 = scmp.lt.s32.totalorder %s16, 1
      %s276 = scalar_select %p275, %s16, 1
      %s277 = smul.addr %s276, 4
      %s278 = scalar_lea.vmem %s3, %s277
      %p279 = scmp.lt.s32.totalorder %s16, 1
      %s280 = scalar_select %p279, %s16, 1
      %s281 = smul.addr %s280, 8
      %s282 = scalar_lea.vmem %s4, %s281
      %p283 = scmp.lt.s32.totalorder %s16, 1
      %s284 = scalar_select %p283, %s16, 1
      %s285 = scalar_lea.vmem %s5, %s284
      %v286 = vld [vmem:[%s282] sm:$0x3f]
      %v287 = vmul.f32 %v286, 0.125
      %v288 = vmul.f32 %v286, 0.75
      %v290 = vrot.slane %v288, 1
      %v292 = vadd.f32 %v287, %v290
      %v294 = vrot.slane %v287, 2
      %v296 = vadd.f32 %v292, %v294
      %v298 = vrot.slane %v286, 1
      %v300 = vadd.f32 %v286, %v298
      %v301 = vmul.f32 %v300, 0.5
      %v302 = vld [vmem:[%s266] sm:$0xf]
      %v303 = vmul.f32 %v296, 0.125
      %v304 = vmul.f32 %v296, 0.75
      %306 = vrot.lane.b32.xlu0 %v304, 127
      %v307 = vpop.permute.xlu0 %306
      %v309 = vadd.f32 %v303, %v307
      %311 = vrot.lane.b32.xlu0 %v303, 126
      %v312 = vpop.permute.xlu0 %311
      %v314 = vadd.f32 %v309, %v312
      %v315 = vsub.f32 %v302, %v314
      %v316 = vand.u32 2147483647, %v315
      %vm317 = vcmask 27648
      %v318 = vsel %vm317, %v316, 0.0
      %319 = vadd.xlane.f32.xlu0 %v318
      %v320 = vpop.xlane.xlu0 %319
      %v321 = vrot.slane %v320, 4
      %v322 = vadd.f32 %v320, %v321
      %v323 = vrot.slane %v322, 2
      %v324 = vadd.f32 %v322, %v323
      %v325 = vrot.slane %v324, 1
      %v326 = vadd.f32 %v324, %v325
      %s327 = vtos %v326
      %v328 = vstv %s327
      %v329 = vld [vmem:[%s270] sm:$0xf]
      %331 = vrot.lane.b32.xlu0 %v296, 127
      %v332 = vpop.permute.xlu0 %331
      %v334 = vadd.f32 %v296, %v332
      %v335 = vmul.f32 %v334, 0.5
      %337 = vrot.lane.b32.xlu0 %v335, 127
      %v338 = vpop.permute.xlu0 %337
      %v340 = vsub.f32 %v329, %v338
      %v341 = vand.u32 2147483647, %v340
      %v342 = vsel %vm317, %v341, 0.0
      %343 = vadd.xlane.f32.xlu0 %v342
      %v344 = vpop.xlane.xlu0 %343
      %v345 = vrot.slane %v344, 4
      %v346 = vadd.f32 %v344, %v345
      %v347 = vrot.slane %v346, 2
      %v348 = vadd.f32 %v346, %v347
      %v349 = vrot.slane %v348, 1
      %v350 = vadd.f32 %v348, %v349
      %s351 = vtos %v350
      %v352 = vstv %s351
      %v353 = vadd.f32 %v328, %v352
      %v354 = vld [vmem:[%s274] sm:$0xf]
      %v355 = vmul.f32 %v301, 0.125
      %v356 = vmul.f32 %v301, 0.75
      %358 = vrot.lane.b32.xlu0 %v356, 127
      %v359 = vpop.permute.xlu0 %358
      %v361 = vadd.f32 %v355, %v359
      %363 = vrot.lane.b32.xlu0 %v355, 126
      %v364 = vpop.permute.xlu0 %363
      %v366 = vadd.f32 %v361, %v364
      %v368 = vrot.slane %v366, 1
      %v370 = vsub.f32 %v354, %v368
      %v371 = vand.u32 2147483647, %v370
      %v372 = vsel %vm317, %v371, 0.0
      %373 = vadd.xlane.f32.xlu0 %v372
      %v374 = vpop.xlane.xlu0 %373
      %v375 = vrot.slane %v374, 4
      %v376 = vadd.f32 %v374, %v375
      %v377 = vrot.slane %v376, 2
      %v378 = vadd.f32 %v376, %v377
      %v379 = vrot.slane %v378, 1
      %v380 = vadd.f32 %v378, %v379
      %s381 = vtos %v380
      %v382 = vstv %s381
      %v383 = vadd.f32 %v353, %v382
      %v384 = vld [vmem:[%s278] sm:$0xf]
      %386 = vrot.lane.b32.xlu0 %v301, 127
      %v387 = vpop.permute.xlu0 %386
      %v389 = vadd.f32 %v301, %v387
      %v390 = vmul.f32 %v389, 0.5
      %v392 = vrot.slane %v390, 1
      %393 = vrot.lane.b32.xlu0 %v392, 127
      %v394 = vpop.permute.xlu0 %393
      %v396 = vsub.f32 %v384, %v394
      %v397 = vand.u32 2147483647, %v396
      %v398 = vsel %vm317, %v397, 0.0
      %399 = vadd.xlane.f32.xlu0 %v398
      %v400 = vpop.xlane.xlu0 %399
      %v401 = vrot.slane %v400, 4
      %v402 = vadd.f32 %v400, %v401
      %v403 = vrot.slane %v402, 2
      %v404 = vadd.f32 %v402, %v403
      %v405 = vrot.slane %v404, 1
      %v406 = vadd.f32 %v404, %v405
      %s407 = vtos %v406
      %v408 = vstv %s407
      %v409 = vadd.f32 %v383, %v408
      %vm410 = vcmask 0
      %411 = vst.msk [vmem:[%s285] sm:$0x1] %vm410, %v409
      %p412 = scmp.lt.s32.totalorder %s16, 1
      %s413 = scalar_select %p412, %s16, 1
      %s414 = scalar_lea.vmem %s5, %s413
      // Predicated region
      $region41: #{compute_all.29} parent=39 // pred_check
        %p415 = pneg %p164
      $region42: #{compute_all.29} parent=39 // pred_check_branch
        %417 = sbr.rel (%p415) target = $region44
      $region43: #{compute_all.29} parent=39 // pred_region
        _
      $region44: #{compute_all.29} parent=39 // pred_fallthru
        _
    $region40: #{compute_all.29} parent=5 // pred_fallthru
      _
    %p418 = scmp.le.s32.totalorder 2, %s11
    // Predicated region
    $region45: #{compute_all.29} parent=5 // pred_check
      %p419 = pneg %p418
    $region46: #{compute_all.29} parent=5 // pred_check_branch
      %421 = sbr.rel (%p419) target = $region48
    $region47: #{compute_all.29} parent=5 // pred_region
      %s422 = ssub.s32 %s11, 2
      // Predicated region
      $region49: #{compute_all.29} parent=47 // pred_check
        %p423 = pneg %p170
      $region50: #{compute_all.29} parent=47 // pred_check_branch
        %425 = sbr.rel (%p423) target = $region52
      $region51: #{compute_all.29} parent=47 // pred_region
        %p426 = scmp.lt.s32.totalorder %s17, 1
        %s427 = scalar_select %p426, %s17, 1
        %s428 = scalar_lea.vmem %s5, %s427
      $region52: #{compute_all.29} parent=47 // pred_fallthru
        _
    $region48: #{compute_all.29} parent=5 // pred_fallthru
      _
  $region6: #{compute_all.29} parent=0 // loop_footer
    %s15 = sadd.s32 1, %s11
  $region7: #{compute_all.29} parent=0 // loop_footer_branch
    %10 = sbr.rel target = $region3
  $region8: #{compute_all.29} parent=0 // loop_exit
    _

// kernel: compute_all.32
$region0: #{compute_all.32}
  #allocation0 [shape = 'u32[]', space=smem, size = 0x4, offset = 0x4, fixed_abs, tag = 'smem constant byte address 0x4 - core index']
  #allocation1 [shape = 'u32[144,128]{1,0:T(1,128)}', space=vmem, size = 0x12000, scoped, tag = 'internal scratch']
  %s0 = inlined_call_operand.vmem [shape: f32[2,2,2], index: 0, kind: input, shape index: {}]
  %s1 = inlined_call_operand.vmem [shape: f32[2,2,2], index: 1, kind: input, shape index: {}]
  %s2 = inlined_call_operand.vmem [shape: f32[2,2,2], index: 2, kind: input, shape index: {}]
  %s3 = inlined_call_operand.vmem [shape: f32[2,2,2], index: 3, kind: input, shape index: {}]
  %s4 = inlined_call_operand.vmem [shape: f32[2,4,4], index: 4, kind: input, shape index: {}]
  %s5 = inlined_call_operand.vmem [shape: f32[2,1,1], index: 5, kind: output, shape index: {}]
  %s6 = sld [smem:[#allocation0]]
  $region53: #{compute_all.32} parent=0
    _
  %s8 = ssub.s32 1, %s6
  %s9 = scalar_select 0, %s8, %s6
  loop: start=0, step=1, limit=4
  $region2: #{compute_all.32} parent=0 // loop_pre_header
    _
  $region3: #{compute_all.32} parent=0 // loop_header
    %s11 = sphi 0, %s15
    %p12 = scmp.ge.s32.totalorder %s11, 4
    %s21 = sphi 0, %s23
    %s24 = sphi 0, %s21
    %s25 = sphi 0, %s24
    %s41 = sphi 0, %s25
    %s47 = sphi 0, %s49
    %s50 = sphi 0, %s47
    %s51 = sphi 0, %s50
    %s67 = sphi 0, %s51
    %s73 = sphi 0, %s75
    %s76 = sphi 0, %s73
    %s77 = sphi 0, %s76
    %s93 = sphi 0, %s77
    %s99 = sphi 0, %s101
    %s102 = sphi 0, %s99
    %s103 = sphi 0, %s102
    %s119 = sphi 0, %s103
    %s125 = sphi 0, %s127
    %s128 = sphi 0, %s125
    %s129 = sphi 0, %s128
    %s145 = sphi 0, %s129
    %s151 = sphi 0, %s153
    %s154 = sphi 0, %s151
    %s155 = sphi 0, %s154
    %s171 = sphi 0, %s155
  $region4: #{compute_all.32} parent=0 // loop_header_branch
    %14 = sbr.rel (%p12) target = $region8
  $region5: #{compute_all.32} parent=0 // loop_body
    %s16 = ssub.s32 %s11, 1
    %s17 = ssub.s32 %s11, 2
    %s18 = sadd.s32 %s11, 1
    %s19 = ssub.s32 %s11, %s18
    %p20 = scmp.eq.s32.totalorder %s19, 0
    %s22 = sadd.s32 %s21, 1
    %s23 = scalar_select %p20, %s21, %s22
    %p26 = pneg %p20
    %p27 = scmp.eq.s32.totalorder %s11, 1
    %p28 = por %p26, %p27
    %p29 = scmp.ne.s32.totalorder %s21, %s24
    %p30 = scmp.eq.s32.totalorder %s11, 0
    %p31 = por %p29, %p30
    %p32 = scmp.ne.s32.totalorder %s21, %s24
    %p33 = scmp.eq.s32.totalorder %s16, 1
    %p34 = por %p32, %p33
    %p35 = scmp.ne.s32.totalorder %s24, %s25
    %p36 = scmp.eq.s32.totalorder %s16, 0
    %p37 = por %p35, %p36
    %p38 = scmp.ne.s32.totalorder %s24, %s25
    %p39 = scmp.eq.s32.totalorder %s17, 1
    %p40 = por %p38, %p39
    %p42 = scmp.ne.s32.totalorder %s25, %s41
    %p43 = scmp.eq.s32.totalorder %s17, 0
    %p44 = por %p42, %p43
    %s45 = ssub.s32 %s11, %s18
    %p46 = scmp.eq.s32.totalorder %s45, 0
    %s48 = sadd.s32 %s47, 1
    %s49 = scalar_select %p46, %s47, %s48
    %p52 = pneg %p46
    %p53 = scmp.eq.s32.totalorder %s11, 1
    %p54 = por %p52, %p53
    %p55 = scmp.ne.s32.totalorder %s47, %s50
    %p56 = scmp.eq.s32.totalorder %s11, 0
    %p57 = por %p55, %p56
    %p58 = scmp.ne.s32.totalorder %s47, %s50
    %p59 = scmp.eq.s32.totalorder %s16, 1
    %p60 = por %p58, %p59
    %p61 = scmp.ne.s32.totalorder %s50, %s51
    %p62 = scmp.eq.s32.totalorder %s16, 0
    %p63 = por %p61, %p62
    %p64 = scmp.ne.s32.totalorder %s50, %s51
    %p65 = scmp.eq.s32.totalorder %s17, 1
    %p66 = por %p64, %p65
    %p68 = scmp.ne.s32.totalorder %s51, %s67
    %p69 = scmp.eq.s32.totalorder %s17, 0
    %p70 = por %p68, %p69
    %s71 = ssub.s32 %s11, %s18
    %p72 = scmp.eq.s32.totalorder %s71, 0
    %s74 = sadd.s32 %s73, 1
    %s75 = scalar_select %p72, %s73, %s74
    %p78 = pneg %p72
    %p79 = scmp.eq.s32.totalorder %s11, 1
    %p80 = por %p78, %p79
    %p81 = scmp.ne.s32.totalorder %s73, %s76
    %p82 = scmp.eq.s32.totalorder %s11, 0
    %p83 = por %p81, %p82
    %p84 = scmp.ne.s32.totalorder %s73, %s76
    %p85 = scmp.eq.s32.totalorder %s16, 1
    %p86 = por %p84, %p85
    %p87 = scmp.ne.s32.totalorder %s76, %s77
    %p88 = scmp.eq.s32.totalorder %s16, 0
    %p89 = por %p87, %p88
    %p90 = scmp.ne.s32.totalorder %s76, %s77
    %p91 = scmp.eq.s32.totalorder %s17, 1
    %p92 = por %p90, %p91
    %p94 = scmp.ne.s32.totalorder %s77, %s93
    %p95 = scmp.eq.s32.totalorder %s17, 0
    %p96 = por %p94, %p95
    %s97 = ssub.s32 %s11, %s18
    %p98 = scmp.eq.s32.totalorder %s97, 0
    %s100 = sadd.s32 %s99, 1
    %s101 = scalar_select %p98, %s99, %s100
    %p104 = pneg %p98
    %p105 = scmp.eq.s32.totalorder %s11, 1
    %p106 = por %p104, %p105
    %p107 = scmp.ne.s32.totalorder %s99, %s102
    %p108 = scmp.eq.s32.totalorder %s11, 0
    %p109 = por %p107, %p108
    %p110 = scmp.ne.s32.totalorder %s99, %s102
    %p111 = scmp.eq.s32.totalorder %s16, 1
    %p112 = por %p110, %p111
    %p113 = scmp.ne.s32.totalorder %s102, %s103
    %p114 = scmp.eq.s32.totalorder %s16, 0
    %p115 = por %p113, %p114
    %p116 = scmp.ne.s32.totalorder %s102, %s103
    %p117 = scmp.eq.s32.totalorder %s17, 1
    %p118 = por %p116, %p117
    %p120 = scmp.ne.s32.totalorder %s103, %s119
    %p121 = scmp.eq.s32.totalorder %s17, 0
    %p122 = por %p120, %p121
    %s123 = ssub.s32 %s11, %s18
    %p124 = scmp.eq.s32.totalorder %s123, 0
    %s126 = sadd.s32 %s125, 1
    %s127 = scalar_select %p124, %s125, %s126
    %p130 = pneg %p124
    %p131 = scmp.eq.s32.totalorder %s11, 1
    %p132 = por %p130, %p131
    %p133 = scmp.ne.s32.totalorder %s125, %s128
    %p134 = scmp.eq.s32.totalorder %s11, 0
    %p135 = por %p133, %p134
    %p136 = scmp.ne.s32.totalorder %s125, %s128
    %p137 = scmp.eq.s32.totalorder %s16, 1
    %p138 = por %p136, %p137
    %p139 = scmp.ne.s32.totalorder %s128, %s129
    %p140 = scmp.eq.s32.totalorder %s16, 0
    %p141 = por %p139, %p140
    %p142 = scmp.ne.s32.totalorder %s128, %s129
    %p143 = scmp.eq.s32.totalorder %s17, 1
    %p144 = por %p142, %p143
    %p146 = scmp.ne.s32.totalorder %s129, %s145
    %p147 = scmp.eq.s32.totalorder %s17, 0
    %p148 = por %p146, %p147
    %s149 = ssub.s32 %s11, %s18
    %p150 = scmp.eq.s32.totalorder %s149, 0
    %s152 = sadd.s32 %s151, 1
    %s153 = scalar_select %p150, %s151, %s152
    %p156 = pneg %p150
    %p157 = scmp.eq.s32.totalorder %s11, 1
    %p158 = por %p156, %p157
    %p159 = scmp.ne.s32.totalorder %s151, %s154
    %p160 = scmp.eq.s32.totalorder %s11, 0
    %p161 = por %p159, %p160
    %p162 = scmp.ne.s32.totalorder %s151, %s154
    %p163 = scmp.eq.s32.totalorder %s16, 1
    %p164 = por %p162, %p163
    %p165 = scmp.ne.s32.totalorder %s154, %s155
    %p166 = scmp.eq.s32.totalorder %s16, 0
    %p167 = por %p165, %p166
    %p168 = scmp.ne.s32.totalorder %s154, %s155
    %p169 = scmp.eq.s32.totalorder %s17, 1
    %p170 = por %p168, %p169
    %p172 = scmp.ne.s32.totalorder %s155, %s171
    %p173 = scmp.eq.s32.totalorder %s17, 0
    %p174 = por %p172, %p173
    %p175 = scmp.le.s32.totalorder 1, %s11
    %p176 = scmp.lt.s32.totalorder %s11, 3
    %p177 = pnand %p175, %p176
    %p178 = pneg %p177
    // Predicated region
    $region9: #{compute_all.32} parent=5 // pred_check
      _
    $region10: #{compute_all.32} parent=5 // pred_check_branch
      %180 = sbr.rel (%p177) target = $region12
    $region11: #{compute_all.32} parent=5 // pred_region
      %s181 = ssub.s32 %s11, 1
    $region12: #{compute_all.32} parent=5 // pred_fallthru
      _
    %p182 = scmp.lt.s32.totalorder %s11, 2
    // Predicated region
    $region13: #{compute_all.32} parent=5 // pred_check
      %p183 = pneg %p182
    $region14: #{compute_all.32} parent=5 // pred_check_branch
      %185 = sbr.rel (%p183) target = $region16
    $region15: #{compute_all.32} parent=5 // pred_region
      // Predicated region
      $region17: #{compute_all.32} parent=15 // pred_check
        %p186 = pneg %p31
      $region18: #{compute_all.32} parent=15 // pred_check_branch
        %188 = sbr.rel (%p186) target = $region20
      $region19: #{compute_all.32} parent=15 // pred_region
        %p189 = scmp.lt.s32.totalorder %s11, 1
        %s190 = scalar_select %p189, %s11, 1
        %s191 = smul.addr %s190, 2
        %s192 = scalar_lea.vmem %s0, %s191
      $region20: #{compute_all.32} parent=15 // pred_fallthru
        _
      // Predicated region
      $region21: #{compute_all.32} parent=15 // pred_check
        %p193 = pneg %p57
      $region22: #{compute_all.32} parent=15 // pred_check_branch
        %195 = sbr.rel (%p193) target = $region24
      $region23: #{compute_all.32} parent=15 // pred_region
        %p196 = scmp.lt.s32.totalorder %s11, 1
        %s197 = scalar_select %p196, %s11, 1
        %s198 = smul.addr %s197, 2
        %s199 = scalar_lea.vmem %s1, %s198
      $region24: #{compute_all.32} parent=15 // pred_fallthru
        _
      // Predicated region
      $region25: #{compute_all.32} parent=15 // pred_check
        %p200 = pneg %p83
      $region26: #{compute_all.32} parent=15 // pred_check_branch
        %202 = sbr.rel (%p200) target = $region28
      $region27: #{compute_all.32} parent=15 // pred_region
        %p203 = scmp.lt.s32.totalorder %s11, 1
        %s204 = scalar_select %p203, %s11, 1
        %s205 = smul.addr %s204, 2
        %s206 = scalar_lea.vmem %s2, %s205
      $region28: #{compute_all.32} parent=15 // pred_fallthru
        _
      // Predicated region
      $region29: #{compute_all.32} parent=15 // pred_check
        %p207 = pneg %p109
      $region30: #{compute_all.32} parent=15 // pred_check_branch
        %209 = sbr.rel (%p207) target = $region32
      $region31: #{compute_all.32} parent=15 // pred_region
        %p210 = scmp.lt.s32.totalorder %s11, 1
        %s211 = scalar_select %p210, %s11, 1
        %s212 = smul.addr %s211, 2
        %s213 = scalar_lea.vmem %s3, %s212
      $region32: #{compute_all.32} parent=15 // pred_fallthru
        _
      // Predicated region
      $region33: #{compute_all.32} parent=15 // pred_check
        %p214 = pneg %p135
      $region34: #{compute_all.32} parent=15 // pred_check_branch
        %216 = sbr.rel (%p214) target = $region36
      $region35: #{compute_all.32} parent=15 // pred_region
        %p217 = scmp.lt.s32.totalorder %s11, 1
        %s218 = scalar_select %p217, %s11, 1
        %s219 = smul.addr %s218, 4
        %s220 = scalar_lea.vmem %s4, %s219
      $region36: #{compute_all.32} parent=15 // pred_fallthru
        _
    $region16: #{compute_all.32} parent=5 // pred_fallthru
      _
    %p221 = scmp.le.s32.totalorder 1, %s11
    %p222 = scmp.lt.s32.totalorder %s11, 3
    %p223 = pnand %p221, %p222
    %p224 = pneg %p223
    // Predicated region
    $region37: #{compute_all.32} parent=5 // pred_check
      _
    $region38: #{compute_all.32} parent=5 // pred_check_branch
      %226 = sbr.rel (%p223) target = $region40
    $region39: #{compute_all.32} parent=5 // pred_region
      %s227 = ssub.s32 %s11, 1
      %p228 = scmp.lt.s32.totalorder %s16, 1
      %s229 = scalar_select %p228, %s16, 1
      %s230 = smul.addr %s229, 2
      %s231 = scalar_lea.vmem %s0, %s230
      %p232 = pneg %p37
      %p233 = pneg %p34
      %p234 = scmp.lt.s32.totalorder %s16, 1
      %s235 = scalar_select %p234, %s16, 1
      %s236 = smul.addr %s235, 2
      %s237 = scalar_lea.vmem %s1, %s236
      %p238 = pneg %p63
      %p239 = pneg %p60
      %p240 = scmp.lt.s32.totalorder %s16, 1
      %s241 = scalar_select %p240, %s16, 1
      %s242 = smul.addr %s241, 2
      %s243 = scalar_lea.vmem %s2, %s242
      %p244 = pneg %p89
      %p245 = pneg %p86
      %p246 = scmp.lt.s32.totalorder %s16, 1
      %s247 = scalar_select %p246, %s16, 1
      %s248 = smul.addr %s247, 2
      %s249 = scalar_lea.vmem %s3, %s248
      %p250 = pneg %p115
      %p251 = pneg %p112
      %p252 = scmp.lt.s32.totalorder %s16, 1
      %s253 = scalar_select %p252, %s16, 1
      %s254 = smul.addr %s253, 4
      %s255 = scalar_lea.vmem %s4, %s254
      %p256 = pneg %p141
      %p257 = pneg %p138
      %p258 = pneg %p167
      %p259 = pneg %p164
      %p260 = scmp.lt.s32.totalorder %s16, 1
      %s261 = scalar_select %p260, %s16, 1
      %s262 = scalar_lea.vmem %s5, %s261
      %p263 = scmp.lt.s32.totalorder %s16, 1
      %s264 = scalar_select %p263, %s16, 1
      %s265 = smul.addr %s264, 2
      %s266 = scalar_lea.vmem %s0, %s265
      %p267 = scmp.lt.s32.totalorder %s16, 1
      %s268 = scalar_select %p267, %s16, 1
      %s269 = smul.addr %s268, 2
      %s270 = scalar_lea.vmem %s1, %s269
      %p271 = scmp.lt.s32.totalorder %s16, 1
      %s272 = scalar_select %p271, %s16, 1
      %s273 = smul.addr %s272, 2
      %s274 = scalar_lea.vmem %s2, %s273
      %p275 = scmp.lt.s32.totalorder %s16, 1
      %s276 = scalar_select %p275, %s16, 1
      %s277 = smul.addr %s276, 2
      %s278 = scalar_lea.vmem %s3, %s277
      %p279 = scmp.lt.s32.totalorder %s16, 1
      %s280 = scalar_select %p279, %s16, 1
      %s281 = smul.addr %s280, 4
      %s282 = scalar_lea.vmem %s4, %s281
      %p283 = scmp.lt.s32.totalorder %s16, 1
      %s284 = scalar_select %p283, %s16, 1
      %s285 = scalar_lea.vmem %s5, %s284
      %v286 = vld [vmem:[%s282] sm:$0xf]
      %v287 = vmul.f32 %v286, 0.125
      %v288 = vmul.f32 %v286, 0.75
      %v290 = vrot.slane %v288, 1
      %v292 = vadd.f32 %v287, %v290
      %v294 = vrot.slane %v287, 2
      %v296 = vadd.f32 %v292, %v294
      %v298 = vrot.slane %v286, 1
      %v300 = vadd.f32 %v286, %v298
      %v301 = vmul.f32 %v300, 0.5
      %v302 = vld [vmem:[%s266] sm:$0x3]
      %v303 = vmul.f32 %v296, 0.125
      %v304 = vmul.f32 %v296, 0.75
      %306 = vrot.lane.b32.xlu0 %v304, 127
      %v307 = vpop.permute.xlu0 %306
      %v309 = vadd.f32 %v303, %v307
      %311 = vrot.lane.b32.xlu0 %v303, 126
      %v312 = vpop.permute.xlu0 %311
      %v314 = vadd.f32 %v309, %v312
      %v315 = vsub.f32 %v302, %v314
      %v316 = vand.u32 2147483647, %v315
      %vm317 = vcmask 9216
      %v318 = vsel %vm317, %v316, 0.0
      %319 = vadd.xlane.f32.xlu0 %v318
      %v320 = vpop.xlane.xlu0 %319
      %v321 = vrot.slane %v320, 4
      %v322 = vadd.f32 %v320, %v321
      %v323 = vrot.slane %v322, 2
      %v324 = vadd.f32 %v322, %v323
      %v325 = vrot.slane %v324, 1
      %v326 = vadd.f32 %v324, %v325
      %s327 = vtos %v326
      %v328 = vstv %s327
      %v329 = vld [vmem:[%s270] sm:$0x3]
      %331 = vrot.lane.b32.xlu0 %v296, 127
      %v332 = vpop.permute.xlu0 %331
      %v334 = vadd.f32 %v296, %v332
      %v335 = vmul.f32 %v334, 0.5
      %337 = vrot.lane.b32.xlu0 %v335, 127
      %v338 = vpop.permute.xlu0 %337
      %v340 = vsub.f32 %v329, %v338
      %v341 = vand.u32 2147483647, %v340
      %v342 = vsel %vm317, %v341, 0.0
      %343 = vadd.xlane.f32.xlu0 %v342
      %v344 = vpop.xlane.xlu0 %343
      %v345 = vrot.slane %v344, 4
      %v346 = vadd.f32 %v344, %v345
      %v347 = vrot.slane %v346, 2
      %v348 = vadd.f32 %v346, %v347
      %v349 = vrot.slane %v348, 1
      %v350 = vadd.f32 %v348, %v349
      %s351 = vtos %v350
      %v352 = vstv %s351
      %v353 = vadd.f32 %v328, %v352
      %v354 = vld [vmem:[%s274] sm:$0x3]
      %v355 = vmul.f32 %v301, 0.125
      %v356 = vmul.f32 %v301, 0.75
      %358 = vrot.lane.b32.xlu0 %v356, 127
      %v359 = vpop.permute.xlu0 %358
      %v361 = vadd.f32 %v355, %v359
      %363 = vrot.lane.b32.xlu0 %v355, 126
      %v364 = vpop.permute.xlu0 %363
      %v366 = vadd.f32 %v361, %v364
      %v368 = vrot.slane %v366, 1
      %v370 = vsub.f32 %v354, %v368
      %v371 = vand.u32 2147483647, %v370
      %v372 = vsel %vm317, %v371, 0.0
      %373 = vadd.xlane.f32.xlu0 %v372
      %v374 = vpop.xlane.xlu0 %373
      %v375 = vrot.slane %v374, 4
      %v376 = vadd.f32 %v374, %v375
      %v377 = vrot.slane %v376, 2
      %v378 = vadd.f32 %v376, %v377
      %v379 = vrot.slane %v378, 1
      %v380 = vadd.f32 %v378, %v379
      %s381 = vtos %v380
      %v382 = vstv %s381
      %v383 = vadd.f32 %v353, %v382
      %v384 = vld [vmem:[%s278] sm:$0x3]
      %386 = vrot.lane.b32.xlu0 %v301, 127
      %v387 = vpop.permute.xlu0 %386
      %v389 = vadd.f32 %v301, %v387
      %v390 = vmul.f32 %v389, 0.5
      %v392 = vrot.slane %v390, 1
      %393 = vrot.lane.b32.xlu0 %v392, 127
      %v394 = vpop.permute.xlu0 %393
      %v396 = vsub.f32 %v384, %v394
      %v397 = vand.u32 2147483647, %v396
      %v398 = vsel %vm317, %v397, 0.0
      %399 = vadd.xlane.f32.xlu0 %v398
      %v400 = vpop.xlane.xlu0 %399
      %v401 = vrot.slane %v400, 4
      %v402 = vadd.f32 %v400, %v401
      %v403 = vrot.slane %v402, 2
      %v404 = vadd.f32 %v402, %v403
      %v405 = vrot.slane %v404, 1
      %v406 = vadd.f32 %v404, %v405
      %s407 = vtos %v406
      %v408 = vstv %s407
      %v409 = vadd.f32 %v383, %v408
      %vm410 = vcmask 0
      %411 = vst.msk [vmem:[%s285] sm:$0x1] %vm410, %v409
      %p412 = scmp.lt.s32.totalorder %s16, 1
      %s413 = scalar_select %p412, %s16, 1
      %s414 = scalar_lea.vmem %s5, %s413
      // Predicated region
      $region41: #{compute_all.32} parent=39 // pred_check
        %p415 = pneg %p164
      $region42: #{compute_all.32} parent=39 // pred_check_branch
        %417 = sbr.rel (%p415) target = $region44
      $region43: #{compute_all.32} parent=39 // pred_region
        _
      $region44: #{compute_all.32} parent=39 // pred_fallthru
        _
    $region40: #{compute_all.32} parent=5 // pred_fallthru
      _
    %p418 = scmp.le.s32.totalorder 2, %s11
    // Predicated region
    $region45: #{compute_all.32} parent=5 // pred_check
      %p419 = pneg %p418
    $region46: #{compute_all.32} parent=5 // pred_check_branch
      %421 = sbr.rel (%p419) target = $region48
    $region47: #{compute_all.32} parent=5 // pred_region
      %s422 = ssub.s32 %s11, 2
      // Predicated region
      $region49: #{compute_all.32} parent=47 // pred_check
        %p423 = pneg %p170
      $region50: #{compute_all.32} parent=47 // pred_check_branch
        %425 = sbr.rel (%p423) target = $region52
      $region51: #{compute_all.32} parent=47 // pred_region
        %p426 = scmp.lt.s32.totalorder %s17, 1
        %s427 = scalar_select %p426, %s17, 1
        %s428 = scalar_lea.vmem %s5, %s427
      $region52: #{compute_all.32} parent=47 // pred_fallthru
        _
    $region48: #{compute_all.32} parent=5 // pred_fallthru
      _
  $region6: #{compute_all.32} parent=0 // loop_footer
    %s15 = sadd.s32 1, %s11
  $region7: #{compute_all.32} parent=0 // loop_footer_branch
    %10 = sbr.rel target = $region3
  $region8: #{compute_all.32} parent=0 // loop_exit
    _

// kernel: sub.11
$region0: #{sub.11}
  #allocation0 [shape = 's32[1]{0}', space=sflag, size = 0x4, scoped, tag = 'scoped memory for sub.11']
  %s0 = inlined_call_operand.vmem [shape: f32[2,32,32], index: 0, kind: input, shape index: {}]
  %s1 = inlined_call_operand.vmem [shape: f32[2,32,32], index: 1, kind: input, shape index: {}]
  %s2 = inlined_call_operand.vmem [shape: f32[2,32,32], index: 2, kind: output, shape index: {}]
  %v3 = vld [vmem:[%s0] sm:$0xff]
  %v4 = vld [vmem:[%s1] sm:$0xff]
  %5 = xla_tuple %v3, %v4
  %6 = xla_tuple %5
  %v7 = vsub.f32 %v3, %v4
  %8 = xla_tuple %v7
  %9 = vst [vmem:[%s2] sm:$0xff] %v7
  %s10 = scalar_lea.vmem %s0, 32
  %v11 = vld [vmem:[%s10] sm:$0xff]
  %s12 = scalar_lea.vmem %s1, 32
  %v13 = vld [vmem:[%s12] sm:$0xff]
  %14 = xla_tuple %v11, %v13
  %15 = xla_tuple %14
  %v16 = vsub.f32 %v11, %v13
  %17 = xla_tuple %v16
  %s18 = scalar_lea.vmem %s2, 32
  %19 = vst [vmem:[%s18] sm:$0xff] %v16
  %s20 = scalar_lea.vmem %s0, 8
  %v21 = vld [vmem:[%s20] sm:$0xff]
  %s22 = scalar_lea.vmem %s1, 8
  %v23 = vld [vmem:[%s22] sm:$0xff]
  %24 = xla_tuple %v21, %v23
  %25 = xla_tuple %24
  %v26 = vsub.f32 %v21, %v23
  %27 = xla_tuple %v26
  %s28 = scalar_lea.vmem %s2, 8
  %29 = vst [vmem:[%s28] sm:$0xff] %v26
  %s30 = scalar_lea.vmem %s0, 40
  %v31 = vld [vmem:[%s30] sm:$0xff]
  %s32 = scalar_lea.vmem %s1, 40
  %v33 = vld [vmem:[%s32] sm:$0xff]
  %34 = xla_tuple %v31, %v33
  %35 = xla_tuple %34
  %v36 = vsub.f32 %v31, %v33
  %37 = xla_tuple %v36
  %s38 = scalar_lea.vmem %s2, 40
  %39 = vst [vmem:[%s38] sm:$0xff] %v36
  %s40 = scalar_lea.vmem %s0, 16
  %v41 = vld [vmem:[%s40] sm:$0xff]
  %s42 = scalar_lea.vmem %s1, 16
  %v43 = vld [vmem:[%s42] sm:$0xff]
  %44 = xla_tuple %v41, %v43
  %45 = xla_tuple %44
  %v46 = vsub.f32 %v41, %v43
  %47 = xla_tuple %v46
  %s48 = scalar_lea.vmem %s2, 16
  %49 = vst [vmem:[%s48] sm:$0xff] %v46
  %s50 = scalar_lea.vmem %s0, 48
  %v51 = vld [vmem:[%s50] sm:$0xff]
  %s52 = scalar_lea.vmem %s1, 48
  %v53 = vld [vmem:[%s52] sm:$0xff]
  %54 = xla_tuple %v51, %v53
  %55 = xla_tuple %54
  %v56 = vsub.f32 %v51, %v53
  %57 = xla_tuple %v56
  %s58 = scalar_lea.vmem %s2, 48
  %59 = vst [vmem:[%s58] sm:$0xff] %v56
  %s60 = scalar_lea.vmem %s0, 24
  %v61 = vld [vmem:[%s60] sm:$0xff]
  %s62 = scalar_lea.vmem %s1, 24
  %v63 = vld [vmem:[%s62] sm:$0xff]
  %64 = xla_tuple %v61, %v63
  %65 = xla_tuple %64
  %v66 = vsub.f32 %v61, %v63
  %67 = xla_tuple %v66
  %s68 = scalar_lea.vmem %s2, 24
  %69 = vst [vmem:[%s68] sm:$0xff] %v66
  %s70 = scalar_lea.vmem %s0, 56
  %v71 = vld [vmem:[%s70] sm:$0xff]
  %s72 = scalar_lea.vmem %s1, 56
  %v73 = vld [vmem:[%s72] sm:$0xff]
  %74 = xla_tuple %v71, %v73
  %75 = xla_tuple %74
  %v76 = vsub.f32 %v71, %v73
  %77 = xla_tuple %v76
  %s78 = scalar_lea.vmem %s2, 56
  %79 = vst [vmem:[%s78] sm:$0xff] %v76

// kernel: compute_all.26
$region0: #{compute_all.26}
  #allocation0 [shape = 'u32[]', space=smem, size = 0x4, offset = 0x4, fixed_abs, tag = 'smem constant byte address 0x4 - core index']
  #allocation1 [shape = 'u32[144,128]{1,0:T(1,128)}', space=vmem, size = 0x12000, scoped, tag = 'internal scratch']
  %s0 = inlined_call_operand.vmem [shape: f32[2,8,8], index: 0, kind: input, shape index: {}]
  %s1 = inlined_call_operand.vmem [shape: f32[2,8,8], index: 1, kind: input, shape index: {}]
  %s2 = inlined_call_operand.vmem [shape: f32[2,8,8], index: 2, kind: input, shape index: {}]
  %s3 = inlined_call_operand.vmem [shape: f32[2,8,8], index: 3, kind: input, shape index: {}]
  %s4 = inlined_call_operand.vmem [shape: f32[2,10,10], index: 4, kind: input, shape index: {}]
  %s5 = inlined_call_operand.vmem [shape: f32[2,1,1], index: 5, kind: output, shape index: {}]
  %s6 = sld [smem:[#allocation0]]
  $region53: #{compute_all.26} parent=0
    _
  %s8 = ssub.s32 1, %s6
  %s9 = scalar_select 0, %s8, %s6
  loop: start=0, step=1, limit=4
  $region2: #{compute_all.26} parent=0 // loop_pre_header
    _
  $region3: #{compute_all.26} parent=0 // loop_header
    %s11 = sphi 0, %s15
    %p12 = scmp.ge.s32.totalorder %s11, 4
    %s21 = sphi 0, %s23
    %s24 = sphi 0, %s21
    %s25 = sphi 0, %s24
    %s41 = sphi 0, %s25
    %s47 = sphi 0, %s49
    %s50 = sphi 0, %s47
    %s51 = sphi 0, %s50
    %s67 = sphi 0, %s51
    %s73 = sphi 0, %s75
    %s76 = sphi 0, %s73
    %s77 = sphi 0, %s76
    %s93 = sphi 0, %s77
    %s99 = sphi 0, %s101
    %s102 = sphi 0, %s99
    %s103 = sphi 0, %s102
    %s119 = sphi 0, %s103
    %s125 = sphi 0, %s127
    %s128 = sphi 0, %s125
    %s129 = sphi 0, %s128
    %s145 = sphi 0, %s129
    %s151 = sphi 0, %s153
    %s154 = sphi 0, %s151
    %s155 = sphi 0, %s154
    %s171 = sphi 0, %s155
  $region4: #{compute_all.26} parent=0 // loop_header_branch
    %14 = sbr.rel (%p12) target = $region8
  $region5: #{compute_all.26} parent=0 // loop_body
    %s16 = ssub.s32 %s11, 1
    %s17 = ssub.s32 %s11, 2
    %s18 = sadd.s32 %s11, 1
    %s19 = ssub.s32 %s11, %s18
    %p20 = scmp.eq.s32.totalorder %s19, 0
    %s22 = sadd.s32 %s21, 1
    %s23 = scalar_select %p20, %s21, %s22
    %p26 = pneg %p20
    %p27 = scmp.eq.s32.totalorder %s11, 1
    %p28 = por %p26, %p27
    %p29 = scmp.ne.s32.totalorder %s21, %s24
    %p30 = scmp.eq.s32.totalorder %s11, 0
    %p31 = por %p29, %p30
    %p32 = scmp.ne.s32.totalorder %s21, %s24
    %p33 = scmp.eq.s32.totalorder %s16, 1
    %p34 = por %p32, %p33
    %p35 = scmp.ne.s32.totalorder %s24, %s25
    %p36 = scmp.eq.s32.totalorder %s16, 0
    %p37 = por %p35, %p36
    %p38 = scmp.ne.s32.totalorder %s24, %s25
    %p39 = scmp.eq.s32.totalorder %s17, 1
    %p40 = por %p38, %p39
    %p42 = scmp.ne.s32.totalorder %s25, %s41
    %p43 = scmp.eq.s32.totalorder %s17, 0
    %p44 = por %p42, %p43
    %s45 = ssub.s32 %s11, %s18
    %p46 = scmp.eq.s32.totalorder %s45, 0
    %s48 = sadd.s32 %s47, 1
    %s49 = scalar_select %p46, %s47, %s48
    %p52 = pneg %p46
    %p53 = scmp.eq.s32.totalorder %s11, 1
    %p54 = por %p52, %p53
    %p55 = scmp.ne.s32.totalorder %s47, %s50
    %p56 = scmp.eq.s32.totalorder %s11, 0
    %p57 = por %p55, %p56
    %p58 = scmp.ne.s32.totalorder %s47, %s50
    %p59 = scmp.eq.s32.totalorder %s16, 1
    %p60 = por %p58, %p59
    %p61 = scmp.ne.s32.totalorder %s50, %s51
    %p62 = scmp.eq.s32.totalorder %s16, 0
    %p63 = por %p61, %p62
    %p64 = scmp.ne.s32.totalorder %s50, %s51
    %p65 = scmp.eq.s32.totalorder %s17, 1
    %p66 = por %p64, %p65
    %p68 = scmp.ne.s32.totalorder %s51, %s67
    %p69 = scmp.eq.s32.totalorder %s17, 0
    %p70 = por %p68, %p69
    %s71 = ssub.s32 %s11, %s18
    %p72 = scmp.eq.s32.totalorder %s71, 0
    %s74 = sadd.s32 %s73, 1
    %s75 = scalar_select %p72, %s73, %s74
    %p78 = pneg %p72
    %p79 = scmp.eq.s32.totalorder %s11, 1
    %p80 = por %p78, %p79
    %p81 = scmp.ne.s32.totalorder %s73, %s76
    %p82 = scmp.eq.s32.totalorder %s11, 0
    %p83 = por %p81, %p82
    %p84 = scmp.ne.s32.totalorder %s73, %s76
    %p85 = scmp.eq.s32.totalorder %s16, 1
    %p86 = por %p84, %p85
    %p87 = scmp.ne.s32.totalorder %s76, %s77
    %p88 = scmp.eq.s32.totalorder %s16, 0
    %p89 = por %p87, %p88
    %p90 = scmp.ne.s32.totalorder %s76, %s77
    %p91 = scmp.eq.s32.totalorder %s17, 1
    %p92 = por %p90, %p91
    %p94 = scmp.ne.s32.totalorder %s77, %s93
    %p95 = scmp.eq.s32.totalorder %s17, 0
    %p96 = por %p94, %p95
    %s97 = ssub.s32 %s11, %s18
    %p98 = scmp.eq.s32.totalorder %s97, 0
    %s100 = sadd.s32 %s99, 1
    %s101 = scalar_select %p98, %s99, %s100
    %p104 = pneg %p98
    %p105 = scmp.eq.s32.totalorder %s11, 1
    %p106 = por %p104, %p105
    %p107 = scmp.ne.s32.totalorder %s99, %s102
    %p108 = scmp.eq.s32.totalorder %s11, 0
    %p109 = por %p107, %p108
    %p110 = scmp.ne.s32.totalorder %s99, %s102
    %p111 = scmp.eq.s32.totalorder %s16, 1
    %p112 = por %p110, %p111
    %p113 = scmp.ne.s32.totalorder %s102, %s103
    %p114 = scmp.eq.s32.totalorder %s16, 0
    %p115 = por %p113, %p114
    %p116 = scmp.ne.s32.totalorder %s102, %s103
    %p117 = scmp.eq.s32.totalorder %s17, 1
    %p118 = por %p116, %p117
    %p120 = scmp.ne.s32.totalorder %s103, %s119
    %p121 = scmp.eq.s32.totalorder %s17, 0
    %p122 = por %p120, %p121
    %s123 = ssub.s32 %s11, %s18
    %p124 = scmp.eq.s32.totalorder %s123, 0
    %s126 = sadd.s32 %s125, 1
    %s127 = scalar_select %p124, %s125, %s126
    %p130 = pneg %p124
    %p131 = scmp.eq.s32.totalorder %s11, 1
    %p132 = por %p130, %p131
    %p133 = scmp.ne.s32.totalorder %s125, %s128
    %p134 = scmp.eq.s32.totalorder %s11, 0
    %p135 = por %p133, %p134
    %p136 = scmp.ne.s32.totalorder %s125, %s128
    %p137 = scmp.eq.s32.totalorder %s16, 1
    %p138 = por %p136, %p137
    %p139 = scmp.ne.s32.totalorder %s128, %s129
    %p140 = scmp.eq.s32.totalorder %s16, 0
    %p141 = por %p139, %p140
    %p142 = scmp.ne.s32.totalorder %s128, %s129
    %p143 = scmp.eq.s32.totalorder %s17, 1
    %p144 = por %p142, %p143
    %p146 = scmp.ne.s32.totalorder %s129, %s145
    %p147 = scmp.eq.s32.totalorder %s17, 0
    %p148 = por %p146, %p147
    %s149 = ssub.s32 %s11, %s18
    %p150 = scmp.eq.s32.totalorder %s149, 0
    %s152 = sadd.s32 %s151, 1
    %s153 = scalar_select %p150, %s151, %s152
    %p156 = pneg %p150
    %p157 = scmp.eq.s32.totalorder %s11, 1
    %p158 = por %p156, %p157
    %p159 = scmp.ne.s32.totalorder %s151, %s154
    %p160 = scmp.eq.s32.totalorder %s11, 0
    %p161 = por %p159, %p160
    %p162 = scmp.ne.s32.totalorder %s151, %s154
    %p163 = scmp.eq.s32.totalorder %s16, 1
    %p164 = por %p162, %p163
    %p165 = scmp.ne.s32.totalorder %s154, %s155
    %p166 = scmp.eq.s32.totalorder %s16, 0
    %p167 = por %p165, %p166
    %p168 = scmp.ne.s32.totalorder %s154, %s155
    %p169 = scmp.eq.s32.totalorder %s17, 1
    %p170 = por %p168, %p169
    %p172 = scmp.ne.s32.totalorder %s155, %s171
    %p173 = scmp.eq.s32.totalorder %s17, 0
    %p174 = por %p172, %p173
    %p175 = scmp.le.s32.totalorder 1, %s11
    %p176 = scmp.lt.s32.totalorder %s11, 3
    %p177 = pnand %p175, %p176
    %p178 = pneg %p177
    // Predicated region
    $region9: #{compute_all.26} parent=5 // pred_check
      _
    $region10: #{compute_all.26} parent=5 // pred_check_branch
      %180 = sbr.rel (%p177) target = $region12
    $region11: #{compute_all.26} parent=5 // pred_region
      %s181 = ssub.s32 %s11, 1
    $region12: #{compute_all.26} parent=5 // pred_fallthru
      _
    %p182 = scmp.lt.s32.totalorder %s11, 2
    // Predicated region
    $region13: #{compute_all.26} parent=5 // pred_check
      %p183 = pneg %p182
    $region14: #{compute_all.26} parent=5 // pred_check_branch
      %185 = sbr.rel (%p183) target = $region16
    $region15: #{compute_all.26} parent=5 // pred_region
      // Predicated region
      $region17: #{compute_all.26} parent=15 // pred_check
        %p186 = pneg %p31
      $region18: #{compute_all.26} parent=15 // pred_check_branch
        %188 = sbr.rel (%p186) target = $region20
      $region19: #{compute_all.26} parent=15 // pred_region
        %p189 = scmp.lt.s32.totalorder %s11, 1
        %s190 = scalar_select %p189, %s11, 1
        %s191 = smul.addr %s190, 8
        %s192 = scalar_lea.vmem %s0, %s191
      $region20: #{compute_all.26} parent=15 // pred_fallthru
        _
      // Predicated region
      $region21: #{compute_all.26} parent=15 // pred_check
        %p193 = pneg %p57
      $region22: #{compute_all.26} parent=15 // pred_check_branch
        %195 = sbr.rel (%p193) target = $region24
      $region23: #{compute_all.26} parent=15 // pred_region
        %p196 = scmp.lt.s32.totalorder %s11, 1
        %s197 = scalar_select %p196, %s11, 1
        %s198 = smul.addr %s197, 8
        %s199 = scalar_lea.vmem %s1, %s198
      $region24: #{compute_all.26} parent=15 // pred_fallthru
        _
      // Predicated region
      $region25: #{compute_all.26} parent=15 // pred_check
        %p200 = pneg %p83
      $region26: #{compute_all.26} parent=15 // pred_check_branch
        %202 = sbr.rel (%p200) target = $region28
      $region27: #{compute_all.26} parent=15 // pred_region
        %p203 = scmp.lt.s32.totalorder %s11, 1
        %s204 = scalar_select %p203, %s11, 1
        %s205 = smul.addr %s204, 8
        %s206 = scalar_lea.vmem %s2, %s205
      $region28: #{compute_all.26} parent=15 // pred_fallthru
        _
      // Predicated region
      $region29: #{compute_all.26} parent=15 // pred_check
        %p207 = pneg %p109
      $region30: #{compute_all.26} parent=15 // pred_check_branch
        %209 = sbr.rel (%p207) target = $region32
      $region31: #{compute_all.26} parent=15 // pred_region
        %p210 = scmp.lt.s32.totalorder %s11, 1
        %s211 = scalar_select %p210, %s11, 1
        %s212 = smul.addr %s211, 8
        %s213 = scalar_lea.vmem %s3, %s212
      $region32: #{compute_all.26} parent=15 // pred_fallthru
        _
      // Predicated region
      $region33: #{compute_all.26} parent=15 // pred_check
        %p214 = pneg %p135
      $region34: #{compute_all.26} parent=15 // pred_check_branch
        %216 = sbr.rel (%p214) target = $region36
      $region35: #{compute_all.26} parent=15 // pred_region
        %p217 = scmp.lt.s32.totalorder %s11, 1
        %s218 = scalar_select %p217, %s11, 1
        %s219 = smul.addr %s218, 2
        %s220 = smul.addr %s219, 8
        %s221 = scalar_lea.vmem %s4, %s220
      $region36: #{compute_all.26} parent=15 // pred_fallthru
        _
    $region16: #{compute_all.26} parent=5 // pred_fallthru
      _
    %p222 = scmp.le.s32.totalorder 1, %s11
    %p223 = scmp.lt.s32.totalorder %s11, 3
    %p224 = pnand %p222, %p223
    %p225 = pneg %p224
    // Predicated region
    $region37: #{compute_all.26} parent=5 // pred_check
      _
    $region38: #{compute_all.26} parent=5 // pred_check_branch
      %227 = sbr.rel (%p224) target = $region40
    $region39: #{compute_all.26} parent=5 // pred_region
      %s228 = ssub.s32 %s11, 1
      %p229 = scmp.lt.s32.totalorder %s16, 1
      %s230 = scalar_select %p229, %s16, 1
      %s231 = smul.addr %s230, 8
      %s232 = scalar_lea.vmem %s0, %s231
      %p233 = pneg %p37
      %p234 = pneg %p34
      %p235 = scmp.lt.s32.totalorder %s16, 1
      %s236 = scalar_select %p235, %s16, 1
      %s237 = smul.addr %s236, 8
      %s238 = scalar_lea.vmem %s1, %s237
      %p239 = pneg %p63
      %p240 = pneg %p60
      %p241 = scmp.lt.s32.totalorder %s16, 1
      %s242 = scalar_select %p241, %s16, 1
      %s243 = smul.addr %s242, 8
      %s244 = scalar_lea.vmem %s2, %s243
      %p245 = pneg %p89
      %p246 = pneg %p86
      %p247 = scmp.lt.s32.totalorder %s16, 1
      %s248 = scalar_select %p247, %s16, 1
      %s249 = smul.addr %s248, 8
      %s250 = scalar_lea.vmem %s3, %s249
      %p251 = pneg %p115
      %p252 = pneg %p112
      %p253 = scmp.lt.s32.totalorder %s16, 1
      %s254 = scalar_select %p253, %s16, 1
      %s255 = smul.addr %s254, 2
      %s256 = smul.addr %s255, 8
      %s257 = scalar_lea.vmem %s4, %s256
      %p258 = pneg %p141
      %p259 = pneg %p138
      %p260 = pneg %p167
      %p261 = pneg %p164
      %p262 = scmp.lt.s32.totalorder %s16, 1
      %s263 = scalar_select %p262, %s16, 1
      %s264 = scalar_lea.vmem %s5, %s263
      %p265 = scmp.lt.s32.totalorder %s16, 1
      %s266 = scalar_select %p265, %s16, 1
      %s267 = smul.addr %s266, 8
      %s268 = scalar_lea.vmem %s0, %s267
      %p269 = scmp.lt.s32.totalorder %s16, 1
      %s270 = scalar_select %p269, %s16, 1
      %s271 = smul.addr %s270, 8
      %s272 = scalar_lea.vmem %s1, %s271
      %p273 = scmp.lt.s32.totalorder %s16, 1
      %s274 = scalar_select %p273, %s16, 1
      %s275 = smul.addr %s274, 8
      %s276 = scalar_lea.vmem %s2, %s275
      %p277 = scmp.lt.s32.totalorder %s16, 1
      %s278 = scalar_select %p277, %s16, 1
      %s279 = smul.addr %s278, 8
      %s280 = scalar_lea.vmem %s3, %s279
      %p281 = scmp.lt.s32.totalorder %s16, 1
      %s282 = scalar_select %p281, %s16, 1
      %s283 = smul.addr %s282, 2
      %s284 = smul.addr %s283, 8
      %s285 = scalar_lea.vmem %s4, %s284
      %p286 = scmp.lt.s32.totalorder %s16, 1
      %s287 = scalar_select %p286, %s16, 1
      %s288 = scalar_lea.vmem %s5, %s287
      %v289 = vld [vmem:[%s285] sm:$0xff]
      %v290 = vld [vmem:[%s285 + $0x8] sm:$0x3]
      %v291 = vmul.f32 %v289, 0.125
      %v292 = vmul.f32 %v289, 0.75
      %v293 = vmul.f32 %v290, 0.75
      %vm296 = vcmask 1046528
      %v297 = vrot.slane %v292, 1
      %v298 = vrot.slane %v293, 1
      %v299 = vsel %vm296, %v297, %v298
      %v301 = vadd.f32 %v291, %v299
      %v302 = vmul.f32 %v290, 0.125
      %vm305 = vcmask 1045504
      %v306 = vrot.slane %v291, 2
      %v307 = vrot.slane %v302, 2
      %v308 = vsel %vm305, %v306, %v307
      %v310 = vadd.f32 %v301, %v308
      %v313 = vrot.slane %v289, 1
      %v314 = vrot.slane %v290, 1
      %v315 = vsel %vm296, %v313, %v314
      %v318 = vadd.f32 %v289, %v315
      %v319 = vadd.f32 %v290, %v314
      %v320 = vmul.f32 %v318, 0.5
      %v321 = vmul.f32 %v319, 0.5
      %v322 = vld [vmem:[%s268] sm:$0xff]
      %v323 = vmul.f32 %v310, 0.125
      %v324 = vmul.f32 %v310, 0.75
      %326 = vrot.lane.b32.xlu0 %v324, 127
      %v327 = vpop.permute.xlu0 %326
      %v329 = vadd.f32 %v323, %v327
      %331 = vrot.lane.b32.xlu0 %v323, 126
      %v332 = vpop.permute.xlu0 %331
      %v334 = vadd.f32 %v329, %v332
      %v335 = vsub.f32 %v322, %v334
      %v336 = vand.u32 2147483647, %v335
      %vm337 = vcmask 64512
      %v338 = vsel %vm337, %v336, 0.0
      %339 = vadd.xlane.f32.xlu0 %v338
      %v340 = vpop.xlane.xlu0 %339
      %v341 = vrot.slane %v340, 4
      %v342 = vadd.f32 %v340, %v341
      %v343 = vrot.slane %v342, 2
      %v344 = vadd.f32 %v342, %v343
      %v345 = vrot.slane %v344, 1
      %v346 = vadd.f32 %v344, %v345
      %s347 = vtos %v346
      %v348 = vstv %s347
      %v349 = vld [vmem:[%s272] sm:$0xff]
      %351 = vrot.lane.b32.xlu0 %v310, 127
      %v352 = vpop.permute.xlu0 %351
      %v354 = vadd.f32 %v310, %v352
      %v355 = vmul.f32 %v354, 0.5
      %357 = vrot.lane.b32.xlu0 %v355, 127
      %v358 = vpop.permute.xlu0 %357
      %v360 = vsub.f32 %v349, %v358
      %v361 = vand.u32 2147483647, %v360
      %v362 = vsel %vm337, %v361, 0.0
      %363 = vadd.xlane.f32.xlu0 %v362
      %v364 = vpop.xlane.xlu0 %363
      %v365 = vrot.slane %v364, 4
      %v366 = vadd.f32 %v364, %v365
      %v367 = vrot.slane %v366, 2
      %v368 = vadd.f32 %v366, %v367
      %v369 = vrot.slane %v368, 1
      %v370 = vadd.f32 %v368, %v369
      %s371 = vtos %v370
      %v372 = vstv %s371
      %v373 = vadd.f32 %v348, %v372
      %v374 = vld [vmem:[%s276] sm:$0xff]
      %v375 = vmul.f32 %v320, 0.125
      %v376 = vmul.f32 %v321, 0.125
      %v377 = vmul.f32 %v320, 0.75
      %v378 = vmul.f32 %v321, 0.75
      %381 = vrot.lane.b32.xlu0 %v377, 127
      %v382 = vpop.permute.xlu0 %381
      %383 = vrot.lane.b32.xlu0 %v378, 127
      %v384 = vpop.permute.xlu0 %383
      %v387 = vadd.f32 %v375, %v382
      %v388 = vadd.f32 %v376, %v384
      %391 = vrot.lane.b32.xlu0 %v375, 126
      %v392 = vpop.permute.xlu0 %391
      %393 = vrot.lane.b32.xlu0 %v376, 126
      %v394 = vpop.permute.xlu0 %393
      %v397 = vadd.f32 %v387, %v392
      %v398 = vadd.f32 %v388, %v394
      %v401 = vrot.slane %v397, 1
      %v402 = vrot.slane %v398, 1
      %v403 = vsel %vm296, %v401, %v402
      %v405 = vsub.f32 %v374, %v403
      %v406 = vand.u32 2147483647, %v405
      %v407 = vsel %vm337, %v406, 0.0
      %408 = vadd.xlane.f32.xlu0 %v407
      %v409 = vpop.xlane.xlu0 %408
      %v410 = vrot.slane %v409, 4
      %v411 = vadd.f32 %v409, %v410
      %v412 = vrot.slane %v411, 2
      %v413 = vadd.f32 %v411, %v412
      %v414 = vrot.slane %v413, 1
      %v415 = vadd.f32 %v413, %v414
      %s416 = vtos %v415
      %v417 = vstv %s416
      %v418 = vadd.f32 %v373, %v417
      %v419 = vld [vmem:[%s280] sm:$0xff]
      %422 = vrot.lane.b32.xlu0 %v320, 127
      %v423 = vpop.permute.xlu0 %422
      %424 = vrot.lane.b32.xlu0 %v321, 127
      %v425 = vpop.permute.xlu0 %424
      %v428 = vadd.f32 %v320, %v423
      %v429 = vadd.f32 %v321, %v425
      %v430 = vmul.f32 %v428, 0.5
      %v431 = vmul.f32 %v429, 0.5
      %v434 = vrot.slane %v430, 1
      %v435 = vrot.slane %v431, 1
      %v436 = vsel %vm296, %v434, %v435
      %437 = vrot.lane.b32.xlu0 %v436, 127
      %v438 = vpop.permute.xlu0 %437
      %v440 = vsub.f32 %v419, %v438
      %v441 = vand.u32 2147483647, %v440
      %v442 = vsel %vm337, %v441, 0.0
      %443 = vadd.xlane.f32.xlu0 %v442
      %v444 = vpop.xlane.xlu0 %443
      %v445 = vrot.slane %v444, 4
      %v446 = vadd.f32 %v444, %v445
      %v447 = vrot.slane %v446, 2
      %v448 = vadd.f32 %v446, %v447
      %v449 = vrot.slane %v448, 1
      %v450 = vadd.f32 %v448, %v449
      %s451 = vtos %v450
      %v452 = vstv %s451
      %v453 = vadd.f32 %v418, %v452
      %vm454 = vcmask 0
      %455 = vst.msk [vmem:[%s288] sm:$0x1] %vm454, %v453
      %p456 = scmp.lt.s32.totalorder %s16, 1
      %s457 = scalar_select %p456, %s16, 1
      %s458 = scalar_lea.vmem %s5, %s457
      // Predicated region
      $region41: #{compute_all.26} parent=39 // pred_check
        %p459 = pneg %p164
      $region42: #{compute_all.26} parent=39 // pred_check_branch
        %461 = sbr.rel (%p459) target = $region44
      $region43: #{compute_all.26} parent=39 // pred_region
        _
      $region44: #{compute_all.26} parent=39 // pred_fallthru
        _
    $region40: #{compute_all.26} parent=5 // pred_fallthru
      _
    %p462 = scmp.le.s32.totalorder 2, %s11
    // Predicated region
    $region45: #{compute_all.26} parent=5 // pred_check
      %p463 = pneg %p462
    $region46: #{compute_all.26} parent=5 // pred_check_branch
      %465 = sbr.rel (%p463) target = $region48
    $region47: #{compute_all.26} parent=5 // pred_region
      %s466 = ssub.s32 %s11, 2
      // Predicated region
      $region49: #{compute_all.26} parent=47 // pred_check
        %p467 = pneg %p170
      $region50: #{compute_all.26} parent=47 // pred_check_branch
        %469 = sbr.rel (%p467) target = $region52
      $region51: #{compute_all.26} parent=47 // pred_region
        %p470 = scmp.lt.s32.totalorder %s17, 1
        %s471 = scalar_select %p470, %s17, 1
        %s472 = scalar_lea.vmem %s5, %s471
      $region52: #{compute_all.26} parent=47 // pred_fallthru
        _
    $region48: #{compute_all.26} parent=5 // pred_fallthru
      _
  $region6: #{compute_all.26} parent=0 // loop_footer
    %s15 = sadd.s32 1, %s11
  $region7: #{compute_all.26} parent=0 // loop_footer_branch
    %10 = sbr.rel target = $region3
  $region8: #{compute_all.26} parent=0 // loop_exit
    _

// kernel: compute_all.23
$region0: #{compute_all.23}
  #allocation0 [shape = 'u32[]', space=smem, size = 0x4, offset = 0x4, fixed_abs, tag = 'smem constant byte address 0x4 - core index']
  #allocation1 [shape = 'u32[144,128]{1,0:T(1,128)}', space=vmem, size = 0x12000, scoped, tag = 'internal scratch']
  %s0 = inlined_call_operand.vmem [shape: f32[2,16,16], index: 0, kind: input, shape index: {}]
  %s1 = inlined_call_operand.vmem [shape: f32[2,16,16], index: 1, kind: input, shape index: {}]
  %s2 = inlined_call_operand.vmem [shape: f32[2,16,16], index: 2, kind: input, shape index: {}]
  %s3 = inlined_call_operand.vmem [shape: f32[2,16,16], index: 3, kind: input, shape index: {}]
  %s4 = inlined_call_operand.vmem [shape: f32[2,18,18], index: 4, kind: input, shape index: {}]
  %s5 = inlined_call_operand.vmem [shape: f32[2,1,1], index: 5, kind: output, shape index: {}]
  %s6 = sld [smem:[#allocation0]]
  $region53: #{compute_all.23} parent=0
    _
  %s8 = ssub.s32 1, %s6
  %s9 = scalar_select 0, %s8, %s6
  loop: start=0, step=1, limit=4
  $region2: #{compute_all.23} parent=0 // loop_pre_header
    _
  $region3: #{compute_all.23} parent=0 // loop_header
    %s11 = sphi 0, %s15
    %p12 = scmp.ge.s32.totalorder %s11, 4
    %s21 = sphi 0, %s23
    %s24 = sphi 0, %s21
    %s25 = sphi 0, %s24
    %s41 = sphi 0, %s25
    %s47 = sphi 0, %s49
    %s50 = sphi 0, %s47
    %s51 = sphi 0, %s50
    %s67 = sphi 0, %s51
    %s73 = sphi 0, %s75
    %s76 = sphi 0, %s73
    %s77 = sphi 0, %s76
    %s93 = sphi 0, %s77
    %s99 = sphi 0, %s101
    %s102 = sphi 0, %s99
    %s103 = sphi 0, %s102
    %s119 = sphi 0, %s103
    %s125 = sphi 0, %s127
    %s128 = sphi 0, %s125
    %s129 = sphi 0, %s128
    %s145 = sphi 0, %s129
    %s151 = sphi 0, %s153
    %s154 = sphi 0, %s151
    %s155 = sphi 0, %s154
    %s171 = sphi 0, %s155
  $region4: #{compute_all.23} parent=0 // loop_header_branch
    %14 = sbr.rel (%p12) target = $region8
  $region5: #{compute_all.23} parent=0 // loop_body
    %s16 = ssub.s32 %s11, 1
    %s17 = ssub.s32 %s11, 2
    %s18 = sadd.s32 %s11, 1
    %s19 = ssub.s32 %s11, %s18
    %p20 = scmp.eq.s32.totalorder %s19, 0
    %s22 = sadd.s32 %s21, 1
    %s23 = scalar_select %p20, %s21, %s22
    %p26 = pneg %p20
    %p27 = scmp.eq.s32.totalorder %s11, 1
    %p28 = por %p26, %p27
    %p29 = scmp.ne.s32.totalorder %s21, %s24
    %p30 = scmp.eq.s32.totalorder %s11, 0
    %p31 = por %p29, %p30
    %p32 = scmp.ne.s32.totalorder %s21, %s24
    %p33 = scmp.eq.s32.totalorder %s16, 1
    %p34 = por %p32, %p33
    %p35 = scmp.ne.s32.totalorder %s24, %s25
    %p36 = scmp.eq.s32.totalorder %s16, 0
    %p37 = por %p35, %p36
    %p38 = scmp.ne.s32.totalorder %s24, %s25
    %p39 = scmp.eq.s32.totalorder %s17, 1
    %p40 = por %p38, %p39
    %p42 = scmp.ne.s32.totalorder %s25, %s41
    %p43 = scmp.eq.s32.totalorder %s17, 0
    %p44 = por %p42, %p43
    %s45 = ssub.s32 %s11, %s18
    %p46 = scmp.eq.s32.totalorder %s45, 0
    %s48 = sadd.s32 %s47, 1
    %s49 = scalar_select %p46, %s47, %s48
    %p52 = pneg %p46
    %p53 = scmp.eq.s32.totalorder %s11, 1
    %p54 = por %p52, %p53
    %p55 = scmp.ne.s32.totalorder %s47, %s50
    %p56 = scmp.eq.s32.totalorder %s11, 0
    %p57 = por %p55, %p56
    %p58 = scmp.ne.s32.totalorder %s47, %s50
    %p59 = scmp.eq.s32.totalorder %s16, 1
    %p60 = por %p58, %p59
    %p61 = scmp.ne.s32.totalorder %s50, %s51
    %p62 = scmp.eq.s32.totalorder %s16, 0
    %p63 = por %p61, %p62
    %p64 = scmp.ne.s32.totalorder %s50, %s51
    %p65 = scmp.eq.s32.totalorder %s17, 1
    %p66 = por %p64, %p65
    %p68 = scmp.ne.s32.totalorder %s51, %s67
    %p69 = scmp.eq.s32.totalorder %s17, 0
    %p70 = por %p68, %p69
    %s71 = ssub.s32 %s11, %s18
    %p72 = scmp.eq.s32.totalorder %s71, 0
    %s74 = sadd.s32 %s73, 1
    %s75 = scalar_select %p72, %s73, %s74
    %p78 = pneg %p72
    %p79 = scmp.eq.s32.totalorder %s11, 1
    %p80 = por %p78, %p79
    %p81 = scmp.ne.s32.totalorder %s73, %s76
    %p82 = scmp.eq.s32.totalorder %s11, 0
    %p83 = por %p81, %p82
    %p84 = scmp.ne.s32.totalorder %s73, %s76
    %p85 = scmp.eq.s32.totalorder %s16, 1
    %p86 = por %p84, %p85
    %p87 = scmp.ne.s32.totalorder %s76, %s77
    %p88 = scmp.eq.s32.totalorder %s16, 0
    %p89 = por %p87, %p88
    %p90 = scmp.ne.s32.totalorder %s76, %s77
    %p91 = scmp.eq.s32.totalorder %s17, 1
    %p92 = por %p90, %p91
    %p94 = scmp.ne.s32.totalorder %s77, %s93
    %p95 = scmp.eq.s32.totalorder %s17, 0
    %p96 = por %p94, %p95
    %s97 = ssub.s32 %s11, %s18
    %p98 = scmp.eq.s32.totalorder %s97, 0
    %s100 = sadd.s32 %s99, 1
    %s101 = scalar_select %p98, %s99, %s100
    %p104 = pneg %p98
    %p105 = scmp.eq.s32.totalorder %s11, 1
    %p106 = por %p104, %p105
    %p107 = scmp.ne.s32.totalorder %s99, %s102
    %p108 = scmp.eq.s32.totalorder %s11, 0
    %p109 = por %p107, %p108
    %p110 = scmp.ne.s32.totalorder %s99, %s102
    %p111 = scmp.eq.s32.totalorder %s16, 1
    %p112 = por %p110, %p111
    %p113 = scmp.ne.s32.totalorder %s102, %s103
    %p114 = scmp.eq.s32.totalorder %s16, 0
    %p115 = por %p113, %p114
    %p116 = scmp.ne.s32.totalorder %s102, %s103
    %p117 = scmp.eq.s32.totalorder %s17, 1
    %p118 = por %p116, %p117
    %p120 = scmp.ne.s32.totalorder %s103, %s119
    %p121 = scmp.eq.s32.totalorder %s17, 0
    %p122 = por %p120, %p121
    %s123 = ssub.s32 %s11, %s18
    %p124 = scmp.eq.s32.totalorder %s123, 0
    %s126 = sadd.s32 %s125, 1
    %s127 = scalar_select %p124, %s125, %s126
    %p130 = pneg %p124
    %p131 = scmp.eq.s32.totalorder %s11, 1
    %p132 = por %p130, %p131
    %p133 = scmp.ne.s32.totalorder %s125, %s128
    %p134 = scmp.eq.s32.totalorder %s11, 0
    %p135 = por %p133, %p134
    %p136 = scmp.ne.s32.totalorder %s125, %s128
    %p137 = scmp.eq.s32.totalorder %s16, 1
    %p138 = por %p136, %p137
    %p139 = scmp.ne.s32.totalorder %s128, %s129
    %p140 = scmp.eq.s32.totalorder %s16, 0
    %p141 = por %p139, %p140
    %p142 = scmp.ne.s32.totalorder %s128, %s129
    %p143 = scmp.eq.s32.totalorder %s17, 1
    %p144 = por %p142, %p143
    %p146 = scmp.ne.s32.totalorder %s129, %s145
    %p147 = scmp.eq.s32.totalorder %s17, 0
    %p148 = por %p146, %p147
    %s149 = ssub.s32 %s11, %s18
    %p150 = scmp.eq.s32.totalorder %s149, 0
    %s152 = sadd.s32 %s151, 1
    %s153 = scalar_select %p150, %s151, %s152
    %p156 = pneg %p150
    %p157 = scmp.eq.s32.totalorder %s11, 1
    %p158 = por %p156, %p157
    %p159 = scmp.ne.s32.totalorder %s151, %s154
    %p160 = scmp.eq.s32.totalorder %s11, 0
    %p161 = por %p159, %p160
    %p162 = scmp.ne.s32.totalorder %s151, %s154
    %p163 = scmp.eq.s32.totalorder %s16, 1
    %p164 = por %p162, %p163
    %p165 = scmp.ne.s32.totalorder %s154, %s155
    %p166 = scmp.eq.s32.totalorder %s16, 0
    %p167 = por %p165, %p166
    %p168 = scmp.ne.s32.totalorder %s154, %s155
    %p169 = scmp.eq.s32.totalorder %s17, 1
    %p170 = por %p168, %p169
    %p172 = scmp.ne.s32.totalorder %s155, %s171
    %p173 = scmp.eq.s32.totalorder %s17, 0
    %p174 = por %p172, %p173
    %p175 = scmp.le.s32.totalorder 1, %s11
    %p176 = scmp.lt.s32.totalorder %s11, 3
    %p177 = pnand %p175, %p176
    %p178 = pneg %p177
    // Predicated region
    $region9: #{compute_all.23} parent=5 // pred_check
      _
    $region10: #{compute_all.23} parent=5 // pred_check_branch
      %180 = sbr.rel (%p177) target = $region12
    $region11: #{compute_all.23} parent=5 // pred_region
      %s181 = ssub.s32 %s11, 1
    $region12: #{compute_all.23} parent=5 // pred_fallthru
      _
    %p182 = scmp.lt.s32.totalorder %s11, 2
    // Predicated region
    $region13: #{compute_all.23} parent=5 // pred_check
      %p183 = pneg %p182
    $region14: #{compute_all.23} parent=5 // pred_check_branch
      %185 = sbr.rel (%p183) target = $region16
    $region15: #{compute_all.23} parent=5 // pred_region
      // Predicated region
      $region17: #{compute_all.23} parent=15 // pred_check
        %p186 = pneg %p31
      $region18: #{compute_all.23} parent=15 // pred_check_branch
        %188 = sbr.rel (%p186) target = $region20
      $region19: #{compute_all.23} parent=15 // pred_region
        %p189 = scmp.lt.s32.totalorder %s11, 1
        %s190 = scalar_select %p189, %s11, 1
        %s191 = smul.addr %s190, 2
        %s192 = smul.addr %s191, 8
        %s193 = scalar_lea.vmem %s0, %s192
      $region20: #{compute_all.23} parent=15 // pred_fallthru
        _
      // Predicated region
      $region21: #{compute_all.23} parent=15 // pred_check
        %p194 = pneg %p57
      $region22: #{compute_all.23} parent=15 // pred_check_branch
        %196 = sbr.rel (%p194) target = $region24
      $region23: #{compute_all.23} parent=15 // pred_region
        %p197 = scmp.lt.s32.totalorder %s11, 1
        %s198 = scalar_select %p197, %s11, 1
        %s199 = smul.addr %s198, 2
        %s200 = smul.addr %s199, 8
        %s201 = scalar_lea.vmem %s1, %s200
      $region24: #{compute_all.23} parent=15 // pred_fallthru
        _
      // Predicated region
      $region25: #{compute_all.23} parent=15 // pred_check
        %p202 = pneg %p83
      $region26: #{compute_all.23} parent=15 // pred_check_branch
        %204 = sbr.rel (%p202) target = $region28
      $region27: #{compute_all.23} parent=15 // pred_region
        %p205 = scmp.lt.s32.totalorder %s11, 1
        %s206 = scalar_select %p205, %s11, 1
        %s207 = smul.addr %s206, 2
        %s208 = smul.addr %s207, 8
        %s209 = scalar_lea.vmem %s2, %s208
      $region28: #{compute_all.23} parent=15 // pred_fallthru
        _
      // Predicated region
      $region29: #{compute_all.23} parent=15 // pred_check
        %p210 = pneg %p109
      $region30: #{compute_all.23} parent=15 // pred_check_branch
        %212 = sbr.rel (%p210) target = $region32
      $region31: #{compute_all.23} parent=15 // pred_region
        %p213 = scmp.lt.s32.totalorder %s11, 1
        %s214 = scalar_select %p213, %s11, 1
        %s215 = smul.addr %s214, 2
        %s216 = smul.addr %s215, 8
        %s217 = scalar_lea.vmem %s3, %s216
      $region32: #{compute_all.23} parent=15 // pred_fallthru
        _
      // Predicated region
      $region33: #{compute_all.23} parent=15 // pred_check
        %p218 = pneg %p135
      $region34: #{compute_all.23} parent=15 // pred_check_branch
        %220 = sbr.rel (%p218) target = $region36
      $region35: #{compute_all.23} parent=15 // pred_region
        %p221 = scmp.lt.s32.totalorder %s11, 1
        %s222 = scalar_select %p221, %s11, 1
        %s223 = smul.addr %s222, 3
        %s224 = smul.addr %s223, 8
        %s225 = scalar_lea.vmem %s4, %s224
      $region36: #{compute_all.23} parent=15 // pred_fallthru
        _
    $region16: #{compute_all.23} parent=5 // pred_fallthru
      _
    %p226 = scmp.le.s32.totalorder 1, %s11
    %p227 = scmp.lt.s32.totalorder %s11, 3
    %p228 = pnand %p226, %p227
    %p229 = pneg %p228
    // Predicated region
    $region37: #{compute_all.23} parent=5 // pred_check
      _
    $region38: #{compute_all.23} parent=5 // pred_check_branch
      %231 = sbr.rel (%p228) target = $region40
    $region39: #{compute_all.23} parent=5 // pred_region
      %s232 = ssub.s32 %s11, 1
      %p233 = scmp.lt.s32.totalorder %s16, 1
      %s234 = scalar_select %p233, %s16, 1
      %s235 = smul.addr %s234, 2
      %s236 = smul.addr %s235, 8
      %s237 = scalar_lea.vmem %s0, %s236
      %p238 = pneg %p37
      %p239 = pneg %p34
      %p240 = scmp.lt.s32.totalorder %s16, 1
      %s241 = scalar_select %p240, %s16, 1
      %s242 = smul.addr %s241, 2
      %s243 = smul.addr %s242, 8
      %s244 = scalar_lea.vmem %s1, %s243
      %p245 = pneg %p63
      %p246 = pneg %p60
      %p247 = scmp.lt.s32.totalorder %s16, 1
      %s248 = scalar_select %p247, %s16, 1
      %s249 = smul.addr %s248, 2
      %s250 = smul.addr %s249, 8
      %s251 = scalar_lea.vmem %s2, %s250
      %p252 = pneg %p89
      %p253 = pneg %p86
      %p254 = scmp.lt.s32.totalorder %s16, 1
      %s255 = scalar_select %p254, %s16, 1
      %s256 = smul.addr %s255, 2
      %s257 = smul.addr %s256, 8
      %s258 = scalar_lea.vmem %s3, %s257
      %p259 = pneg %p115
      %p260 = pneg %p112
      %p261 = scmp.lt.s32.totalorder %s16, 1
      %s262 = scalar_select %p261, %s16, 1
      %s263 = smul.addr %s262, 3
      %s264 = smul.addr %s263, 8
      %s265 = scalar_lea.vmem %s4, %s264
      %p266 = pneg %p141
      %p267 = pneg %p138
      %p268 = pneg %p167
      %p269 = pneg %p164
      %p270 = scmp.lt.s32.totalorder %s16, 1
      %s271 = scalar_select %p270, %s16, 1
      %s272 = scalar_lea.vmem %s5, %s271
      %p273 = scmp.lt.s32.totalorder %s16, 1
      %s274 = scalar_select %p273, %s16, 1
      %s275 = smul.addr %s274, 2
      %s276 = smul.addr %s275, 8
      %s277 = scalar_lea.vmem %s0, %s276
      %p278 = scmp.lt.s32.totalorder %s16, 1
      %s279 = scalar_select %p278, %s16, 1
      %s280 = smul.addr %s279, 2
      %s281 = smul.addr %s280, 8
      %s282 = scalar_lea.vmem %s1, %s281
      %p283 = scmp.lt.s32.totalorder %s16, 1
      %s284 = scalar_select %p283, %s16, 1
      %s285 = smul.addr %s284, 2
      %s286 = smul.addr %s285, 8
      %s287 = scalar_lea.vmem %s2, %s286
      %p288 = scmp.lt.s32.totalorder %s16, 1
      %s289 = scalar_select %p288, %s16, 1
      %s290 = smul.addr %s289, 2
      %s291 = smul.addr %s290, 8
      %s292 = scalar_lea.vmem %s3, %s291
      %p293 = scmp.lt.s32.totalorder %s16, 1
      %s294 = scalar_select %p293, %s16, 1
      %s295 = smul.addr %s294, 3
      %s296 = smul.addr %s295, 8
      %s297 = scalar_lea.vmem %s4, %s296
      %p298 = scmp.lt.s32.totalorder %s16, 1
      %s299 = scalar_select %p298, %s16, 1
      %s300 = scalar_lea.vmem %s5, %s299
      %v301 = vld [vmem:[%s297] sm:$0xff]
      %v302 = vld [vmem:[%s297 + $0x8] sm:$0xff]
      %v303 = vld [vmem:[%s297 + $0x10] sm:$0x3]
      %v304 = vmul.f32 %v301, 0.125
      %v305 = vmul.f32 %v302, 0.125
      %v306 = vmul.f32 %v301, 0.75
      %v307 = vmul.f32 %v302, 0.75
      %v308 = vmul.f32 %v303, 0.75
      %vm312 = vcmask 1046528
      %v313 = vrot.slane %v306, 1
      %v314 = vrot.slane %v307, 1
      %v315 = vsel %vm312, %v313, %v314
      %v316 = vrot.slane %v308, 1
      %v317 = vsel %vm312, %v314, %v316
      %v320 = vadd.f32 %v304, %v315
      %v321 = vadd.f32 %v305, %v317
      %v322 = vmul.f32 %v303, 0.125
      %vm326 = vcmask 1045504
      %v327 = vrot.slane %v304, 2
      %v328 = vrot.slane %v305, 2
      %v329 = vsel %vm326, %v327, %v328
      %v330 = vrot.slane %v322, 2
      %v331 = vsel %vm326, %v328, %v330
      %v334 = vadd.f32 %v320, %v329
      %v335 = vadd.f32 %v321, %v331
      %v339 = vrot.slane %v301, 1
      %v340 = vrot.slane %v302, 1
      %v341 = vsel %vm312, %v339, %v340
      %v342 = vrot.slane %v303, 1
      %v343 = vsel %vm312, %v340, %v342
      %v347 = vadd.f32 %v301, %v341
      %v348 = vadd.f32 %v302, %v343
      %v349 = vadd.f32 %v303, %v342
      %v350 = vmul.f32 %v347, 0.5
      %v351 = vmul.f32 %v348, 0.5
      %v352 = vmul.f32 %v349, 0.5
      %v353 = vld [vmem:[%s277] sm:$0xff]
      %v354 = vld [vmem:[%s277 + $0x8] sm:$0xff]
      %v355 = vmul.f32 %v334, 0.125
      %v356 = vmul.f32 %v335, 0.125
      %v357 = vmul.f32 %v334, 0.75
      %v358 = vmul.f32 %v335, 0.75
      %361 = vrot.lane.b32.xlu0 %v357, 127
      %v362 = vpop.permute.xlu0 %361
      %363 = vrot.lane.b32.xlu0 %v358, 127
      %v364 = vpop.permute.xlu0 %363
      %v367 = vadd.f32 %v355, %v362
      %v368 = vadd.f32 %v356, %v364
      %371 = vrot.lane.b32.xlu0 %v355, 126
      %v372 = vpop.permute.xlu0 %371
      %373 = vrot.lane.b32.xlu0 %v356, 126
      %v374 = vpop.permute.xlu0 %373
      %v377 = vadd.f32 %v367, %v372
      %v378 = vadd.f32 %v368, %v374
      %v379 = vsub.f32 %v353, %v377
      %v380 = vsub.f32 %v354, %v378
      %v381 = vand.u32 2147483647, %v379
      %v382 = vand.u32 2147483647, %v380
      %vm383 = vcmask 130048
      %v384 = vsel %vm383, %v381, 0.0
      %v385 = vsel %vm383, %v382, 0.0
      %v386 = vadd.f32 %v384, %v385
      %387 = vadd.xlane.f32.xlu0 %v386
      %v388 = vpop.xlane.xlu0 %387
      %v389 = vrot.slane %v388, 4
      %v390 = vadd.f32 %v388, %v389
      %v391 = vrot.slane %v390, 2
      %v392 = vadd.f32 %v390, %v391
      %v393 = vrot.slane %v392, 1
      %v394 = vadd.f32 %v392, %v393
      %s395 = vtos %v394
      %v396 = vstv %s395
      %v397 = vld [vmem:[%s282] sm:$0xff]
      %v398 = vld [vmem:[%s282 + $0x8] sm:$0xff]
      %401 = vrot.lane.b32.xlu0 %v334, 127
      %v402 = vpop.permute.xlu0 %401
      %403 = vrot.lane.b32.xlu0 %v335, 127
      %v404 = vpop.permute.xlu0 %403
      %v407 = vadd.f32 %v334, %v402
      %v408 = vadd.f32 %v335, %v404
      %v409 = vmul.f32 %v407, 0.5
      %v410 = vmul.f32 %v408, 0.5
      %413 = vrot.lane.b32.xlu0 %v409, 127
      %v414 = vpop.permute.xlu0 %413
      %415 = vrot.lane.b32.xlu0 %v410, 127
      %v416 = vpop.permute.xlu0 %415
      %v419 = vsub.f32 %v397, %v414
      %v420 = vsub.f32 %v398, %v416
      %v421 = vand.u32 2147483647, %v419
      %v422 = vand.u32 2147483647, %v420
      %v423 = vsel %vm383, %v421, 0.0
      %v424 = vsel %vm383, %v422, 0.0
      %v425 = vadd.f32 %v423, %v424
      %426 = vadd.xlane.f32.xlu0 %v425
      %v427 = vpop.xlane.xlu0 %426
      %v428 = vrot.slane %v427, 4
      %v429 = vadd.f32 %v427, %v428
      %v430 = vrot.slane %v429, 2
      %v431 = vadd.f32 %v429, %v430
      %v432 = vrot.slane %v431, 1
      %v433 = vadd.f32 %v431, %v432
      %s434 = vtos %v433
      %v435 = vstv %s434
      %v436 = vadd.f32 %v396, %v435
      %v437 = vld [vmem:[%s287] sm:$0xff]
      %v438 = vld [vmem:[%s287 + $0x8] sm:$0xff]
      %v439 = vmul.f32 %v350, 0.125
      %v440 = vmul.f32 %v351, 0.125
      %v441 = vmul.f32 %v352, 0.125
      %v442 = vmul.f32 %v350, 0.75
      %v443 = vmul.f32 %v351, 0.75
      %v444 = vmul.f32 %v352, 0.75
      %448 = vrot.lane.b32.xlu0 %v442, 127
      %v449 = vpop.permute.xlu0 %448
      %450 = vrot.lane.b32.xlu0 %v443, 127
      %v451 = vpop.permute.xlu0 %450
      %452 = vrot.lane.b32.xlu0 %v444, 127
      %v453 = vpop.permute.xlu0 %452
      %v457 = vadd.f32 %v439, %v449
      %v458 = vadd.f32 %v440, %v451
      %v459 = vadd.f32 %v441, %v453
      %463 = vrot.lane.b32.xlu0 %v439, 126
      %v464 = vpop.permute.xlu0 %463
      %465 = vrot.lane.b32.xlu0 %v440, 126
      %v466 = vpop.permute.xlu0 %465
      %467 = vrot.lane.b32.xlu0 %v441, 126
      %v468 = vpop.permute.xlu0 %467
      %v472 = vadd.f32 %v457, %v464
      %v473 = vadd.f32 %v458, %v466
      %v474 = vadd.f32 %v459, %v468
      %v478 = vrot.slane %v472, 1
      %v479 = vrot.slane %v473, 1
      %v480 = vsel %vm312, %v478, %v479
      %v481 = vrot.slane %v474, 1
      %v482 = vsel %vm312, %v479, %v481
      %v485 = vsub.f32 %v437, %v480
      %v486 = vsub.f32 %v438, %v482
      %v487 = vand.u32 2147483647, %v485
      %v488 = vand.u32 2147483647, %v486
      %v489 = vsel %vm383, %v487, 0.0
      %v490 = vsel %vm383, %v488, 0.0
      %v491 = vadd.f32 %v489, %v490
      %492 = vadd.xlane.f32.xlu0 %v491
      %v493 = vpop.xlane.xlu0 %492
      %v494 = vrot.slane %v493, 4
      %v495 = vadd.f32 %v493, %v494
      %v496 = vrot.slane %v495, 2
      %v497 = vadd.f32 %v495, %v496
      %v498 = vrot.slane %v497, 1
      %v499 = vadd.f32 %v497, %v498
      %s500 = vtos %v499
      %v501 = vstv %s500
      %v502 = vadd.f32 %v436, %v501
      %v503 = vld [vmem:[%s292] sm:$0xff]
      %v504 = vld [vmem:[%s292 + $0x8] sm:$0xff]
      %508 = vrot.lane.b32.xlu0 %v350, 127
      %v509 = vpop.permute.xlu0 %508
      %510 = vrot.lane.b32.xlu0 %v351, 127
      %v511 = vpop.permute.xlu0 %510
      %512 = vrot.lane.b32.xlu0 %v352, 127
      %v513 = vpop.permute.xlu0 %512
      %v517 = vadd.f32 %v350, %v509
      %v518 = vadd.f32 %v351, %v511
      %v519 = vadd.f32 %v352, %v513
      %v520 = vmul.f32 %v517, 0.5
      %v521 = vmul.f32 %v518, 0.5
      %v522 = vmul.f32 %v519, 0.5
      %v526 = vrot.slane %v520, 1
      %v527 = vrot.slane %v521, 1
      %v528 = vsel %vm312, %v526, %v527
      %v529 = vrot.slane %v522, 1
      %v530 = vsel %vm312, %v527, %v529
      %531 = vrot.lane.b32.xlu0 %v528, 127
      %v532 = vpop.permute.xlu0 %531
      %533 = vrot.lane.b32.xlu0 %v530, 127
      %v534 = vpop.permute.xlu0 %533
      %v537 = vsub.f32 %v503, %v532
      %v538 = vsub.f32 %v504, %v534
      %v539 = vand.u32 2147483647, %v537
      %v540 = vand.u32 2147483647, %v538
      %v541 = vsel %vm383, %v539, 0.0
      %v542 = vsel %vm383, %v540, 0.0
      %v543 = vadd.f32 %v541, %v542
      %544 = vadd.xlane.f32.xlu0 %v543
      %v545 = vpop.xlane.xlu0 %544
      %v546 = vrot.slane %v545, 4
      %v547 = vadd.f32 %v545, %v546
      %v548 = vrot.slane %v547, 2
      %v549 = vadd.f32 %v547, %v548
      %v550 = vrot.slane %v549, 1
      %v551 = vadd.f32 %v549, %v550
      %s552 = vtos %v551
      %v553 = vstv %s552
      %v554 = vadd.f32 %v502, %v553
      %vm555 = vcmask 0
      %556 = vst.msk [vmem:[%s300] sm:$0x1] %vm555, %v554
      %p557 = scmp.lt.s32.totalorder %s16, 1
      %s558 = scalar_select %p557, %s16, 1
      %s559 = scalar_lea.vmem %s5, %s558
      // Predicated region
      $region41: #{compute_all.23} parent=39 // pred_check
        %p560 = pneg %p164
      $region42: #{compute_all.23} parent=39 // pred_check_branch
        %562 = sbr.rel (%p560) target = $region44
      $region43: #{compute_all.23} parent=39 // pred_region
        _
      $region44: #{compute_all.23} parent=39 // pred_fallthru
        _
    $region40: #{compute_all.23} parent=5 // pred_fallthru
      _
    %p563 = scmp.le.s32.totalorder 2, %s11
    // Predicated region
    $region45: #{compute_all.23} parent=5 // pred_check
      %p564 = pneg %p563
    $region46: #{compute_all.23} parent=5 // pred_check_branch
      %566 = sbr.rel (%p564) target = $region48
    $region47: #{compute_all.23} parent=5 // pred_region
      %s567 = ssub.s32 %s11, 2
      // Predicated region
      $region49: #{compute_all.23} parent=47 // pred_check
        %p568 = pneg %p170
      $region50: #{compute_all.23} parent=47 // pred_check_branch
        %570 = sbr.rel (%p568) target = $region52
      $region51: #{compute_all.23} parent=47 // pred_region
        %p571 = scmp.lt.s32.totalorder %s17, 1
        %s572 = scalar_select %p571, %s17, 1
        %s573 = scalar_lea.vmem %s5, %s572
      $region52: #{compute_all.23} parent=47 // pred_fallthru
        _
    $region48: #{compute_all.23} parent=5 // pred_fallthru
      _
  $region6: #{compute_all.23} parent=0 // loop_footer
    %s15 = sadd.s32 1, %s11
  $region7: #{compute_all.23} parent=0 // loop_footer_branch
    %10 = sbr.rel target = $region3
  $region8: #{compute_all.23} parent=0 // loop_exit
    _

// kernel: compute_all.20
$region0: #{compute_all.20}
  #allocation0 [shape = 'u32[]', space=smem, size = 0x4, offset = 0x4, fixed_abs, tag = 'smem constant byte address 0x4 - core index']
  #allocation1 [shape = 'u32[144,128]{1,0:T(1,128)}', space=vmem, size = 0x12000, scoped, tag = 'internal scratch']
  %s0 = inlined_call_operand.vmem [shape: f32[2,32,32], index: 0, kind: input, shape index: {}]
  %s1 = inlined_call_operand.vmem [shape: f32[2,32,32], index: 1, kind: input, shape index: {}]
  %s2 = inlined_call_operand.vmem [shape: f32[2,32,32], index: 2, kind: input, shape index: {}]
  %s3 = inlined_call_operand.vmem [shape: f32[2,32,32], index: 3, kind: input, shape index: {}]
  %s4 = inlined_call_operand.vmem [shape: f32[2,34,34], index: 4, kind: input, shape index: {}]
  %s5 = inlined_call_operand.vmem [shape: f32[2,1,1], index: 5, kind: output, shape index: {}]
  %s6 = sld [smem:[#allocation0]]
  $region53: #{compute_all.20} parent=0
    _
  %s8 = ssub.s32 1, %s6
  %s9 = scalar_select 0, %s8, %s6
  loop: start=0, step=1, limit=4
  $region2: #{compute_all.20} parent=0 // loop_pre_header
    _
  $region3: #{compute_all.20} parent=0 // loop_header
    %s11 = sphi 0, %s15
    %p12 = scmp.ge.s32.totalorder %s11, 4
    %s21 = sphi 0, %s23
    %s24 = sphi 0, %s21
    %s25 = sphi 0, %s24
    %s41 = sphi 0, %s25
    %s47 = sphi 0, %s49
    %s50 = sphi 0, %s47
    %s51 = sphi 0, %s50
    %s67 = sphi 0, %s51
    %s73 = sphi 0, %s75
    %s76 = sphi 0, %s73
    %s77 = sphi 0, %s76
    %s93 = sphi 0, %s77
    %s99 = sphi 0, %s101
    %s102 = sphi 0, %s99
    %s103 = sphi 0, %s102
    %s119 = sphi 0, %s103
    %s125 = sphi 0, %s127
    %s128 = sphi 0, %s125
    %s129 = sphi 0, %s128
    %s145 = sphi 0, %s129
    %s151 = sphi 0, %s153
    %s154 = sphi 0, %s151
    %s155 = sphi 0, %s154
    %s171 = sphi 0, %s155
  $region4: #{compute_all.20} parent=0 // loop_header_branch
    %14 = sbr.rel (%p12) target = $region8
  $region5: #{compute_all.20} parent=0 // loop_body
    %s16 = ssub.s32 %s11, 1
    %s17 = ssub.s32 %s11, 2
    %s18 = sadd.s32 %s11, 1
    %s19 = ssub.s32 %s11, %s18
    %p20 = scmp.eq.s32.totalorder %s19, 0
    %s22 = sadd.s32 %s21, 1
    %s23 = scalar_select %p20, %s21, %s22
    %p26 = pneg %p20
    %p27 = scmp.eq.s32.totalorder %s11, 1
    %p28 = por %p26, %p27
    %p29 = scmp.ne.s32.totalorder %s21, %s24
    %p30 = scmp.eq.s32.totalorder %s11, 0
    %p31 = por %p29, %p30
    %p32 = scmp.ne.s32.totalorder %s21, %s24
    %p33 = scmp.eq.s32.totalorder %s16, 1
    %p34 = por %p32, %p33
    %p35 = scmp.ne.s32.totalorder %s24, %s25
    %p36 = scmp.eq.s32.totalorder %s16, 0
    %p37 = por %p35, %p36
    %p38 = scmp.ne.s32.totalorder %s24, %s25
    %p39 = scmp.eq.s32.totalorder %s17, 1
    %p40 = por %p38, %p39
    %p42 = scmp.ne.s32.totalorder %s25, %s41
    %p43 = scmp.eq.s32.totalorder %s17, 0
    %p44 = por %p42, %p43
    %s45 = ssub.s32 %s11, %s18
    %p46 = scmp.eq.s32.totalorder %s45, 0
    %s48 = sadd.s32 %s47, 1
    %s49 = scalar_select %p46, %s47, %s48
    %p52 = pneg %p46
    %p53 = scmp.eq.s32.totalorder %s11, 1
    %p54 = por %p52, %p53
    %p55 = scmp.ne.s32.totalorder %s47, %s50
    %p56 = scmp.eq.s32.totalorder %s11, 0
    %p57 = por %p55, %p56
    %p58 = scmp.ne.s32.totalorder %s47, %s50
    %p59 = scmp.eq.s32.totalorder %s16, 1
    %p60 = por %p58, %p59
    %p61 = scmp.ne.s32.totalorder %s50, %s51
    %p62 = scmp.eq.s32.totalorder %s16, 0
    %p63 = por %p61, %p62
    %p64 = scmp.ne.s32.totalorder %s50, %s51
    %p65 = scmp.eq.s32.totalorder %s17, 1
    %p66 = por %p64, %p65
    %p68 = scmp.ne.s32.totalorder %s51, %s67
    %p69 = scmp.eq.s32.totalorder %s17, 0
    %p70 = por %p68, %p69
    %s71 = ssub.s32 %s11, %s18
    %p72 = scmp.eq.s32.totalorder %s71, 0
    %s74 = sadd.s32 %s73, 1
    %s75 = scalar_select %p72, %s73, %s74
    %p78 = pneg %p72
    %p79 = scmp.eq.s32.totalorder %s11, 1
    %p80 = por %p78, %p79
    %p81 = scmp.ne.s32.totalorder %s73, %s76
    %p82 = scmp.eq.s32.totalorder %s11, 0
    %p83 = por %p81, %p82
    %p84 = scmp.ne.s32.totalorder %s73, %s76
    %p85 = scmp.eq.s32.totalorder %s16, 1
    %p86 = por %p84, %p85
    %p87 = scmp.ne.s32.totalorder %s76, %s77
    %p88 = scmp.eq.s32.totalorder %s16, 0
    %p89 = por %p87, %p88
    %p90 = scmp.ne.s32.totalorder %s76, %s77
    %p91 = scmp.eq.s32.totalorder %s17, 1
    %p92 = por %p90, %p91
    %p94 = scmp.ne.s32.totalorder %s77, %s93
    %p95 = scmp.eq.s32.totalorder %s17, 0
    %p96 = por %p94, %p95
    %s97 = ssub.s32 %s11, %s18
    %p98 = scmp.eq.s32.totalorder %s97, 0
    %s100 = sadd.s32 %s99, 1
    %s101 = scalar_select %p98, %s99, %s100
    %p104 = pneg %p98
    %p105 = scmp.eq.s32.totalorder %s11, 1
    %p106 = por %p104, %p105
    %p107 = scmp.ne.s32.totalorder %s99, %s102
    %p108 = scmp.eq.s32.totalorder %s11, 0
    %p109 = por %p107, %p108
    %p110 = scmp.ne.s32.totalorder %s99, %s102
    %p111 = scmp.eq.s32.totalorder %s16, 1
    %p112 = por %p110, %p111
    %p113 = scmp.ne.s32.totalorder %s102, %s103
    %p114 = scmp.eq.s32.totalorder %s16, 0
    %p115 = por %p113, %p114
    %p116 = scmp.ne.s32.totalorder %s102, %s103
    %p117 = scmp.eq.s32.totalorder %s17, 1
    %p118 = por %p116, %p117
    %p120 = scmp.ne.s32.totalorder %s103, %s119
    %p121 = scmp.eq.s32.totalorder %s17, 0
    %p122 = por %p120, %p121
    %s123 = ssub.s32 %s11, %s18
    %p124 = scmp.eq.s32.totalorder %s123, 0
    %s126 = sadd.s32 %s125, 1
    %s127 = scalar_select %p124, %s125, %s126
    %p130 = pneg %p124
    %p131 = scmp.eq.s32.totalorder %s11, 1
    %p132 = por %p130, %p131
    %p133 = scmp.ne.s32.totalorder %s125, %s128
    %p134 = scmp.eq.s32.totalorder %s11, 0
    %p135 = por %p133, %p134
    %p136 = scmp.ne.s32.totalorder %s125, %s128
    %p137 = scmp.eq.s32.totalorder %s16, 1
    %p138 = por %p136, %p137
    %p139 = scmp.ne.s32.totalorder %s128, %s129
    %p140 = scmp.eq.s32.totalorder %s16, 0
    %p141 = por %p139, %p140
    %p142 = scmp.ne.s32.totalorder %s128, %s129
    %p143 = scmp.eq.s32.totalorder %s17, 1
    %p144 = por %p142, %p143
    %p146 = scmp.ne.s32.totalorder %s129, %s145
    %p147 = scmp.eq.s32.totalorder %s17, 0
    %p148 = por %p146, %p147
    %s149 = ssub.s32 %s11, %s18
    %p150 = scmp.eq.s32.totalorder %s149, 0
    %s152 = sadd.s32 %s151, 1
    %s153 = scalar_select %p150, %s151, %s152
    %p156 = pneg %p150
    %p157 = scmp.eq.s32.totalorder %s11, 1
    %p158 = por %p156, %p157
    %p159 = scmp.ne.s32.totalorder %s151, %s154
    %p160 = scmp.eq.s32.totalorder %s11, 0
    %p161 = por %p159, %p160
    %p162 = scmp.ne.s32.totalorder %s151, %s154
    %p163 = scmp.eq.s32.totalorder %s16, 1
    %p164 = por %p162, %p163
    %p165 = scmp.ne.s32.totalorder %s154, %s155
    %p166 = scmp.eq.s32.totalorder %s16, 0
    %p167 = por %p165, %p166
    %p168 = scmp.ne.s32.totalorder %s154, %s155
    %p169 = scmp.eq.s32.totalorder %s17, 1
    %p170 = por %p168, %p169
    %p172 = scmp.ne.s32.totalorder %s155, %s171
    %p173 = scmp.eq.s32.totalorder %s17, 0
    %p174 = por %p172, %p173
    %p175 = scmp.le.s32.totalorder 1, %s11
    %p176 = scmp.lt.s32.totalorder %s11, 3
    %p177 = pnand %p175, %p176
    %p178 = pneg %p177
    // Predicated region
    $region9: #{compute_all.20} parent=5 // pred_check
      _
    $region10: #{compute_all.20} parent=5 // pred_check_branch
      %180 = sbr.rel (%p177) target = $region12
    $region11: #{compute_all.20} parent=5 // pred_region
      %s181 = ssub.s32 %s11, 1
    $region12: #{compute_all.20} parent=5 // pred_fallthru
      _
    %p182 = scmp.lt.s32.totalorder %s11, 2
    // Predicated region
    $region13: #{compute_all.20} parent=5 // pred_check
      %p183 = pneg %p182
    $region14: #{compute_all.20} parent=5 // pred_check_branch
      %185 = sbr.rel (%p183) target = $region16
    $region15: #{compute_all.20} parent=5 // pred_region
      // Predicated region
      $region17: #{compute_all.20} parent=15 // pred_check
        %p186 = pneg %p31
      $region18: #{compute_all.20} parent=15 // pred_check_branch
        %188 = sbr.rel (%p186) target = $region20
      $region19: #{compute_all.20} parent=15 // pred_region
        %p189 = scmp.lt.s32.totalorder %s11, 1
        %s190 = scalar_select %p189, %s11, 1
        %s191 = smul.addr %s190, 4
        %s192 = smul.addr %s191, 8
        %s193 = scalar_lea.vmem %s0, %s192
      $region20: #{compute_all.20} parent=15 // pred_fallthru
        _
      // Predicated region
      $region21: #{compute_all.20} parent=15 // pred_check
        %p194 = pneg %p57
      $region22: #{compute_all.20} parent=15 // pred_check_branch
        %196 = sbr.rel (%p194) target = $region24
      $region23: #{compute_all.20} parent=15 // pred_region
        %p197 = scmp.lt.s32.totalorder %s11, 1
        %s198 = scalar_select %p197, %s11, 1
        %s199 = smul.addr %s198, 4
        %s200 = smul.addr %s199, 8
        %s201 = scalar_lea.vmem %s1, %s200
      $region24: #{compute_all.20} parent=15 // pred_fallthru
        _
      // Predicated region
      $region25: #{compute_all.20} parent=15 // pred_check
        %p202 = pneg %p83
      $region26: #{compute_all.20} parent=15 // pred_check_branch
        %204 = sbr.rel (%p202) target = $region28
      $region27: #{compute_all.20} parent=15 // pred_region
        %p205 = scmp.lt.s32.totalorder %s11, 1
        %s206 = scalar_select %p205, %s11, 1
        %s207 = smul.addr %s206, 4
        %s208 = smul.addr %s207, 8
        %s209 = scalar_lea.vmem %s2, %s208
      $region28: #{compute_all.20} parent=15 // pred_fallthru
        _
      // Predicated region
      $region29: #{compute_all.20} parent=15 // pred_check
        %p210 = pneg %p109
      $region30: #{compute_all.20} parent=15 // pred_check_branch
        %212 = sbr.rel (%p210) target = $region32
      $region31: #{compute_all.20} parent=15 // pred_region
        %p213 = scmp.lt.s32.totalorder %s11, 1
        %s214 = scalar_select %p213, %s11, 1
        %s215 = smul.addr %s214, 4
        %s216 = smul.addr %s215, 8
        %s217 = scalar_lea.vmem %s3, %s216
      $region32: #{compute_all.20} parent=15 // pred_fallthru
        _
      // Predicated region
      $region33: #{compute_all.20} parent=15 // pred_check
        %p218 = pneg %p135
      $region34: #{compute_all.20} parent=15 // pred_check_branch
        %220 = sbr.rel (%p218) target = $region36
      $region35: #{compute_all.20} parent=15 // pred_region
        %p221 = scmp.lt.s32.totalorder %s11, 1
        %s222 = scalar_select %p221, %s11, 1
        %s223 = smul.addr %s222, 5
        %s224 = smul.addr %s223, 8
        %s225 = scalar_lea.vmem %s4, %s224
      $region36: #{compute_all.20} parent=15 // pred_fallthru
        _
    $region16: #{compute_all.20} parent=5 // pred_fallthru
      _
    %p226 = scmp.le.s32.totalorder 1, %s11
    %p227 = scmp.lt.s32.totalorder %s11, 3
    %p228 = pnand %p226, %p227
    %p229 = pneg %p228
    // Predicated region
    $region37: #{compute_all.20} parent=5 // pred_check
      _
    $region38: #{compute_all.20} parent=5 // pred_check_branch
      %231 = sbr.rel (%p228) target = $region40
    $region39: #{compute_all.20} parent=5 // pred_region
      %s232 = ssub.s32 %s11, 1
      %p233 = scmp.lt.s32.totalorder %s16, 1
      %s234 = scalar_select %p233, %s16, 1
      %s235 = smul.addr %s234, 4
      %s236 = smul.addr %s235, 8
      %s237 = scalar_lea.vmem %s0, %s236
      %p238 = pneg %p37
      %p239 = pneg %p34
      %p240 = scmp.lt.s32.totalorder %s16, 1
      %s241 = scalar_select %p240, %s16, 1
      %s242 = smul.addr %s241, 4
      %s243 = smul.addr %s242, 8
      %s244 = scalar_lea.vmem %s1, %s243
      %p245 = pneg %p63
      %p246 = pneg %p60
      %p247 = scmp.lt.s32.totalorder %s16, 1
      %s248 = scalar_select %p247, %s16, 1
      %s249 = smul.addr %s248, 4
      %s250 = smul.addr %s249, 8
      %s251 = scalar_lea.vmem %s2, %s250
      %p252 = pneg %p89
      %p253 = pneg %p86
      %p254 = scmp.lt.s32.totalorder %s16, 1
      %s255 = scalar_select %p254, %s16, 1
      %s256 = smul.addr %s255, 4
      %s257 = smul.addr %s256, 8
      %s258 = scalar_lea.vmem %s3, %s257
      %p259 = pneg %p115
      %p260 = pneg %p112
      %p261 = scmp.lt.s32.totalorder %s16, 1
      %s262 = scalar_select %p261, %s16, 1
      %s263 = smul.addr %s262, 5
      %s264 = smul.addr %s263, 8
      %s265 = scalar_lea.vmem %s4, %s264
      %p266 = pneg %p141
      %p267 = pneg %p138
      %p268 = pneg %p167
      %p269 = pneg %p164
      %p270 = scmp.lt.s32.totalorder %s16, 1
      %s271 = scalar_select %p270, %s16, 1
      %s272 = scalar_lea.vmem %s5, %s271
      %p273 = scmp.lt.s32.totalorder %s16, 1
      %s274 = scalar_select %p273, %s16, 1
      %s275 = smul.addr %s274, 4
      %s276 = smul.addr %s275, 8
      %s277 = scalar_lea.vmem %s0, %s276
      %p278 = scmp.lt.s32.totalorder %s16, 1
      %s279 = scalar_select %p278, %s16, 1
      %s280 = smul.addr %s279, 4
      %s281 = smul.addr %s280, 8
      %s282 = scalar_lea.vmem %s1, %s281
      %p283 = scmp.lt.s32.totalorder %s16, 1
      %s284 = scalar_select %p283, %s16, 1
      %s285 = smul.addr %s284, 4
      %s286 = smul.addr %s285, 8
      %s287 = scalar_lea.vmem %s2, %s286
      %p288 = scmp.lt.s32.totalorder %s16, 1
      %s289 = scalar_select %p288, %s16, 1
      %s290 = smul.addr %s289, 4
      %s291 = smul.addr %s290, 8
      %s292 = scalar_lea.vmem %s3, %s291
      %p293 = scmp.lt.s32.totalorder %s16, 1
      %s294 = scalar_select %p293, %s16, 1
      %s295 = smul.addr %s294, 5
      %s296 = smul.addr %s295, 8
      %s297 = scalar_lea.vmem %s4, %s296
      %p298 = scmp.lt.s32.totalorder %s16, 1
      %s299 = scalar_select %p298, %s16, 1
      %s300 = scalar_lea.vmem %s5, %s299
      %v301 = vld [vmem:[%s297] sm:$0xff]
      %v302 = vld [vmem:[%s297 + $0x8] sm:$0xff]
      %v303 = vld [vmem:[%s297 + $0x10] sm:$0xff]
      %v304 = vld [vmem:[%s297 + $0x18] sm:$0xff]
      %v305 = vld [vmem:[%s297 + $0x20] sm:$0x3]
      %v306 = vmul.f32 %v301, 0.125
      %v307 = vmul.f32 %v302, 0.125
      %v308 = vmul.f32 %v303, 0.125
      %v309 = vmul.f32 %v304, 0.125
      %v310 = vmul.f32 %v301, 0.75
      %v311 = vmul.f32 %v302, 0.75
      %v312 = vmul.f32 %v303, 0.75
      %v313 = vmul.f32 %v304, 0.75
      %v314 = vmul.f32 %v305, 0.75
      %vm320 = vcmask 1046528
      %v321 = vrot.slane %v310, 1
      %v322 = vrot.slane %v311, 1
      %v323 = vsel %vm320, %v321, %v322
      %v324 = vrot.slane %v312, 1
      %v325 = vsel %vm320, %v322, %v324
      %v326 = vrot.slane %v313, 1
      %v327 = vsel %vm320, %v324, %v326
      %v328 = vrot.slane %v314, 1
      %v329 = vsel %vm320, %v326, %v328
      %v334 = vadd.f32 %v306, %v323
      %v335 = vadd.f32 %v307, %v325
      %v336 = vadd.f32 %v308, %v327
      %v337 = vadd.f32 %v309, %v329
      %v338 = vmul.f32 %v305, 0.125
      %vm344 = vcmask 1045504
      %v345 = vrot.slane %v306, 2
      %v346 = vrot.slane %v307, 2
      %v347 = vsel %vm344, %v345, %v346
      %v348 = vrot.slane %v308, 2
      %v349 = vsel %vm344, %v346, %v348
      %v350 = vrot.slane %v309, 2
      %v351 = vsel %vm344, %v348, %v350
      %v352 = vrot.slane %v338, 2
      %v353 = vsel %vm344, %v350, %v352
      %v358 = vadd.f32 %v334, %v347
      %v359 = vadd.f32 %v335, %v349
      %v360 = vadd.f32 %v336, %v351
      %v361 = vadd.f32 %v337, %v353
      %v367 = vrot.slane %v301, 1
      %v368 = vrot.slane %v302, 1
      %v369 = vsel %vm320, %v367, %v368
      %v370 = vrot.slane %v303, 1
      %v371 = vsel %vm320, %v368, %v370
      %v372 = vrot.slane %v304, 1
      %v373 = vsel %vm320, %v370, %v372
      %v374 = vrot.slane %v305, 1
      %v375 = vsel %vm320, %v372, %v374
      %v381 = vadd.f32 %v301, %v369
      %v382 = vadd.f32 %v302, %v371
      %v383 = vadd.f32 %v303, %v373
      %v384 = vadd.f32 %v304, %v375
      %v385 = vadd.f32 %v305, %v374
      %v386 = vmul.f32 %v381, 0.5
      %v387 = vmul.f32 %v382, 0.5
      %v388 = vmul.f32 %v383, 0.5
      %v389 = vmul.f32 %v384, 0.5
      %v390 = vmul.f32 %v385, 0.5
      %v391 = vld [vmem:[%s277] sm:$0xff]
      %v392 = vld [vmem:[%s277 + $0x8] sm:$0xff]
      %v393 = vld [vmem:[%s277 + $0x10] sm:$0xff]
      %v394 = vld [vmem:[%s277 + $0x18] sm:$0xff]
      %v395 = vmul.f32 %v358, 0.125
      %v396 = vmul.f32 %v359, 0.125
      %v397 = vmul.f32 %v360, 0.125
      %v398 = vmul.f32 %v361, 0.125
      %v399 = vmul.f32 %v358, 0.75
      %v400 = vmul.f32 %v359, 0.75
      %v401 = vmul.f32 %v360, 0.75
      %v402 = vmul.f32 %v361, 0.75
      %407 = vrot.lane.b32.xlu0 %v399, 127
      %v408 = vpop.permute.xlu0 %407
      %409 = vrot.lane.b32.xlu0 %v400, 127
      %v410 = vpop.permute.xlu0 %409
      %411 = vrot.lane.b32.xlu0 %v401, 127
      %v412 = vpop.permute.xlu0 %411
      %413 = vrot.lane.b32.xlu0 %v402, 127
      %v414 = vpop.permute.xlu0 %413
      %v419 = vadd.f32 %v395, %v408
      %v420 = vadd.f32 %v396, %v410
      %v421 = vadd.f32 %v397, %v412
      %v422 = vadd.f32 %v398, %v414
      %427 = vrot.lane.b32.xlu0 %v395, 126
      %v428 = vpop.permute.xlu0 %427
      %429 = vrot.lane.b32.xlu0 %v396, 126
      %v430 = vpop.permute.xlu0 %429
      %431 = vrot.lane.b32.xlu0 %v397, 126
      %v432 = vpop.permute.xlu0 %431
      %433 = vrot.lane.b32.xlu0 %v398, 126
      %v434 = vpop.permute.xlu0 %433
      %v439 = vadd.f32 %v419, %v428
      %v440 = vadd.f32 %v420, %v430
      %v441 = vadd.f32 %v421, %v432
      %v442 = vadd.f32 %v422, %v434
      %v443 = vsub.f32 %v391, %v439
      %v444 = vsub.f32 %v392, %v440
      %v445 = vsub.f32 %v393, %v441
      %v446 = vsub.f32 %v394, %v442
      %v447 = vand.u32 2147483647, %v443
      %v448 = vand.u32 2147483647, %v444
      %v449 = vand.u32 2147483647, %v445
      %v450 = vand.u32 2147483647, %v446
      %vm451 = vcmask 261120
      %v452 = vsel %vm451, %v447, 0.0
      %v453 = vsel %vm451, %v448, 0.0
      %v454 = vadd.f32 %v452, %v453
      %v455 = vsel %vm451, %v449, 0.0
      %v456 = vadd.f32 %v454, %v455
      %v457 = vsel %vm451, %v450, 0.0
      %v458 = vadd.f32 %v456, %v457
      %459 = vadd.xlane.f32.xlu0 %v458
      %v460 = vpop.xlane.xlu0 %459
      %v461 = vrot.slane %v460, 4
      %v462 = vadd.f32 %v460, %v461
      %v463 = vrot.slane %v462, 2
      %v464 = vadd.f32 %v462, %v463
      %v465 = vrot.slane %v464, 1
      %v466 = vadd.f32 %v464, %v465
      %s467 = vtos %v466
      %v468 = vstv %s467
      %v469 = vld [vmem:[%s282] sm:$0xff]
      %v470 = vld [vmem:[%s282 + $0x8] sm:$0xff]
      %v471 = vld [vmem:[%s282 + $0x10] sm:$0xff]
      %v472 = vld [vmem:[%s282 + $0x18] sm:$0xff]
      %477 = vrot.lane.b32.xlu0 %v358, 127
      %v478 = vpop.permute.xlu0 %477
      %479 = vrot.lane.b32.xlu0 %v359, 127
      %v480 = vpop.permute.xlu0 %479
      %481 = vrot.lane.b32.xlu0 %v360, 127
      %v482 = vpop.permute.xlu0 %481
      %483 = vrot.lane.b32.xlu0 %v361, 127
      %v484 = vpop.permute.xlu0 %483
      %v489 = vadd.f32 %v358, %v478
      %v490 = vadd.f32 %v359, %v480
      %v491 = vadd.f32 %v360, %v482
      %v492 = vadd.f32 %v361, %v484
      %v493 = vmul.f32 %v489, 0.5
      %v494 = vmul.f32 %v490, 0.5
      %v495 = vmul.f32 %v491, 0.5
      %v496 = vmul.f32 %v492, 0.5
      %501 = vrot.lane.b32.xlu0 %v493, 127
      %v502 = vpop.permute.xlu0 %501
      %503 = vrot.lane.b32.xlu0 %v494, 127
      %v504 = vpop.permute.xlu0 %503
      %505 = vrot.lane.b32.xlu0 %v495, 127
      %v506 = vpop.permute.xlu0 %505
      %507 = vrot.lane.b32.xlu0 %v496, 127
      %v508 = vpop.permute.xlu0 %507
      %v513 = vsub.f32 %v469, %v502
      %v514 = vsub.f32 %v470, %v504
      %v515 = vsub.f32 %v471, %v506
      %v516 = vsub.f32 %v472, %v508
      %v517 = vand.u32 2147483647, %v513
      %v518 = vand.u32 2147483647, %v514
      %v519 = vand.u32 2147483647, %v515
      %v520 = vand.u32 2147483647, %v516
      %v521 = vsel %vm451, %v517, 0.0
      %v522 = vsel %vm451, %v518, 0.0
      %v523 = vadd.f32 %v521, %v522
      %v524 = vsel %vm451, %v519, 0.0
      %v525 = vadd.f32 %v523, %v524
      %v526 = vsel %vm451, %v520, 0.0
      %v527 = vadd.f32 %v525, %v526
      %528 = vadd.xlane.f32.xlu0 %v527
      %v529 = vpop.xlane.xlu0 %528
      %v530 = vrot.slane %v529, 4
      %v531 = vadd.f32 %v529, %v530
      %v532 = vrot.slane %v531, 2
      %v533 = vadd.f32 %v531, %v532
      %v534 = vrot.slane %v533, 1
      %v535 = vadd.f32 %v533, %v534
      %s536 = vtos %v535
      %v537 = vstv %s536
      %v538 = vadd.f32 %v468, %v537
      %v539 = vld [vmem:[%s287] sm:$0xff]
      %v540 = vld [vmem:[%s287 + $0x8] sm:$0xff]
      %v541 = vld [vmem:[%s287 + $0x10] sm:$0xff]
      %v542 = vld [vmem:[%s287 + $0x18] sm:$0xff]
      %v543 = vmul.f32 %v386, 0.125
      %v544 = vmul.f32 %v387, 0.125
      %v545 = vmul.f32 %v388, 0.125
      %v546 = vmul.f32 %v389, 0.125
      %v547 = vmul.f32 %v390, 0.125
      %v548 = vmul.f32 %v386, 0.75
      %v549 = vmul.f32 %v387, 0.75
      %v550 = vmul.f32 %v388, 0.75
      %v551 = vmul.f32 %v389, 0.75
      %v552 = vmul.f32 %v390, 0.75
      %558 = vrot.lane.b32.xlu0 %v548, 127
      %v559 = vpop.permute.xlu0 %558
      %560 = vrot.lane.b32.xlu0 %v549, 127
      %v561 = vpop.permute.xlu0 %560
      %562 = vrot.lane.b32.xlu0 %v550, 127
      %v563 = vpop.permute.xlu0 %562
      %564 = vrot.lane.b32.xlu0 %v551, 127
      %v565 = vpop.permute.xlu0 %564
      %566 = vrot.lane.b32.xlu0 %v552, 127
      %v567 = vpop.permute.xlu0 %566
      %v573 = vadd.f32 %v543, %v559
      %v574 = vadd.f32 %v544, %v561
      %v575 = vadd.f32 %v545, %v563
      %v576 = vadd.f32 %v546, %v565
      %v577 = vadd.f32 %v547, %v567
      %583 = vrot.lane.b32.xlu0 %v543, 126
      %v584 = vpop.permute.xlu0 %583
      %585 = vrot.lane.b32.xlu0 %v544, 126
      %v586 = vpop.permute.xlu0 %585
      %587 = vrot.lane.b32.xlu0 %v545, 126
      %v588 = vpop.permute.xlu0 %587
      %589 = vrot.lane.b32.xlu0 %v546, 126
      %v590 = vpop.permute.xlu0 %589
      %591 = vrot.lane.b32.xlu0 %v547, 126
      %v592 = vpop.permute.xlu0 %591
      %v598 = vadd.f32 %v573, %v584
      %v599 = vadd.f32 %v574, %v586
      %v600 = vadd.f32 %v575, %v588
      %v601 = vadd.f32 %v576, %v590
      %v602 = vadd.f32 %v577, %v592
      %v608 = vrot.slane %v598, 1
      %v609 = vrot.slane %v599, 1
      %v610 = vsel %vm320, %v608, %v609
      %v611 = vrot.slane %v600, 1
      %v612 = vsel %vm320, %v609, %v611
      %v613 = vrot.slane %v601, 1
      %v614 = vsel %vm320, %v611, %v613
      %v615 = vrot.slane %v602, 1
      %v616 = vsel %vm320, %v613, %v615
      %v621 = vsub.f32 %v539, %v610
      %v622 = vsub.f32 %v540, %v612
      %v623 = vsub.f32 %v541, %v614
      %v624 = vsub.f32 %v542, %v616
      %v625 = vand.u32 2147483647, %v621
      %v626 = vand.u32 2147483647, %v622
      %v627 = vand.u32 2147483647, %v623
      %v628 = vand.u32 2147483647, %v624
      %v629 = vsel %vm451, %v625, 0.0
      %v630 = vsel %vm451, %v626, 0.0
      %v631 = vadd.f32 %v629, %v630
      %v632 = vsel %vm451, %v627, 0.0
      %v633 = vadd.f32 %v631, %v632
      %v634 = vsel %vm451, %v628, 0.0
      %v635 = vadd.f32 %v633, %v634
      %636 = vadd.xlane.f32.xlu0 %v635
      %v637 = vpop.xlane.xlu0 %636
      %v638 = vrot.slane %v637, 4
      %v639 = vadd.f32 %v637, %v638
      %v640 = vrot.slane %v639, 2
      %v641 = vadd.f32 %v639, %v640
      %v642 = vrot.slane %v641, 1
      %v643 = vadd.f32 %v641, %v642
      %s644 = vtos %v643
      %v645 = vstv %s644
      %v646 = vadd.f32 %v538, %v645
      %v647 = vld [vmem:[%s292] sm:$0xff]
      %v648 = vld [vmem:[%s292 + $0x8] sm:$0xff]
      %v649 = vld [vmem:[%s292 + $0x10] sm:$0xff]
      %v650 = vld [vmem:[%s292 + $0x18] sm:$0xff]
      %656 = vrot.lane.b32.xlu0 %v386, 127
      %v657 = vpop.permute.xlu0 %656
      %658 = vrot.lane.b32.xlu0 %v387, 127
      %v659 = vpop.permute.xlu0 %658
      %660 = vrot.lane.b32.xlu0 %v388, 127
      %v661 = vpop.permute.xlu0 %660
      %662 = vrot.lane.b32.xlu0 %v389, 127
      %v663 = vpop.permute.xlu0 %662
      %664 = vrot.lane.b32.xlu0 %v390, 127
      %v665 = vpop.permute.xlu0 %664
      %v671 = vadd.f32 %v386, %v657
      %v672 = vadd.f32 %v387, %v659
      %v673 = vadd.f32 %v388, %v661
      %v674 = vadd.f32 %v389, %v663
      %v675 = vadd.f32 %v390, %v665
      %v676 = vmul.f32 %v671, 0.5
      %v677 = vmul.f32 %v672, 0.5
      %v678 = vmul.f32 %v673, 0.5
      %v679 = vmul.f32 %v674, 0.5
      %v680 = vmul.f32 %v675, 0.5
      %v686 = vrot.slane %v676, 1
      %v687 = vrot.slane %v677, 1
      %v688 = vsel %vm320, %v686, %v687
      %v689 = vrot.slane %v678, 1
      %v690 = vsel %vm320, %v687, %v689
      %v691 = vrot.slane %v679, 1
      %v692 = vsel %vm320, %v689, %v691
      %v693 = vrot.slane %v680, 1
      %v694 = vsel %vm320, %v691, %v693
      %695 = vrot.lane.b32.xlu0 %v688, 127
      %v696 = vpop.permute.xlu0 %695
      %697 = vrot.lane.b32.xlu0 %v690, 127
      %v698 = vpop.permute.xlu0 %697
      %699 = vrot.lane.b32.xlu0 %v692, 127
      %v700 = vpop.permute.xlu0 %699
      %701 = vrot.lane.b32.xlu0 %v694, 127
      %v702 = vpop.permute.xlu0 %701
      %v707 = vsub.f32 %v647, %v696
      %v708 = vsub.f32 %v648, %v698
      %v709 = vsub.f32 %v649, %v700
      %v710 = vsub.f32 %v650, %v702
      %v711 = vand.u32 2147483647, %v707
      %v712 = vand.u32 2147483647, %v708
      %v713 = vand.u32 2147483647, %v709
      %v714 = vand.u32 2147483647, %v710
      %v715 = vsel %vm451, %v711, 0.0
      %v716 = vsel %vm451, %v712, 0.0
      %v717 = vadd.f32 %v715, %v716
      %v718 = vsel %vm451, %v713, 0.0
      %v719 = vadd.f32 %v717, %v718
      %v720 = vsel %vm451, %v714, 0.0
      %v721 = vadd.f32 %v719, %v720
      %722 = vadd.xlane.f32.xlu0 %v721
      %v723 = vpop.xlane.xlu0 %722
      %v724 = vrot.slane %v723, 4
      %v725 = vadd.f32 %v723, %v724
      %v726 = vrot.slane %v725, 2
      %v727 = vadd.f32 %v725, %v726
      %v728 = vrot.slane %v727, 1
      %v729 = vadd.f32 %v727, %v728
      %s730 = vtos %v729
      %v731 = vstv %s730
      %v732 = vadd.f32 %v646, %v731
      %vm733 = vcmask 0
      %734 = vst.msk [vmem:[%s300] sm:$0x1] %vm733, %v732
      %p735 = scmp.lt.s32.totalorder %s16, 1
      %s736 = scalar_select %p735, %s16, 1
      %s737 = scalar_lea.vmem %s5, %s736
      // Predicated region
      $region41: #{compute_all.20} parent=39 // pred_check
        %p738 = pneg %p164
      $region42: #{compute_all.20} parent=39 // pred_check_branch
        %740 = sbr.rel (%p738) target = $region44
      $region43: #{compute_all.20} parent=39 // pred_region
        _
      $region44: #{compute_all.20} parent=39 // pred_fallthru
        _
    $region40: #{compute_all.20} parent=5 // pred_fallthru
      _
    %p741 = scmp.le.s32.totalorder 2, %s11
    // Predicated region
    $region45: #{compute_all.20} parent=5 // pred_check
      %p742 = pneg %p741
    $region46: #{compute_all.20} parent=5 // pred_check_branch
      %744 = sbr.rel (%p742) target = $region48
    $region47: #{compute_all.20} parent=5 // pred_region
      %s745 = ssub.s32 %s11, 2
      // Predicated region
      $region49: #{compute_all.20} parent=47 // pred_check
        %p746 = pneg %p170
      $region50: #{compute_all.20} parent=47 // pred_check_branch
        %748 = sbr.rel (%p746) target = $region52
      $region51: #{compute_all.20} parent=47 // pred_region
        %p749 = scmp.lt.s32.totalorder %s17, 1
        %s750 = scalar_select %p749, %s17, 1
        %s751 = scalar_lea.vmem %s5, %s750
      $region52: #{compute_all.20} parent=47 // pred_fallthru
        _
    $region48: #{compute_all.20} parent=5 // pred_fallthru
      _
  $region6: #{compute_all.20} parent=0 // loop_footer
    %s15 = sadd.s32 1, %s11
  $region7: #{compute_all.20} parent=0 // loop_footer_branch
    %10 = sbr.rel target = $region3
  $region8: #{compute_all.20} parent=0 // loop_exit
    _

// kernel: compute_all.35
$region0: #{compute_all.35}
  #allocation0 [shape = 'u32[]', space=smem, size = 0x4, offset = 0x4, fixed_abs, tag = 'smem constant byte address 0x4 - core index']
  #allocation1 [shape = 'u32[144,128]{1,0:T(1,128)}', space=vmem, size = 0x12000, scoped, tag = 'internal scratch']
  %s0 = inlined_call_operand.vmem [shape: f32[16,512], index: 0, kind: input, shape index: {}]
  %s1 = inlined_call_operand.vmem [shape: f32[16,512], index: 1, kind: input, shape index: {}]
  %s2 = inlined_call_operand.vmem [shape: f32[16,512], index: 2, kind: input, shape index: {}]
  %s3 = inlined_call_operand.hbm [shape: f32[1,1,1], index: 3, kind: output, shape index: {0}]
  %s4 = inlined_call_operand.hbm [shape: f32[1,1,1], index: 4, kind: output, shape index: {1}]
  %5 = xla_tuple %s3, %s4
  %s6 = sld [smem:[#allocation0]]
  $region30: #{compute_all.35} parent=0
    _
  %s8 = ssub.s32 1, %s6
  %s9 = scalar_select 0, %s8, %s6
  $region1: #{compute_all.35} parent=0
    #allocation2 [shape = 'u8[512]{0}', space=vmem, size = 0x400, scoped, tag = 'output window, operand 0, single buffered']
    #allocation3 [shape = 's32[1]{0}', space=sflag, size = 0x4, scoped, tag = 'scoped memory for compute_all.35']
    #allocation4 [shape = 'u8[512]{0}', space=vmem, size = 0x400, scoped, tag = 'output window, operand 1, single buffered']
    #allocation5 [shape = 's32[1]{0}', space=sflag, size = 0x4, scoped, tag = 'scoped memory for compute_all.35']
    %10 = vsyncpa [#allocation3], 0
    %11 = vsyncpa [#allocation5], 0
    // Predicated region
    $region2: #{compute_all.35} parent=1 // pred_check
      _
    $region3: #{compute_all.35} parent=1 // pred_check_branch
      %13 = sbr.rel (0) target = $region5
    $region4: #{compute_all.35} parent=1 // pred_region
      _
    $region5: #{compute_all.35} parent=1 // pred_fallthru
      _
    // Predicated region
    $region6: #{compute_all.35} parent=1 // pred_check
      _
    $region7: #{compute_all.35} parent=1 // pred_check_branch
      %15 = sbr.rel (0) target = $region9
    $region8: #{compute_all.35} parent=1 // pred_region
      _
    $region9: #{compute_all.35} parent=1 // pred_fallthru
      _
    // Predicated region
    $region10: #{compute_all.35} parent=1 // pred_check
      _
    $region11: #{compute_all.35} parent=1 // pred_check_branch
      %17 = sbr.rel (0) target = $region13
    $region12: #{compute_all.35} parent=1 // pred_region
      _
    $region13: #{compute_all.35} parent=1 // pred_fallthru
      _
    %v18 = vld [vmem:[%s0] sm:$0xff]
    %v19 = vld [vmem:[%s0 + $0x8] sm:$0xff]
    %v20 = vld [vmem:[%s0 + $0x10] sm:$0xff]
    %v21 = vld [vmem:[%s0 + $0x18] sm:$0xff]
    %v22 = vld [vmem:[%s0 + $0x20] sm:$0xff]
    %v23 = vld [vmem:[%s0 + $0x28] sm:$0xff]
    %v24 = vld [vmem:[%s0 + $0x30] sm:$0xff]
    %v25 = vld [vmem:[%s0 + $0x38] sm:$0xff]
    %v26 = vld [vmem:[%s1] sm:$0xff]
    %v27 = vld [vmem:[%s1 + $0x8] sm:$0xff]
    %v28 = vld [vmem:[%s1 + $0x10] sm:$0xff]
    %v29 = vld [vmem:[%s1 + $0x18] sm:$0xff]
    %v30 = vld [vmem:[%s1 + $0x20] sm:$0xff]
    %v31 = vld [vmem:[%s1 + $0x28] sm:$0xff]
    %v32 = vld [vmem:[%s1 + $0x30] sm:$0xff]
    %v33 = vld [vmem:[%s1 + $0x38] sm:$0xff]
    %v34 = vld [vmem:[%s2] sm:$0xff]
    %v35 = vld [vmem:[%s2 + $0x8] sm:$0xff]
    %v36 = vld [vmem:[%s2 + $0x10] sm:$0xff]
    %v37 = vld [vmem:[%s2 + $0x18] sm:$0xff]
    %v38 = vld [vmem:[%s2 + $0x20] sm:$0xff]
    %v39 = vld [vmem:[%s2 + $0x28] sm:$0xff]
    %v40 = vld [vmem:[%s2 + $0x30] sm:$0xff]
    %v41 = vld [vmem:[%s2 + $0x38] sm:$0xff]
    %v42 = vmul.f32 %v18, %v34
    %v43 = vmul.f32 %v19, %v35
    %v44 = vmul.f32 %v20, %v36
    %v45 = vmul.f32 %v21, %v37
    %v46 = vmul.f32 %v22, %v38
    %v47 = vmul.f32 %v23, %v39
    %v48 = vmul.f32 %v24, %v40
    %v49 = vmul.f32 %v25, %v41
    %v50 = vmul.f32 %v26, %v34
    %v51 = vmul.f32 %v27, %v35
    %v52 = vmul.f32 %v28, %v36
    %v53 = vmul.f32 %v29, %v37
    %v54 = vmul.f32 %v30, %v38
    %v55 = vmul.f32 %v31, %v39
    %v56 = vmul.f32 %v32, %v40
    %v57 = vmul.f32 %v33, %v41
    %v58 = vsub.f32 %v42, %v50
    %v59 = vsub.f32 %v43, %v51
    %v60 = vsub.f32 %v44, %v52
    %v61 = vsub.f32 %v45, %v53
    %v62 = vsub.f32 %v46, %v54
    %v63 = vsub.f32 %v47, %v55
    %v64 = vsub.f32 %v48, %v56
    %v65 = vsub.f32 %v49, %v57
    %v66 = vand.u32 2147483647, %v58
    %v67 = vand.u32 2147483647, %v59
    %v68 = vand.u32 2147483647, %v60
    %v69 = vand.u32 2147483647, %v61
    %v70 = vand.u32 2147483647, %v62
    %v71 = vand.u32 2147483647, %v63
    %v72 = vand.u32 2147483647, %v64
    %v73 = vand.u32 2147483647, %v65
    %v74 = vadd.f32 %v66, %v67
    %v75 = vadd.f32 %v74, %v68
    %v76 = vadd.f32 %v75, %v69
    %v77 = vadd.f32 %v76, %v70
    %v78 = vadd.f32 %v77, %v71
    %v79 = vadd.f32 %v78, %v72
    %v80 = vadd.f32 %v79, %v73
    %81 = vadd.xlane.f32.xlu0 %v80
    %v82 = vpop.xlane.xlu0 %81
    %v83 = vrot.slane %v82, 4
    %v84 = vadd.f32 %v82, %v83
    %v85 = vrot.slane %v84, 2
    %v86 = vadd.f32 %v84, %v85
    %v87 = vrot.slane %v86, 1
    %v88 = vadd.f32 %v86, %v87
    %s89 = vtos %v88
    %v90 = vstv %s89
    %vm91 = vcmask 0
    %92 = vst.msk [vmem:[#allocation2] sm:$0x1] %vm91, %v90
    %v93 = vadd.f32 %v34, %v35
    %v94 = vadd.f32 %v93, %v36
    %v95 = vadd.f32 %v94, %v37
    %v96 = vadd.f32 %v95, %v38
    %v97 = vadd.f32 %v96, %v39
    %v98 = vadd.f32 %v97, %v40
    %v99 = vadd.f32 %v98, %v41
    %100 = vadd.xlane.f32.xlu0 %v99
    %v101 = vpop.xlane.xlu0 %100
    %v102 = vrot.slane %v101, 4
    %v103 = vadd.f32 %v101, %v102
    %v104 = vrot.slane %v103, 2
    %v105 = vadd.f32 %v103, %v104
    %v106 = vrot.slane %v105, 1
    %v107 = vadd.f32 %v105, %v106
    %s108 = vtos %v107
    %v109 = vstv %s108
    %110 = vst.msk [vmem:[#allocation4] sm:$0x1] %vm91, %v109
    // Predicated region
    $region14: #{compute_all.35} parent=1 // pred_check
      _
    $region15: #{compute_all.35} parent=1 // pred_check_branch
      %112 = sbr.rel (0) target = $region17
    $region16: #{compute_all.35} parent=1 // pred_region
      %s114 = ssub.s32 16, 16
      %115 = vsyncadd [#allocation3], %s114
      %s117 = sshll.u32 [#allocation2], 4
      %s118 = int_to_ptr.vmem [resolvable:$true] %s117
      %120 = dma.vmem_to_hbm [thread:$0]  %s118, 16, %s3, [#allocation3]
    $region17: #{compute_all.35} parent=1 // pred_fallthru
      _
    // Predicated region
    $region18: #{compute_all.35} parent=1 // pred_check
      _
    $region19: #{compute_all.35} parent=1 // pred_check_branch
      %122 = sbr.rel (0) target = $region21
    $region20: #{compute_all.35} parent=1 // pred_region
      %s124 = ssub.s32 16, 16
      %125 = vsyncadd [#allocation5], %s124
      %s127 = sshll.u32 [#allocation4], 4
      %s128 = int_to_ptr.vmem [resolvable:$true] %s127
      %130 = dma.vmem_to_hbm [thread:$0]  %s128, 16, %s4, [#allocation5]
    $region21: #{compute_all.35} parent=1 // pred_fallthru
      _
    // Predicated region
    $region22: #{compute_all.35} parent=1 // pred_check
      _
    $region23: #{compute_all.35} parent=1 // pred_check_branch
      %132 = sbr.rel (0) target = $region25
    $region24: #{compute_all.35} parent=1 // pred_region
      %133 = dma.done [#allocation3], 16
    $region25: #{compute_all.35} parent=1 // pred_fallthru
      _
    // Predicated region
    $region26: #{compute_all.35} parent=1 // pred_check
      _
    $region27: #{compute_all.35} parent=1 // pred_check_branch
      %135 = sbr.rel (0) target = $region29
    $region28: #{compute_all.35} parent=1 // pred_region
      %136 = dma.done [#allocation5], 16
    $region29: #{compute_all.35} parent=1 // pred_fallthru
      _
    %137 = vsyncpa [#allocation3], 1
    %138 = vsyncpa [#allocation5], 1

// kernel: compute_all.33
$region0: #{compute_all.33}
  #allocation0 [shape = 'u32[]', space=smem, size = 0x4, offset = 0x4, fixed_abs, tag = 'smem constant byte address 0x4 - core index']
  #allocation1 [shape = 'u32[144,128]{1,0:T(1,128)}', space=vmem, size = 0x12000, scoped, tag = 'internal scratch']
  %s0 = inlined_call_operand.vmem [shape: f32[2,66,66], index: 0, kind: input, shape index: {}]
  %s1 = inlined_call_operand.vmem [shape: f32[2,66,66], index: 1, kind: input, shape index: {}]
  %s2 = inlined_call_operand.vmem [shape: f32[2,1,1], index: 2, kind: output, shape index: {0}]
  %s3 = inlined_call_operand.vmem [shape: f32[2,1,1], index: 3, kind: output, shape index: {1}]
  %s4 = inlined_call_operand.vmem [shape: f32[2,1,1], index: 4, kind: output, shape index: {2}]
  %s5 = inlined_call_operand.vmem [shape: f32[2,1,1], index: 5, kind: output, shape index: {3}]
  %6 = xla_tuple %s2, %s3, %s4, %s5
  %s7 = sld [smem:[#allocation0]]
  $region65: #{compute_all.33} parent=0
    _
  %s9 = ssub.s32 1, %s7
  %s10 = scalar_select 0, %s9, %s7
  loop: start=0, step=1, limit=4
  $region2: #{compute_all.33} parent=0 // loop_pre_header
    _
  $region3: #{compute_all.33} parent=0 // loop_header
    %s12 = sphi 0, %s16
    %p13 = scmp.ge.s32.totalorder %s12, 4
    %s22 = sphi 0, %s24
    %s25 = sphi 0, %s22
    %s26 = sphi 0, %s25
    %s42 = sphi 0, %s26
    %s48 = sphi 0, %s50
    %s51 = sphi 0, %s48
    %s52 = sphi 0, %s51
    %s68 = sphi 0, %s52
    %s74 = sphi 0, %s76
    %s77 = sphi 0, %s74
    %s78 = sphi 0, %s77
    %s94 = sphi 0, %s78
    %s100 = sphi 0, %s102
    %s103 = sphi 0, %s100
    %s104 = sphi 0, %s103
    %s120 = sphi 0, %s104
    %s126 = sphi 0, %s128
    %s129 = sphi 0, %s126
    %s130 = sphi 0, %s129
    %s146 = sphi 0, %s130
    %s152 = sphi 0, %s154
    %s155 = sphi 0, %s152
    %s156 = sphi 0, %s155
    %s172 = sphi 0, %s156
  $region4: #{compute_all.33} parent=0 // loop_header_branch
    %15 = sbr.rel (%p13) target = $region8
  $region5: #{compute_all.33} parent=0 // loop_body
    %s17 = ssub.s32 %s12, 1
    %s18 = ssub.s32 %s12, 2
    %s19 = sadd.s32 %s12, 1
    %s20 = ssub.s32 %s12, %s19
    %p21 = scmp.eq.s32.totalorder %s20, 0
    %s23 = sadd.s32 %s22, 1
    %s24 = scalar_select %p21, %s22, %s23
    %p27 = pneg %p21
    %p28 = scmp.eq.s32.totalorder %s12, 1
    %p29 = por %p27, %p28
    %p30 = scmp.ne.s32.totalorder %s22, %s25
    %p31 = scmp.eq.s32.totalorder %s12, 0
    %p32 = por %p30, %p31
    %p33 = scmp.ne.s32.totalorder %s22, %s25
    %p34 = scmp.eq.s32.totalorder %s17, 1
    %p35 = por %p33, %p34
    %p36 = scmp.ne.s32.totalorder %s25, %s26
    %p37 = scmp.eq.s32.totalorder %s17, 0
    %p38 = por %p36, %p37
    %p39 = scmp.ne.s32.totalorder %s25, %s26
    %p40 = scmp.eq.s32.totalorder %s18, 1
    %p41 = por %p39, %p40
    %p43 = scmp.ne.s32.totalorder %s26, %s42
    %p44 = scmp.eq.s32.totalorder %s18, 0
    %p45 = por %p43, %p44
    %s46 = ssub.s32 %s12, %s19
    %p47 = scmp.eq.s32.totalorder %s46, 0
    %s49 = sadd.s32 %s48, 1
    %s50 = scalar_select %p47, %s48, %s49
    %p53 = pneg %p47
    %p54 = scmp.eq.s32.totalorder %s12, 1
    %p55 = por %p53, %p54
    %p56 = scmp.ne.s32.totalorder %s48, %s51
    %p57 = scmp.eq.s32.totalorder %s12, 0
    %p58 = por %p56, %p57
    %p59 = scmp.ne.s32.totalorder %s48, %s51
    %p60 = scmp.eq.s32.totalorder %s17, 1
    %p61 = por %p59, %p60
    %p62 = scmp.ne.s32.totalorder %s51, %s52
    %p63 = scmp.eq.s32.totalorder %s17, 0
    %p64 = por %p62, %p63
    %p65 = scmp.ne.s32.totalorder %s51, %s52
    %p66 = scmp.eq.s32.totalorder %s18, 1
    %p67 = por %p65, %p66
    %p69 = scmp.ne.s32.totalorder %s52, %s68
    %p70 = scmp.eq.s32.totalorder %s18, 0
    %p71 = por %p69, %p70
    %s72 = ssub.s32 %s12, %s19
    %p73 = scmp.eq.s32.totalorder %s72, 0
    %s75 = sadd.s32 %s74, 1
    %s76 = scalar_select %p73, %s74, %s75
    %p79 = pneg %p73
    %p80 = scmp.eq.s32.totalorder %s12, 1
    %p81 = por %p79, %p80
    %p82 = scmp.ne.s32.totalorder %s74, %s77
    %p83 = scmp.eq.s32.totalorder %s12, 0
    %p84 = por %p82, %p83
    %p85 = scmp.ne.s32.totalorder %s74, %s77
    %p86 = scmp.eq.s32.totalorder %s17, 1
    %p87 = por %p85, %p86
    %p88 = scmp.ne.s32.totalorder %s77, %s78
    %p89 = scmp.eq.s32.totalorder %s17, 0
    %p90 = por %p88, %p89
    %p91 = scmp.ne.s32.totalorder %s77, %s78
    %p92 = scmp.eq.s32.totalorder %s18, 1
    %p93 = por %p91, %p92
    %p95 = scmp.ne.s32.totalorder %s78, %s94
    %p96 = scmp.eq.s32.totalorder %s18, 0
    %p97 = por %p95, %p96
    %s98 = ssub.s32 %s12, %s19
    %p99 = scmp.eq.s32.totalorder %s98, 0
    %s101 = sadd.s32 %s100, 1
    %s102 = scalar_select %p99, %s100, %s101
    %p105 = pneg %p99
    %p106 = scmp.eq.s32.totalorder %s12, 1
    %p107 = por %p105, %p106
    %p108 = scmp.ne.s32.totalorder %s100, %s103
    %p109 = scmp.eq.s32.totalorder %s12, 0
    %p110 = por %p108, %p109
    %p111 = scmp.ne.s32.totalorder %s100, %s103
    %p112 = scmp.eq.s32.totalorder %s17, 1
    %p113 = por %p111, %p112
    %p114 = scmp.ne.s32.totalorder %s103, %s104
    %p115 = scmp.eq.s32.totalorder %s17, 0
    %p116 = por %p114, %p115
    %p117 = scmp.ne.s32.totalorder %s103, %s104
    %p118 = scmp.eq.s32.totalorder %s18, 1
    %p119 = por %p117, %p118
    %p121 = scmp.ne.s32.totalorder %s104, %s120
    %p122 = scmp.eq.s32.totalorder %s18, 0
    %p123 = por %p121, %p122
    %s124 = ssub.s32 %s12, %s19
    %p125 = scmp.eq.s32.totalorder %s124, 0
    %s127 = sadd.s32 %s126, 1
    %s128 = scalar_select %p125, %s126, %s127
    %p131 = pneg %p125
    %p132 = scmp.eq.s32.totalorder %s12, 1
    %p133 = por %p131, %p132
    %p134 = scmp.ne.s32.totalorder %s126, %s129
    %p135 = scmp.eq.s32.totalorder %s12, 0
    %p136 = por %p134, %p135
    %p137 = scmp.ne.s32.totalorder %s126, %s129
    %p138 = scmp.eq.s32.totalorder %s17, 1
    %p139 = por %p137, %p138
    %p140 = scmp.ne.s32.totalorder %s129, %s130
    %p141 = scmp.eq.s32.totalorder %s17, 0
    %p142 = por %p140, %p141
    %p143 = scmp.ne.s32.totalorder %s129, %s130
    %p144 = scmp.eq.s32.totalorder %s18, 1
    %p145 = por %p143, %p144
    %p147 = scmp.ne.s32.totalorder %s130, %s146
    %p148 = scmp.eq.s32.totalorder %s18, 0
    %p149 = por %p147, %p148
    %s150 = ssub.s32 %s12, %s19
    %p151 = scmp.eq.s32.totalorder %s150, 0
    %s153 = sadd.s32 %s152, 1
    %s154 = scalar_select %p151, %s152, %s153
    %p157 = pneg %p151
    %p158 = scmp.eq.s32.totalorder %s12, 1
    %p159 = por %p157, %p158
    %p160 = scmp.ne.s32.totalorder %s152, %s155
    %p161 = scmp.eq.s32.totalorder %s12, 0
    %p162 = por %p160, %p161
    %p163 = scmp.ne.s32.totalorder %s152, %s155
    %p164 = scmp.eq.s32.totalorder %s17, 1
    %p165 = por %p163, %p164
    %p166 = scmp.ne.s32.totalorder %s155, %s156
    %p167 = scmp.eq.s32.totalorder %s17, 0
    %p168 = por %p166, %p167
    %p169 = scmp.ne.s32.totalorder %s155, %s156
    %p170 = scmp.eq.s32.totalorder %s18, 1
    %p171 = por %p169, %p170
    %p173 = scmp.ne.s32.totalorder %s156, %s172
    %p174 = scmp.eq.s32.totalorder %s18, 0
    %p175 = por %p173, %p174
    %p176 = scmp.le.s32.totalorder 1, %s12
    %p177 = scmp.lt.s32.totalorder %s12, 3
    %p178 = pnand %p176, %p177
    %p179 = pneg %p178
    // Predicated region
    $region9: #{compute_all.33} parent=5 // pred_check
      _
    $region10: #{compute_all.33} parent=5 // pred_check_branch
      %181 = sbr.rel (%p178) target = $region12
    $region11: #{compute_all.33} parent=5 // pred_region
      %s182 = ssub.s32 %s12, 1
    $region12: #{compute_all.33} parent=5 // pred_fallthru
      _
    %p183 = scmp.lt.s32.totalorder %s12, 2
    // Predicated region
    $region13: #{compute_all.33} parent=5 // pred_check
      %p184 = pneg %p183
    $region14: #{compute_all.33} parent=5 // pred_check_branch
      %186 = sbr.rel (%p184) target = $region16
    $region15: #{compute_all.33} parent=5 // pred_region
      // Predicated region
      $region17: #{compute_all.33} parent=15 // pred_check
        %p187 = pneg %p32
      $region18: #{compute_all.33} parent=15 // pred_check_branch
        %189 = sbr.rel (%p187) target = $region20
      $region19: #{compute_all.33} parent=15 // pred_region
        %p190 = scmp.lt.s32.totalorder %s12, 1
        %s191 = scalar_select %p190, %s12, 1
        %s192 = smul.addr %s191, 9
        %s193 = smul.addr %s192, 8
        %s194 = scalar_lea.vmem %s0, %s193
      $region20: #{compute_all.33} parent=15 // pred_fallthru
        _
      // Predicated region
      $region21: #{compute_all.33} parent=15 // pred_check
        %p195 = pneg %p58
      $region22: #{compute_all.33} parent=15 // pred_check_branch
        %197 = sbr.rel (%p195) target = $region24
      $region23: #{compute_all.33} parent=15 // pred_region
        %p198 = scmp.lt.s32.totalorder %s12, 1
        %s199 = scalar_select %p198, %s12, 1
        %s200 = smul.addr %s199, 9
        %s201 = smul.addr %s200, 8
        %s202 = scalar_lea.vmem %s1, %s201
      $region24: #{compute_all.33} parent=15 // pred_fallthru
        _
    $region16: #{compute_all.33} parent=5 // pred_fallthru
      _
    %p203 = scmp.le.s32.totalorder 1, %s12
    %p204 = scmp.lt.s32.totalorder %s12, 3
    %p205 = pnand %p203, %p204
    %p206 = pneg %p205
    // Predicated region
    $region25: #{compute_all.33} parent=5 // pred_check
      _
    $region26: #{compute_all.33} parent=5 // pred_check_branch
      %208 = sbr.rel (%p205) target = $region28
    $region27: #{compute_all.33} parent=5 // pred_region
      %s209 = ssub.s32 %s12, 1
      %p210 = scmp.lt.s32.totalorder %s17, 1
      %s211 = scalar_select %p210, %s17, 1
      %s212 = smul.addr %s211, 9
      %s213 = smul.addr %s212, 8
      %s214 = scalar_lea.vmem %s0, %s213
      %p215 = pneg %p38
      %p216 = pneg %p35
      %p217 = scmp.lt.s32.totalorder %s17, 1
      %s218 = scalar_select %p217, %s17, 1
      %s219 = smul.addr %s218, 9
      %s220 = smul.addr %s219, 8
      %s221 = scalar_lea.vmem %s1, %s220
      %p222 = pneg %p64
      %p223 = pneg %p61
      %p224 = pneg %p90
      %p225 = pneg %p87
      %p226 = scmp.lt.s32.totalorder %s17, 1
      %s227 = scalar_select %p226, %s17, 1
      %s228 = scalar_lea.vmem %s2, %s227
      %p229 = pneg %p116
      %p230 = pneg %p113
      %p231 = scmp.lt.s32.totalorder %s17, 1
      %s232 = scalar_select %p231, %s17, 1
      %s233 = scalar_lea.vmem %s3, %s232
      %p234 = pneg %p142
      %p235 = pneg %p139
      %p236 = scmp.lt.s32.totalorder %s17, 1
      %s237 = scalar_select %p236, %s17, 1
      %s238 = scalar_lea.vmem %s4, %s237
      %p239 = pneg %p168
      %p240 = pneg %p165
      %p241 = scmp.lt.s32.totalorder %s17, 1
      %s242 = scalar_select %p241, %s17, 1
      %s243 = scalar_lea.vmem %s5, %s242
      %p244 = scmp.lt.s32.totalorder %s17, 1
      %s245 = scalar_select %p244, %s17, 1
      %s246 = smul.addr %s245, 9
      %s247 = smul.addr %s246, 8
      %s248 = scalar_lea.vmem %s0, %s247
      %p249 = scmp.lt.s32.totalorder %s17, 1
      %s250 = scalar_select %p249, %s17, 1
      %s251 = smul.addr %s250, 9
      %s252 = smul.addr %s251, 8
      %s253 = scalar_lea.vmem %s1, %s252
      %p254 = scmp.lt.s32.totalorder %s17, 1
      %s255 = scalar_select %p254, %s17, 1
      %s256 = scalar_lea.vmem %s2, %s255
      %p257 = scmp.lt.s32.totalorder %s17, 1
      %s258 = scalar_select %p257, %s17, 1
      %s259 = scalar_lea.vmem %s3, %s258
      %p260 = scmp.lt.s32.totalorder %s17, 1
      %s261 = scalar_select %p260, %s17, 1
      %s262 = scalar_lea.vmem %s4, %s261
      %p263 = scmp.lt.s32.totalorder %s17, 1
      %s264 = scalar_select %p263, %s17, 1
      %s265 = scalar_lea.vmem %s5, %s264
      %v266 = vld [vmem:[%s248] sm:$0xff]
      %v267 = vld [vmem:[%s248 + $0x8] sm:$0xff]
      %v268 = vld [vmem:[%s248 + $0x10] sm:$0xff]
      %v269 = vld [vmem:[%s248 + $0x18] sm:$0xff]
      %v270 = vld [vmem:[%s248 + $0x20] sm:$0xff]
      %v271 = vld [vmem:[%s248 + $0x28] sm:$0xff]
      %v272 = vld [vmem:[%s248 + $0x30] sm:$0xff]
      %v273 = vld [vmem:[%s248 + $0x38] sm:$0xff]
      %v274 = vld [vmem:[%s248 + $0x40] sm:$0x3]
      %v275 = vld [vmem:[%s253] sm:$0xff]
      %v276 = vld [vmem:[%s253 + $0x8] sm:$0xff]
      %v277 = vld [vmem:[%s253 + $0x10] sm:$0xff]
      %v278 = vld [vmem:[%s253 + $0x18] sm:$0xff]
      %v279 = vld [vmem:[%s253 + $0x20] sm:$0xff]
      %v280 = vld [vmem:[%s253 + $0x28] sm:$0xff]
      %v281 = vld [vmem:[%s253 + $0x30] sm:$0xff]
      %v282 = vld [vmem:[%s253 + $0x38] sm:$0xff]
      %v283 = vld [vmem:[%s253 + $0x40] sm:$0x3]
      %v284 = vmul.f32 %v266, 2.0
      %v285 = vmul.f32 %v267, 2.0
      %v286 = vmul.f32 %v268, 2.0
      %v287 = vmul.f32 %v269, 2.0
      %v288 = vmul.f32 %v270, 2.0
      %v289 = vmul.f32 %v271, 2.0
      %v290 = vmul.f32 %v272, 2.0
      %v291 = vmul.f32 %v273, 2.0
      %v292 = vmul.f32 %v274, 2.0
      %vm302 = vcmask 1046528
      %v303 = vrot.slane %v284, 1
      %v304 = vrot.slane %v285, 1
      %v305 = vsel %vm302, %v303, %v304
      %v306 = vrot.slane %v286, 1
      %v307 = vsel %vm302, %v304, %v306
      %v308 = vrot.slane %v287, 1
      %v309 = vsel %vm302, %v306, %v308
      %v310 = vrot.slane %v288, 1
      %v311 = vsel %vm302, %v308, %v310
      %v312 = vrot.slane %v289, 1
      %v313 = vsel %vm302, %v310, %v312
      %v314 = vrot.slane %v290, 1
      %v315 = vsel %vm302, %v312, %v314
      %v316 = vrot.slane %v291, 1
      %v317 = vsel %vm302, %v314, %v316
      %v318 = vrot.slane %v292, 1
      %v319 = vsel %vm302, %v316, %v318
      %v328 = vadd.f32 %v266, %v305
      %v329 = vadd.f32 %v267, %v307
      %v330 = vadd.f32 %v268, %v309
      %v331 = vadd.f32 %v269, %v311
      %v332 = vadd.f32 %v270, %v313
      %v333 = vadd.f32 %v271, %v315
      %v334 = vadd.f32 %v272, %v317
      %v335 = vadd.f32 %v273, %v319
      %vm345 = vcmask 1045504
      %v346 = vrot.slane %v266, 2
      %v347 = vrot.slane %v267, 2
      %v348 = vsel %vm345, %v346, %v347
      %v349 = vrot.slane %v268, 2
      %v350 = vsel %vm345, %v347, %v349
      %v351 = vrot.slane %v269, 2
      %v352 = vsel %vm345, %v349, %v351
      %v353 = vrot.slane %v270, 2
      %v354 = vsel %vm345, %v351, %v353
      %v355 = vrot.slane %v271, 2
      %v356 = vsel %vm345, %v353, %v355
      %v357 = vrot.slane %v272, 2
      %v358 = vsel %vm345, %v355, %v357
      %v359 = vrot.slane %v273, 2
      %v360 = vsel %vm345, %v357, %v359
      %v361 = vrot.slane %v274, 2
      %v362 = vsel %vm345, %v359, %v361
      %v371 = vadd.f32 %v328, %v348
      %v372 = vadd.f32 %v329, %v350
      %v373 = vadd.f32 %v330, %v352
      %v374 = vadd.f32 %v331, %v354
      %v375 = vadd.f32 %v332, %v356
      %v376 = vadd.f32 %v333, %v358
      %v377 = vadd.f32 %v334, %v360
      %v378 = vadd.f32 %v335, %v362
      %387 = vrot.lane.b32.xlu0 %v371, 2
      %v388 = vpop.permute.xlu0 %387
      %389 = vrot.lane.b32.xlu0 %v372, 2
      %v390 = vpop.permute.xlu0 %389
      %391 = vrot.lane.b32.xlu0 %v373, 2
      %v392 = vpop.permute.xlu0 %391
      %393 = vrot.lane.b32.xlu0 %v374, 2
      %v394 = vpop.permute.xlu0 %393
      %395 = vrot.lane.b32.xlu0 %v375, 2
      %v396 = vpop.permute.xlu0 %395
      %397 = vrot.lane.b32.xlu0 %v376, 2
      %v398 = vpop.permute.xlu0 %397
      %399 = vrot.lane.b32.xlu0 %v377, 2
      %v400 = vpop.permute.xlu0 %399
      %401 = vrot.lane.b32.xlu0 %v378, 2
      %v402 = vpop.permute.xlu0 %401
      %v411 = vsub.f32 %v371, %v388
      %v412 = vsub.f32 %v372, %v390
      %v413 = vsub.f32 %v373, %v392
      %v414 = vsub.f32 %v374, %v394
      %v415 = vsub.f32 %v375, %v396
      %v416 = vsub.f32 %v376, %v398
      %v417 = vsub.f32 %v377, %v400
      %v418 = vsub.f32 %v378, %v402
      %v419 = vmul.f32 %v275, 2.0
      %v420 = vmul.f32 %v276, 2.0
      %v421 = vmul.f32 %v277, 2.0
      %v422 = vmul.f32 %v278, 2.0
      %v423 = vmul.f32 %v279, 2.0
      %v424 = vmul.f32 %v280, 2.0
      %v425 = vmul.f32 %v281, 2.0
      %v426 = vmul.f32 %v282, 2.0
      %v427 = vmul.f32 %v283, 2.0
      %v437 = vrot.slane %v419, 1
      %v438 = vrot.slane %v420, 1
      %v439 = vsel %vm302, %v437, %v438
      %v440 = vrot.slane %v421, 1
      %v441 = vsel %vm302, %v438, %v440
      %v442 = vrot.slane %v422, 1
      %v443 = vsel %vm302, %v440, %v442
      %v444 = vrot.slane %v423, 1
      %v445 = vsel %vm302, %v442, %v444
      %v446 = vrot.slane %v424, 1
      %v447 = vsel %vm302, %v444, %v446
      %v448 = vrot.slane %v425, 1
      %v449 = vsel %vm302, %v446, %v448
      %v450 = vrot.slane %v426, 1
      %v451 = vsel %vm302, %v448, %v450
      %v452 = vrot.slane %v427, 1
      %v453 = vsel %vm302, %v450, %v452
      %v462 = vadd.f32 %v275, %v439
      %v463 = vadd.f32 %v276, %v441
      %v464 = vadd.f32 %v277, %v443
      %v465 = vadd.f32 %v278, %v445
      %v466 = vadd.f32 %v279, %v447
      %v467 = vadd.f32 %v280, %v449
      %v468 = vadd.f32 %v281, %v451
      %v469 = vadd.f32 %v282, %v453
      %v479 = vrot.slane %v275, 2
      %v480 = vrot.slane %v276, 2
      %v481 = vsel %vm345, %v479, %v480
      %v482 = vrot.slane %v277, 2
      %v483 = vsel %vm345, %v480, %v482
      %v484 = vrot.slane %v278, 2
      %v485 = vsel %vm345, %v482, %v484
      %v486 = vrot.slane %v279, 2
      %v487 = vsel %vm345, %v484, %v486
      %v488 = vrot.slane %v280, 2
      %v489 = vsel %vm345, %v486, %v488
      %v490 = vrot.slane %v281, 2
      %v491 = vsel %vm345, %v488, %v490
      %v492 = vrot.slane %v282, 2
      %v493 = vsel %vm345, %v490, %v492
      %v494 = vrot.slane %v283, 2
      %v495 = vsel %vm345, %v492, %v494
      %v504 = vadd.f32 %v462, %v481
      %v505 = vadd.f32 %v463, %v483
      %v506 = vadd.f32 %v464, %v485
      %v507 = vadd.f32 %v465, %v487
      %v508 = vadd.f32 %v466, %v489
      %v509 = vadd.f32 %v467, %v491
      %v510 = vadd.f32 %v468, %v493
      %v511 = vadd.f32 %v469, %v495
      %520 = vrot.lane.b32.xlu0 %v504, 2
      %v521 = vpop.permute.xlu0 %520
      %522 = vrot.lane.b32.xlu0 %v505, 2
      %v523 = vpop.permute.xlu0 %522
      %524 = vrot.lane.b32.xlu0 %v506, 2
      %v525 = vpop.permute.xlu0 %524
      %526 = vrot.lane.b32.xlu0 %v507, 2
      %v527 = vpop.permute.xlu0 %526
      %528 = vrot.lane.b32.xlu0 %v508, 2
      %v529 = vpop.permute.xlu0 %528
      %530 = vrot.lane.b32.xlu0 %v509, 2
      %v531 = vpop.permute.xlu0 %530
      %532 = vrot.lane.b32.xlu0 %v510, 2
      %v533 = vpop.permute.xlu0 %532
      %534 = vrot.lane.b32.xlu0 %v511, 2
      %v535 = vpop.permute.xlu0 %534
      %v544 = vsub.f32 %v504, %v521
      %v545 = vsub.f32 %v505, %v523
      %v546 = vsub.f32 %v506, %v525
      %v547 = vsub.f32 %v507, %v527
      %v548 = vsub.f32 %v508, %v529
      %v549 = vsub.f32 %v509, %v531
      %v550 = vsub.f32 %v510, %v533
      %v551 = vsub.f32 %v511, %v535
      %vm552 = vcmask 1041408
      %v553 = vrot.slane %v266, 6
      %v554 = vrot.slane %v267, 6
      %v555 = vsel %vm552, %v553, %v554
      %v556 = vrot.slane %v268, 6
      %v557 = vsel %vm552, %v554, %v556
      %v558 = vrot.slane %v269, 6
      %v559 = vsel %vm552, %v556, %v558
      %v560 = vrot.slane %v270, 6
      %v561 = vsel %vm552, %v558, %v560
      %v562 = vrot.slane %v271, 6
      %v563 = vsel %vm552, %v560, %v562
      %v564 = vrot.slane %v272, 6
      %v565 = vsel %vm552, %v562, %v564
      %v566 = vrot.slane %v273, 6
      %v567 = vsel %vm552, %v564, %v566
      %v577 = vsub.f32 %v266, %v553
      %v578 = vsub.f32 %v267, %v555
      %v579 = vsub.f32 %v268, %v557
      %v580 = vsub.f32 %v269, %v559
      %v581 = vsub.f32 %v270, %v561
      %v582 = vsub.f32 %v271, %v563
      %v583 = vsub.f32 %v272, %v565
      %v584 = vsub.f32 %v273, %v567
      %v585 = vsub.f32 %v274, %v566
      %v586 = vmul.f32 %v577, 2.0
      %v587 = vmul.f32 %v578, 2.0
      %v588 = vmul.f32 %v579, 2.0
      %v589 = vmul.f32 %v580, 2.0
      %v590 = vmul.f32 %v581, 2.0
      %v591 = vmul.f32 %v582, 2.0
      %v592 = vmul.f32 %v583, 2.0
      %v593 = vmul.f32 %v584, 2.0
      %v594 = vmul.f32 %v585, 2.0
      %604 = vrot.lane.b32.xlu0 %v586, 127
      %v605 = vpop.permute.xlu0 %604
      %606 = vrot.lane.b32.xlu0 %v587, 127
      %v607 = vpop.permute.xlu0 %606
      %608 = vrot.lane.b32.xlu0 %v588, 127
      %v609 = vpop.permute.xlu0 %608
      %610 = vrot.lane.b32.xlu0 %v589, 127
      %v611 = vpop.permute.xlu0 %610
      %612 = vrot.lane.b32.xlu0 %v590, 127
      %v613 = vpop.permute.xlu0 %612
      %614 = vrot.lane.b32.xlu0 %v591, 127
      %v615 = vpop.permute.xlu0 %614
      %616 = vrot.lane.b32.xlu0 %v592, 127
      %v617 = vpop.permute.xlu0 %616
      %618 = vrot.lane.b32.xlu0 %v593, 127
      %v619 = vpop.permute.xlu0 %618
      %620 = vrot.lane.b32.xlu0 %v594, 127
      %v621 = vpop.permute.xlu0 %620
      %v631 = vadd.f32 %v577, %v605
      %v632 = vadd.f32 %v578, %v607
      %v633 = vadd.f32 %v579, %v609
      %v634 = vadd.f32 %v580, %v611
      %v635 = vadd.f32 %v581, %v613
      %v636 = vadd.f32 %v582, %v615
      %v637 = vadd.f32 %v583, %v617
      %v638 = vadd.f32 %v584, %v619
      %v639 = vadd.f32 %v585, %v621
      %649 = vrot.lane.b32.xlu0 %v577, 126
      %v650 = vpop.permute.xlu0 %649
      %651 = vrot.lane.b32.xlu0 %v578, 126
      %v652 = vpop.permute.xlu0 %651
      %653 = vrot.lane.b32.xlu0 %v579, 126
      %v654 = vpop.permute.xlu0 %653
      %655 = vrot.lane.b32.xlu0 %v580, 126
      %v656 = vpop.permute.xlu0 %655
      %657 = vrot.lane.b32.xlu0 %v581, 126
      %v658 = vpop.permute.xlu0 %657
      %659 = vrot.lane.b32.xlu0 %v582, 126
      %v660 = vpop.permute.xlu0 %659
      %661 = vrot.lane.b32.xlu0 %v583, 126
      %v662 = vpop.permute.xlu0 %661
      %663 = vrot.lane.b32.xlu0 %v584, 126
      %v664 = vpop.permute.xlu0 %663
      %665 = vrot.lane.b32.xlu0 %v585, 126
      %v666 = vpop.permute.xlu0 %665
      %v676 = vadd.f32 %v631, %v650
      %v677 = vadd.f32 %v632, %v652
      %v678 = vadd.f32 %v633, %v654
      %v679 = vadd.f32 %v634, %v656
      %v680 = vadd.f32 %v635, %v658
      %v681 = vadd.f32 %v636, %v660
      %v682 = vadd.f32 %v637, %v662
      %v683 = vadd.f32 %v638, %v664
      %v684 = vadd.f32 %v639, %v666
      %v685 = vrot.slane %v275, 6
      %v686 = vrot.slane %v276, 6
      %v687 = vsel %vm552, %v685, %v686
      %v688 = vrot.slane %v277, 6
      %v689 = vsel %vm552, %v686, %v688
      %v690 = vrot.slane %v278, 6
      %v691 = vsel %vm552, %v688, %v690
      %v692 = vrot.slane %v279, 6
      %v693 = vsel %vm552, %v690, %v692
      %v694 = vrot.slane %v280, 6
      %v695 = vsel %vm552, %v692, %v694
      %v696 = vrot.slane %v281, 6
      %v697 = vsel %vm552, %v694, %v696
      %v698 = vrot.slane %v282, 6
      %v699 = vsel %vm552, %v696, %v698
      %v709 = vsub.f32 %v275, %v685
      %v710 = vsub.f32 %v276, %v687
      %v711 = vsub.f32 %v277, %v689
      %v712 = vsub.f32 %v278, %v691
      %v713 = vsub.f32 %v279, %v693
      %v714 = vsub.f32 %v280, %v695
      %v715 = vsub.f32 %v281, %v697
      %v716 = vsub.f32 %v282, %v699
      %v717 = vsub.f32 %v283, %v698
      %v718 = vmul.f32 %v709, 2.0
      %v719 = vmul.f32 %v710, 2.0
      %v720 = vmul.f32 %v711, 2.0
      %v721 = vmul.f32 %v712, 2.0
      %v722 = vmul.f32 %v713, 2.0
      %v723 = vmul.f32 %v714, 2.0
      %v724 = vmul.f32 %v715, 2.0
      %v725 = vmul.f32 %v716, 2.0
      %v726 = vmul.f32 %v717, 2.0
      %736 = vrot.lane.b32.xlu0 %v718, 127
      %v737 = vpop.permute.xlu0 %736
      %738 = vrot.lane.b32.xlu0 %v719, 127
      %v739 = vpop.permute.xlu0 %738
      %740 = vrot.lane.b32.xlu0 %v720, 127
      %v741 = vpop.permute.xlu0 %740
      %742 = vrot.lane.b32.xlu0 %v721, 127
      %v743 = vpop.permute.xlu0 %742
      %744 = vrot.lane.b32.xlu0 %v722, 127
      %v745 = vpop.permute.xlu0 %744
      %746 = vrot.lane.b32.xlu0 %v723, 127
      %v747 = vpop.permute.xlu0 %746
      %748 = vrot.lane.b32.xlu0 %v724, 127
      %v749 = vpop.permute.xlu0 %748
      %750 = vrot.lane.b32.xlu0 %v725, 127
      %v751 = vpop.permute.xlu0 %750
      %752 = vrot.lane.b32.xlu0 %v726, 127
      %v753 = vpop.permute.xlu0 %752
      %v763 = vadd.f32 %v709, %v737
      %v764 = vadd.f32 %v710, %v739
      %v765 = vadd.f32 %v711, %v741
      %v766 = vadd.f32 %v712, %v743
      %v767 = vadd.f32 %v713, %v745
      %v768 = vadd.f32 %v714, %v747
      %v769 = vadd.f32 %v715, %v749
      %v770 = vadd.f32 %v716, %v751
      %v771 = vadd.f32 %v717, %v753
      %781 = vrot.lane.b32.xlu0 %v709, 126
      %v782 = vpop.permute.xlu0 %781
      %783 = vrot.lane.b32.xlu0 %v710, 126
      %v784 = vpop.permute.xlu0 %783
      %785 = vrot.lane.b32.xlu0 %v711, 126
      %v786 = vpop.permute.xlu0 %785
      %787 = vrot.lane.b32.xlu0 %v712, 126
      %v788 = vpop.permute.xlu0 %787
      %789 = vrot.lane.b32.xlu0 %v713, 126
      %v790 = vpop.permute.xlu0 %789
      %791 = vrot.lane.b32.xlu0 %v714, 126
      %v792 = vpop.permute.xlu0 %791
      %793 = vrot.lane.b32.xlu0 %v715, 126
      %v794 = vpop.permute.xlu0 %793
      %795 = vrot.lane.b32.xlu0 %v716, 126
      %v796 = vpop.permute.xlu0 %795
      %797 = vrot.lane.b32.xlu0 %v717, 126
      %v798 = vpop.permute.xlu0 %797
      %v808 = vadd.f32 %v763, %v782
      %v809 = vadd.f32 %v764, %v784
      %v810 = vadd.f32 %v765, %v786
      %v811 = vadd.f32 %v766, %v788
      %v812 = vadd.f32 %v767, %v790
      %v813 = vadd.f32 %v768, %v792
      %v814 = vadd.f32 %v769, %v794
      %v815 = vadd.f32 %v770, %v796
      %v816 = vadd.f32 %v771, %v798
      %v817 = vsub.f32 %v411, %v544
      %v818 = vsub.f32 %v412, %v545
      %v819 = vsub.f32 %v413, %v546
      %v820 = vsub.f32 %v414, %v547
      %v821 = vsub.f32 %v415, %v548
      %v822 = vsub.f32 %v416, %v549
      %v823 = vsub.f32 %v417, %v550
      %v824 = vsub.f32 %v418, %v551
      %v825 = vand.u32 2147483647, %v817
      %v826 = vand.u32 2147483647, %v818
      %v827 = vand.u32 2147483647, %v819
      %v828 = vand.u32 2147483647, %v820
      %v829 = vand.u32 2147483647, %v821
      %v830 = vand.u32 2147483647, %v822
      %v831 = vand.u32 2147483647, %v823
      %v832 = vand.u32 2147483647, %v824
      %841 = vrot.lane.b32.xlu0 %v825, 126
      %v842 = vpop.permute.xlu0 %841
      %843 = vrot.lane.b32.xlu0 %v826, 126
      %v844 = vpop.permute.xlu0 %843
      %845 = vrot.lane.b32.xlu0 %v827, 126
      %v846 = vpop.permute.xlu0 %845
      %847 = vrot.lane.b32.xlu0 %v828, 126
      %v848 = vpop.permute.xlu0 %847
      %849 = vrot.lane.b32.xlu0 %v829, 126
      %v850 = vpop.permute.xlu0 %849
      %851 = vrot.lane.b32.xlu0 %v830, 126
      %v852 = vpop.permute.xlu0 %851
      %853 = vrot.lane.b32.xlu0 %v831, 126
      %v854 = vpop.permute.xlu0 %853
      %855 = vrot.lane.b32.xlu0 %v832, 126
      %v856 = vpop.permute.xlu0 %855
      %vm865 = vcmask 523264
      %v866 = vsel %vm865, %v842, 0.0
      %v867 = vsel %vm865, %v844, 0.0
      %v868 = vadd.f32 %v866, %v867
      %v869 = vsel %vm865, %v846, 0.0
      %v870 = vadd.f32 %v868, %v869
      %v871 = vsel %vm865, %v848, 0.0
      %v872 = vadd.f32 %v870, %v871
      %v873 = vsel %vm865, %v850, 0.0
      %v874 = vadd.f32 %v872, %v873
      %v875 = vsel %vm865, %v852, 0.0
      %v876 = vadd.f32 %v874, %v875
      %v877 = vsel %vm865, %v854, 0.0
      %v878 = vadd.f32 %v876, %v877
      %v879 = vsel %vm865, %v856, 0.0
      %v880 = vadd.f32 %v878, %v879
      %881 = vadd.xlane.f32.xlu0 %v880
      %v882 = vpop.xlane.xlu0 %881
      %v883 = vrot.slane %v882, 4
      %v884 = vadd.f32 %v882, %v883
      %v885 = vrot.slane %v884, 2
      %v886 = vadd.f32 %v884, %v885
      %v887 = vrot.slane %v886, 1
      %v888 = vadd.f32 %v886, %v887
      %s889 = vtos %v888
      %v890 = vstv %s889
      %vm891 = vcmask 0
      %892 = vst.msk [vmem:[%s256] sm:$0x1] %vm891, %v890
      %v893 = vsub.f32 %v676, %v808
      %v894 = vsub.f32 %v677, %v809
      %v895 = vsub.f32 %v678, %v810
      %v896 = vsub.f32 %v679, %v811
      %v897 = vsub.f32 %v680, %v812
      %v898 = vsub.f32 %v681, %v813
      %v899 = vsub.f32 %v682, %v814
      %v900 = vsub.f32 %v683, %v815
      %v901 = vsub.f32 %v684, %v816
      %v902 = vand.u32 2147483647, %v893
      %v903 = vand.u32 2147483647, %v894
      %v904 = vand.u32 2147483647, %v895
      %v905 = vand.u32 2147483647, %v896
      %v906 = vand.u32 2147483647, %v897
      %v907 = vand.u32 2147483647, %v898
      %v908 = vand.u32 2147483647, %v899
      %v909 = vand.u32 2147483647, %v900
      %v910 = vand.u32 2147483647, %v901
      %v920 = vrot.slane %v902, 2
      %v921 = vrot.slane %v903, 2
      %v922 = vsel %vm345, %v920, %v921
      %v923 = vrot.slane %v904, 2
      %v924 = vsel %vm345, %v921, %v923
      %v925 = vrot.slane %v905, 2
      %v926 = vsel %vm345, %v923, %v925
      %v927 = vrot.slane %v906, 2
      %v928 = vsel %vm345, %v925, %v927
      %v929 = vrot.slane %v907, 2
      %v930 = vsel %vm345, %v927, %v929
      %v931 = vrot.slane %v908, 2
      %v932 = vsel %vm345, %v929, %v931
      %v933 = vrot.slane %v909, 2
      %v934 = vsel %vm345, %v931, %v933
      %v935 = vrot.slane %v910, 2
      %v936 = vsel %vm345, %v933, %v935
      %v945 = vsel %vm865, %v922, 0.0
      %v946 = vsel %vm865, %v924, 0.0
      %v947 = vadd.f32 %v945, %v946
      %v948 = vsel %vm865, %v926, 0.0
      %v949 = vadd.f32 %v947, %v948
      %v950 = vsel %vm865, %v928, 0.0
      %v951 = vadd.f32 %v949, %v950
      %v952 = vsel %vm865, %v930, 0.0
      %v953 = vadd.f32 %v951, %v952
      %v954 = vsel %vm865, %v932, 0.0
      %v955 = vadd.f32 %v953, %v954
      %v956 = vsel %vm865, %v934, 0.0
      %v957 = vadd.f32 %v955, %v956
      %v958 = vsel %vm865, %v936, 0.0
      %v959 = vadd.f32 %v957, %v958
      %960 = vadd.xlane.f32.xlu0 %v959
      %v961 = vpop.xlane.xlu0 %960
      %v962 = vrot.slane %v961, 4
      %v963 = vadd.f32 %v961, %v962
      %v964 = vrot.slane %v963, 2
      %v965 = vadd.f32 %v963, %v964
      %v966 = vrot.slane %v965, 1
      %v967 = vadd.f32 %v965, %v966
      %s968 = vtos %v967
      %v969 = vstv %s968
      %970 = vst.msk [vmem:[%s259] sm:$0x1] %vm891, %v969
      %v971 = vand.u32 2147483647, %v411
      %v972 = vand.u32 2147483647, %v412
      %v973 = vand.u32 2147483647, %v413
      %v974 = vand.u32 2147483647, %v414
      %v975 = vand.u32 2147483647, %v415
      %v976 = vand.u32 2147483647, %v416
      %v977 = vand.u32 2147483647, %v417
      %v978 = vand.u32 2147483647, %v418
      %987 = vrot.lane.b32.xlu0 %v971, 126
      %v988 = vpop.permute.xlu0 %987
      %989 = vrot.lane.b32.xlu0 %v972, 126
      %v990 = vpop.permute.xlu0 %989
      %991 = vrot.lane.b32.xlu0 %v973, 126
      %v992 = vpop.permute.xlu0 %991
      %993 = vrot.lane.b32.xlu0 %v974, 126
      %v994 = vpop.permute.xlu0 %993
      %995 = vrot.lane.b32.xlu0 %v975, 126
      %v996 = vpop.permute.xlu0 %995
      %997 = vrot.lane.b32.xlu0 %v976, 126
      %v998 = vpop.permute.xlu0 %997
      %999 = vrot.lane.b32.xlu0 %v977, 126
      %v1000 = vpop.permute.xlu0 %999
      %1001 = vrot.lane.b32.xlu0 %v978, 126
      %v1002 = vpop.permute.xlu0 %1001
      %v1011 = vsel %vm865, %v988, 0.0
      %v1012 = vsel %vm865, %v990, 0.0
      %v1013 = vadd.f32 %v1011, %v1012
      %v1014 = vsel %vm865, %v992, 0.0
      %v1015 = vadd.f32 %v1013, %v1014
      %v1016 = vsel %vm865, %v994, 0.0
      %v1017 = vadd.f32 %v1015, %v1016
      %v1018 = vsel %vm865, %v996, 0.0
      %v1019 = vadd.f32 %v1017, %v1018
      %v1020 = vsel %vm865, %v998, 0.0
      %v1021 = vadd.f32 %v1019, %v1020
      %v1022 = vsel %vm865, %v1000, 0.0
      %v1023 = vadd.f32 %v1021, %v1022
      %v1024 = vsel %vm865, %v1002, 0.0
      %v1025 = vadd.f32 %v1023, %v1024
      %1026 = vadd.xlane.f32.xlu0 %v1025
      %v1027 = vpop.xlane.xlu0 %1026
      %v1028 = vrot.slane %v1027, 4
      %v1029 = vadd.f32 %v1027, %v1028
      %v1030 = vrot.slane %v1029, 2
      %v1031 = vadd.f32 %v1029, %v1030
      %v1032 = vrot.slane %v1031, 1
      %v1033 = vadd.f32 %v1031, %v1032
      %s1034 = vtos %v1033
      %v1035 = vstv %s1034
      %1036 = vst.msk [vmem:[%s262] sm:$0x1] %vm891, %v1035
      %v1037 = vand.u32 2147483647, %v676
      %v1038 = vand.u32 2147483647, %v677
      %v1039 = vand.u32 2147483647, %v678
      %v1040 = vand.u32 2147483647, %v679
      %v1041 = vand.u32 2147483647, %v680
      %v1042 = vand.u32 2147483647, %v681
      %v1043 = vand.u32 2147483647, %v682
      %v1044 = vand.u32 2147483647, %v683
      %v1045 = vand.u32 2147483647, %v684
      %v1055 = vrot.slane %v1037, 2
      %v1056 = vrot.slane %v1038, 2
      %v1057 = vsel %vm345, %v1055, %v1056
      %v1058 = vrot.slane %v1039, 2
      %v1059 = vsel %vm345, %v1056, %v1058
      %v1060 = vrot.slane %v1040, 2
      %v1061 = vsel %vm345, %v1058, %v1060
      %v1062 = vrot.slane %v1041, 2
      %v1063 = vsel %vm345, %v1060, %v1062
      %v1064 = vrot.slane %v1042, 2
      %v1065 = vsel %vm345, %v1062, %v1064
      %v1066 = vrot.slane %v1043, 2
      %v1067 = vsel %vm345, %v1064, %v1066
      %v1068 = vrot.slane %v1044, 2
      %v1069 = vsel %vm345, %v1066, %v1068
      %v1070 = vrot.slane %v1045, 2
      %v1071 = vsel %vm345, %v1068, %v1070
      %v1080 = vsel %vm865, %v1057, 0.0
      %v1081 = vsel %vm865, %v1059, 0.0
      %v1082 = vadd.f32 %v1080, %v1081
      %v1083 = vsel %vm865, %v1061, 0.0
      %v1084 = vadd.f32 %v1082, %v1083
      %v1085 = vsel %vm865, %v1063, 0.0
      %v1086 = vadd.f32 %v1084, %v1085
      %v1087 = vsel %vm865, %v1065, 0.0
      %v1088 = vadd.f32 %v1086, %v1087
      %v1089 = vsel %vm865, %v1067, 0.0
      %v1090 = vadd.f32 %v1088, %v1089
      %v1091 = vsel %vm865, %v1069, 0.0
      %v1092 = vadd.f32 %v1090, %v1091
      %v1093 = vsel %vm865, %v1071, 0.0
      %v1094 = vadd.f32 %v1092, %v1093
      %1095 = vadd.xlane.f32.xlu0 %v1094
      %v1096 = vpop.xlane.xlu0 %1095
      %v1097 = vrot.slane %v1096, 4
      %v1098 = vadd.f32 %v1096, %v1097
      %v1099 = vrot.slane %v1098, 2
      %v1100 = vadd.f32 %v1098, %v1099
      %v1101 = vrot.slane %v1100, 1
      %v1102 = vadd.f32 %v1100, %v1101
      %s1103 = vtos %v1102
      %v1104 = vstv %s1103
      %1105 = vst.msk [vmem:[%s265] sm:$0x1] %vm891, %v1104
      %p1106 = scmp.lt.s32.totalorder %s17, 1
      %s1107 = scalar_select %p1106, %s17, 1
      %s1108 = scalar_lea.vmem %s2, %s1107
      %p1109 = scmp.lt.s32.totalorder %s17, 1
      %s1110 = scalar_select %p1109, %s17, 1
      %s1111 = scalar_lea.vmem %s3, %s1110
      %p1112 = scmp.lt.s32.totalorder %s17, 1
      %s1113 = scalar_select %p1112, %s17, 1
      %s1114 = scalar_lea.vmem %s4, %s1113
      %p1115 = scmp.lt.s32.totalorder %s17, 1
      %s1116 = scalar_select %p1115, %s17, 1
      %s1117 = scalar_lea.vmem %s5, %s1116
      // Predicated region
      $region29: #{compute_all.33} parent=27 // pred_check
        %p1118 = pneg %p87
      $region30: #{compute_all.33} parent=27 // pred_check_branch
        %1120 = sbr.rel (%p1118) target = $region32
      $region31: #{compute_all.33} parent=27 // pred_region
        _
      $region32: #{compute_all.33} parent=27 // pred_fallthru
        _
      // Predicated region
      $region33: #{compute_all.33} parent=27 // pred_check
        %p1121 = pneg %p113
      $region34: #{compute_all.33} parent=27 // pred_check_branch
        %1123 = sbr.rel (%p1121) target = $region36
      $region35: #{compute_all.33} parent=27 // pred_region
        _
      $region36: #{compute_all.33} parent=27 // pred_fallthru
        _
      // Predicated region
      $region37: #{compute_all.33} parent=27 // pred_check
        %p1124 = pneg %p139
      $region38: #{compute_all.33} parent=27 // pred_check_branch
        %1126 = sbr.rel (%p1124) target = $region40
      $region39: #{compute_all.33} parent=27 // pred_region
        _
      $region40: #{compute_all.33} parent=27 // pred_fallthru
        _
      // Predicated region
      $region41: #{compute_all.33} parent=27 // pred_check
        %p1127 = pneg %p165
      $region42: #{compute_all.33} parent=27 // pred_check_branch
        %1129 = sbr.rel (%p1127) target = $region44
      $region43: #{compute_all.33} parent=27 // pred_region
        _
      $region44: #{compute_all.33} parent=27 // pred_fallthru
        _
    $region28: #{compute_all.33} parent=5 // pred_fallthru
      _
    %p1130 = scmp.le.s32.totalorder 2, %s12
    // Predicated region
    $region45: #{compute_all.33} parent=5 // pred_check
      %p1131 = pneg %p1130
    $region46: #{compute_all.33} parent=5 // pred_check_branch
      %1133 = sbr.rel (%p1131) target = $region48
    $region47: #{compute_all.33} parent=5 // pred_region
      %s1134 = ssub.s32 %s12, 2
      // Predicated region
      $region49: #{compute_all.33} parent=47 // pred_check
        %p1135 = pneg %p93
      $region50: #{compute_all.33} parent=47 // pred_check_branch
        %1137 = sbr.rel (%p1135) target = $region52
      $region51: #{compute_all.33} parent=47 // pred_region
        %p1138 = scmp.lt.s32.totalorder %s18, 1
        %s1139 = scalar_select %p1138, %s18, 1
        %s1140 = scalar_lea.vmem %s2, %s1139
      $region52: #{compute_all.33} parent=47 // pred_fallthru
        _
      // Predicated region
      $region53: #{compute_all.33} parent=47 // pred_check
        %p1141 = pneg %p119
      $region54: #{compute_all.33} parent=47 // pred_check_branch
        %1143 = sbr.rel (%p1141) target = $region56
      $region55: #{compute_all.33} parent=47 // pred_region
        %p1144 = scmp.lt.s32.totalorder %s18, 1
        %s1145 = scalar_select %p1144, %s18, 1
        %s1146 = scalar_lea.vmem %s3, %s1145
      $region56: #{compute_all.33} parent=47 // pred_fallthru
        _
      // Predicated region
      $region57: #{compute_all.33} parent=47 // pred_check
        %p1147 = pneg %p145
      $region58: #{compute_all.33} parent=47 // pred_check_branch
        %1149 = sbr.rel (%p1147) target = $region60
      $region59: #{compute_all.33} parent=47 // pred_region
        %p1150 = scmp.lt.s32.totalorder %s18, 1
        %s1151 = scalar_select %p1150, %s18, 1
        %s1152 = scalar_lea.vmem %s4, %s1151
      $region60: #{compute_all.33} parent=47 // pred_fallthru
        _
      // Predicated region
      $region61: #{compute_all.33} parent=47 // pred_check
        %p1153 = pneg %p171
      $region62: #{compute_all.33} parent=47 // pred_check_branch
        %1155 = sbr.rel (%p1153) target = $region64
      $region63: #{compute_all.33} parent=47 // pred_region
        %p1156 = scmp.lt.s32.totalorder %s18, 1
        %s1157 = scalar_select %p1156, %s18, 1
        %s1158 = scalar_lea.vmem %s5, %s1157
      $region64: #{compute_all.33} parent=47 // pred_fallthru
        _
    $region48: #{compute_all.33} parent=5 // pred_fallthru
      _
  $region6: #{compute_all.33} parent=0 // loop_footer
    %s16 = sadd.s32 1, %s12
  $region7: #{compute_all.33} parent=0 // loop_footer_branch
    %11 = sbr.rel target = $region3
  $region8: #{compute_all.33} parent=0 // loop_exit
    _

</llo_original>
